<compile_context>
chip_gen: v5e
topology: v5e:2x2
jax: 0.10.0
libtpu: 0.0.40
codegen_flags: <defaults>
</compile_context>

<pallas_src>
import numpy as np

import jax
import jax.numpy as jnp
from jax import lax
from jax.experimental import pallas as pl
from jax.experimental.pallas import tpu as pltpu


# ----------------------------------------------------------------------------
# Host-side constants: interior masks and 0/1 selection matrices (numpy, once).
# ----------------------------------------------------------------------------

def _interior_mask(H, W):
    Hp, Wp = H + 2, W + 2
    m = np.zeros((Hp, Wp), np.float32)
    m[1:H + 1, 1:W + 1] = 1.0
    return jnp.asarray(m.reshape(1, Hp * Wp))


def _pool_select(H, W):
    """(P_fine, P_coarse): picks the top-left of every 2x2 window and drops it
    at the matching *padded* coarse flat position (border columns stay 0)."""
    Hp, Wp = H + 2, W + 2
    Hc, Wc = H // 2, W // 2
    Hcp, Wcp = Hc + 2, Wc + 2
    D = np.zeros((Hp * Wp, Hcp * Wcp), np.float32)
    for ic in range(Hc):
        for jc in range(Wc):
            D[(2 * ic + 1) * Wp + (2 * jc + 1), (ic + 1) * Wcp + (jc + 1)] = 1.0
    return jnp.asarray(D)


def _upsample_select(H, W):
    """(4, P_in, P_out): scatters the 4 parity phases of a stride-2 transpose
    conv into the 2x-larger padded flat output plane."""
    Hp, Wp = H + 2, W + 2
    Hop, Wop = 2 * H + 2, 2 * W + 2
    Pin, Pout = Hp * Wp, Hop * Wop
    U = np.zeros((4, Pin, Pout), np.float32)
    for k, (py, px) in enumerate(((0, 0), (0, 1), (1, 0), (1, 1))):
        for i in range(H):
            for j in range(W):
                U[k, (i + 1) * Wp + (j + 1),
                  (2 * i + 1 + py) * Wop + (2 * j + 1 + px)] = 1.0
    return jnp.asarray(U)


# ----------------------------------------------------------------------------
# The fused UNet kernel.
# ----------------------------------------------------------------------------

def _make_unet_kernel(H, W):
    wps = (W + 2, W // 2 + 2, W // 4 + 2, W // 8 + 2)

    def _shifted(x, shifts, wp):
        """Views of the zero-haloed flat activation shifted by `s` lanes
        (shifted[p] == x[p + s] for every interior position p)."""
        c, p = x.shape
        m = wp + 1
        z = jnp.zeros((c, m), x.dtype)
        xe = jnp.concatenate([z, x, z], axis=1)
        return [xe[:, m + s:m + s + p] for s in shifts]

    def _dot(a, b):
        return jnp.dot(a, b, preferred_element_type=jnp.float32)

    def conv3x3(x, wp, w_ref, b_ref, mask):
        """'same' 3x3 conv as one im2col contraction: (Co,9Ci) @ (9Ci,P)."""
        shifts = [dy * wp + dx for dy in (-1, 0, 1) for dx in (-1, 0, 1)]
        patches = jnp.concatenate(_shifted(x, shifts, wp), axis=0)
        return (_dot(w_ref[...], patches) + b_ref[...]) * mask

    def bn_relu(x, s_ref, t_ref, mask):
        return jnp.maximum(x * s_ref[...] + t_ref[...], 0.0) * mask

    def maxpool2x2(x, wp, d_ref):
        a, b, c, d = _shifted(x, (0, 1, wp, wp + 1), wp)
        m = jnp.maximum(jnp.maximum(a, b), jnp.maximum(c, d))
        return _dot(m, d_ref[...])

    def conv_t3x3_s2(x, wp, wt_ref, bt_ref, u_ref, mask_out):
        """ConvTranspose2d(k=3, stride=2, pad=1, output_pad=1) by parity
        decomposition; wt_ref holds the spatially-flipped taps (3,3,Co,Ci)."""
        x00, x01, x10, x11 = _shifted(x, (0, 1, wp, wp + 1), wp)
        ph = (
            _dot(wt_ref[1, 1], x00),                                    # even/even
            _dot(wt_ref[1, 0], x00) + _dot(wt_ref[1, 2], x01),          # even/odd
            _dot(wt_ref[0, 1], x00) + _dot(wt_ref[2, 1], x10),          # odd/even
            _dot(wt_ref[0, 0], x00) + _dot(wt_ref[0, 2], x01)
            + _dot(wt_ref[2, 0], x10) + _dot(wt_ref[2, 2], x11),        # odd/odd
        )
        y = _dot(ph[0], u_ref[0])
        for k in (1, 2, 3):
            y = y + _dot(ph[k], u_ref[k])
        return (y + bt_ref[...]) * mask_out

    def kernel(x_ref, *refs):
        (s1a, t1a, w1a, b1a, s1b, t1b, w1b, b1b,
         s2a, t2a, w2a, b2a, s2b, t2b, w2b, b2b,
         s3a, t3a, w3a, b3a, s3b, t3b, w3b, b3b,
         sma, tma, wma, bma, smb, tmb, wmb, bmb,
         wtm, btm,
         w6a, b6a, w6b, b6b, wt6, bt6,
         w7a, b7a, w7b, b7b, wt7, bt7,
         w9, b9,
         m0r, m1r, m2r, m3r,
         d0r, d1r, d2r,
         u3r, u2r, u1r,
         out_ref) = refs

        wp0, wp1, wp2, wp3 = wps
        m0, m1, m2, m3 = m0r[...], m1r[...], m2r[...], m3r[...]

        x0 = x_ref[0]                                            # (C, P0)

        # ---- fc1: DownSample(C -> F) -------------------------------------
        a = bn_relu(x0, s1a, t1a, m0)
        a = conv3x3(a, wp0, w1a, b1a, m0)
        a = bn_relu(a, s1b, t1b, m0)
        conv1 = conv3x3(a, wp0, w1b, b1b, m0)
        pool1 = maxpool2x2(conv1, wp0, d0r)

        # ---- fc2: DownSample(F -> 2F) ------------------------------------
        a = bn_relu(pool1, s2a, t2a, m1)
        a = conv3x3(a, wp1, w2a, b2a, m1)
        a = bn_relu(a, s2b, t2b, m1)
        conv2 = conv3x3(a, wp1, w2b, b2b, m1)
        pool2 = maxpool2x2(conv2, wp1, d1r)

        # ---- fc3: DownSample(2F -> 4F) -----------------------------------
        a = bn_relu(pool2, s3a, t3a, m2)
        a = conv3x3(a, wp2, w3a, b3a, m2)
        a = bn_relu(a, s3b, t3b, m2)
        conv3 = conv3x3(a, wp2, w3b, b3b, m2)
        pool3 = maxpool2x2(conv3, wp2, d2r)

        # ---- middle (down then transpose-conv up) ------------------------
        a = bn_relu(pool3, sma, tma, m3)
        a = conv3x3(a, wp3, wma, bma, m3)
        a = bn_relu(a, smb, tmb, m3)
        mid = conv3x3(a, wp3, wmb, bmb, m3)
        mid_up = conv_t3x3_s2(mid, wp3, wtm, btm, u3r, m2)

        # ---- fc6: UpSample(8F -> 4F) on concat(conv3, mid_up) -------------
        a = jnp.concatenate([conv3, mid_up], axis=0)
        a = conv3x3(a, wp2, w6a, b6a, m2)
        a = conv3x3(a, wp2, w6b, b6b, m2)
        deconv2 = conv_t3x3_s2(a, wp2, wt6, bt6, u2r, m1)

        # ---- fc7: UpSample(4F -> 2F) on concat(conv2, deconv2) ------------
        a = jnp.concatenate([conv2, deconv2], axis=0)
        a = conv3x3(a, wp1, w7a, b7a, m1)
        a = conv3x3(a, wp1, w7b, b7b, m1)
        deconv3 = conv_t3x3_s2(a, wp1, wt7, bt7, u1r, m0)

        # ---- fc9: 1x1 conv + sigmoid on concat(conv1, deconv3) ------------
        a = jnp.concatenate([conv1, deconv3], axis=0)
        logits = jnp.dot(w9[...], a, preferred_element_type=jnp.float32) + b9[...]
        out_ref[0] = (1.0 / (1.0 + jnp.exp(-logits))).astype(out_ref.dtype)

    return kernel


# ----------------------------------------------------------------------------
# Parameter handling (PyTorch layouts -> kernel layouts).
# ----------------------------------------------------------------------------

def pack_kernel_inputs(params, H, W):
    def conv2d_w(w):            # (Co,Ci,3,3) -> (Co, 9*Ci), tap-major
        co, ci = w.shape[0], w.shape[1]
        return jnp.transpose(w, (0, 2, 3, 1)).reshape(co, 9 * ci)

    def conv_t_w(w):            # (Ci,Co,3,3) -> spatially flipped (3,3,Co,Ci)
        return jnp.transpose(w[:, :, ::-1, ::-1], (2, 3, 1, 0))

    def col(v):
        return v.reshape(-1, 1)

    inputs = []
    for name in ("fc1", "fc2", "fc3", "mid"):
        d = params[name]
        inputs += [col(d["s1"]), col(d["t1"]), conv2d_w(d["w1"]), col(d["b1"]),
                   col(d["s2"]), col(d["t2"]), conv2d_w(d["w2"]), col(d["b2"])]
    inputs += [conv_t_w(params["mid_up"]["wt"]), col(params["mid_up"]["bt"])]
    for name in ("fc6", "fc7"):
        d = params[name]
        inputs += [conv2d_w(d["w1"]), col(d["b1"]), conv2d_w(d["w2"]), col(d["b2"]),
                   conv_t_w(d["wt"]), col(d["bt"])]
    inputs += [params["fc9"]["w"].reshape(2, -1), col(params["fc9"]["b"])]

    sizes = [(H, W), (H // 2, W // 2), (H // 4, W // 4), (H // 8, W // 8)]
    inputs += [_interior_mask(h, w) for (h, w) in sizes]
    inputs += [_pool_select(h, w) for (h, w) in sizes[:3]]
    inputs += [_upsample_select(*sizes[3]), _upsample_select(*sizes[2]),
               _upsample_select(*sizes[1])]
    return inputs


def init_params(key, C, F):
    state = [key]

    def nk():
        state[0], sub = jax.random.split(state[0])
        return sub

    def conv_w(ci, co):
        return jax.random.normal(nk(), (co, ci, 3, 3), jnp.float32) * (0.5 / (3.0 * ci ** 0.5))

    def conv_t_w(ci, co):
        return jax.random.normal(nk(), (ci, co, 3, 3), jnp.float32) * (0.5 / (3.0 * ci ** 0.5))

    def vec(c):
        return jax.random.normal(nk(), (c,), jnp.float32) * 0.1

    def bn(c):  # folded inference-mode BatchNorm: y = x*scale + shift
        gamma = 1.0 + 0.1 * jax.random.normal(nk(), (c,), jnp.float32)
        beta = 0.1 * jax.random.normal(nk(), (c,), jnp.float32)
        mean = 0.1 * jax.random.normal(nk(), (c,), jnp.float32)
        var = 0.5 + jnp.abs(jax.random.normal(nk(), (c,), jnp.float32))
        scale = gamma * lax.rsqrt(var + 1e-5)
        return scale, beta - mean * scale

    def down(ci, co):
        s1, t1 = bn(ci)
        s2, t2 = bn(co)
        return dict(s1=s1, t1=t1, w1=conv_w(ci, co), b1=vec(co),
                    s2=s2, t2=t2, w2=conv_w(co, co), b2=vec(co))

    def up(ci, co):
        return dict(w1=conv_w(ci, co), b1=vec(co),
                    w2=conv_w(co, co), b2=vec(co),
                    wt=conv_t_w(co, co // 2), bt=vec(co // 2))

    return {
        "fc1": down(C, F),
        "fc2": down(F, 2 * F),
        "fc3": down(2 * F, 4 * F),
        "mid": down(4 * F, 8 * F),
        "mid_up": dict(wt=conv_t_w(8 * F, 4 * F), bt=vec(4 * F)),
        "fc6": up(8 * F, 4 * F),
        "fc7": up(4 * F, 2 * F),
        "fc9": dict(w=jax.random.normal(nk(), (2, 2 * F, 1, 1), jnp.float32) * 0.2,
                    b=vec(2)),
    }


# ----------------------------------------------------------------------------
# Wrapper around the single pallas_call.
# ----------------------------------------------------------------------------

def _cost_estimate(N, C, F, H, W, in_bytes, out_bytes):
    def c3(ci, co, h, w):
        return 2 * 9 * ci * co * h * w
    h1, w1, h2, w2, h3, w3 = H // 2, W // 2, H // 4, W // 4, H // 8, W // 8
    fl = (c3(C, F, H, W) + c3(F, F, H, W)
          + c3(F, 2 * F, h1, w1) + c3(2 * F, 2 * F, h1, w1)
          + c3(2 * F, 4 * F, h2, w2) + c3(4 * F, 4 * F, h2, w2)
          + c3(4 * F, 8 * F, h3, w3) + c3(8 * F, 8 * F, h3, w3)
          + c3(8 * F, 4 * F, h3, w3)
          + c3(8 * F, 4 * F, h2, w2) + c3(4 * F, 4 * F, h2, w2) + c3(4 * F, 2 * F, h2, w2)
          + c3(4 * F, 2 * F, h1, w1) + c3(2 * F, 2 * F, h1, w1) + c3(2 * F, F, h1, w1)
          + 2 * 2 * (2 * F) * H * W)
    p0, p1, p2, p3 = ((H + 2) * (W + 2), (h1 + 2) * (w1 + 2),
                      (h2 + 2) * (w2 + 2), (h3 + 2) * (w3 + 2))
    fl += 2 * (F * p0 * p1 + 2 * F * p1 * p2 + 4 * F * p2 * p3)          # pool selects
    fl += 2 * 4 * (4 * F * p3 * p2 + 2 * F * p2 * p1 + F * p1 * p0)      # phase scatters
    return pl.CostEstimate(flops=int(N * fl),
                           transcendentals=int(N * 2 * H * W),
                           bytes_accessed=int(in_bytes + out_bytes))


def unet_forward(x_nchw, kernel_inputs):
    """UNet.forward — NCHW float32 in, (N, 2, H, W) float32 out."""
    N, C, H, W = x_nchw.shape
    assert H % 8 == 0 and W % 8 == 0, "H and W must be divisible by 8"
    Hp, Wp = H + 2, W + 2
    P0 = Hp * Wp
    F = kernel_inputs[2].shape[0]          # first conv weight is (F, 9*C)

    # One zero-pad + flatten of the network input (channel-major flat layout).
    xp = jnp.pad(x_nchw, ((0, 0), (0, 0), (1, 1), (1, 1))).reshape(N, C, P0)

    kernel = _make_unet_kernel(H, W)

    def _const_spec(arr):
        nd = arr.ndim
        return pl.BlockSpec(arr.shape, lambda n, _z=(0,) * nd: _z)

    in_specs = [pl.BlockSpec((1, C, P0), lambda n: (n, 0, 0))]
    in_specs += [_const_spec(a) for a in kernel_inputs]

    in_bytes = x_nchw.size * x_nchw.dtype.itemsize + sum(
        a.size * a.dtype.itemsize for a in kernel_inputs)
    out_bytes = N * 2 * P0 * 4

    out_flat = pl.pallas_call(
        kernel,
        out_shape=jax.ShapeDtypeStruct((N, 2, P0), jnp.float32),
        grid=(N,),
        in_specs=in_specs,
        out_specs=pl.BlockSpec((1, 2, P0), lambda n: (n, 0, 0)),
        compiler_params=pltpu.CompilerParams(
            dimension_semantics=("parallel",)),
        cost_estimate=_cost_estimate(N, C, F, H, W, in_bytes, out_bytes),
    )(xp, *kernel_inputs)

    return out_flat.reshape(N, 2, Hp, Wp)[:, :, 1:H + 1, 1:W + 1]


# ----------------------------------------------------------------------------
# Pure-JAX (lax) reference for correctness checking.
# ----------------------------------------------------------------------------

def unet_reference(x, params):
    dn = ("NCHW", "OIHW", "NCHW")

    def conv(x, w, b):
        y = lax.conv_general_dilated(x, w, (1, 1), "SAME", dimension_numbers=dn)
        return y + b.reshape(1, -1, 1, 1)

    def conv_t(x, w, b):   # ConvTranspose2d(k=3, s=2, p=1, output_padding=1)
        w_flip = jnp.transpose(w[:, :, ::-1, ::-1], (1, 0, 2, 3))
        y = lax.conv_general_dilated(x, w_flip, (1, 1), padding=((1, 2), (1, 2)),
                                     lhs_dilation=(2, 2), dimension_numbers=dn)
        return y + b.reshape(1, -1, 1, 1)

    def bn_relu(x, s, t):
        return jnp.maximum(x * s.reshape(1, -1, 1, 1) + t.reshape(1, -1, 1, 1), 0.0)

    def pool(x):
        return lax.reduce_window(x, -jnp.inf, lax.max, (1, 1, 2, 2), (1, 1, 2, 2), "VALID")

    def down(x, d):
        y = bn_relu(x, d["s1"], d["t1"])
        y = conv(y, d["w1"], d["b1"])
        y = bn_relu(y, d["s2"], d["t2"])
        y = conv(y, d["w2"], d["b2"])
        return y, pool(y)

    def up(x, d):
        y = conv(x, d["w1"], d["b1"])
        y = conv(y, d["w2"], d["b2"])
        return conv_t(y, d["wt"], d["bt"])

    conv1, pool1 = down(x, params["fc1"])
    conv2, pool2 = down(pool1, params["fc2"])
    conv3, pool3 = down(pool2, params["fc3"])

    m = params["mid"]
    y = bn_relu(pool3, m["s1"], m["t1"])
    y = conv(y, m["w1"], m["b1"])
    y = bn_relu(y, m["s2"], m["t2"])
    middle_down = conv(y, m["w2"], m["b2"])
    middle_up = conv_t(middle_down, params["mid_up"]["wt"], params["mid_up"]["bt"])

    deconv2 = up(jnp.concatenate([conv3, middle_up], axis=1), params["fc6"])
    deconv3 = up(jnp.concatenate([conv2, deconv2], axis=1), params["fc7"])

    cat4 = jnp.concatenate([conv1, deconv3], axis=1)
    logits = lax.conv_general_dilated(cat4, params["fc9"]["w"], (1, 1), "VALID",
                                      dimension_numbers=dn)
    logits = logits + params["fc9"]["b"].reshape(1, -1, 1, 1)
    return jax.nn.sigmoid(logits)


if __name__ == "__main__":
    key = jax.random.PRNGKey(0)
    kx, kp = jax.random.split(key)

    N, C, H, W = 2, 4, 16, 16
    F = 8

    x = jax.random.normal(kx, (N, C, H, W), jnp.float32)
    params = init_params(kp, C, F)
    kernel_inputs = pack_kernel_inputs(params, H, W)

    fwd = jax.jit(unet_forward)
    out = jax.block_until_ready(fwd(x, kernel_inputs))
    assert out.shape == (N, 2, H, W), out.shape

    ref = jax.block_until_ready(unet_reference(x, params))
    if not jnp.allclose(out, ref, atol=2e-4, rtol=2e-4):
        err = float(jnp.max(jnp.abs(out - ref)))
        raise AssertionError(
            f"Pallas UNet output mismatch vs lax reference (max abs err {err:.3e})")

    print("KERNEL_OK")
</pallas_src>

<mosaic_0001>
module attributes {stable_mosaic.version = 11 : i64} {
  func.func @kernel(%arg0: i32, %arg1: memref<1x4x324xf32, #tpu.memory_space<vmem>>, %arg2: memref<4x1xf32, #tpu.memory_space<vmem>>, %arg3: memref<4x1xf32, #tpu.memory_space<vmem>>, %arg4: memref<8x36xf32, #tpu.memory_space<vmem>>, %arg5: memref<8x1xf32, #tpu.memory_space<vmem>>, %arg6: memref<8x1xf32, #tpu.memory_space<vmem>>, %arg7: memref<8x1xf32, #tpu.memory_space<vmem>>, %arg8: memref<8x72xf32, #tpu.memory_space<vmem>>, %arg9: memref<8x1xf32, #tpu.memory_space<vmem>>, %arg10: memref<8x1xf32, #tpu.memory_space<vmem>>, %arg11: memref<8x1xf32, #tpu.memory_space<vmem>>, %arg12: memref<16x72xf32, #tpu.memory_space<vmem>>, %arg13: memref<16x1xf32, #tpu.memory_space<vmem>>, %arg14: memref<16x1xf32, #tpu.memory_space<vmem>>, %arg15: memref<16x1xf32, #tpu.memory_space<vmem>>, %arg16: memref<16x144xf32, #tpu.memory_space<vmem>>, %arg17: memref<16x1xf32, #tpu.memory_space<vmem>>, %arg18: memref<16x1xf32, #tpu.memory_space<vmem>>, %arg19: memref<16x1xf32, #tpu.memory_space<vmem>>, %arg20: memref<32x144xf32, #tpu.memory_space<vmem>>, %arg21: memref<32x1xf32, #tpu.memory_space<vmem>>, %arg22: memref<32x1xf32, #tpu.memory_space<vmem>>, %arg23: memref<32x1xf32, #tpu.memory_space<vmem>>, %arg24: memref<32x288xf32, #tpu.memory_space<vmem>>, %arg25: memref<32x1xf32, #tpu.memory_space<vmem>>, %arg26: memref<32x1xf32, #tpu.memory_space<vmem>>, %arg27: memref<32x1xf32, #tpu.memory_space<vmem>>, %arg28: memref<64x288xf32, #tpu.memory_space<vmem>>, %arg29: memref<64x1xf32, #tpu.memory_space<vmem>>, %arg30: memref<64x1xf32, #tpu.memory_space<vmem>>, %arg31: memref<64x1xf32, #tpu.memory_space<vmem>>, %arg32: memref<64x576xf32, #tpu.memory_space<vmem>>, %arg33: memref<64x1xf32, #tpu.memory_space<vmem>>, %arg34: memref<3x3x32x64xf32, #tpu.memory_space<vmem>>, %arg35: memref<32x1xf32, #tpu.memory_space<vmem>>, %arg36: memref<32x576xf32, #tpu.memory_space<vmem>>, %arg37: memref<32x1xf32, #tpu.memory_space<vmem>>, %arg38: memref<32x288xf32, #tpu.memory_space<vmem>>, %arg39: memref<32x1xf32, #tpu.memory_space<vmem>>, %arg40: memref<3x3x16x32xf32, #tpu.memory_space<vmem>>, %arg41: memref<16x1xf32, #tpu.memory_space<vmem>>, %arg42: memref<16x288xf32, #tpu.memory_space<vmem>>, %arg43: memref<16x1xf32, #tpu.memory_space<vmem>>, %arg44: memref<16x144xf32, #tpu.memory_space<vmem>>, %arg45: memref<16x1xf32, #tpu.memory_space<vmem>>, %arg46: memref<3x3x8x16xf32, #tpu.memory_space<vmem>>, %arg47: memref<8x1xf32, #tpu.memory_space<vmem>>, %arg48: memref<2x16xf32, #tpu.memory_space<vmem>>, %arg49: memref<2x1xf32, #tpu.memory_space<vmem>>, %arg50: memref<1x324xf32, #tpu.memory_space<vmem>>, %arg51: memref<1x100xf32, #tpu.memory_space<vmem>>, %arg52: memref<1x36xf32, #tpu.memory_space<vmem>>, %arg53: memref<1x16xf32, #tpu.memory_space<vmem>>, %arg54: memref<324x100xf32, #tpu.memory_space<vmem>>, %arg55: memref<100x36xf32, #tpu.memory_space<vmem>>, %arg56: memref<36x16xf32, #tpu.memory_space<vmem>>, %arg57: memref<4x16x36xf32, #tpu.memory_space<vmem>>, %arg58: memref<4x36x100xf32, #tpu.memory_space<vmem>>, %arg59: memref<4x100x324xf32, #tpu.memory_space<vmem>>, %arg60: memref<1x2x324xf32, #tpu.memory_space<vmem>>) attributes {dimension_semantics = [#tpu.dimension_semantics<parallel>], iteration_bounds = array<i64: 2>, scalar_prefetch = 0 : i64, scratch_operands = 0 : i64, tpu.core_type = #tpu.core_type<tc>, window_params = [{transform_indices = @transform_0, window_bounds = array<i64: 1, 4, 324>}, {pipeline_mode = #tpu.pipeline_mode<synchronous>, transform_indices = @transform_1, window_bounds = array<i64: 4, 1>}, {pipeline_mode = #tpu.pipeline_mode<synchronous>, transform_indices = @transform_2, window_bounds = array<i64: 4, 1>}, {pipeline_mode = #tpu.pipeline_mode<synchronous>, transform_indices = @transform_3, window_bounds = array<i64: 8, 36>}, {pipeline_mode = #tpu.pipeline_mode<synchronous>, transform_indices = @transform_4, window_bounds = array<i64: 8, 1>}, {pipeline_mode = #tpu.pipeline_mode<synchronous>, transform_indices = @transform_5, window_bounds = array<i64: 8, 1>}, {pipeline_mode = #tpu.pipeline_mode<synchronous>, transform_indices = @transform_6, window_bounds = array<i64: 8, 1>}, {pipeline_mode = #tpu.pipeline_mode<synchronous>, transform_indices = @transform_7, window_bounds = array<i64: 8, 72>}, {pipeline_mode = #tpu.pipeline_mode<synchronous>, transform_indices = @transform_8, window_bounds = array<i64: 8, 1>}, {pipeline_mode = #tpu.pipeline_mode<synchronous>, transform_indices = @transform_9, window_bounds = array<i64: 8, 1>}, {pipeline_mode = #tpu.pipeline_mode<synchronous>, transform_indices = @transform_10, window_bounds = array<i64: 8, 1>}, {pipeline_mode = #tpu.pipeline_mode<synchronous>, transform_indices = @transform_11, window_bounds = array<i64: 16, 72>}, {pipeline_mode = #tpu.pipeline_mode<synchronous>, transform_indices = @transform_12, window_bounds = array<i64: 16, 1>}, {pipeline_mode = #tpu.pipeline_mode<synchronous>, transform_indices = @transform_13, window_bounds = array<i64: 16, 1>}, {pipeline_mode = #tpu.pipeline_mode<synchronous>, transform_indices = @transform_14, window_bounds = array<i64: 16, 1>}, {pipeline_mode = #tpu.pipeline_mode<synchronous>, transform_indices = @transform_15, window_bounds = array<i64: 16, 144>}, {pipeline_mode = #tpu.pipeline_mode<synchronous>, transform_indices = @transform_16, window_bounds = array<i64: 16, 1>}, {pipeline_mode = #tpu.pipeline_mode<synchronous>, transform_indices = @transform_17, window_bounds = array<i64: 16, 1>}, {pipeline_mode = #tpu.pipeline_mode<synchronous>, transform_indices = @transform_18, window_bounds = array<i64: 16, 1>}, {pipeline_mode = #tpu.pipeline_mode<synchronous>, transform_indices = @transform_19, window_bounds = array<i64: 32, 144>}, {pipeline_mode = #tpu.pipeline_mode<synchronous>, transform_indices = @transform_20, window_bounds = array<i64: 32, 1>}, {pipeline_mode = #tpu.pipeline_mode<synchronous>, transform_indices = @transform_21, window_bounds = array<i64: 32, 1>}, {pipeline_mode = #tpu.pipeline_mode<synchronous>, transform_indices = @transform_22, window_bounds = array<i64: 32, 1>}, {pipeline_mode = #tpu.pipeline_mode<synchronous>, transform_indices = @transform_23, window_bounds = array<i64: 32, 288>}, {pipeline_mode = #tpu.pipeline_mode<synchronous>, transform_indices = @transform_24, window_bounds = array<i64: 32, 1>}, {pipeline_mode = #tpu.pipeline_mode<synchronous>, transform_indices = @transform_25, window_bounds = array<i64: 32, 1>}, {pipeline_mode = #tpu.pipeline_mode<synchronous>, transform_indices = @transform_26, window_bounds = array<i64: 32, 1>}, {pipeline_mode = #tpu.pipeline_mode<synchronous>, transform_indices = @transform_27, window_bounds = array<i64: 64, 288>}, {pipeline_mode = #tpu.pipeline_mode<synchronous>, transform_indices = @transform_28, window_bounds = array<i64: 64, 1>}, {pipeline_mode = #tpu.pipeline_mode<synchronous>, transform_indices = @transform_29, window_bounds = array<i64: 64, 1>}, {pipeline_mode = #tpu.pipeline_mode<synchronous>, transform_indices = @transform_30, window_bounds = array<i64: 64, 1>}, {pipeline_mode = #tpu.pipeline_mode<synchronous>, transform_indices = @transform_31, window_bounds = array<i64: 64, 576>}, {pipeline_mode = #tpu.pipeline_mode<synchronous>, transform_indices = @transform_32, window_bounds = array<i64: 64, 1>}, {pipeline_mode = #tpu.pipeline_mode<synchronous>, transform_indices = @transform_33, window_bounds = array<i64: 3, 3, 32, 64>}, {pipeline_mode = #tpu.pipeline_mode<synchronous>, transform_indices = @transform_34, window_bounds = array<i64: 32, 1>}, {pipeline_mode = #tpu.pipeline_mode<synchronous>, transform_indices = @transform_35, window_bounds = array<i64: 32, 576>}, {pipeline_mode = #tpu.pipeline_mode<synchronous>, transform_indices = @transform_36, window_bounds = array<i64: 32, 1>}, {pipeline_mode = #tpu.pipeline_mode<synchronous>, transform_indices = @transform_37, window_bounds = array<i64: 32, 288>}, {pipeline_mode = #tpu.pipeline_mode<synchronous>, transform_indices = @transform_38, window_bounds = array<i64: 32, 1>}, {pipeline_mode = #tpu.pipeline_mode<synchronous>, transform_indices = @transform_39, window_bounds = array<i64: 3, 3, 16, 32>}, {pipeline_mode = #tpu.pipeline_mode<synchronous>, transform_indices = @transform_40, window_bounds = array<i64: 16, 1>}, {pipeline_mode = #tpu.pipeline_mode<synchronous>, transform_indices = @transform_41, window_bounds = array<i64: 16, 288>}, {pipeline_mode = #tpu.pipeline_mode<synchronous>, transform_indices = @transform_42, window_bounds = array<i64: 16, 1>}, {pipeline_mode = #tpu.pipeline_mode<synchronous>, transform_indices = @transform_43, window_bounds = array<i64: 16, 144>}, {pipeline_mode = #tpu.pipeline_mode<synchronous>, transform_indices = @transform_44, window_bounds = array<i64: 16, 1>}, {pipeline_mode = #tpu.pipeline_mode<synchronous>, transform_indices = @transform_45, window_bounds = array<i64: 3, 3, 8, 16>}, {pipeline_mode = #tpu.pipeline_mode<synchronous>, transform_indices = @transform_46, window_bounds = array<i64: 8, 1>}, {pipeline_mode = #tpu.pipeline_mode<synchronous>, transform_indices = @transform_47, window_bounds = array<i64: 2, 16>}, {pipeline_mode = #tpu.pipeline_mode<synchronous>, transform_indices = @transform_48, window_bounds = array<i64: 2, 1>}, {pipeline_mode = #tpu.pipeline_mode<synchronous>, transform_indices = @transform_49, window_bounds = array<i64: 1, 324>}, {pipeline_mode = #tpu.pipeline_mode<synchronous>, transform_indices = @transform_50, window_bounds = array<i64: 1, 100>}, {pipeline_mode = #tpu.pipeline_mode<synchronous>, transform_indices = @transform_51, window_bounds = array<i64: 1, 36>}, {pipeline_mode = #tpu.pipeline_mode<synchronous>, transform_indices = @transform_52, window_bounds = array<i64: 1, 16>}, {pipeline_mode = #tpu.pipeline_mode<synchronous>, transform_indices = @transform_53, window_bounds = array<i64: 324, 100>}, {pipeline_mode = #tpu.pipeline_mode<synchronous>, transform_indices = @transform_54, window_bounds = array<i64: 100, 36>}, {pipeline_mode = #tpu.pipeline_mode<synchronous>, transform_indices = @transform_55, window_bounds = array<i64: 36, 16>}, {pipeline_mode = #tpu.pipeline_mode<synchronous>, transform_indices = @transform_56, window_bounds = array<i64: 4, 16, 36>}, {pipeline_mode = #tpu.pipeline_mode<synchronous>, transform_indices = @transform_57, window_bounds = array<i64: 4, 36, 100>}, {pipeline_mode = #tpu.pipeline_mode<synchronous>, transform_indices = @transform_58, window_bounds = array<i64: 4, 100, 324>}, {transform_indices = @transform_59, window_bounds = array<i64: 1, 2, 324>}]} {
    %c0 = arith.constant 0 : index
    %c0_0 = arith.constant 0 : index
    %0 = vector.load %arg50[%c0, %c0_0] : memref<1x324xf32, #tpu.memory_space<vmem>>, vector<1x324xf32>
    %c0_1 = arith.constant 0 : index
    %c0_2 = arith.constant 0 : index
    %1 = vector.load %arg51[%c0_1, %c0_2] : memref<1x100xf32, #tpu.memory_space<vmem>>, vector<1x100xf32>
    %c0_3 = arith.constant 0 : index
    %c0_4 = arith.constant 0 : index
    %2 = vector.load %arg52[%c0_3, %c0_4] : memref<1x36xf32, #tpu.memory_space<vmem>>, vector<1x36xf32>
    %c0_5 = arith.constant 0 : index
    %c0_6 = arith.constant 0 : index
    %3 = vector.load %arg53[%c0_5, %c0_6] : memref<1x16xf32, #tpu.memory_space<vmem>>, vector<1x16xf32>
    %c0_7 = arith.constant 0 : index
    %c0_8 = arith.constant 0 : index
    %c0_9 = arith.constant 0 : index
    %4 = vector.load %arg1[%c0_7, %c0_8, %c0_9] : memref<1x4x324xf32, #tpu.memory_space<vmem>>, vector<1x4x324xf32>
    %5 = vector.shape_cast %4 : vector<1x4x324xf32> to vector<4x324xf32>
    %c0_10 = arith.constant 0 : index
    %c0_11 = arith.constant 0 : index
    %6 = vector.load %arg2[%c0_10, %c0_11] : memref<4x1xf32, #tpu.memory_space<vmem>>, vector<4x1xf32>
    %7 = vector.broadcast %6 : vector<4x1xf32> to vector<4x324xf32>
    %8 = arith.mulf %5, %7 : vector<4x324xf32>
    %c0_12 = arith.constant 0 : index
    %c0_13 = arith.constant 0 : index
    %9 = vector.load %arg3[%c0_12, %c0_13] : memref<4x1xf32, #tpu.memory_space<vmem>>, vector<4x1xf32>
    %10 = vector.broadcast %9 : vector<4x1xf32> to vector<4x324xf32>
    %11 = arith.addf %8, %10 : vector<4x324xf32>
    %cst = arith.constant 0.000000e+00 : f32
    %12 = vector.broadcast %cst : f32 to vector<4x324xf32>
    %13 = arith.maximumf %11, %12 : vector<4x324xf32>
    %14 = vector.broadcast %0 : vector<1x324xf32> to vector<4x324xf32>
    %15 = arith.mulf %13, %14 : vector<4x324xf32>
    %cst_14 = arith.constant 0.000000e+00 : f32
    %16 = vector.broadcast %cst_14 : f32 to vector<4x19xf32>
    %17 = tpu.concatenate %16, %15, %16 in 1 : vector<4x19xf32>, vector<4x324xf32>, vector<4x19xf32> -> vector<4x362xf32>
    %18 = vector.extract_strided_slice %17 {offsets = [0, 0], sizes = [4, 324], strides = [1, 1]} : vector<4x362xf32> to vector<4x324xf32>
    %19 = vector.extract_strided_slice %17 {offsets = [0, 1], sizes = [4, 324], strides = [1, 1]} : vector<4x362xf32> to vector<4x324xf32>
    %20 = vector.extract_strided_slice %17 {offsets = [0, 2], sizes = [4, 324], strides = [1, 1]} : vector<4x362xf32> to vector<4x324xf32>
    %21 = vector.extract_strided_slice %17 {offsets = [0, 18], sizes = [4, 324], strides = [1, 1]} : vector<4x362xf32> to vector<4x324xf32>
    %22 = vector.extract_strided_slice %17 {offsets = [0, 19], sizes = [4, 324], strides = [1, 1]} : vector<4x362xf32> to vector<4x324xf32>
    %23 = vector.extract_strided_slice %17 {offsets = [0, 20], sizes = [4, 324], strides = [1, 1]} : vector<4x362xf32> to vector<4x324xf32>
    %24 = vector.extract_strided_slice %17 {offsets = [0, 36], sizes = [4, 324], strides = [1, 1]} : vector<4x362xf32> to vector<4x324xf32>
    %25 = vector.extract_strided_slice %17 {offsets = [0, 37], sizes = [4, 324], strides = [1, 1]} : vector<4x362xf32> to vector<4x324xf32>
    %26 = vector.extract_strided_slice %17 {offsets = [0, 38], sizes = [4, 324], strides = [1, 1]} : vector<4x362xf32> to vector<4x324xf32>
    %27 = tpu.concatenate %18, %19, %20, %21, %22, %23, %24, %25, %26 in 0 : vector<4x324xf32>, vector<4x324xf32>, vector<4x324xf32>, vector<4x324xf32>, vector<4x324xf32>, vector<4x324xf32>, vector<4x324xf32>, vector<4x324xf32>, vector<4x324xf32> -> vector<36x324xf32>
    %c0_15 = arith.constant 0 : index
    %c0_16 = arith.constant 0 : index
    %28 = vector.load %arg4[%c0_15, %c0_16] : memref<8x36xf32, #tpu.memory_space<vmem>>, vector<8x36xf32>
    %cst_17 = arith.constant dense<0.000000e+00> : vector<8x324xf32>
    %29 = tpu.matmul %28, %27, %cst_17 {dimension_numbers = #tpu.dot_dimension_numbers<[1], [0], [0], [1], [0, 0, 1, 1], [], []>} : vector<8x36xf32>, vector<36x324xf32>, vector<8x324xf32> -> vector<8x324xf32>
    %c0_18 = arith.constant 0 : index
    %c0_19 = arith.constant 0 : index
    %30 = vector.load %arg5[%c0_18, %c0_19] : memref<8x1xf32, #tpu.memory_space<vmem>>, vector<8x1xf32>
    %31 = vector.broadcast %30 : vector<8x1xf32> to vector<8x324xf32>
    %32 = arith.addf %29, %31 : vector<8x324xf32>
    %33 = vector.broadcast %0 : vector<1x324xf32> to vector<8x324xf32>
    %34 = arith.mulf %32, %33 : vector<8x324xf32>
    %c0_20 = arith.constant 0 : index
    %c0_21 = arith.constant 0 : index
    %35 = vector.load %arg6[%c0_20, %c0_21] : memref<8x1xf32, #tpu.memory_space<vmem>>, vector<8x1xf32>
    %36 = vector.broadcast %35 : vector<8x1xf32> to vector<8x324xf32>
    %37 = arith.mulf %34, %36 : vector<8x324xf32>
    %c0_22 = arith.constant 0 : index
    %c0_23 = arith.constant 0 : index
    %38 = vector.load %arg7[%c0_22, %c0_23] : memref<8x1xf32, #tpu.memory_space<vmem>>, vector<8x1xf32>
    %39 = vector.broadcast %38 : vector<8x1xf32> to vector<8x324xf32>
    %40 = arith.addf %37, %39 : vector<8x324xf32>
    %cst_24 = arith.constant 0.000000e+00 : f32
    %41 = vector.broadcast %cst_24 : f32 to vector<8x324xf32>
    %42 = arith.maximumf %40, %41 : vector<8x324xf32>
    %43 = vector.broadcast %0 : vector<1x324xf32> to vector<8x324xf32>
    %44 = arith.mulf %42, %43 : vector<8x324xf32>
    %cst_25 = arith.constant 0.000000e+00 : f32
    %45 = vector.broadcast %cst_25 : f32 to vector<8x19xf32>
    %46 = tpu.concatenate %45, %44, %45 in 1 : vector<8x19xf32>, vector<8x324xf32>, vector<8x19xf32> -> vector<8x362xf32>
    %47 = vector.extract_strided_slice %46 {offsets = [0, 0], sizes = [8, 324], strides = [1, 1]} : vector<8x362xf32> to vector<8x324xf32>
    %48 = vector.extract_strided_slice %46 {offsets = [0, 1], sizes = [8, 324], strides = [1, 1]} : vector<8x362xf32> to vector<8x324xf32>
    %49 = vector.extract_strided_slice %46 {offsets = [0, 2], sizes = [8, 324], strides = [1, 1]} : vector<8x362xf32> to vector<8x324xf32>
    %50 = vector.extract_strided_slice %46 {offsets = [0, 18], sizes = [8, 324], strides = [1, 1]} : vector<8x362xf32> to vector<8x324xf32>
    %51 = vector.extract_strided_slice %46 {offsets = [0, 19], sizes = [8, 324], strides = [1, 1]} : vector<8x362xf32> to vector<8x324xf32>
    %52 = vector.extract_strided_slice %46 {offsets = [0, 20], sizes = [8, 324], strides = [1, 1]} : vector<8x362xf32> to vector<8x324xf32>
    %53 = vector.extract_strided_slice %46 {offsets = [0, 36], sizes = [8, 324], strides = [1, 1]} : vector<8x362xf32> to vector<8x324xf32>
    %54 = vector.extract_strided_slice %46 {offsets = [0, 37], sizes = [8, 324], strides = [1, 1]} : vector<8x362xf32> to vector<8x324xf32>
    %55 = vector.extract_strided_slice %46 {offsets = [0, 38], sizes = [8, 324], strides = [1, 1]} : vector<8x362xf32> to vector<8x324xf32>
    %56 = tpu.concatenate %47, %48, %49, %50, %51, %52, %53, %54, %55 in 0 : vector<8x324xf32>, vector<8x324xf32>, vector<8x324xf32>, vector<8x324xf32>, vector<8x324xf32>, vector<8x324xf32>, vector<8x324xf32>, vector<8x324xf32>, vector<8x324xf32> -> vector<72x324xf32>
    %c0_26 = arith.constant 0 : index
    %c0_27 = arith.constant 0 : index
    %57 = vector.load %arg8[%c0_26, %c0_27] : memref<8x72xf32, #tpu.memory_space<vmem>>, vector<8x72xf32>
    %cst_28 = arith.constant dense<0.000000e+00> : vector<8x324xf32>
    %58 = tpu.matmul %57, %56, %cst_28 {dimension_numbers = #tpu.dot_dimension_numbers<[1], [0], [0], [1], [0, 0, 1, 1], [], []>} : vector<8x72xf32>, vector<72x324xf32>, vector<8x324xf32> -> vector<8x324xf32>
    %c0_29 = arith.constant 0 : index
    %c0_30 = arith.constant 0 : index
    %59 = vector.load %arg9[%c0_29, %c0_30] : memref<8x1xf32, #tpu.memory_space<vmem>>, vector<8x1xf32>
    %60 = vector.broadcast %59 : vector<8x1xf32> to vector<8x324xf32>
    %61 = arith.addf %58, %60 : vector<8x324xf32>
    %62 = vector.broadcast %0 : vector<1x324xf32> to vector<8x324xf32>
    %63 = arith.mulf %61, %62 : vector<8x324xf32>
    %cst_31 = arith.constant 0.000000e+00 : f32
    %64 = vector.broadcast %cst_31 : f32 to vector<8x19xf32>
    %65 = tpu.concatenate %64, %63, %64 in 1 : vector<8x19xf32>, vector<8x324xf32>, vector<8x19xf32> -> vector<8x362xf32>
    %66 = vector.extract_strided_slice %65 {offsets = [0, 19], sizes = [8, 324], strides = [1, 1]} : vector<8x362xf32> to vector<8x324xf32>
    %67 = vector.extract_strided_slice %65 {offsets = [0, 20], sizes = [8, 324], strides = [1, 1]} : vector<8x362xf32> to vector<8x324xf32>
    %68 = vector.extract_strided_slice %65 {offsets = [0, 37], sizes = [8, 324], strides = [1, 1]} : vector<8x362xf32> to vector<8x324xf32>
    %69 = vector.extract_strided_slice %65 {offsets = [0, 38], sizes = [8, 324], strides = [1, 1]} : vector<8x362xf32> to vector<8x324xf32>
    %70 = arith.maximumf %66, %67 : vector<8x324xf32>
    %71 = arith.maximumf %68, %69 : vector<8x324xf32>
    %72 = arith.maximumf %70, %71 : vector<8x324xf32>
    %c0_32 = arith.constant 0 : index
    %c0_33 = arith.constant 0 : index
    %73 = vector.load %arg54[%c0_32, %c0_33] : memref<324x100xf32, #tpu.memory_space<vmem>>, vector<324x100xf32>
    %cst_34 = arith.constant dense<0.000000e+00> : vector<8x100xf32>
    %74 = tpu.matmul %72, %73, %cst_34 {dimension_numbers = #tpu.dot_dimension_numbers<[1], [0], [0], [1], [0, 0, 1, 1], [], []>} : vector<8x324xf32>, vector<324x100xf32>, vector<8x100xf32> -> vector<8x100xf32>
    %c0_35 = arith.constant 0 : index
    %c0_36 = arith.constant 0 : index
    %75 = vector.load %arg10[%c0_35, %c0_36] : memref<8x1xf32, #tpu.memory_space<vmem>>, vector<8x1xf32>
    %76 = vector.broadcast %75 : vector<8x1xf32> to vector<8x100xf32>
    %77 = arith.mulf %74, %76 : vector<8x100xf32>
    %c0_37 = arith.constant 0 : index
    %c0_38 = arith.constant 0 : index
    %78 = vector.load %arg11[%c0_37, %c0_38] : memref<8x1xf32, #tpu.memory_space<vmem>>, vector<8x1xf32>
    %79 = vector.broadcast %78 : vector<8x1xf32> to vector<8x100xf32>
    %80 = arith.addf %77, %79 : vector<8x100xf32>
    %cst_39 = arith.constant 0.000000e+00 : f32
    %81 = vector.broadcast %cst_39 : f32 to vector<8x100xf32>
    %82 = arith.maximumf %80, %81 : vector<8x100xf32>
    %83 = vector.broadcast %1 : vector<1x100xf32> to vector<8x100xf32>
    %84 = arith.mulf %82, %83 : vector<8x100xf32>
    %cst_40 = arith.constant 0.000000e+00 : f32
    %85 = vector.broadcast %cst_40 : f32 to vector<8x11xf32>
    %86 = tpu.concatenate %85, %84, %85 in 1 : vector<8x11xf32>, vector<8x100xf32>, vector<8x11xf32> -> vector<8x122xf32>
    %87 = vector.extract_strided_slice %86 {offsets = [0, 0], sizes = [8, 100], strides = [1, 1]} : vector<8x122xf32> to vector<8x100xf32>
    %88 = vector.extract_strided_slice %86 {offsets = [0, 1], sizes = [8, 100], strides = [1, 1]} : vector<8x122xf32> to vector<8x100xf32>
    %89 = vector.extract_strided_slice %86 {offsets = [0, 2], sizes = [8, 100], strides = [1, 1]} : vector<8x122xf32> to vector<8x100xf32>
    %90 = vector.extract_strided_slice %86 {offsets = [0, 10], sizes = [8, 100], strides = [1, 1]} : vector<8x122xf32> to vector<8x100xf32>
    %91 = vector.extract_strided_slice %86 {offsets = [0, 11], sizes = [8, 100], strides = [1, 1]} : vector<8x122xf32> to vector<8x100xf32>
    %92 = vector.extract_strided_slice %86 {offsets = [0, 12], sizes = [8, 100], strides = [1, 1]} : vector<8x122xf32> to vector<8x100xf32>
    %93 = vector.extract_strided_slice %86 {offsets = [0, 20], sizes = [8, 100], strides = [1, 1]} : vector<8x122xf32> to vector<8x100xf32>
    %94 = vector.extract_strided_slice %86 {offsets = [0, 21], sizes = [8, 100], strides = [1, 1]} : vector<8x122xf32> to vector<8x100xf32>
    %95 = vector.extract_strided_slice %86 {offsets = [0, 22], sizes = [8, 100], strides = [1, 1]} : vector<8x122xf32> to vector<8x100xf32>
    %96 = tpu.concatenate %87, %88, %89, %90, %91, %92, %93, %94, %95 in 0 : vector<8x100xf32>, vector<8x100xf32>, vector<8x100xf32>, vector<8x100xf32>, vector<8x100xf32>, vector<8x100xf32>, vector<8x100xf32>, vector<8x100xf32>, vector<8x100xf32> -> vector<72x100xf32>
    %c0_41 = arith.constant 0 : index
    %c0_42 = arith.constant 0 : index
    %97 = vector.load %arg12[%c0_41, %c0_42] : memref<16x72xf32, #tpu.memory_space<vmem>>, vector<16x72xf32>
    %cst_43 = arith.constant dense<0.000000e+00> : vector<16x100xf32>
    %98 = tpu.matmul %97, %96, %cst_43 {dimension_numbers = #tpu.dot_dimension_numbers<[1], [0], [0], [1], [0, 0, 1, 1], [], []>} : vector<16x72xf32>, vector<72x100xf32>, vector<16x100xf32> -> vector<16x100xf32>
    %c0_44 = arith.constant 0 : index
    %c0_45 = arith.constant 0 : index
    %99 = vector.load %arg13[%c0_44, %c0_45] : memref<16x1xf32, #tpu.memory_space<vmem>>, vector<16x1xf32>
    %100 = vector.broadcast %99 : vector<16x1xf32> to vector<16x100xf32>
    %101 = arith.addf %98, %100 : vector<16x100xf32>
    %102 = vector.broadcast %1 : vector<1x100xf32> to vector<16x100xf32>
    %103 = arith.mulf %101, %102 : vector<16x100xf32>
    %c0_46 = arith.constant 0 : index
    %c0_47 = arith.constant 0 : index
    %104 = vector.load %arg14[%c0_46, %c0_47] : memref<16x1xf32, #tpu.memory_space<vmem>>, vector<16x1xf32>
    %105 = vector.broadcast %104 : vector<16x1xf32> to vector<16x100xf32>
    %106 = arith.mulf %103, %105 : vector<16x100xf32>
    %c0_48 = arith.constant 0 : index
    %c0_49 = arith.constant 0 : index
    %107 = vector.load %arg15[%c0_48, %c0_49] : memref<16x1xf32, #tpu.memory_space<vmem>>, vector<16x1xf32>
    %108 = vector.broadcast %107 : vector<16x1xf32> to vector<16x100xf32>
    %109 = arith.addf %106, %108 : vector<16x100xf32>
    %cst_50 = arith.constant 0.000000e+00 : f32
    %110 = vector.broadcast %cst_50 : f32 to vector<16x100xf32>
    %111 = arith.maximumf %109, %110 : vector<16x100xf32>
    %112 = vector.broadcast %1 : vector<1x100xf32> to vector<16x100xf32>
    %113 = arith.mulf %111, %112 : vector<16x100xf32>
    %cst_51 = arith.constant 0.000000e+00 : f32
    %114 = vector.broadcast %cst_51 : f32 to vector<16x11xf32>
    %115 = tpu.concatenate %114, %113, %114 in 1 : vector<16x11xf32>, vector<16x100xf32>, vector<16x11xf32> -> vector<16x122xf32>
    %116 = vector.extract_strided_slice %115 {offsets = [0, 0], sizes = [16, 100], strides = [1, 1]} : vector<16x122xf32> to vector<16x100xf32>
    %117 = vector.extract_strided_slice %115 {offsets = [0, 1], sizes = [16, 100], strides = [1, 1]} : vector<16x122xf32> to vector<16x100xf32>
    %118 = vector.extract_strided_slice %115 {offsets = [0, 2], sizes = [16, 100], strides = [1, 1]} : vector<16x122xf32> to vector<16x100xf32>
    %119 = vector.extract_strided_slice %115 {offsets = [0, 10], sizes = [16, 100], strides = [1, 1]} : vector<16x122xf32> to vector<16x100xf32>
    %120 = vector.extract_strided_slice %115 {offsets = [0, 11], sizes = [16, 100], strides = [1, 1]} : vector<16x122xf32> to vector<16x100xf32>
    %121 = vector.extract_strided_slice %115 {offsets = [0, 12], sizes = [16, 100], strides = [1, 1]} : vector<16x122xf32> to vector<16x100xf32>
    %122 = vector.extract_strided_slice %115 {offsets = [0, 20], sizes = [16, 100], strides = [1, 1]} : vector<16x122xf32> to vector<16x100xf32>
    %123 = vector.extract_strided_slice %115 {offsets = [0, 21], sizes = [16, 100], strides = [1, 1]} : vector<16x122xf32> to vector<16x100xf32>
    %124 = vector.extract_strided_slice %115 {offsets = [0, 22], sizes = [16, 100], strides = [1, 1]} : vector<16x122xf32> to vector<16x100xf32>
    %125 = tpu.concatenate %116, %117, %118, %119, %120, %121, %122, %123, %124 in 0 : vector<16x100xf32>, vector<16x100xf32>, vector<16x100xf32>, vector<16x100xf32>, vector<16x100xf32>, vector<16x100xf32>, vector<16x100xf32>, vector<16x100xf32>, vector<16x100xf32> -> vector<144x100xf32>
    %c0_52 = arith.constant 0 : index
    %c0_53 = arith.constant 0 : index
    %126 = vector.load %arg16[%c0_52, %c0_53] : memref<16x144xf32, #tpu.memory_space<vmem>>, vector<16x144xf32>
    %cst_54 = arith.constant dense<0.000000e+00> : vector<16x100xf32>
    %127 = tpu.matmul %126, %125, %cst_54 {dimension_numbers = #tpu.dot_dimension_numbers<[1], [0], [0], [1], [0, 0, 1, 1], [], []>} : vector<16x144xf32>, vector<144x100xf32>, vector<16x100xf32> -> vector<16x100xf32>
    %c0_55 = arith.constant 0 : index
    %c0_56 = arith.constant 0 : index
    %128 = vector.load %arg17[%c0_55, %c0_56] : memref<16x1xf32, #tpu.memory_space<vmem>>, vector<16x1xf32>
    %129 = vector.broadcast %128 : vector<16x1xf32> to vector<16x100xf32>
    %130 = arith.addf %127, %129 : vector<16x100xf32>
    %131 = vector.broadcast %1 : vector<1x100xf32> to vector<16x100xf32>
    %132 = arith.mulf %130, %131 : vector<16x100xf32>
    %cst_57 = arith.constant 0.000000e+00 : f32
    %133 = vector.broadcast %cst_57 : f32 to vector<16x11xf32>
    %134 = tpu.concatenate %133, %132, %133 in 1 : vector<16x11xf32>, vector<16x100xf32>, vector<16x11xf32> -> vector<16x122xf32>
    %135 = vector.extract_strided_slice %134 {offsets = [0, 11], sizes = [16, 100], strides = [1, 1]} : vector<16x122xf32> to vector<16x100xf32>
    %136 = vector.extract_strided_slice %134 {offsets = [0, 12], sizes = [16, 100], strides = [1, 1]} : vector<16x122xf32> to vector<16x100xf32>
    %137 = vector.extract_strided_slice %134 {offsets = [0, 21], sizes = [16, 100], strides = [1, 1]} : vector<16x122xf32> to vector<16x100xf32>
    %138 = vector.extract_strided_slice %134 {offsets = [0, 22], sizes = [16, 100], strides = [1, 1]} : vector<16x122xf32> to vector<16x100xf32>
    %139 = arith.maximumf %135, %136 : vector<16x100xf32>
    %140 = arith.maximumf %137, %138 : vector<16x100xf32>
    %141 = arith.maximumf %139, %140 : vector<16x100xf32>
    %c0_58 = arith.constant 0 : index
    %c0_59 = arith.constant 0 : index
    %142 = vector.load %arg55[%c0_58, %c0_59] : memref<100x36xf32, #tpu.memory_space<vmem>>, vector<100x36xf32>
    %cst_60 = arith.constant dense<0.000000e+00> : vector<16x36xf32>
    %143 = tpu.matmul %141, %142, %cst_60 {dimension_numbers = #tpu.dot_dimension_numbers<[1], [0], [0], [1], [0, 0, 1, 1], [], []>} : vector<16x100xf32>, vector<100x36xf32>, vector<16x36xf32> -> vector<16x36xf32>
    %c0_61 = arith.constant 0 : index
    %c0_62 = arith.constant 0 : index
    %144 = vector.load %arg18[%c0_61, %c0_62] : memref<16x1xf32, #tpu.memory_space<vmem>>, vector<16x1xf32>
    %145 = vector.broadcast %144 : vector<16x1xf32> to vector<16x36xf32>
    %146 = arith.mulf %143, %145 : vector<16x36xf32>
    %c0_63 = arith.constant 0 : index
    %c0_64 = arith.constant 0 : index
    %147 = vector.load %arg19[%c0_63, %c0_64] : memref<16x1xf32, #tpu.memory_space<vmem>>, vector<16x1xf32>
    %148 = vector.broadcast %147 : vector<16x1xf32> to vector<16x36xf32>
    %149 = arith.addf %146, %148 : vector<16x36xf32>
    %cst_65 = arith.constant 0.000000e+00 : f32
    %150 = vector.broadcast %cst_65 : f32 to vector<16x36xf32>
    %151 = arith.maximumf %149, %150 : vector<16x36xf32>
    %152 = vector.broadcast %2 : vector<1x36xf32> to vector<16x36xf32>
    %153 = arith.mulf %151, %152 : vector<16x36xf32>
    %cst_66 = arith.constant 0.000000e+00 : f32
    %154 = vector.broadcast %cst_66 : f32 to vector<16x7xf32>
    %155 = tpu.concatenate %154, %153, %154 in 1 : vector<16x7xf32>, vector<16x36xf32>, vector<16x7xf32> -> vector<16x50xf32>
    %156 = vector.extract_strided_slice %155 {offsets = [0, 0], sizes = [16, 36], strides = [1, 1]} : vector<16x50xf32> to vector<16x36xf32>
    %157 = vector.extract_strided_slice %155 {offsets = [0, 1], sizes = [16, 36], strides = [1, 1]} : vector<16x50xf32> to vector<16x36xf32>
    %158 = vector.extract_strided_slice %155 {offsets = [0, 2], sizes = [16, 36], strides = [1, 1]} : vector<16x50xf32> to vector<16x36xf32>
    %159 = vector.extract_strided_slice %155 {offsets = [0, 6], sizes = [16, 36], strides = [1, 1]} : vector<16x50xf32> to vector<16x36xf32>
    %160 = vector.extract_strided_slice %155 {offsets = [0, 7], sizes = [16, 36], strides = [1, 1]} : vector<16x50xf32> to vector<16x36xf32>
    %161 = vector.extract_strided_slice %155 {offsets = [0, 8], sizes = [16, 36], strides = [1, 1]} : vector<16x50xf32> to vector<16x36xf32>
    %162 = vector.extract_strided_slice %155 {offsets = [0, 12], sizes = [16, 36], strides = [1, 1]} : vector<16x50xf32> to vector<16x36xf32>
    %163 = vector.extract_strided_slice %155 {offsets = [0, 13], sizes = [16, 36], strides = [1, 1]} : vector<16x50xf32> to vector<16x36xf32>
    %164 = vector.extract_strided_slice %155 {offsets = [0, 14], sizes = [16, 36], strides = [1, 1]} : vector<16x50xf32> to vector<16x36xf32>
    %165 = tpu.concatenate %156, %157, %158, %159, %160, %161, %162, %163, %164 in 0 : vector<16x36xf32>, vector<16x36xf32>, vector<16x36xf32>, vector<16x36xf32>, vector<16x36xf32>, vector<16x36xf32>, vector<16x36xf32>, vector<16x36xf32>, vector<16x36xf32> -> vector<144x36xf32>
    %c0_67 = arith.constant 0 : index
    %c0_68 = arith.constant 0 : index
    %166 = vector.load %arg20[%c0_67, %c0_68] : memref<32x144xf32, #tpu.memory_space<vmem>>, vector<32x144xf32>
    %cst_69 = arith.constant dense<0.000000e+00> : vector<32x36xf32>
    %167 = tpu.matmul %166, %165, %cst_69 {dimension_numbers = #tpu.dot_dimension_numbers<[1], [0], [0], [1], [0, 0, 1, 1], [], []>} : vector<32x144xf32>, vector<144x36xf32>, vector<32x36xf32> -> vector<32x36xf32>
    %c0_70 = arith.constant 0 : index
    %c0_71 = arith.constant 0 : index
    %168 = vector.load %arg21[%c0_70, %c0_71] : memref<32x1xf32, #tpu.memory_space<vmem>>, vector<32x1xf32>
    %169 = vector.broadcast %168 : vector<32x1xf32> to vector<32x36xf32>
    %170 = arith.addf %167, %169 : vector<32x36xf32>
    %171 = vector.broadcast %2 : vector<1x36xf32> to vector<32x36xf32>
    %172 = arith.mulf %170, %171 : vector<32x36xf32>
    %c0_72 = arith.constant 0 : index
    %c0_73 = arith.constant 0 : index
    %173 = vector.load %arg22[%c0_72, %c0_73] : memref<32x1xf32, #tpu.memory_space<vmem>>, vector<32x1xf32>
    %174 = vector.broadcast %173 : vector<32x1xf32> to vector<32x36xf32>
    %175 = arith.mulf %172, %174 : vector<32x36xf32>
    %c0_74 = arith.constant 0 : index
    %c0_75 = arith.constant 0 : index
    %176 = vector.load %arg23[%c0_74, %c0_75] : memref<32x1xf32, #tpu.memory_space<vmem>>, vector<32x1xf32>
    %177 = vector.broadcast %176 : vector<32x1xf32> to vector<32x36xf32>
    %178 = arith.addf %175, %177 : vector<32x36xf32>
    %cst_76 = arith.constant 0.000000e+00 : f32
    %179 = vector.broadcast %cst_76 : f32 to vector<32x36xf32>
    %180 = arith.maximumf %178, %179 : vector<32x36xf32>
    %181 = vector.broadcast %2 : vector<1x36xf32> to vector<32x36xf32>
    %182 = arith.mulf %180, %181 : vector<32x36xf32>
    %cst_77 = arith.constant 0.000000e+00 : f32
    %183 = vector.broadcast %cst_77 : f32 to vector<32x7xf32>
    %184 = tpu.concatenate %183, %182, %183 in 1 : vector<32x7xf32>, vector<32x36xf32>, vector<32x7xf32> -> vector<32x50xf32>
    %185 = vector.extract_strided_slice %184 {offsets = [0, 0], sizes = [32, 36], strides = [1, 1]} : vector<32x50xf32> to vector<32x36xf32>
    %186 = vector.extract_strided_slice %184 {offsets = [0, 1], sizes = [32, 36], strides = [1, 1]} : vector<32x50xf32> to vector<32x36xf32>
    %187 = vector.extract_strided_slice %184 {offsets = [0, 2], sizes = [32, 36], strides = [1, 1]} : vector<32x50xf32> to vector<32x36xf32>
    %188 = vector.extract_strided_slice %184 {offsets = [0, 6], sizes = [32, 36], strides = [1, 1]} : vector<32x50xf32> to vector<32x36xf32>
    %189 = vector.extract_strided_slice %184 {offsets = [0, 7], sizes = [32, 36], strides = [1, 1]} : vector<32x50xf32> to vector<32x36xf32>
    %190 = vector.extract_strided_slice %184 {offsets = [0, 8], sizes = [32, 36], strides = [1, 1]} : vector<32x50xf32> to vector<32x36xf32>
    %191 = vector.extract_strided_slice %184 {offsets = [0, 12], sizes = [32, 36], strides = [1, 1]} : vector<32x50xf32> to vector<32x36xf32>
    %192 = vector.extract_strided_slice %184 {offsets = [0, 13], sizes = [32, 36], strides = [1, 1]} : vector<32x50xf32> to vector<32x36xf32>
    %193 = vector.extract_strided_slice %184 {offsets = [0, 14], sizes = [32, 36], strides = [1, 1]} : vector<32x50xf32> to vector<32x36xf32>
    %194 = tpu.concatenate %185, %186, %187, %188, %189, %190, %191, %192, %193 in 0 : vector<32x36xf32>, vector<32x36xf32>, vector<32x36xf32>, vector<32x36xf32>, vector<32x36xf32>, vector<32x36xf32>, vector<32x36xf32>, vector<32x36xf32>, vector<32x36xf32> -> vector<288x36xf32>
    %c0_78 = arith.constant 0 : index
    %c0_79 = arith.constant 0 : index
    %195 = vector.load %arg24[%c0_78, %c0_79] : memref<32x288xf32, #tpu.memory_space<vmem>>, vector<32x288xf32>
    %cst_80 = arith.constant dense<0.000000e+00> : vector<32x36xf32>
    %196 = tpu.matmul %195, %194, %cst_80 {dimension_numbers = #tpu.dot_dimension_numbers<[1], [0], [0], [1], [0, 0, 1, 1], [], []>} : vector<32x288xf32>, vector<288x36xf32>, vector<32x36xf32> -> vector<32x36xf32>
    %c0_81 = arith.constant 0 : index
    %c0_82 = arith.constant 0 : index
    %197 = vector.load %arg25[%c0_81, %c0_82] : memref<32x1xf32, #tpu.memory_space<vmem>>, vector<32x1xf32>
    %198 = vector.broadcast %197 : vector<32x1xf32> to vector<32x36xf32>
    %199 = arith.addf %196, %198 : vector<32x36xf32>
    %200 = vector.broadcast %2 : vector<1x36xf32> to vector<32x36xf32>
    %201 = arith.mulf %199, %200 : vector<32x36xf32>
    %cst_83 = arith.constant 0.000000e+00 : f32
    %202 = vector.broadcast %cst_83 : f32 to vector<32x7xf32>
    %203 = tpu.concatenate %202, %201, %202 in 1 : vector<32x7xf32>, vector<32x36xf32>, vector<32x7xf32> -> vector<32x50xf32>
    %204 = vector.extract_strided_slice %203 {offsets = [0, 7], sizes = [32, 36], strides = [1, 1]} : vector<32x50xf32> to vector<32x36xf32>
    %205 = vector.extract_strided_slice %203 {offsets = [0, 8], sizes = [32, 36], strides = [1, 1]} : vector<32x50xf32> to vector<32x36xf32>
    %206 = vector.extract_strided_slice %203 {offsets = [0, 13], sizes = [32, 36], strides = [1, 1]} : vector<32x50xf32> to vector<32x36xf32>
    %207 = vector.extract_strided_slice %203 {offsets = [0, 14], sizes = [32, 36], strides = [1, 1]} : vector<32x50xf32> to vector<32x36xf32>
    %208 = arith.maximumf %204, %205 : vector<32x36xf32>
    %209 = arith.maximumf %206, %207 : vector<32x36xf32>
    %210 = arith.maximumf %208, %209 : vector<32x36xf32>
    %c0_84 = arith.constant 0 : index
    %c0_85 = arith.constant 0 : index
    %211 = vector.load %arg56[%c0_84, %c0_85] : memref<36x16xf32, #tpu.memory_space<vmem>>, vector<36x16xf32>
    %cst_86 = arith.constant dense<0.000000e+00> : vector<32x16xf32>
    %212 = tpu.matmul %210, %211, %cst_86 {dimension_numbers = #tpu.dot_dimension_numbers<[1], [0], [0], [1], [0, 0, 1, 1], [], []>} : vector<32x36xf32>, vector<36x16xf32>, vector<32x16xf32> -> vector<32x16xf32>
    %c0_87 = arith.constant 0 : index
    %c0_88 = arith.constant 0 : index
    %213 = vector.load %arg26[%c0_87, %c0_88] : memref<32x1xf32, #tpu.memory_space<vmem>>, vector<32x1xf32>
    %214 = vector.broadcast %213 : vector<32x1xf32> to vector<32x16xf32>
    %215 = arith.mulf %212, %214 : vector<32x16xf32>
    %c0_89 = arith.constant 0 : index
    %c0_90 = arith.constant 0 : index
    %216 = vector.load %arg27[%c0_89, %c0_90] : memref<32x1xf32, #tpu.memory_space<vmem>>, vector<32x1xf32>
    %217 = vector.broadcast %216 : vector<32x1xf32> to vector<32x16xf32>
    %218 = arith.addf %215, %217 : vector<32x16xf32>
    %cst_91 = arith.constant 0.000000e+00 : f32
    %219 = vector.broadcast %cst_91 : f32 to vector<32x16xf32>
    %220 = arith.maximumf %218, %219 : vector<32x16xf32>
    %221 = vector.broadcast %3 : vector<1x16xf32> to vector<32x16xf32>
    %222 = arith.mulf %220, %221 : vector<32x16xf32>
    %cst_92 = arith.constant 0.000000e+00 : f32
    %223 = vector.broadcast %cst_92 : f32 to vector<32x5xf32>
    %224 = tpu.concatenate %223, %222, %223 in 1 : vector<32x5xf32>, vector<32x16xf32>, vector<32x5xf32> -> vector<32x26xf32>
    %225 = vector.extract_strided_slice %224 {offsets = [0, 0], sizes = [32, 16], strides = [1, 1]} : vector<32x26xf32> to vector<32x16xf32>
    %226 = vector.extract_strided_slice %224 {offsets = [0, 1], sizes = [32, 16], strides = [1, 1]} : vector<32x26xf32> to vector<32x16xf32>
    %227 = vector.extract_strided_slice %224 {offsets = [0, 2], sizes = [32, 16], strides = [1, 1]} : vector<32x26xf32> to vector<32x16xf32>
    %228 = vector.extract_strided_slice %224 {offsets = [0, 4], sizes = [32, 16], strides = [1, 1]} : vector<32x26xf32> to vector<32x16xf32>
    %229 = vector.extract_strided_slice %224 {offsets = [0, 5], sizes = [32, 16], strides = [1, 1]} : vector<32x26xf32> to vector<32x16xf32>
    %230 = vector.extract_strided_slice %224 {offsets = [0, 6], sizes = [32, 16], strides = [1, 1]} : vector<32x26xf32> to vector<32x16xf32>
    %231 = vector.extract_strided_slice %224 {offsets = [0, 8], sizes = [32, 16], strides = [1, 1]} : vector<32x26xf32> to vector<32x16xf32>
    %232 = vector.extract_strided_slice %224 {offsets = [0, 9], sizes = [32, 16], strides = [1, 1]} : vector<32x26xf32> to vector<32x16xf32>
    %233 = vector.extract_strided_slice %224 {offsets = [0, 10], sizes = [32, 16], strides = [1, 1]} : vector<32x26xf32> to vector<32x16xf32>
    %234 = tpu.concatenate %225, %226, %227, %228, %229, %230, %231, %232, %233 in 0 : vector<32x16xf32>, vector<32x16xf32>, vector<32x16xf32>, vector<32x16xf32>, vector<32x16xf32>, vector<32x16xf32>, vector<32x16xf32>, vector<32x16xf32>, vector<32x16xf32> -> vector<288x16xf32>
    %c0_93 = arith.constant 0 : index
    %c0_94 = arith.constant 0 : index
    %235 = vector.load %arg28[%c0_93, %c0_94] : memref<64x288xf32, #tpu.memory_space<vmem>>, vector<64x288xf32>
    %cst_95 = arith.constant dense<0.000000e+00> : vector<64x16xf32>
    %236 = tpu.matmul %235, %234, %cst_95 {dimension_numbers = #tpu.dot_dimension_numbers<[1], [0], [0], [1], [0, 0, 1, 1], [], []>} : vector<64x288xf32>, vector<288x16xf32>, vector<64x16xf32> -> vector<64x16xf32>
    %c0_96 = arith.constant 0 : index
    %c0_97 = arith.constant 0 : index
    %237 = vector.load %arg29[%c0_96, %c0_97] : memref<64x1xf32, #tpu.memory_space<vmem>>, vector<64x1xf32>
    %238 = vector.broadcast %237 : vector<64x1xf32> to vector<64x16xf32>
    %239 = arith.addf %236, %238 : vector<64x16xf32>
    %240 = vector.broadcast %3 : vector<1x16xf32> to vector<64x16xf32>
    %241 = arith.mulf %239, %240 : vector<64x16xf32>
    %c0_98 = arith.constant 0 : index
    %c0_99 = arith.constant 0 : index
    %242 = vector.load %arg30[%c0_98, %c0_99] : memref<64x1xf32, #tpu.memory_space<vmem>>, vector<64x1xf32>
    %243 = vector.broadcast %242 : vector<64x1xf32> to vector<64x16xf32>
    %244 = arith.mulf %241, %243 : vector<64x16xf32>
    %c0_100 = arith.constant 0 : index
    %c0_101 = arith.constant 0 : index
    %245 = vector.load %arg31[%c0_100, %c0_101] : memref<64x1xf32, #tpu.memory_space<vmem>>, vector<64x1xf32>
    %246 = vector.broadcast %245 : vector<64x1xf32> to vector<64x16xf32>
    %247 = arith.addf %244, %246 : vector<64x16xf32>
    %cst_102 = arith.constant 0.000000e+00 : f32
    %248 = vector.broadcast %cst_102 : f32 to vector<64x16xf32>
    %249 = arith.maximumf %247, %248 : vector<64x16xf32>
    %250 = vector.broadcast %3 : vector<1x16xf32> to vector<64x16xf32>
    %251 = arith.mulf %249, %250 : vector<64x16xf32>
    %cst_103 = arith.constant 0.000000e+00 : f32
    %252 = vector.broadcast %cst_103 : f32 to vector<64x5xf32>
    %253 = tpu.concatenate %252, %251, %252 in 1 : vector<64x5xf32>, vector<64x16xf32>, vector<64x5xf32> -> vector<64x26xf32>
    %254 = vector.extract_strided_slice %253 {offsets = [0, 0], sizes = [64, 16], strides = [1, 1]} : vector<64x26xf32> to vector<64x16xf32>
    %255 = vector.extract_strided_slice %253 {offsets = [0, 1], sizes = [64, 16], strides = [1, 1]} : vector<64x26xf32> to vector<64x16xf32>
    %256 = vector.extract_strided_slice %253 {offsets = [0, 2], sizes = [64, 16], strides = [1, 1]} : vector<64x26xf32> to vector<64x16xf32>
    %257 = vector.extract_strided_slice %253 {offsets = [0, 4], sizes = [64, 16], strides = [1, 1]} : vector<64x26xf32> to vector<64x16xf32>
    %258 = vector.extract_strided_slice %253 {offsets = [0, 5], sizes = [64, 16], strides = [1, 1]} : vector<64x26xf32> to vector<64x16xf32>
    %259 = vector.extract_strided_slice %253 {offsets = [0, 6], sizes = [64, 16], strides = [1, 1]} : vector<64x26xf32> to vector<64x16xf32>
    %260 = vector.extract_strided_slice %253 {offsets = [0, 8], sizes = [64, 16], strides = [1, 1]} : vector<64x26xf32> to vector<64x16xf32>
    %261 = vector.extract_strided_slice %253 {offsets = [0, 9], sizes = [64, 16], strides = [1, 1]} : vector<64x26xf32> to vector<64x16xf32>
    %262 = vector.extract_strided_slice %253 {offsets = [0, 10], sizes = [64, 16], strides = [1, 1]} : vector<64x26xf32> to vector<64x16xf32>
    %263 = tpu.concatenate %254, %255, %256, %257, %258, %259, %260, %261, %262 in 0 : vector<64x16xf32>, vector<64x16xf32>, vector<64x16xf32>, vector<64x16xf32>, vector<64x16xf32>, vector<64x16xf32>, vector<64x16xf32>, vector<64x16xf32>, vector<64x16xf32> -> vector<576x16xf32>
    %c0_104 = arith.constant 0 : index
    %c0_105 = arith.constant 0 : index
    %264 = vector.load %arg32[%c0_104, %c0_105] : memref<64x576xf32, #tpu.memory_space<vmem>>, vector<64x576xf32>
    %cst_106 = arith.constant dense<0.000000e+00> : vector<64x16xf32>
    %265 = tpu.matmul %264, %263, %cst_106 {dimension_numbers = #tpu.dot_dimension_numbers<[1], [0], [0], [1], [0, 0, 1, 1], [], []>} : vector<64x576xf32>, vector<576x16xf32>, vector<64x16xf32> -> vector<64x16xf32>
    %c0_107 = arith.constant 0 : index
    %c0_108 = arith.constant 0 : index
    %266 = vector.load %arg33[%c0_107, %c0_108] : memref<64x1xf32, #tpu.memory_space<vmem>>, vector<64x1xf32>
    %267 = vector.broadcast %266 : vector<64x1xf32> to vector<64x16xf32>
    %268 = arith.addf %265, %267 : vector<64x16xf32>
    %269 = vector.broadcast %3 : vector<1x16xf32> to vector<64x16xf32>
    %270 = arith.mulf %268, %269 : vector<64x16xf32>
    %cst_109 = arith.constant 0.000000e+00 : f32
    %271 = vector.broadcast %cst_109 : f32 to vector<64x5xf32>
    %272 = tpu.concatenate %271, %270, %271 in 1 : vector<64x5xf32>, vector<64x16xf32>, vector<64x5xf32> -> vector<64x26xf32>
    %273 = vector.extract_strided_slice %272 {offsets = [0, 5], sizes = [64, 16], strides = [1, 1]} : vector<64x26xf32> to vector<64x16xf32>
    %274 = vector.extract_strided_slice %272 {offsets = [0, 6], sizes = [64, 16], strides = [1, 1]} : vector<64x26xf32> to vector<64x16xf32>
    %275 = vector.extract_strided_slice %272 {offsets = [0, 9], sizes = [64, 16], strides = [1, 1]} : vector<64x26xf32> to vector<64x16xf32>
    %276 = vector.extract_strided_slice %272 {offsets = [0, 10], sizes = [64, 16], strides = [1, 1]} : vector<64x26xf32> to vector<64x16xf32>
    %c1 = arith.constant 1 : index
    %c1_110 = arith.constant 1 : index
    %c0_111 = arith.constant 0 : index
    %c0_112 = arith.constant 0 : index
    %277 = vector.load %arg34[%c1, %c1_110, %c0_111, %c0_112] : memref<3x3x32x64xf32, #tpu.memory_space<vmem>>, vector<1x1x32x64xf32>
    %278 = vector.shape_cast %277 : vector<1x1x32x64xf32> to vector<32x64xf32>
    %cst_113 = arith.constant dense<0.000000e+00> : vector<32x16xf32>
    %279 = tpu.matmul %278, %273, %cst_113 {dimension_numbers = #tpu.dot_dimension_numbers<[1], [0], [0], [1], [0, 0, 1, 1], [], []>} : vector<32x64xf32>, vector<64x16xf32>, vector<32x16xf32> -> vector<32x16xf32>
    %c1_114 = arith.constant 1 : index
    %c0_115 = arith.constant 0 : index
    %c0_116 = arith.constant 0 : index
    %c0_117 = arith.constant 0 : index
    %280 = vector.load %arg34[%c1_114, %c0_115, %c0_116, %c0_117] : memref<3x3x32x64xf32, #tpu.memory_space<vmem>>, vector<1x1x32x64xf32>
    %281 = vector.shape_cast %280 : vector<1x1x32x64xf32> to vector<32x64xf32>
    %cst_118 = arith.constant dense<0.000000e+00> : vector<32x16xf32>
    %282 = tpu.matmul %281, %273, %cst_118 {dimension_numbers = #tpu.dot_dimension_numbers<[1], [0], [0], [1], [0, 0, 1, 1], [], []>} : vector<32x64xf32>, vector<64x16xf32>, vector<32x16xf32> -> vector<32x16xf32>
    %c1_119 = arith.constant 1 : index
    %c2 = arith.constant 2 : index
    %c0_120 = arith.constant 0 : index
    %c0_121 = arith.constant 0 : index
    %283 = vector.load %arg34[%c1_119, %c2, %c0_120, %c0_121] : memref<3x3x32x64xf32, #tpu.memory_space<vmem>>, vector<1x1x32x64xf32>
    %284 = vector.shape_cast %283 : vector<1x1x32x64xf32> to vector<32x64xf32>
    %cst_122 = arith.constant dense<0.000000e+00> : vector<32x16xf32>
    %285 = tpu.matmul %284, %274, %cst_122 {dimension_numbers = #tpu.dot_dimension_numbers<[1], [0], [0], [1], [0, 0, 1, 1], [], []>} : vector<32x64xf32>, vector<64x16xf32>, vector<32x16xf32> -> vector<32x16xf32>
    %286 = arith.addf %282, %285 : vector<32x16xf32>
    %c0_123 = arith.constant 0 : index
    %c1_124 = arith.constant 1 : index
    %c0_125 = arith.constant 0 : index
    %c0_126 = arith.constant 0 : index
    %287 = vector.load %arg34[%c0_123, %c1_124, %c0_125, %c0_126] : memref<3x3x32x64xf32, #tpu.memory_space<vmem>>, vector<1x1x32x64xf32>
    %288 = vector.shape_cast %287 : vector<1x1x32x64xf32> to vector<32x64xf32>
    %cst_127 = arith.constant dense<0.000000e+00> : vector<32x16xf32>
    %289 = tpu.matmul %288, %273, %cst_127 {dimension_numbers = #tpu.dot_dimension_numbers<[1], [0], [0], [1], [0, 0, 1, 1], [], []>} : vector<32x64xf32>, vector<64x16xf32>, vector<32x16xf32> -> vector<32x16xf32>
    %c2_128 = arith.constant 2 : index
    %c1_129 = arith.constant 1 : index
    %c0_130 = arith.constant 0 : index
    %c0_131 = arith.constant 0 : index
    %290 = vector.load %arg34[%c2_128, %c1_129, %c0_130, %c0_131] : memref<3x3x32x64xf32, #tpu.memory_space<vmem>>, vector<1x1x32x64xf32>
    %291 = vector.shape_cast %290 : vector<1x1x32x64xf32> to vector<32x64xf32>
    %cst_132 = arith.constant dense<0.000000e+00> : vector<32x16xf32>
    %292 = tpu.matmul %291, %275, %cst_132 {dimension_numbers = #tpu.dot_dimension_numbers<[1], [0], [0], [1], [0, 0, 1, 1], [], []>} : vector<32x64xf32>, vector<64x16xf32>, vector<32x16xf32> -> vector<32x16xf32>
    %293 = arith.addf %289, %292 : vector<32x16xf32>
    %c0_133 = arith.constant 0 : index
    %c0_134 = arith.constant 0 : index
    %c0_135 = arith.constant 0 : index
    %c0_136 = arith.constant 0 : index
    %294 = vector.load %arg34[%c0_133, %c0_134, %c0_135, %c0_136] : memref<3x3x32x64xf32, #tpu.memory_space<vmem>>, vector<1x1x32x64xf32>
    %295 = vector.shape_cast %294 : vector<1x1x32x64xf32> to vector<32x64xf32>
    %cst_137 = arith.constant dense<0.000000e+00> : vector<32x16xf32>
    %296 = tpu.matmul %295, %273, %cst_137 {dimension_numbers = #tpu.dot_dimension_numbers<[1], [0], [0], [1], [0, 0, 1, 1], [], []>} : vector<32x64xf32>, vector<64x16xf32>, vector<32x16xf32> -> vector<32x16xf32>
    %c0_138 = arith.constant 0 : index
    %c2_139 = arith.constant 2 : index
    %c0_140 = arith.constant 0 : index
    %c0_141 = arith.constant 0 : index
    %297 = vector.load %arg34[%c0_138, %c2_139, %c0_140, %c0_141] : memref<3x3x32x64xf32, #tpu.memory_space<vmem>>, vector<1x1x32x64xf32>
    %298 = vector.shape_cast %297 : vector<1x1x32x64xf32> to vector<32x64xf32>
    %cst_142 = arith.constant dense<0.000000e+00> : vector<32x16xf32>
    %299 = tpu.matmul %298, %274, %cst_142 {dimension_numbers = #tpu.dot_dimension_numbers<[1], [0], [0], [1], [0, 0, 1, 1], [], []>} : vector<32x64xf32>, vector<64x16xf32>, vector<32x16xf32> -> vector<32x16xf32>
    %300 = arith.addf %296, %299 : vector<32x16xf32>
    %c2_143 = arith.constant 2 : index
    %c0_144 = arith.constant 0 : index
    %c0_145 = arith.constant 0 : index
    %c0_146 = arith.constant 0 : index
    %301 = vector.load %arg34[%c2_143, %c0_144, %c0_145, %c0_146] : memref<3x3x32x64xf32, #tpu.memory_space<vmem>>, vector<1x1x32x64xf32>
    %302 = vector.shape_cast %301 : vector<1x1x32x64xf32> to vector<32x64xf32>
    %cst_147 = arith.constant dense<0.000000e+00> : vector<32x16xf32>
    %303 = tpu.matmul %302, %275, %cst_147 {dimension_numbers = #tpu.dot_dimension_numbers<[1], [0], [0], [1], [0, 0, 1, 1], [], []>} : vector<32x64xf32>, vector<64x16xf32>, vector<32x16xf32> -> vector<32x16xf32>
    %304 = arith.addf %300, %303 : vector<32x16xf32>
    %c2_148 = arith.constant 2 : index
    %c2_149 = arith.constant 2 : index
    %c0_150 = arith.constant 0 : index
    %c0_151 = arith.constant 0 : index
    %305 = vector.load %arg34[%c2_148, %c2_149, %c0_150, %c0_151] : memref<3x3x32x64xf32, #tpu.memory_space<vmem>>, vector<1x1x32x64xf32>
    %306 = vector.shape_cast %305 : vector<1x1x32x64xf32> to vector<32x64xf32>
    %cst_152 = arith.constant dense<0.000000e+00> : vector<32x16xf32>
    %307 = tpu.matmul %306, %276, %cst_152 {dimension_numbers = #tpu.dot_dimension_numbers<[1], [0], [0], [1], [0, 0, 1, 1], [], []>} : vector<32x64xf32>, vector<64x16xf32>, vector<32x16xf32> -> vector<32x16xf32>
    %308 = arith.addf %304, %307 : vector<32x16xf32>
    %c0_153 = arith.constant 0 : index
    %c0_154 = arith.constant 0 : index
    %c0_155 = arith.constant 0 : index
    %309 = vector.load %arg57[%c0_153, %c0_154, %c0_155] : memref<4x16x36xf32, #tpu.memory_space<vmem>>, vector<1x16x36xf32>
    %310 = vector.shape_cast %309 : vector<1x16x36xf32> to vector<16x36xf32>
    %cst_156 = arith.constant dense<0.000000e+00> : vector<32x36xf32>
    %311 = tpu.matmul %279, %310, %cst_156 {dimension_numbers = #tpu.dot_dimension_numbers<[1], [0], [0], [1], [0, 0, 1, 1], [], []>} : vector<32x16xf32>, vector<16x36xf32>, vector<32x36xf32> -> vector<32x36xf32>
    %c1_157 = arith.constant 1 : index
    %c0_158 = arith.constant 0 : index
    %c0_159 = arith.constant 0 : index
    %312 = vector.load %arg57[%c1_157, %c0_158, %c0_159] : memref<4x16x36xf32, #tpu.memory_space<vmem>>, vector<1x16x36xf32>
    %313 = vector.shape_cast %312 : vector<1x16x36xf32> to vector<16x36xf32>
    %cst_160 = arith.constant dense<0.000000e+00> : vector<32x36xf32>
    %314 = tpu.matmul %286, %313, %cst_160 {dimension_numbers = #tpu.dot_dimension_numbers<[1], [0], [0], [1], [0, 0, 1, 1], [], []>} : vector<32x16xf32>, vector<16x36xf32>, vector<32x36xf32> -> vector<32x36xf32>
    %315 = arith.addf %311, %314 : vector<32x36xf32>
    %c2_161 = arith.constant 2 : index
    %c0_162 = arith.constant 0 : index
    %c0_163 = arith.constant 0 : index
    %316 = vector.load %arg57[%c2_161, %c0_162, %c0_163] : memref<4x16x36xf32, #tpu.memory_space<vmem>>, vector<1x16x36xf32>
    %317 = vector.shape_cast %316 : vector<1x16x36xf32> to vector<16x36xf32>
    %cst_164 = arith.constant dense<0.000000e+00> : vector<32x36xf32>
    %318 = tpu.matmul %293, %317, %cst_164 {dimension_numbers = #tpu.dot_dimension_numbers<[1], [0], [0], [1], [0, 0, 1, 1], [], []>} : vector<32x16xf32>, vector<16x36xf32>, vector<32x36xf32> -> vector<32x36xf32>
    %319 = arith.addf %315, %318 : vector<32x36xf32>
    %c3 = arith.constant 3 : index
    %c0_165 = arith.constant 0 : index
    %c0_166 = arith.constant 0 : index
    %320 = vector.load %arg57[%c3, %c0_165, %c0_166] : memref<4x16x36xf32, #tpu.memory_space<vmem>>, vector<1x16x36xf32>
    %321 = vector.shape_cast %320 : vector<1x16x36xf32> to vector<16x36xf32>
    %cst_167 = arith.constant dense<0.000000e+00> : vector<32x36xf32>
    %322 = tpu.matmul %308, %321, %cst_167 {dimension_numbers = #tpu.dot_dimension_numbers<[1], [0], [0], [1], [0, 0, 1, 1], [], []>} : vector<32x16xf32>, vector<16x36xf32>, vector<32x36xf32> -> vector<32x36xf32>
    %323 = arith.addf %319, %322 : vector<32x36xf32>
    %c0_168 = arith.constant 0 : index
    %c0_169 = arith.constant 0 : index
    %324 = vector.load %arg35[%c0_168, %c0_169] : memref<32x1xf32, #tpu.memory_space<vmem>>, vector<32x1xf32>
    %325 = vector.broadcast %324 : vector<32x1xf32> to vector<32x36xf32>
    %326 = arith.addf %323, %325 : vector<32x36xf32>
    %327 = vector.broadcast %2 : vector<1x36xf32> to vector<32x36xf32>
    %328 = arith.mulf %326, %327 : vector<32x36xf32>
    %329 = tpu.concatenate %201, %328 in 0 : vector<32x36xf32>, vector<32x36xf32> -> vector<64x36xf32>
    %cst_170 = arith.constant 0.000000e+00 : f32
    %330 = vector.broadcast %cst_170 : f32 to vector<64x7xf32>
    %331 = tpu.concatenate %330, %329, %330 in 1 : vector<64x7xf32>, vector<64x36xf32>, vector<64x7xf32> -> vector<64x50xf32>
    %332 = vector.extract_strided_slice %331 {offsets = [0, 0], sizes = [64, 36], strides = [1, 1]} : vector<64x50xf32> to vector<64x36xf32>
    %333 = vector.extract_strided_slice %331 {offsets = [0, 1], sizes = [64, 36], strides = [1, 1]} : vector<64x50xf32> to vector<64x36xf32>
    %334 = vector.extract_strided_slice %331 {offsets = [0, 2], sizes = [64, 36], strides = [1, 1]} : vector<64x50xf32> to vector<64x36xf32>
    %335 = vector.extract_strided_slice %331 {offsets = [0, 6], sizes = [64, 36], strides = [1, 1]} : vector<64x50xf32> to vector<64x36xf32>
    %336 = vector.extract_strided_slice %331 {offsets = [0, 7], sizes = [64, 36], strides = [1, 1]} : vector<64x50xf32> to vector<64x36xf32>
    %337 = vector.extract_strided_slice %331 {offsets = [0, 8], sizes = [64, 36], strides = [1, 1]} : vector<64x50xf32> to vector<64x36xf32>
    %338 = vector.extract_strided_slice %331 {offsets = [0, 12], sizes = [64, 36], strides = [1, 1]} : vector<64x50xf32> to vector<64x36xf32>
    %339 = vector.extract_strided_slice %331 {offsets = [0, 13], sizes = [64, 36], strides = [1, 1]} : vector<64x50xf32> to vector<64x36xf32>
    %340 = vector.extract_strided_slice %331 {offsets = [0, 14], sizes = [64, 36], strides = [1, 1]} : vector<64x50xf32> to vector<64x36xf32>
    %341 = tpu.concatenate %332, %333, %334, %335, %336, %337, %338, %339, %340 in 0 : vector<64x36xf32>, vector<64x36xf32>, vector<64x36xf32>, vector<64x36xf32>, vector<64x36xf32>, vector<64x36xf32>, vector<64x36xf32>, vector<64x36xf32>, vector<64x36xf32> -> vector<576x36xf32>
    %c0_171 = arith.constant 0 : index
    %c0_172 = arith.constant 0 : index
    %342 = vector.load %arg36[%c0_171, %c0_172] : memref<32x576xf32, #tpu.memory_space<vmem>>, vector<32x576xf32>
    %cst_173 = arith.constant dense<0.000000e+00> : vector<32x36xf32>
    %343 = tpu.matmul %342, %341, %cst_173 {dimension_numbers = #tpu.dot_dimension_numbers<[1], [0], [0], [1], [0, 0, 1, 1], [], []>} : vector<32x576xf32>, vector<576x36xf32>, vector<32x36xf32> -> vector<32x36xf32>
    %c0_174 = arith.constant 0 : index
    %c0_175 = arith.constant 0 : index
    %344 = vector.load %arg37[%c0_174, %c0_175] : memref<32x1xf32, #tpu.memory_space<vmem>>, vector<32x1xf32>
    %345 = vector.broadcast %344 : vector<32x1xf32> to vector<32x36xf32>
    %346 = arith.addf %343, %345 : vector<32x36xf32>
    %347 = vector.broadcast %2 : vector<1x36xf32> to vector<32x36xf32>
    %348 = arith.mulf %346, %347 : vector<32x36xf32>
    %cst_176 = arith.constant 0.000000e+00 : f32
    %349 = vector.broadcast %cst_176 : f32 to vector<32x7xf32>
    %350 = tpu.concatenate %349, %348, %349 in 1 : vector<32x7xf32>, vector<32x36xf32>, vector<32x7xf32> -> vector<32x50xf32>
    %351 = vector.extract_strided_slice %350 {offsets = [0, 0], sizes = [32, 36], strides = [1, 1]} : vector<32x50xf32> to vector<32x36xf32>
    %352 = vector.extract_strided_slice %350 {offsets = [0, 1], sizes = [32, 36], strides = [1, 1]} : vector<32x50xf32> to vector<32x36xf32>
    %353 = vector.extract_strided_slice %350 {offsets = [0, 2], sizes = [32, 36], strides = [1, 1]} : vector<32x50xf32> to vector<32x36xf32>
    %354 = vector.extract_strided_slice %350 {offsets = [0, 6], sizes = [32, 36], strides = [1, 1]} : vector<32x50xf32> to vector<32x36xf32>
    %355 = vector.extract_strided_slice %350 {offsets = [0, 7], sizes = [32, 36], strides = [1, 1]} : vector<32x50xf32> to vector<32x36xf32>
    %356 = vector.extract_strided_slice %350 {offsets = [0, 8], sizes = [32, 36], strides = [1, 1]} : vector<32x50xf32> to vector<32x36xf32>
    %357 = vector.extract_strided_slice %350 {offsets = [0, 12], sizes = [32, 36], strides = [1, 1]} : vector<32x50xf32> to vector<32x36xf32>
    %358 = vector.extract_strided_slice %350 {offsets = [0, 13], sizes = [32, 36], strides = [1, 1]} : vector<32x50xf32> to vector<32x36xf32>
    %359 = vector.extract_strided_slice %350 {offsets = [0, 14], sizes = [32, 36], strides = [1, 1]} : vector<32x50xf32> to vector<32x36xf32>
    %360 = tpu.concatenate %351, %352, %353, %354, %355, %356, %357, %358, %359 in 0 : vector<32x36xf32>, vector<32x36xf32>, vector<32x36xf32>, vector<32x36xf32>, vector<32x36xf32>, vector<32x36xf32>, vector<32x36xf32>, vector<32x36xf32>, vector<32x36xf32> -> vector<288x36xf32>
    %c0_177 = arith.constant 0 : index
    %c0_178 = arith.constant 0 : index
    %361 = vector.load %arg38[%c0_177, %c0_178] : memref<32x288xf32, #tpu.memory_space<vmem>>, vector<32x288xf32>
    %cst_179 = arith.constant dense<0.000000e+00> : vector<32x36xf32>
    %362 = tpu.matmul %361, %360, %cst_179 {dimension_numbers = #tpu.dot_dimension_numbers<[1], [0], [0], [1], [0, 0, 1, 1], [], []>} : vector<32x288xf32>, vector<288x36xf32>, vector<32x36xf32> -> vector<32x36xf32>
    %c0_180 = arith.constant 0 : index
    %c0_181 = arith.constant 0 : index
    %363 = vector.load %arg39[%c0_180, %c0_181] : memref<32x1xf32, #tpu.memory_space<vmem>>, vector<32x1xf32>
    %364 = vector.broadcast %363 : vector<32x1xf32> to vector<32x36xf32>
    %365 = arith.addf %362, %364 : vector<32x36xf32>
    %366 = vector.broadcast %2 : vector<1x36xf32> to vector<32x36xf32>
    %367 = arith.mulf %365, %366 : vector<32x36xf32>
    %cst_182 = arith.constant 0.000000e+00 : f32
    %368 = vector.broadcast %cst_182 : f32 to vector<32x7xf32>
    %369 = tpu.concatenate %368, %367, %368 in 1 : vector<32x7xf32>, vector<32x36xf32>, vector<32x7xf32> -> vector<32x50xf32>
    %370 = vector.extract_strided_slice %369 {offsets = [0, 7], sizes = [32, 36], strides = [1, 1]} : vector<32x50xf32> to vector<32x36xf32>
    %371 = vector.extract_strided_slice %369 {offsets = [0, 8], sizes = [32, 36], strides = [1, 1]} : vector<32x50xf32> to vector<32x36xf32>
    %372 = vector.extract_strided_slice %369 {offsets = [0, 13], sizes = [32, 36], strides = [1, 1]} : vector<32x50xf32> to vector<32x36xf32>
    %373 = vector.extract_strided_slice %369 {offsets = [0, 14], sizes = [32, 36], strides = [1, 1]} : vector<32x50xf32> to vector<32x36xf32>
    %c1_183 = arith.constant 1 : index
    %c1_184 = arith.constant 1 : index
    %c0_185 = arith.constant 0 : index
    %c0_186 = arith.constant 0 : index
    %374 = vector.load %arg40[%c1_183, %c1_184, %c0_185, %c0_186] : memref<3x3x16x32xf32, #tpu.memory_space<vmem>>, vector<1x1x16x32xf32>
    %375 = vector.shape_cast %374 : vector<1x1x16x32xf32> to vector<16x32xf32>
    %cst_187 = arith.constant dense<0.000000e+00> : vector<16x36xf32>
    %376 = tpu.matmul %375, %370, %cst_187 {dimension_numbers = #tpu.dot_dimension_numbers<[1], [0], [0], [1], [0, 0, 1, 1], [], []>} : vector<16x32xf32>, vector<32x36xf32>, vector<16x36xf32> -> vector<16x36xf32>
    %c1_188 = arith.constant 1 : index
    %c0_189 = arith.constant 0 : index
    %c0_190 = arith.constant 0 : index
    %c0_191 = arith.constant 0 : index
    %377 = vector.load %arg40[%c1_188, %c0_189, %c0_190, %c0_191] : memref<3x3x16x32xf32, #tpu.memory_space<vmem>>, vector<1x1x16x32xf32>
    %378 = vector.shape_cast %377 : vector<1x1x16x32xf32> to vector<16x32xf32>
    %cst_192 = arith.constant dense<0.000000e+00> : vector<16x36xf32>
    %379 = tpu.matmul %378, %370, %cst_192 {dimension_numbers = #tpu.dot_dimension_numbers<[1], [0], [0], [1], [0, 0, 1, 1], [], []>} : vector<16x32xf32>, vector<32x36xf32>, vector<16x36xf32> -> vector<16x36xf32>
    %c1_193 = arith.constant 1 : index
    %c2_194 = arith.constant 2 : index
    %c0_195 = arith.constant 0 : index
    %c0_196 = arith.constant 0 : index
    %380 = vector.load %arg40[%c1_193, %c2_194, %c0_195, %c0_196] : memref<3x3x16x32xf32, #tpu.memory_space<vmem>>, vector<1x1x16x32xf32>
    %381 = vector.shape_cast %380 : vector<1x1x16x32xf32> to vector<16x32xf32>
    %cst_197 = arith.constant dense<0.000000e+00> : vector<16x36xf32>
    %382 = tpu.matmul %381, %371, %cst_197 {dimension_numbers = #tpu.dot_dimension_numbers<[1], [0], [0], [1], [0, 0, 1, 1], [], []>} : vector<16x32xf32>, vector<32x36xf32>, vector<16x36xf32> -> vector<16x36xf32>
    %383 = arith.addf %379, %382 : vector<16x36xf32>
    %c0_198 = arith.constant 0 : index
    %c1_199 = arith.constant 1 : index
    %c0_200 = arith.constant 0 : index
    %c0_201 = arith.constant 0 : index
    %384 = vector.load %arg40[%c0_198, %c1_199, %c0_200, %c0_201] : memref<3x3x16x32xf32, #tpu.memory_space<vmem>>, vector<1x1x16x32xf32>
    %385 = vector.shape_cast %384 : vector<1x1x16x32xf32> to vector<16x32xf32>
    %cst_202 = arith.constant dense<0.000000e+00> : vector<16x36xf32>
    %386 = tpu.matmul %385, %370, %cst_202 {dimension_numbers = #tpu.dot_dimension_numbers<[1], [0], [0], [1], [0, 0, 1, 1], [], []>} : vector<16x32xf32>, vector<32x36xf32>, vector<16x36xf32> -> vector<16x36xf32>
    %c2_203 = arith.constant 2 : index
    %c1_204 = arith.constant 1 : index
    %c0_205 = arith.constant 0 : index
    %c0_206 = arith.constant 0 : index
    %387 = vector.load %arg40[%c2_203, %c1_204, %c0_205, %c0_206] : memref<3x3x16x32xf32, #tpu.memory_space<vmem>>, vector<1x1x16x32xf32>
    %388 = vector.shape_cast %387 : vector<1x1x16x32xf32> to vector<16x32xf32>
    %cst_207 = arith.constant dense<0.000000e+00> : vector<16x36xf32>
    %389 = tpu.matmul %388, %372, %cst_207 {dimension_numbers = #tpu.dot_dimension_numbers<[1], [0], [0], [1], [0, 0, 1, 1], [], []>} : vector<16x32xf32>, vector<32x36xf32>, vector<16x36xf32> -> vector<16x36xf32>
    %390 = arith.addf %386, %389 : vector<16x36xf32>
    %c0_208 = arith.constant 0 : index
    %c0_209 = arith.constant 0 : index
    %c0_210 = arith.constant 0 : index
    %c0_211 = arith.constant 0 : index
    %391 = vector.load %arg40[%c0_208, %c0_209, %c0_210, %c0_211] : memref<3x3x16x32xf32, #tpu.memory_space<vmem>>, vector<1x1x16x32xf32>
    %392 = vector.shape_cast %391 : vector<1x1x16x32xf32> to vector<16x32xf32>
    %cst_212 = arith.constant dense<0.000000e+00> : vector<16x36xf32>
    %393 = tpu.matmul %392, %370, %cst_212 {dimension_numbers = #tpu.dot_dimension_numbers<[1], [0], [0], [1], [0, 0, 1, 1], [], []>} : vector<16x32xf32>, vector<32x36xf32>, vector<16x36xf32> -> vector<16x36xf32>
    %c0_213 = arith.constant 0 : index
    %c2_214 = arith.constant 2 : index
    %c0_215 = arith.constant 0 : index
    %c0_216 = arith.constant 0 : index
    %394 = vector.load %arg40[%c0_213, %c2_214, %c0_215, %c0_216] : memref<3x3x16x32xf32, #tpu.memory_space<vmem>>, vector<1x1x16x32xf32>
    %395 = vector.shape_cast %394 : vector<1x1x16x32xf32> to vector<16x32xf32>
    %cst_217 = arith.constant dense<0.000000e+00> : vector<16x36xf32>
    %396 = tpu.matmul %395, %371, %cst_217 {dimension_numbers = #tpu.dot_dimension_numbers<[1], [0], [0], [1], [0, 0, 1, 1], [], []>} : vector<16x32xf32>, vector<32x36xf32>, vector<16x36xf32> -> vector<16x36xf32>
    %397 = arith.addf %393, %396 : vector<16x36xf32>
    %c2_218 = arith.constant 2 : index
    %c0_219 = arith.constant 0 : index
    %c0_220 = arith.constant 0 : index
    %c0_221 = arith.constant 0 : index
    %398 = vector.load %arg40[%c2_218, %c0_219, %c0_220, %c0_221] : memref<3x3x16x32xf32, #tpu.memory_space<vmem>>, vector<1x1x16x32xf32>
    %399 = vector.shape_cast %398 : vector<1x1x16x32xf32> to vector<16x32xf32>
    %cst_222 = arith.constant dense<0.000000e+00> : vector<16x36xf32>
    %400 = tpu.matmul %399, %372, %cst_222 {dimension_numbers = #tpu.dot_dimension_numbers<[1], [0], [0], [1], [0, 0, 1, 1], [], []>} : vector<16x32xf32>, vector<32x36xf32>, vector<16x36xf32> -> vector<16x36xf32>
    %401 = arith.addf %397, %400 : vector<16x36xf32>
    %c2_223 = arith.constant 2 : index
    %c2_224 = arith.constant 2 : index
    %c0_225 = arith.constant 0 : index
    %c0_226 = arith.constant 0 : index
    %402 = vector.load %arg40[%c2_223, %c2_224, %c0_225, %c0_226] : memref<3x3x16x32xf32, #tpu.memory_space<vmem>>, vector<1x1x16x32xf32>
    %403 = vector.shape_cast %402 : vector<1x1x16x32xf32> to vector<16x32xf32>
    %cst_227 = arith.constant dense<0.000000e+00> : vector<16x36xf32>
    %404 = tpu.matmul %403, %373, %cst_227 {dimension_numbers = #tpu.dot_dimension_numbers<[1], [0], [0], [1], [0, 0, 1, 1], [], []>} : vector<16x32xf32>, vector<32x36xf32>, vector<16x36xf32> -> vector<16x36xf32>
    %405 = arith.addf %401, %404 : vector<16x36xf32>
    %c0_228 = arith.constant 0 : index
    %c0_229 = arith.constant 0 : index
    %c0_230 = arith.constant 0 : index
    %406 = vector.load %arg58[%c0_228, %c0_229, %c0_230] : memref<4x36x100xf32, #tpu.memory_space<vmem>>, vector<1x36x100xf32>
    %407 = vector.shape_cast %406 : vector<1x36x100xf32> to vector<36x100xf32>
    %cst_231 = arith.constant dense<0.000000e+00> : vector<16x100xf32>
    %408 = tpu.matmul %376, %407, %cst_231 {dimension_numbers = #tpu.dot_dimension_numbers<[1], [0], [0], [1], [0, 0, 1, 1], [], []>} : vector<16x36xf32>, vector<36x100xf32>, vector<16x100xf32> -> vector<16x100xf32>
    %c1_232 = arith.constant 1 : index
    %c0_233 = arith.constant 0 : index
    %c0_234 = arith.constant 0 : index
    %409 = vector.load %arg58[%c1_232, %c0_233, %c0_234] : memref<4x36x100xf32, #tpu.memory_space<vmem>>, vector<1x36x100xf32>
    %410 = vector.shape_cast %409 : vector<1x36x100xf32> to vector<36x100xf32>
    %cst_235 = arith.constant dense<0.000000e+00> : vector<16x100xf32>
    %411 = tpu.matmul %383, %410, %cst_235 {dimension_numbers = #tpu.dot_dimension_numbers<[1], [0], [0], [1], [0, 0, 1, 1], [], []>} : vector<16x36xf32>, vector<36x100xf32>, vector<16x100xf32> -> vector<16x100xf32>
    %412 = arith.addf %408, %411 : vector<16x100xf32>
    %c2_236 = arith.constant 2 : index
    %c0_237 = arith.constant 0 : index
    %c0_238 = arith.constant 0 : index
    %413 = vector.load %arg58[%c2_236, %c0_237, %c0_238] : memref<4x36x100xf32, #tpu.memory_space<vmem>>, vector<1x36x100xf32>
    %414 = vector.shape_cast %413 : vector<1x36x100xf32> to vector<36x100xf32>
    %cst_239 = arith.constant dense<0.000000e+00> : vector<16x100xf32>
    %415 = tpu.matmul %390, %414, %cst_239 {dimension_numbers = #tpu.dot_dimension_numbers<[1], [0], [0], [1], [0, 0, 1, 1], [], []>} : vector<16x36xf32>, vector<36x100xf32>, vector<16x100xf32> -> vector<16x100xf32>
    %416 = arith.addf %412, %415 : vector<16x100xf32>
    %c3_240 = arith.constant 3 : index
    %c0_241 = arith.constant 0 : index
    %c0_242 = arith.constant 0 : index
    %417 = vector.load %arg58[%c3_240, %c0_241, %c0_242] : memref<4x36x100xf32, #tpu.memory_space<vmem>>, vector<1x36x100xf32>
    %418 = vector.shape_cast %417 : vector<1x36x100xf32> to vector<36x100xf32>
    %cst_243 = arith.constant dense<0.000000e+00> : vector<16x100xf32>
    %419 = tpu.matmul %405, %418, %cst_243 {dimension_numbers = #tpu.dot_dimension_numbers<[1], [0], [0], [1], [0, 0, 1, 1], [], []>} : vector<16x36xf32>, vector<36x100xf32>, vector<16x100xf32> -> vector<16x100xf32>
    %420 = arith.addf %416, %419 : vector<16x100xf32>
    %c0_244 = arith.constant 0 : index
    %c0_245 = arith.constant 0 : index
    %421 = vector.load %arg41[%c0_244, %c0_245] : memref<16x1xf32, #tpu.memory_space<vmem>>, vector<16x1xf32>
    %422 = vector.broadcast %421 : vector<16x1xf32> to vector<16x100xf32>
    %423 = arith.addf %420, %422 : vector<16x100xf32>
    %424 = vector.broadcast %1 : vector<1x100xf32> to vector<16x100xf32>
    %425 = arith.mulf %423, %424 : vector<16x100xf32>
    %426 = tpu.concatenate %132, %425 in 0 : vector<16x100xf32>, vector<16x100xf32> -> vector<32x100xf32>
    %cst_246 = arith.constant 0.000000e+00 : f32
    %427 = vector.broadcast %cst_246 : f32 to vector<32x11xf32>
    %428 = tpu.concatenate %427, %426, %427 in 1 : vector<32x11xf32>, vector<32x100xf32>, vector<32x11xf32> -> vector<32x122xf32>
    %429 = vector.extract_strided_slice %428 {offsets = [0, 0], sizes = [32, 100], strides = [1, 1]} : vector<32x122xf32> to vector<32x100xf32>
    %430 = vector.extract_strided_slice %428 {offsets = [0, 1], sizes = [32, 100], strides = [1, 1]} : vector<32x122xf32> to vector<32x100xf32>
    %431 = vector.extract_strided_slice %428 {offsets = [0, 2], sizes = [32, 100], strides = [1, 1]} : vector<32x122xf32> to vector<32x100xf32>
    %432 = vector.extract_strided_slice %428 {offsets = [0, 10], sizes = [32, 100], strides = [1, 1]} : vector<32x122xf32> to vector<32x100xf32>
    %433 = vector.extract_strided_slice %428 {offsets = [0, 11], sizes = [32, 100], strides = [1, 1]} : vector<32x122xf32> to vector<32x100xf32>
    %434 = vector.extract_strided_slice %428 {offsets = [0, 12], sizes = [32, 100], strides = [1, 1]} : vector<32x122xf32> to vector<32x100xf32>
    %435 = vector.extract_strided_slice %428 {offsets = [0, 20], sizes = [32, 100], strides = [1, 1]} : vector<32x122xf32> to vector<32x100xf32>
    %436 = vector.extract_strided_slice %428 {offsets = [0, 21], sizes = [32, 100], strides = [1, 1]} : vector<32x122xf32> to vector<32x100xf32>
    %437 = vector.extract_strided_slice %428 {offsets = [0, 22], sizes = [32, 100], strides = [1, 1]} : vector<32x122xf32> to vector<32x100xf32>
    %438 = tpu.concatenate %429, %430, %431, %432, %433, %434, %435, %436, %437 in 0 : vector<32x100xf32>, vector<32x100xf32>, vector<32x100xf32>, vector<32x100xf32>, vector<32x100xf32>, vector<32x100xf32>, vector<32x100xf32>, vector<32x100xf32>, vector<32x100xf32> -> vector<288x100xf32>
    %c0_247 = arith.constant 0 : index
    %c0_248 = arith.constant 0 : index
    %439 = vector.load %arg42[%c0_247, %c0_248] : memref<16x288xf32, #tpu.memory_space<vmem>>, vector<16x288xf32>
    %cst_249 = arith.constant dense<0.000000e+00> : vector<16x100xf32>
    %440 = tpu.matmul %439, %438, %cst_249 {dimension_numbers = #tpu.dot_dimension_numbers<[1], [0], [0], [1], [0, 0, 1, 1], [], []>} : vector<16x288xf32>, vector<288x100xf32>, vector<16x100xf32> -> vector<16x100xf32>
    %c0_250 = arith.constant 0 : index
    %c0_251 = arith.constant 0 : index
    %441 = vector.load %arg43[%c0_250, %c0_251] : memref<16x1xf32, #tpu.memory_space<vmem>>, vector<16x1xf32>
    %442 = vector.broadcast %441 : vector<16x1xf32> to vector<16x100xf32>
    %443 = arith.addf %440, %442 : vector<16x100xf32>
    %444 = vector.broadcast %1 : vector<1x100xf32> to vector<16x100xf32>
    %445 = arith.mulf %443, %444 : vector<16x100xf32>
    %cst_252 = arith.constant 0.000000e+00 : f32
    %446 = vector.broadcast %cst_252 : f32 to vector<16x11xf32>
    %447 = tpu.concatenate %446, %445, %446 in 1 : vector<16x11xf32>, vector<16x100xf32>, vector<16x11xf32> -> vector<16x122xf32>
    %448 = vector.extract_strided_slice %447 {offsets = [0, 0], sizes = [16, 100], strides = [1, 1]} : vector<16x122xf32> to vector<16x100xf32>
    %449 = vector.extract_strided_slice %447 {offsets = [0, 1], sizes = [16, 100], strides = [1, 1]} : vector<16x122xf32> to vector<16x100xf32>
    %450 = vector.extract_strided_slice %447 {offsets = [0, 2], sizes = [16, 100], strides = [1, 1]} : vector<16x122xf32> to vector<16x100xf32>
    %451 = vector.extract_strided_slice %447 {offsets = [0, 10], sizes = [16, 100], strides = [1, 1]} : vector<16x122xf32> to vector<16x100xf32>
    %452 = vector.extract_strided_slice %447 {offsets = [0, 11], sizes = [16, 100], strides = [1, 1]} : vector<16x122xf32> to vector<16x100xf32>
    %453 = vector.extract_strided_slice %447 {offsets = [0, 12], sizes = [16, 100], strides = [1, 1]} : vector<16x122xf32> to vector<16x100xf32>
    %454 = vector.extract_strided_slice %447 {offsets = [0, 20], sizes = [16, 100], strides = [1, 1]} : vector<16x122xf32> to vector<16x100xf32>
    %455 = vector.extract_strided_slice %447 {offsets = [0, 21], sizes = [16, 100], strides = [1, 1]} : vector<16x122xf32> to vector<16x100xf32>
    %456 = vector.extract_strided_slice %447 {offsets = [0, 22], sizes = [16, 100], strides = [1, 1]} : vector<16x122xf32> to vector<16x100xf32>
    %457 = tpu.concatenate %448, %449, %450, %451, %452, %453, %454, %455, %456 in 0 : vector<16x100xf32>, vector<16x100xf32>, vector<16x100xf32>, vector<16x100xf32>, vector<16x100xf32>, vector<16x100xf32>, vector<16x100xf32>, vector<16x100xf32>, vector<16x100xf32> -> vector<144x100xf32>
    %c0_253 = arith.constant 0 : index
    %c0_254 = arith.constant 0 : index
    %458 = vector.load %arg44[%c0_253, %c0_254] : memref<16x144xf32, #tpu.memory_space<vmem>>, vector<16x144xf32>
    %cst_255 = arith.constant dense<0.000000e+00> : vector<16x100xf32>
    %459 = tpu.matmul %458, %457, %cst_255 {dimension_numbers = #tpu.dot_dimension_numbers<[1], [0], [0], [1], [0, 0, 1, 1], [], []>} : vector<16x144xf32>, vector<144x100xf32>, vector<16x100xf32> -> vector<16x100xf32>
    %c0_256 = arith.constant 0 : index
    %c0_257 = arith.constant 0 : index
    %460 = vector.load %arg45[%c0_256, %c0_257] : memref<16x1xf32, #tpu.memory_space<vmem>>, vector<16x1xf32>
    %461 = vector.broadcast %460 : vector<16x1xf32> to vector<16x100xf32>
    %462 = arith.addf %459, %461 : vector<16x100xf32>
    %463 = vector.broadcast %1 : vector<1x100xf32> to vector<16x100xf32>
    %464 = arith.mulf %462, %463 : vector<16x100xf32>
    %cst_258 = arith.constant 0.000000e+00 : f32
    %465 = vector.broadcast %cst_258 : f32 to vector<16x11xf32>
    %466 = tpu.concatenate %465, %464, %465 in 1 : vector<16x11xf32>, vector<16x100xf32>, vector<16x11xf32> -> vector<16x122xf32>
    %467 = vector.extract_strided_slice %466 {offsets = [0, 11], sizes = [16, 100], strides = [1, 1]} : vector<16x122xf32> to vector<16x100xf32>
    %468 = vector.extract_strided_slice %466 {offsets = [0, 12], sizes = [16, 100], strides = [1, 1]} : vector<16x122xf32> to vector<16x100xf32>
    %469 = vector.extract_strided_slice %466 {offsets = [0, 21], sizes = [16, 100], strides = [1, 1]} : vector<16x122xf32> to vector<16x100xf32>
    %470 = vector.extract_strided_slice %466 {offsets = [0, 22], sizes = [16, 100], strides = [1, 1]} : vector<16x122xf32> to vector<16x100xf32>
    %c1_259 = arith.constant 1 : index
    %c1_260 = arith.constant 1 : index
    %c0_261 = arith.constant 0 : index
    %c0_262 = arith.constant 0 : index
    %471 = vector.load %arg46[%c1_259, %c1_260, %c0_261, %c0_262] : memref<3x3x8x16xf32, #tpu.memory_space<vmem>>, vector<1x1x8x16xf32>
    %472 = vector.shape_cast %471 : vector<1x1x8x16xf32> to vector<8x16xf32>
    %cst_263 = arith.constant dense<0.000000e+00> : vector<8x100xf32>
    %473 = tpu.matmul %472, %467, %cst_263 {dimension_numbers = #tpu.dot_dimension_numbers<[1], [0], [0], [1], [0, 0, 1, 1], [], []>} : vector<8x16xf32>, vector<16x100xf32>, vector<8x100xf32> -> vector<8x100xf32>
    %c1_264 = arith.constant 1 : index
    %c0_265 = arith.constant 0 : index
    %c0_266 = arith.constant 0 : index
    %c0_267 = arith.constant 0 : index
    %474 = vector.load %arg46[%c1_264, %c0_265, %c0_266, %c0_267] : memref<3x3x8x16xf32, #tpu.memory_space<vmem>>, vector<1x1x8x16xf32>
    %475 = vector.shape_cast %474 : vector<1x1x8x16xf32> to vector<8x16xf32>
    %cst_268 = arith.constant dense<0.000000e+00> : vector<8x100xf32>
    %476 = tpu.matmul %475, %467, %cst_268 {dimension_numbers = #tpu.dot_dimension_numbers<[1], [0], [0], [1], [0, 0, 1, 1], [], []>} : vector<8x16xf32>, vector<16x100xf32>, vector<8x100xf32> -> vector<8x100xf32>
    %c1_269 = arith.constant 1 : index
    %c2_270 = arith.constant 2 : index
    %c0_271 = arith.constant 0 : index
    %c0_272 = arith.constant 0 : index
    %477 = vector.load %arg46[%c1_269, %c2_270, %c0_271, %c0_272] : memref<3x3x8x16xf32, #tpu.memory_space<vmem>>, vector<1x1x8x16xf32>
    %478 = vector.shape_cast %477 : vector<1x1x8x16xf32> to vector<8x16xf32>
    %cst_273 = arith.constant dense<0.000000e+00> : vector<8x100xf32>
    %479 = tpu.matmul %478, %468, %cst_273 {dimension_numbers = #tpu.dot_dimension_numbers<[1], [0], [0], [1], [0, 0, 1, 1], [], []>} : vector<8x16xf32>, vector<16x100xf32>, vector<8x100xf32> -> vector<8x100xf32>
    %480 = arith.addf %476, %479 : vector<8x100xf32>
    %c0_274 = arith.constant 0 : index
    %c1_275 = arith.constant 1 : index
    %c0_276 = arith.constant 0 : index
    %c0_277 = arith.constant 0 : index
    %481 = vector.load %arg46[%c0_274, %c1_275, %c0_276, %c0_277] : memref<3x3x8x16xf32, #tpu.memory_space<vmem>>, vector<1x1x8x16xf32>
    %482 = vector.shape_cast %481 : vector<1x1x8x16xf32> to vector<8x16xf32>
    %cst_278 = arith.constant dense<0.000000e+00> : vector<8x100xf32>
    %483 = tpu.matmul %482, %467, %cst_278 {dimension_numbers = #tpu.dot_dimension_numbers<[1], [0], [0], [1], [0, 0, 1, 1], [], []>} : vector<8x16xf32>, vector<16x100xf32>, vector<8x100xf32> -> vector<8x100xf32>
    %c2_279 = arith.constant 2 : index
    %c1_280 = arith.constant 1 : index
    %c0_281 = arith.constant 0 : index
    %c0_282 = arith.constant 0 : index
    %484 = vector.load %arg46[%c2_279, %c1_280, %c0_281, %c0_282] : memref<3x3x8x16xf32, #tpu.memory_space<vmem>>, vector<1x1x8x16xf32>
    %485 = vector.shape_cast %484 : vector<1x1x8x16xf32> to vector<8x16xf32>
    %cst_283 = arith.constant dense<0.000000e+00> : vector<8x100xf32>
    %486 = tpu.matmul %485, %469, %cst_283 {dimension_numbers = #tpu.dot_dimension_numbers<[1], [0], [0], [1], [0, 0, 1, 1], [], []>} : vector<8x16xf32>, vector<16x100xf32>, vector<8x100xf32> -> vector<8x100xf32>
    %487 = arith.addf %483, %486 : vector<8x100xf32>
    %c0_284 = arith.constant 0 : index
    %c0_285 = arith.constant 0 : index
    %c0_286 = arith.constant 0 : index
    %c0_287 = arith.constant 0 : index
    %488 = vector.load %arg46[%c0_284, %c0_285, %c0_286, %c0_287] : memref<3x3x8x16xf32, #tpu.memory_space<vmem>>, vector<1x1x8x16xf32>
    %489 = vector.shape_cast %488 : vector<1x1x8x16xf32> to vector<8x16xf32>
    %cst_288 = arith.constant dense<0.000000e+00> : vector<8x100xf32>
    %490 = tpu.matmul %489, %467, %cst_288 {dimension_numbers = #tpu.dot_dimension_numbers<[1], [0], [0], [1], [0, 0, 1, 1], [], []>} : vector<8x16xf32>, vector<16x100xf32>, vector<8x100xf32> -> vector<8x100xf32>
    %c0_289 = arith.constant 0 : index
    %c2_290 = arith.constant 2 : index
    %c0_291 = arith.constant 0 : index
    %c0_292 = arith.constant 0 : index
    %491 = vector.load %arg46[%c0_289, %c2_290, %c0_291, %c0_292] : memref<3x3x8x16xf32, #tpu.memory_space<vmem>>, vector<1x1x8x16xf32>
    %492 = vector.shape_cast %491 : vector<1x1x8x16xf32> to vector<8x16xf32>
    %cst_293 = arith.constant dense<0.000000e+00> : vector<8x100xf32>
    %493 = tpu.matmul %492, %468, %cst_293 {dimension_numbers = #tpu.dot_dimension_numbers<[1], [0], [0], [1], [0, 0, 1, 1], [], []>} : vector<8x16xf32>, vector<16x100xf32>, vector<8x100xf32> -> vector<8x100xf32>
    %494 = arith.addf %490, %493 : vector<8x100xf32>
    %c2_294 = arith.constant 2 : index
    %c0_295 = arith.constant 0 : index
    %c0_296 = arith.constant 0 : index
    %c0_297 = arith.constant 0 : index
    %495 = vector.load %arg46[%c2_294, %c0_295, %c0_296, %c0_297] : memref<3x3x8x16xf32, #tpu.memory_space<vmem>>, vector<1x1x8x16xf32>
    %496 = vector.shape_cast %495 : vector<1x1x8x16xf32> to vector<8x16xf32>
    %cst_298 = arith.constant dense<0.000000e+00> : vector<8x100xf32>
    %497 = tpu.matmul %496, %469, %cst_298 {dimension_numbers = #tpu.dot_dimension_numbers<[1], [0], [0], [1], [0, 0, 1, 1], [], []>} : vector<8x16xf32>, vector<16x100xf32>, vector<8x100xf32> -> vector<8x100xf32>
    %498 = arith.addf %494, %497 : vector<8x100xf32>
    %c2_299 = arith.constant 2 : index
    %c2_300 = arith.constant 2 : index
    %c0_301 = arith.constant 0 : index
    %c0_302 = arith.constant 0 : index
    %499 = vector.load %arg46[%c2_299, %c2_300, %c0_301, %c0_302] : memref<3x3x8x16xf32, #tpu.memory_space<vmem>>, vector<1x1x8x16xf32>
    %500 = vector.shape_cast %499 : vector<1x1x8x16xf32> to vector<8x16xf32>
    %cst_303 = arith.constant dense<0.000000e+00> : vector<8x100xf32>
    %501 = tpu.matmul %500, %470, %cst_303 {dimension_numbers = #tpu.dot_dimension_numbers<[1], [0], [0], [1], [0, 0, 1, 1], [], []>} : vector<8x16xf32>, vector<16x100xf32>, vector<8x100xf32> -> vector<8x100xf32>
    %502 = arith.addf %498, %501 : vector<8x100xf32>
    %c0_304 = arith.constant 0 : index
    %c0_305 = arith.constant 0 : index
    %c0_306 = arith.constant 0 : index
    %503 = vector.load %arg59[%c0_304, %c0_305, %c0_306] : memref<4x100x324xf32, #tpu.memory_space<vmem>>, vector<1x100x324xf32>
    %504 = vector.shape_cast %503 : vector<1x100x324xf32> to vector<100x324xf32>
    %cst_307 = arith.constant dense<0.000000e+00> : vector<8x324xf32>
    %505 = tpu.matmul %473, %504, %cst_307 {dimension_numbers = #tpu.dot_dimension_numbers<[1], [0], [0], [1], [0, 0, 1, 1], [], []>} : vector<8x100xf32>, vector<100x324xf32>, vector<8x324xf32> -> vector<8x324xf32>
    %c1_308 = arith.constant 1 : index
    %c0_309 = arith.constant 0 : index
    %c0_310 = arith.constant 0 : index
    %506 = vector.load %arg59[%c1_308, %c0_309, %c0_310] : memref<4x100x324xf32, #tpu.memory_space<vmem>>, vector<1x100x324xf32>
    %507 = vector.shape_cast %506 : vector<1x100x324xf32> to vector<100x324xf32>
    %cst_311 = arith.constant dense<0.000000e+00> : vector<8x324xf32>
    %508 = tpu.matmul %480, %507, %cst_311 {dimension_numbers = #tpu.dot_dimension_numbers<[1], [0], [0], [1], [0, 0, 1, 1], [], []>} : vector<8x100xf32>, vector<100x324xf32>, vector<8x324xf32> -> vector<8x324xf32>
    %509 = arith.addf %505, %508 : vector<8x324xf32>
    %c2_312 = arith.constant 2 : index
    %c0_313 = arith.constant 0 : index
    %c0_314 = arith.constant 0 : index
    %510 = vector.load %arg59[%c2_312, %c0_313, %c0_314] : memref<4x100x324xf32, #tpu.memory_space<vmem>>, vector<1x100x324xf32>
    %511 = vector.shape_cast %510 : vector<1x100x324xf32> to vector<100x324xf32>
    %cst_315 = arith.constant dense<0.000000e+00> : vector<8x324xf32>
    %512 = tpu.matmul %487, %511, %cst_315 {dimension_numbers = #tpu.dot_dimension_numbers<[1], [0], [0], [1], [0, 0, 1, 1], [], []>} : vector<8x100xf32>, vector<100x324xf32>, vector<8x324xf32> -> vector<8x324xf32>
    %513 = arith.addf %509, %512 : vector<8x324xf32>
    %c3_316 = arith.constant 3 : index
    %c0_317 = arith.constant 0 : index
    %c0_318 = arith.constant 0 : index
    %514 = vector.load %arg59[%c3_316, %c0_317, %c0_318] : memref<4x100x324xf32, #tpu.memory_space<vmem>>, vector<1x100x324xf32>
    %515 = vector.shape_cast %514 : vector<1x100x324xf32> to vector<100x324xf32>
    %cst_319 = arith.constant dense<0.000000e+00> : vector<8x324xf32>
    %516 = tpu.matmul %502, %515, %cst_319 {dimension_numbers = #tpu.dot_dimension_numbers<[1], [0], [0], [1], [0, 0, 1, 1], [], []>} : vector<8x100xf32>, vector<100x324xf32>, vector<8x324xf32> -> vector<8x324xf32>
    %517 = arith.addf %513, %516 : vector<8x324xf32>
    %c0_320 = arith.constant 0 : index
    %c0_321 = arith.constant 0 : index
    %518 = vector.load %arg47[%c0_320, %c0_321] : memref<8x1xf32, #tpu.memory_space<vmem>>, vector<8x1xf32>
    %519 = vector.broadcast %518 : vector<8x1xf32> to vector<8x324xf32>
    %520 = arith.addf %517, %519 : vector<8x324xf32>
    %521 = vector.broadcast %0 : vector<1x324xf32> to vector<8x324xf32>
    %522 = arith.mulf %520, %521 : vector<8x324xf32>
    %523 = tpu.concatenate %63, %522 in 0 : vector<8x324xf32>, vector<8x324xf32> -> vector<16x324xf32>
    %c0_322 = arith.constant 0 : index
    %c0_323 = arith.constant 0 : index
    %524 = vector.load %arg48[%c0_322, %c0_323] : memref<2x16xf32, #tpu.memory_space<vmem>>, vector<2x16xf32>
    %cst_324 = arith.constant dense<0.000000e+00> : vector<2x324xf32>
    %525 = tpu.matmul %524, %523, %cst_324 {dimension_numbers = #tpu.dot_dimension_numbers<[1], [0], [0], [1], [0, 0, 1, 1], [], []>} : vector<2x16xf32>, vector<16x324xf32>, vector<2x324xf32> -> vector<2x324xf32>
    %c0_325 = arith.constant 0 : index
    %c0_326 = arith.constant 0 : index
    %526 = vector.load %arg49[%c0_325, %c0_326] : memref<2x1xf32, #tpu.memory_space<vmem>>, vector<2x1xf32>
    %527 = vector.broadcast %526 : vector<2x1xf32> to vector<2x324xf32>
    %528 = arith.addf %525, %527 : vector<2x324xf32>
    %cst_327 = arith.constant 0.000000e+00 : f32
    %529 = vector.broadcast %cst_327 : f32 to vector<2x324xf32>
    %530 = arith.subf %529, %528 : vector<2x324xf32>
    %531 = math.exp %530 : vector<2x324xf32>
    %cst_328 = arith.constant 1.000000e+00 : f32
    %532 = vector.broadcast %cst_328 : f32 to vector<2x324xf32>
    %533 = arith.addf %532, %531 : vector<2x324xf32>
    %cst_329 = arith.constant 1.000000e+00 : f32
    %534 = vector.broadcast %cst_329 : f32 to vector<2x324xf32>
    %535 = arith.divf %534, %533 : vector<2x324xf32>
    %c0_330 = arith.constant 0 : index
    %c0_331 = arith.constant 0 : index
    %c0_332 = arith.constant 0 : index
    %536 = vector.load %arg60[%c0_330, %c0_331, %c0_332] : memref<1x2x324xf32, #tpu.memory_space<vmem>>, vector<1x2x324xf32>
    %537 = vector.shape_cast %536 : vector<1x2x324xf32> to vector<2x324xf32>
    %538 = vector.shape_cast %535 : vector<2x324xf32> to vector<1x2x324xf32>
    tpu.vector_store %arg60[%c0_330, %c0_331, %c0_332], %538 {strides = array<i32>} : memref<1x2x324xf32, #tpu.memory_space<vmem>>, vector<1x2x324xf32>,
    return
  }
  func.func @transform_0(%arg0: i32) -> (i32, i32, i32) {
    %c0_i32 = arith.constant 0 : i32
    %c0_i32_0 = arith.constant 0 : i32
    %c0_i32_1 = arith.constant 0 : i32
    return %arg0, %c0_i32, %c0_i32_0 : i32, i32, i32
  }
  func.func @transform_1(%arg0: i32) -> (i32, i32) {
    %c0_i32 = arith.constant 0 : i32
    %c0_i32_0 = arith.constant 0 : i32
    %c0_i32_1 = arith.constant 0 : i32
    return %c0_i32, %c0_i32_0 : i32, i32
  }
  func.func @transform_2(%arg0: i32) -> (i32, i32) {
    %c0_i32 = arith.constant 0 : i32
    %c0_i32_0 = arith.constant 0 : i32
    %c0_i32_1 = arith.constant 0 : i32
    return %c0_i32, %c0_i32_0 : i32, i32
  }
  func.func @transform_3(%arg0: i32) -> (i32, i32) {
    %c0_i32 = arith.constant 0 : i32
    %c0_i32_0 = arith.constant 0 : i32
    %c0_i32_1 = arith.constant 0 : i32
    return %c0_i32, %c0_i32_0 : i32, i32
  }
  func.func @transform_4(%arg0: i32) -> (i32, i32) {
    %c0_i32 = arith.constant 0 : i32
    %c0_i32_0 = arith.constant 0 : i32
    %c0_i32_1 = arith.constant 0 : i32
    return %c0_i32, %c0_i32_0 : i32, i32
  }
  func.func @transform_5(%arg0: i32) -> (i32, i32) {
    %c0_i32 = arith.constant 0 : i32
    %c0_i32_0 = arith.constant 0 : i32
    %c0_i32_1 = arith.constant 0 : i32
    return %c0_i32, %c0_i32_0 : i32, i32
  }
  func.func @transform_6(%arg0: i32) -> (i32, i32) {
    %c0_i32 = arith.constant 0 : i32
    %c0_i32_0 = arith.constant 0 : i32
    %c0_i32_1 = arith.constant 0 : i32
    return %c0_i32, %c0_i32_0 : i32, i32
  }
  func.func @transform_7(%arg0: i32) -> (i32, i32) {
    %c0_i32 = arith.constant 0 : i32
    %c0_i32_0 = arith.constant 0 : i32
    %c0_i32_1 = arith.constant 0 : i32
    return %c0_i32, %c0_i32_0 : i32, i32
  }
  func.func @transform_8(%arg0: i32) -> (i32, i32) {
    %c0_i32 = arith.constant 0 : i32
    %c0_i32_0 = arith.constant 0 : i32
    %c0_i32_1 = arith.constant 0 : i32
    return %c0_i32, %c0_i32_0 : i32, i32
  }
  func.func @transform_9(%arg0: i32) -> (i32, i32) {
    %c0_i32 = arith.constant 0 : i32
    %c0_i32_0 = arith.constant 0 : i32
    %c0_i32_1 = arith.constant 0 : i32
    return %c0_i32, %c0_i32_0 : i32, i32
  }
  func.func @transform_10(%arg0: i32) -> (i32, i32) {
    %c0_i32 = arith.constant 0 : i32
    %c0_i32_0 = arith.constant 0 : i32
    %c0_i32_1 = arith.constant 0 : i32
    return %c0_i32, %c0_i32_0 : i32, i32
  }
  func.func @transform_11(%arg0: i32) -> (i32, i32) {
    %c0_i32 = arith.constant 0 : i32
    %c0_i32_0 = arith.constant 0 : i32
    %c0_i32_1 = arith.constant 0 : i32
    return %c0_i32, %c0_i32_0 : i32, i32
  }
  func.func @transform_12(%arg0: i32) -> (i32, i32) {
    %c0_i32 = arith.constant 0 : i32
    %c0_i32_0 = arith.constant 0 : i32
    %c0_i32_1 = arith.constant 0 : i32
    return %c0_i32, %c0_i32_0 : i32, i32
  }
  func.func @transform_13(%arg0: i32) -> (i32, i32) {
    %c0_i32 = arith.constant 0 : i32
    %c0_i32_0 = arith.constant 0 : i32
    %c0_i32_1 = arith.constant 0 : i32
    return %c0_i32, %c0_i32_0 : i32, i32
  }
  func.func @transform_14(%arg0: i32) -> (i32, i32) {
    %c0_i32 = arith.constant 0 : i32
    %c0_i32_0 = arith.constant 0 : i32
    %c0_i32_1 = arith.constant 0 : i32
    return %c0_i32, %c0_i32_0 : i32, i32
  }
  func.func @transform_15(%arg0: i32) -> (i32, i32) {
    %c0_i32 = arith.constant 0 : i32
    %c0_i32_0 = arith.constant 0 : i32
    %c0_i32_1 = arith.constant 0 : i32
    return %c0_i32, %c0_i32_0 : i32, i32
  }
  func.func @transform_16(%arg0: i32) -> (i32, i32) {
    %c0_i32 = arith.constant 0 : i32
    %c0_i32_0 = arith.constant 0 : i32
    %c0_i32_1 = arith.constant 0 : i32
    return %c0_i32, %c0_i32_0 : i32, i32
  }
  func.func @transform_17(%arg0: i32) -> (i32, i32) {
    %c0_i32 = arith.constant 0 : i32
    %c0_i32_0 = arith.constant 0 : i32
    %c0_i32_1 = arith.constant 0 : i32
    return %c0_i32, %c0_i32_0 : i32, i32
  }
  func.func @transform_18(%arg0: i32) -> (i32, i32) {
    %c0_i32 = arith.constant 0 : i32
    %c0_i32_0 = arith.constant 0 : i32
    %c0_i32_1 = arith.constant 0 : i32
    return %c0_i32, %c0_i32_0 : i32, i32
  }
  func.func @transform_19(%arg0: i32) -> (i32, i32) {
    %c0_i32 = arith.constant 0 : i32
    %c0_i32_0 = arith.constant 0 : i32
    %c0_i32_1 = arith.constant 0 : i32
    return %c0_i32, %c0_i32_0 : i32, i32
  }
  func.func @transform_20(%arg0: i32) -> (i32, i32) {
    %c0_i32 = arith.constant 0 : i32
    %c0_i32_0 = arith.constant 0 : i32
    %c0_i32_1 = arith.constant 0 : i32
    return %c0_i32, %c0_i32_0 : i32, i32
  }
  func.func @transform_21(%arg0: i32) -> (i32, i32) {
    %c0_i32 = arith.constant 0 : i32
    %c0_i32_0 = arith.constant 0 : i32
    %c0_i32_1 = arith.constant 0 : i32
    return %c0_i32, %c0_i32_0 : i32, i32
  }
  func.func @transform_22(%arg0: i32) -> (i32, i32) {
    %c0_i32 = arith.constant 0 : i32
    %c0_i32_0 = arith.constant 0 : i32
    %c0_i32_1 = arith.constant 0 : i32
    return %c0_i32, %c0_i32_0 : i32, i32
  }
  func.func @transform_23(%arg0: i32) -> (i32, i32) {
    %c0_i32 = arith.constant 0 : i32
    %c0_i32_0 = arith.constant 0 : i32
    %c0_i32_1 = arith.constant 0 : i32
    return %c0_i32, %c0_i32_0 : i32, i32
  }
  func.func @transform_24(%arg0: i32) -> (i32, i32) {
    %c0_i32 = arith.constant 0 : i32
    %c0_i32_0 = arith.constant 0 : i32
    %c0_i32_1 = arith.constant 0 : i32
    return %c0_i32, %c0_i32_0 : i32, i32
  }
  func.func @transform_25(%arg0: i32) -> (i32, i32) {
    %c0_i32 = arith.constant 0 : i32
    %c0_i32_0 = arith.constant 0 : i32
    %c0_i32_1 = arith.constant 0 : i32
    return %c0_i32, %c0_i32_0 : i32, i32
  }
  func.func @transform_26(%arg0: i32) -> (i32, i32) {
    %c0_i32 = arith.constant 0 : i32
    %c0_i32_0 = arith.constant 0 : i32
    %c0_i32_1 = arith.constant 0 : i32
    return %c0_i32, %c0_i32_0 : i32, i32
  }
  func.func @transform_27(%arg0: i32) -> (i32, i32) {
    %c0_i32 = arith.constant 0 : i32
    %c0_i32_0 = arith.constant 0 : i32
    %c0_i32_1 = arith.constant 0 : i32
    return %c0_i32, %c0_i32_0 : i32, i32
  }
  func.func @transform_28(%arg0: i32) -> (i32, i32) {
    %c0_i32 = arith.constant 0 : i32
    %c0_i32_0 = arith.constant 0 : i32
    %c0_i32_1 = arith.constant 0 : i32
    return %c0_i32, %c0_i32_0 : i32, i32
  }
  func.func @transform_29(%arg0: i32) -> (i32, i32) {
    %c0_i32 = arith.constant 0 : i32
    %c0_i32_0 = arith.constant 0 : i32
    %c0_i32_1 = arith.constant 0 : i32
    return %c0_i32, %c0_i32_0 : i32, i32
  }
  func.func @transform_30(%arg0: i32) -> (i32, i32) {
    %c0_i32 = arith.constant 0 : i32
    %c0_i32_0 = arith.constant 0 : i32
    %c0_i32_1 = arith.constant 0 : i32
    return %c0_i32, %c0_i32_0 : i32, i32
  }
  func.func @transform_31(%arg0: i32) -> (i32, i32) {
    %c0_i32 = arith.constant 0 : i32
    %c0_i32_0 = arith.constant 0 : i32
    %c0_i32_1 = arith.constant 0 : i32
    return %c0_i32, %c0_i32_0 : i32, i32
  }
  func.func @transform_32(%arg0: i32) -> (i32, i32) {
    %c0_i32 = arith.constant 0 : i32
    %c0_i32_0 = arith.constant 0 : i32
    %c0_i32_1 = arith.constant 0 : i32
    return %c0_i32, %c0_i32_0 : i32, i32
  }
  func.func @transform_33(%arg0: i32) -> (i32, i32, i32, i32) {
    %c0_i32 = arith.constant 0 : i32
    %c0_i32_0 = arith.constant 0 : i32
    %c0_i32_1 = arith.constant 0 : i32
    %c0_i32_2 = arith.constant 0 : i32
    %c0_i32_3 = arith.constant 0 : i32
    return %c0_i32, %c0_i32_0, %c0_i32_1, %c0_i32_2 : i32, i32, i32, i32
  }
  func.func @transform_34(%arg0: i32) -> (i32, i32) {
    %c0_i32 = arith.constant 0 : i32
    %c0_i32_0 = arith.constant 0 : i32
    %c0_i32_1 = arith.constant 0 : i32
    return %c0_i32, %c0_i32_0 : i32, i32
  }
  func.func @transform_35(%arg0: i32) -> (i32, i32) {
    %c0_i32 = arith.constant 0 : i32
    %c0_i32_0 = arith.constant 0 : i32
    %c0_i32_1 = arith.constant 0 : i32
    return %c0_i32, %c0_i32_0 : i32, i32
  }
  func.func @transform_36(%arg0: i32) -> (i32, i32) {
    %c0_i32 = arith.constant 0 : i32
    %c0_i32_0 = arith.constant 0 : i32
    %c0_i32_1 = arith.constant 0 : i32
    return %c0_i32, %c0_i32_0 : i32, i32
  }
  func.func @transform_37(%arg0: i32) -> (i32, i32) {
    %c0_i32 = arith.constant 0 : i32
    %c0_i32_0 = arith.constant 0 : i32
    %c0_i32_1 = arith.constant 0 : i32
    return %c0_i32, %c0_i32_0 : i32, i32
  }
  func.func @transform_38(%arg0: i32) -> (i32, i32) {
    %c0_i32 = arith.constant 0 : i32
    %c0_i32_0 = arith.constant 0 : i32
    %c0_i32_1 = arith.constant 0 : i32
    return %c0_i32, %c0_i32_0 : i32, i32
  }
  func.func @transform_39(%arg0: i32) -> (i32, i32, i32, i32) {
    %c0_i32 = arith.constant 0 : i32
    %c0_i32_0 = arith.constant 0 : i32
    %c0_i32_1 = arith.constant 0 : i32
    %c0_i32_2 = arith.constant 0 : i32
    %c0_i32_3 = arith.constant 0 : i32
    return %c0_i32, %c0_i32_0, %c0_i32_1, %c0_i32_2 : i32, i32, i32, i32
  }
  func.func @transform_40(%arg0: i32) -> (i32, i32) {
    %c0_i32 = arith.constant 0 : i32
    %c0_i32_0 = arith.constant 0 : i32
    %c0_i32_1 = arith.constant 0 : i32
    return %c0_i32, %c0_i32_0 : i32, i32
  }
  func.func @transform_41(%arg0: i32) -> (i32, i32) {
    %c0_i32 = arith.constant 0 : i32
    %c0_i32_0 = arith.constant 0 : i32
    %c0_i32_1 = arith.constant 0 : i32
    return %c0_i32, %c0_i32_0 : i32, i32
  }
  func.func @transform_42(%arg0: i32) -> (i32, i32) {
    %c0_i32 = arith.constant 0 : i32
    %c0_i32_0 = arith.constant 0 : i32
    %c0_i32_1 = arith.constant 0 : i32
    return %c0_i32, %c0_i32_0 : i32, i32
  }
  func.func @transform_43(%arg0: i32) -> (i32, i32) {
    %c0_i32 = arith.constant 0 : i32
    %c0_i32_0 = arith.constant 0 : i32
    %c0_i32_1 = arith.constant 0 : i32
    return %c0_i32, %c0_i32_0 : i32, i32
  }
  func.func @transform_44(%arg0: i32) -> (i32, i32) {
    %c0_i32 = arith.constant 0 : i32
    %c0_i32_0 = arith.constant 0 : i32
    %c0_i32_1 = arith.constant 0 : i32
    return %c0_i32, %c0_i32_0 : i32, i32
  }
  func.func @transform_45(%arg0: i32) -> (i32, i32, i32, i32) {
    %c0_i32 = arith.constant 0 : i32
    %c0_i32_0 = arith.constant 0 : i32
    %c0_i32_1 = arith.constant 0 : i32
    %c0_i32_2 = arith.constant 0 : i32
    %c0_i32_3 = arith.constant 0 : i32
    return %c0_i32, %c0_i32_0, %c0_i32_1, %c0_i32_2 : i32, i32, i32, i32
  }
  func.func @transform_46(%arg0: i32) -> (i32, i32) {
    %c0_i32 = arith.constant 0 : i32
    %c0_i32_0 = arith.constant 0 : i32
    %c0_i32_1 = arith.constant 0 : i32
    return %c0_i32, %c0_i32_0 : i32, i32
  }
  func.func @transform_47(%arg0: i32) -> (i32, i32) {
    %c0_i32 = arith.constant 0 : i32
    %c0_i32_0 = arith.constant 0 : i32
    %c0_i32_1 = arith.constant 0 : i32
    return %c0_i32, %c0_i32_0 : i32, i32
  }
  func.func @transform_48(%arg0: i32) -> (i32, i32) {
    %c0_i32 = arith.constant 0 : i32
    %c0_i32_0 = arith.constant 0 : i32
    %c0_i32_1 = arith.constant 0 : i32
    return %c0_i32, %c0_i32_0 : i32, i32
  }
  func.func @transform_49(%arg0: i32) -> (i32, i32) {
    %c0_i32 = arith.constant 0 : i32
    %c0_i32_0 = arith.constant 0 : i32
    %c0_i32_1 = arith.constant 0 : i32
    return %c0_i32, %c0_i32_0 : i32, i32
  }
  func.func @transform_50(%arg0: i32) -> (i32, i32) {
    %c0_i32 = arith.constant 0 : i32
    %c0_i32_0 = arith.constant 0 : i32
    %c0_i32_1 = arith.constant 0 : i32
    return %c0_i32, %c0_i32_0 : i32, i32
  }
  func.func @transform_51(%arg0: i32) -> (i32, i32) {
    %c0_i32 = arith.constant 0 : i32
    %c0_i32_0 = arith.constant 0 : i32
    %c0_i32_1 = arith.constant 0 : i32
    return %c0_i32, %c0_i32_0 : i32, i32
  }
  func.func @transform_52(%arg0: i32) -> (i32, i32) {
    %c0_i32 = arith.constant 0 : i32
    %c0_i32_0 = arith.constant 0 : i32
    %c0_i32_1 = arith.constant 0 : i32
    return %c0_i32, %c0_i32_0 : i32, i32
  }
  func.func @transform_53(%arg0: i32) -> (i32, i32) {
    %c0_i32 = arith.constant 0 : i32
    %c0_i32_0 = arith.constant 0 : i32
    %c0_i32_1 = arith.constant 0 : i32
    return %c0_i32, %c0_i32_0 : i32, i32
  }
  func.func @transform_54(%arg0: i32) -> (i32, i32) {
    %c0_i32 = arith.constant 0 : i32
    %c0_i32_0 = arith.constant 0 : i32
    %c0_i32_1 = arith.constant 0 : i32
    return %c0_i32, %c0_i32_0 : i32, i32
  }
  func.func @transform_55(%arg0: i32) -> (i32, i32) {
    %c0_i32 = arith.constant 0 : i32
    %c0_i32_0 = arith.constant 0 : i32
    %c0_i32_1 = arith.constant 0 : i32
    return %c0_i32, %c0_i32_0 : i32, i32
  }
  func.func @transform_56(%arg0: i32) -> (i32, i32, i32) {
    %c0_i32 = arith.constant 0 : i32
    %c0_i32_0 = arith.constant 0 : i32
    %c0_i32_1 = arith.constant 0 : i32
    %c0_i32_2 = arith.constant 0 : i32
    return %c0_i32, %c0_i32_0, %c0_i32_1 : i32, i32, i32
  }
  func.func @transform_57(%arg0: i32) -> (i32, i32, i32) {
    %c0_i32 = arith.constant 0 : i32
    %c0_i32_0 = arith.constant 0 : i32
    %c0_i32_1 = arith.constant 0 : i32
    %c0_i32_2 = arith.constant 0 : i32
    return %c0_i32, %c0_i32_0, %c0_i32_1 : i32, i32, i32
  }
  func.func @transform_58(%arg0: i32) -> (i32, i32, i32) {
    %c0_i32 = arith.constant 0 : i32
    %c0_i32_0 = arith.constant 0 : i32
    %c0_i32_1 = arith.constant 0 : i32
    %c0_i32_2 = arith.constant 0 : i32
    return %c0_i32, %c0_i32_0, %c0_i32_1 : i32, i32, i32
  }
  func.func @transform_59(%arg0: i32) -> (i32, i32, i32) {
    %c0_i32 = arith.constant 0 : i32
    %c0_i32_0 = arith.constant 0 : i32
    %c0_i32_1 = arith.constant 0 : i32
    return %arg0, %c0_i32, %c0_i32_0 : i32, i32, i32
  }
}

</mosaic_0001>

<llo_original>
// kernel: unet_forward.1
$region0: #{unet_forward.1}
  #allocation0 [shape = 'u32[]', space=smem, size = 0x4, offset = 0x4, fixed_abs, tag = 'smem constant byte address 0x4 - core index']
  #allocation1 [shape = 'u32[72,128]{1,0:T(1,128)}', space=vmem, size = 0x9000, scoped, tag = 'internal scratch']
  %s0 = inlined_call_operand.smem [shape: u32[60], index: -1, kind: input, shape index: {}]
  %s1 = sld [smem:[%s0]]
  %s2 = scalar_lea.smem %s0, 1
  %s3 = sld [smem:[%s2]]
  %s4 = scalar_lea.smem %s0, 2
  %s5 = sld [smem:[%s4]]
  %s6 = scalar_lea.smem %s0, 3
  %s7 = sld [smem:[%s6]]
  %s8 = scalar_lea.smem %s0, 4
  %s9 = sld [smem:[%s8]]
  %s10 = scalar_lea.smem %s0, 5
  %s11 = sld [smem:[%s10]]
  %s12 = scalar_lea.smem %s0, 6
  %s13 = sld [smem:[%s12]]
  %s14 = scalar_lea.smem %s0, 7
  %s15 = sld [smem:[%s14]]
  %s16 = scalar_lea.smem %s0, 8
  %s17 = sld [smem:[%s16]]
  %s18 = scalar_lea.smem %s0, 9
  %s19 = sld [smem:[%s18]]
  %s20 = scalar_lea.smem %s0, 10
  %s21 = sld [smem:[%s20]]
  %s22 = scalar_lea.smem %s0, 11
  %s23 = sld [smem:[%s22]]
  %s24 = scalar_lea.smem %s0, 12
  %s25 = sld [smem:[%s24]]
  %s26 = scalar_lea.smem %s0, 13
  %s27 = sld [smem:[%s26]]
  %s28 = scalar_lea.smem %s0, 14
  %s29 = sld [smem:[%s28]]
  %s30 = scalar_lea.smem %s0, 15
  %s31 = sld [smem:[%s30]]
  %s32 = scalar_lea.smem %s0, 16
  %s33 = sld [smem:[%s32]]
  %s34 = scalar_lea.smem %s0, 17
  %s35 = sld [smem:[%s34]]
  %s36 = scalar_lea.smem %s0, 18
  %s37 = sld [smem:[%s36]]
  %s38 = scalar_lea.smem %s0, 19
  %s39 = sld [smem:[%s38]]
  %s40 = scalar_lea.smem %s0, 20
  %s41 = sld [smem:[%s40]]
  %s42 = scalar_lea.smem %s0, 21
  %s43 = sld [smem:[%s42]]
  %s44 = scalar_lea.smem %s0, 22
  %s45 = sld [smem:[%s44]]
  %s46 = scalar_lea.smem %s0, 23
  %s47 = sld [smem:[%s46]]
  %s48 = scalar_lea.smem %s0, 24
  %s49 = sld [smem:[%s48]]
  %s50 = scalar_lea.smem %s0, 25
  %s51 = sld [smem:[%s50]]
  %s52 = scalar_lea.smem %s0, 26
  %s53 = sld [smem:[%s52]]
  %s54 = scalar_lea.smem %s0, 27
  %s55 = sld [smem:[%s54]]
  %s56 = scalar_lea.smem %s0, 28
  %s57 = sld [smem:[%s56]]
  %s58 = scalar_lea.smem %s0, 29
  %s59 = sld [smem:[%s58]]
  %s60 = scalar_lea.smem %s0, 30
  %s61 = sld [smem:[%s60]]
  %s62 = scalar_lea.smem %s0, 31
  %s63 = sld [smem:[%s62]]
  %s64 = scalar_lea.smem %s0, 32
  %s65 = sld [smem:[%s64]]
  %s66 = scalar_lea.smem %s0, 33
  %s67 = sld [smem:[%s66]]
  %s68 = scalar_lea.smem %s0, 34
  %s69 = sld [smem:[%s68]]
  %s70 = scalar_lea.smem %s0, 35
  %s71 = sld [smem:[%s70]]
  %s72 = scalar_lea.smem %s0, 36
  %s73 = sld [smem:[%s72]]
  %s74 = scalar_lea.smem %s0, 37
  %s75 = sld [smem:[%s74]]
  %s76 = scalar_lea.smem %s0, 38
  %s77 = sld [smem:[%s76]]
  %s78 = scalar_lea.smem %s0, 39
  %s79 = sld [smem:[%s78]]
  %s80 = scalar_lea.smem %s0, 40
  %s81 = sld [smem:[%s80]]
  %s82 = scalar_lea.smem %s0, 41
  %s83 = sld [smem:[%s82]]
  %s84 = scalar_lea.smem %s0, 42
  %s85 = sld [smem:[%s84]]
  %s86 = scalar_lea.smem %s0, 43
  %s87 = sld [smem:[%s86]]
  %s88 = scalar_lea.smem %s0, 44
  %s89 = sld [smem:[%s88]]
  %s90 = scalar_lea.smem %s0, 45
  %s91 = sld [smem:[%s90]]
  %s92 = scalar_lea.smem %s0, 46
  %s93 = sld [smem:[%s92]]
  %s94 = scalar_lea.smem %s0, 47
  %s95 = sld [smem:[%s94]]
  %s96 = scalar_lea.smem %s0, 48
  %s97 = sld [smem:[%s96]]
  %s98 = scalar_lea.smem %s0, 49
  %s99 = sld [smem:[%s98]]
  %s100 = scalar_lea.smem %s0, 50
  %s101 = sld [smem:[%s100]]
  %s102 = scalar_lea.smem %s0, 51
  %s103 = sld [smem:[%s102]]
  %s104 = scalar_lea.smem %s0, 52
  %s105 = sld [smem:[%s104]]
  %s106 = scalar_lea.smem %s0, 53
  %s107 = sld [smem:[%s106]]
  %s108 = scalar_lea.smem %s0, 54
  %s109 = sld [smem:[%s108]]
  %s110 = scalar_lea.smem %s0, 55
  %s111 = sld [smem:[%s110]]
  %s112 = scalar_lea.smem %s0, 56
  %s113 = sld [smem:[%s112]]
  %s114 = scalar_lea.smem %s0, 57
  %s115 = sld [smem:[%s114]]
  %s116 = scalar_lea.smem %s0, 58
  %s117 = sld [smem:[%s116]]
  %s118 = scalar_lea.smem %s0, 59
  %s119 = sld [smem:[%s118]]
  %s120 = sld [smem:[#allocation0]]
  $region269: #{unet_forward.1} parent=0
    _
  %s122 = ssub.s32 1, %s120
  %s123 = scalar_select 0, %s122, %s120
  loop: start=0, step=1, limit=4
  $region2: #{unet_forward.1} parent=0 // loop_pre_header
    _
  $region3: #{unet_forward.1} parent=0 // loop_header
    %s125 = sphi 0, %s129
    %p126 = scmp.ge.s32.totalorder %s125, 4
    %s135 = sphi 0, %s137
    %s138 = sphi 0, %s135
    %s139 = sphi 0, %s138
    %s155 = sphi 0, %s139
    %s159 = sphi 0, %s159
    %s161 = sphi 0, %s159
    %s162 = sphi 0, %s161
    %s176 = sphi 0, %s162
    %s180 = sphi 0, %s180
    %s182 = sphi 0, %s180
    %s183 = sphi 0, %s182
    %s197 = sphi 0, %s183
    %s201 = sphi 0, %s201
    %s203 = sphi 0, %s201
    %s204 = sphi 0, %s203
    %s218 = sphi 0, %s204
    %s222 = sphi 0, %s222
    %s224 = sphi 0, %s222
    %s225 = sphi 0, %s224
    %s239 = sphi 0, %s225
    %s243 = sphi 0, %s243
    %s245 = sphi 0, %s243
    %s246 = sphi 0, %s245
    %s260 = sphi 0, %s246
    %s264 = sphi 0, %s264
    %s266 = sphi 0, %s264
    %s267 = sphi 0, %s266
    %s281 = sphi 0, %s267
    %s285 = sphi 0, %s285
    %s287 = sphi 0, %s285
    %s288 = sphi 0, %s287
    %s302 = sphi 0, %s288
    %s306 = sphi 0, %s306
    %s308 = sphi 0, %s306
    %s309 = sphi 0, %s308
    %s323 = sphi 0, %s309
    %s327 = sphi 0, %s327
    %s329 = sphi 0, %s327
    %s330 = sphi 0, %s329
    %s344 = sphi 0, %s330
    %s348 = sphi 0, %s348
    %s350 = sphi 0, %s348
    %s351 = sphi 0, %s350
    %s365 = sphi 0, %s351
    %s369 = sphi 0, %s369
    %s371 = sphi 0, %s369
    %s372 = sphi 0, %s371
    %s386 = sphi 0, %s372
    %s390 = sphi 0, %s390
    %s392 = sphi 0, %s390
    %s393 = sphi 0, %s392
    %s407 = sphi 0, %s393
    %s411 = sphi 0, %s411
    %s413 = sphi 0, %s411
    %s414 = sphi 0, %s413
    %s428 = sphi 0, %s414
    %s432 = sphi 0, %s432
    %s434 = sphi 0, %s432
    %s435 = sphi 0, %s434
    %s449 = sphi 0, %s435
    %s453 = sphi 0, %s453
    %s455 = sphi 0, %s453
    %s456 = sphi 0, %s455
    %s470 = sphi 0, %s456
    %s474 = sphi 0, %s474
    %s476 = sphi 0, %s474
    %s477 = sphi 0, %s476
    %s491 = sphi 0, %s477
    %s495 = sphi 0, %s495
    %s497 = sphi 0, %s495
    %s498 = sphi 0, %s497
    %s512 = sphi 0, %s498
    %s516 = sphi 0, %s516
    %s518 = sphi 0, %s516
    %s519 = sphi 0, %s518
    %s533 = sphi 0, %s519
    %s537 = sphi 0, %s537
    %s539 = sphi 0, %s537
    %s540 = sphi 0, %s539
    %s554 = sphi 0, %s540
    %s558 = sphi 0, %s558
    %s560 = sphi 0, %s558
    %s561 = sphi 0, %s560
    %s575 = sphi 0, %s561
    %s579 = sphi 0, %s579
    %s581 = sphi 0, %s579
    %s582 = sphi 0, %s581
    %s596 = sphi 0, %s582
    %s600 = sphi 0, %s600
    %s602 = sphi 0, %s600
    %s603 = sphi 0, %s602
    %s617 = sphi 0, %s603
    %s621 = sphi 0, %s621
    %s623 = sphi 0, %s621
    %s624 = sphi 0, %s623
    %s638 = sphi 0, %s624
    %s642 = sphi 0, %s642
    %s644 = sphi 0, %s642
    %s645 = sphi 0, %s644
    %s659 = sphi 0, %s645
    %s663 = sphi 0, %s663
    %s665 = sphi 0, %s663
    %s666 = sphi 0, %s665
    %s680 = sphi 0, %s666
    %s684 = sphi 0, %s684
    %s686 = sphi 0, %s684
    %s687 = sphi 0, %s686
    %s701 = sphi 0, %s687
    %s705 = sphi 0, %s705
    %s707 = sphi 0, %s705
    %s708 = sphi 0, %s707
    %s722 = sphi 0, %s708
    %s726 = sphi 0, %s726
    %s728 = sphi 0, %s726
    %s729 = sphi 0, %s728
    %s743 = sphi 0, %s729
    %s747 = sphi 0, %s747
    %s749 = sphi 0, %s747
    %s750 = sphi 0, %s749
    %s764 = sphi 0, %s750
    %s768 = sphi 0, %s768
    %s770 = sphi 0, %s768
    %s771 = sphi 0, %s770
    %s785 = sphi 0, %s771
    %s789 = sphi 0, %s789
    %s791 = sphi 0, %s789
    %s792 = sphi 0, %s791
    %s806 = sphi 0, %s792
    %s810 = sphi 0, %s810
    %s812 = sphi 0, %s810
    %s813 = sphi 0, %s812
    %s827 = sphi 0, %s813
    %s831 = sphi 0, %s831
    %s833 = sphi 0, %s831
    %s834 = sphi 0, %s833
    %s848 = sphi 0, %s834
    %s852 = sphi 0, %s852
    %s854 = sphi 0, %s852
    %s855 = sphi 0, %s854
    %s869 = sphi 0, %s855
    %s873 = sphi 0, %s873
    %s875 = sphi 0, %s873
    %s876 = sphi 0, %s875
    %s890 = sphi 0, %s876
    %s894 = sphi 0, %s894
    %s896 = sphi 0, %s894
    %s897 = sphi 0, %s896
    %s911 = sphi 0, %s897
    %s915 = sphi 0, %s915
    %s917 = sphi 0, %s915
    %s918 = sphi 0, %s917
    %s932 = sphi 0, %s918
    %s936 = sphi 0, %s936
    %s938 = sphi 0, %s936
    %s939 = sphi 0, %s938
    %s953 = sphi 0, %s939
    %s957 = sphi 0, %s957
    %s959 = sphi 0, %s957
    %s960 = sphi 0, %s959
    %s974 = sphi 0, %s960
    %s978 = sphi 0, %s978
    %s980 = sphi 0, %s978
    %s981 = sphi 0, %s980
    %s995 = sphi 0, %s981
    %s999 = sphi 0, %s999
    %s1001 = sphi 0, %s999
    %s1002 = sphi 0, %s1001
    %s1016 = sphi 0, %s1002
    %s1020 = sphi 0, %s1020
    %s1022 = sphi 0, %s1020
    %s1023 = sphi 0, %s1022
    %s1037 = sphi 0, %s1023
    %s1041 = sphi 0, %s1041
    %s1043 = sphi 0, %s1041
    %s1044 = sphi 0, %s1043
    %s1058 = sphi 0, %s1044
    %s1062 = sphi 0, %s1062
    %s1064 = sphi 0, %s1062
    %s1065 = sphi 0, %s1064
    %s1079 = sphi 0, %s1065
    %s1083 = sphi 0, %s1083
    %s1085 = sphi 0, %s1083
    %s1086 = sphi 0, %s1085
    %s1100 = sphi 0, %s1086
    %s1104 = sphi 0, %s1104
    %s1106 = sphi 0, %s1104
    %s1107 = sphi 0, %s1106
    %s1121 = sphi 0, %s1107
    %s1125 = sphi 0, %s1125
    %s1127 = sphi 0, %s1125
    %s1128 = sphi 0, %s1127
    %s1142 = sphi 0, %s1128
    %s1146 = sphi 0, %s1146
    %s1148 = sphi 0, %s1146
    %s1149 = sphi 0, %s1148
    %s1163 = sphi 0, %s1149
    %s1167 = sphi 0, %s1167
    %s1169 = sphi 0, %s1167
    %s1170 = sphi 0, %s1169
    %s1184 = sphi 0, %s1170
    %s1188 = sphi 0, %s1188
    %s1190 = sphi 0, %s1188
    %s1191 = sphi 0, %s1190
    %s1205 = sphi 0, %s1191
    %s1209 = sphi 0, %s1209
    %s1211 = sphi 0, %s1209
    %s1212 = sphi 0, %s1211
    %s1226 = sphi 0, %s1212
    %s1230 = sphi 0, %s1230
    %s1232 = sphi 0, %s1230
    %s1233 = sphi 0, %s1232
    %s1247 = sphi 0, %s1233
    %s1251 = sphi 0, %s1251
    %s1253 = sphi 0, %s1251
    %s1254 = sphi 0, %s1253
    %s1268 = sphi 0, %s1254
    %s1272 = sphi 0, %s1272
    %s1274 = sphi 0, %s1272
    %s1275 = sphi 0, %s1274
    %s1289 = sphi 0, %s1275
    %s1293 = sphi 0, %s1293
    %s1295 = sphi 0, %s1293
    %s1296 = sphi 0, %s1295
    %s1310 = sphi 0, %s1296
    %s1314 = sphi 0, %s1314
    %s1316 = sphi 0, %s1314
    %s1317 = sphi 0, %s1316
    %s1331 = sphi 0, %s1317
    %s1335 = sphi 0, %s1335
    %s1337 = sphi 0, %s1335
    %s1338 = sphi 0, %s1337
    %s1352 = sphi 0, %s1338
    %s1356 = sphi 0, %s1356
    %s1358 = sphi 0, %s1356
    %s1359 = sphi 0, %s1358
    %s1373 = sphi 0, %s1359
    %s1379 = sphi 0, %s1381
    %s1382 = sphi 0, %s1379
    %s1383 = sphi 0, %s1382
    %s1399 = sphi 0, %s1383
  $region4: #{unet_forward.1} parent=0 // loop_header_branch
    %128 = sbr.rel (%p126) target = $region8
  $region5: #{unet_forward.1} parent=0 // loop_body
    %s130 = ssub.s32 %s125, 1
    %s131 = ssub.s32 %s125, 2
    %s132 = sadd.s32 %s125, 1
    %s133 = ssub.s32 %s125, %s132
    %p134 = scmp.eq.s32.totalorder %s133, 0
    %s136 = sadd.s32 %s135, 1
    %s137 = scalar_select %p134, %s135, %s136
    %p140 = pneg %p134
    %p141 = scmp.eq.s32.totalorder %s125, 1
    %p142 = por %p140, %p141
    %p143 = scmp.ne.s32.totalorder %s135, %s138
    %p144 = scmp.eq.s32.totalorder %s125, 0
    %p145 = por %p143, %p144
    %p146 = scmp.ne.s32.totalorder %s135, %s138
    %p147 = scmp.eq.s32.totalorder %s130, 1
    %p148 = por %p146, %p147
    %p149 = scmp.ne.s32.totalorder %s138, %s139
    %p150 = scmp.eq.s32.totalorder %s130, 0
    %p151 = por %p149, %p150
    %p152 = scmp.ne.s32.totalorder %s138, %s139
    %p153 = scmp.eq.s32.totalorder %s131, 1
    %p154 = por %p152, %p153
    %p156 = scmp.ne.s32.totalorder %s139, %s155
    %p157 = scmp.eq.s32.totalorder %s131, 0
    %p158 = por %p156, %p157
    %s160 = sadd.s32 %s159, 1
    %p163 = scmp.eq.s32.totalorder %s125, 1
    %p164 = scmp.ne.s32.totalorder %s159, %s161
    %p165 = scmp.eq.s32.totalorder %s125, 0
    %p166 = por %p164, %p165
    %p167 = scmp.ne.s32.totalorder %s159, %s161
    %p168 = scmp.eq.s32.totalorder %s130, 1
    %p169 = por %p167, %p168
    %p170 = scmp.ne.s32.totalorder %s161, %s162
    %p171 = scmp.eq.s32.totalorder %s130, 0
    %p172 = por %p170, %p171
    %p173 = scmp.ne.s32.totalorder %s161, %s162
    %p174 = scmp.eq.s32.totalorder %s131, 1
    %p175 = por %p173, %p174
    %p177 = scmp.ne.s32.totalorder %s162, %s176
    %p178 = scmp.eq.s32.totalorder %s131, 0
    %p179 = por %p177, %p178
    %s181 = sadd.s32 %s180, 1
    %p184 = scmp.eq.s32.totalorder %s125, 1
    %p185 = scmp.ne.s32.totalorder %s180, %s182
    %p186 = scmp.eq.s32.totalorder %s125, 0
    %p187 = por %p185, %p186
    %p188 = scmp.ne.s32.totalorder %s180, %s182
    %p189 = scmp.eq.s32.totalorder %s130, 1
    %p190 = por %p188, %p189
    %p191 = scmp.ne.s32.totalorder %s182, %s183
    %p192 = scmp.eq.s32.totalorder %s130, 0
    %p193 = por %p191, %p192
    %p194 = scmp.ne.s32.totalorder %s182, %s183
    %p195 = scmp.eq.s32.totalorder %s131, 1
    %p196 = por %p194, %p195
    %p198 = scmp.ne.s32.totalorder %s183, %s197
    %p199 = scmp.eq.s32.totalorder %s131, 0
    %p200 = por %p198, %p199
    %s202 = sadd.s32 %s201, 1
    %p205 = scmp.eq.s32.totalorder %s125, 1
    %p206 = scmp.ne.s32.totalorder %s201, %s203
    %p207 = scmp.eq.s32.totalorder %s125, 0
    %p208 = por %p206, %p207
    %p209 = scmp.ne.s32.totalorder %s201, %s203
    %p210 = scmp.eq.s32.totalorder %s130, 1
    %p211 = por %p209, %p210
    %p212 = scmp.ne.s32.totalorder %s203, %s204
    %p213 = scmp.eq.s32.totalorder %s130, 0
    %p214 = por %p212, %p213
    %p215 = scmp.ne.s32.totalorder %s203, %s204
    %p216 = scmp.eq.s32.totalorder %s131, 1
    %p217 = por %p215, %p216
    %p219 = scmp.ne.s32.totalorder %s204, %s218
    %p220 = scmp.eq.s32.totalorder %s131, 0
    %p221 = por %p219, %p220
    %s223 = sadd.s32 %s222, 1
    %p226 = scmp.eq.s32.totalorder %s125, 1
    %p227 = scmp.ne.s32.totalorder %s222, %s224
    %p228 = scmp.eq.s32.totalorder %s125, 0
    %p229 = por %p227, %p228
    %p230 = scmp.ne.s32.totalorder %s222, %s224
    %p231 = scmp.eq.s32.totalorder %s130, 1
    %p232 = por %p230, %p231
    %p233 = scmp.ne.s32.totalorder %s224, %s225
    %p234 = scmp.eq.s32.totalorder %s130, 0
    %p235 = por %p233, %p234
    %p236 = scmp.ne.s32.totalorder %s224, %s225
    %p237 = scmp.eq.s32.totalorder %s131, 1
    %p238 = por %p236, %p237
    %p240 = scmp.ne.s32.totalorder %s225, %s239
    %p241 = scmp.eq.s32.totalorder %s131, 0
    %p242 = por %p240, %p241
    %s244 = sadd.s32 %s243, 1
    %p247 = scmp.eq.s32.totalorder %s125, 1
    %p248 = scmp.ne.s32.totalorder %s243, %s245
    %p249 = scmp.eq.s32.totalorder %s125, 0
    %p250 = por %p248, %p249
    %p251 = scmp.ne.s32.totalorder %s243, %s245
    %p252 = scmp.eq.s32.totalorder %s130, 1
    %p253 = por %p251, %p252
    %p254 = scmp.ne.s32.totalorder %s245, %s246
    %p255 = scmp.eq.s32.totalorder %s130, 0
    %p256 = por %p254, %p255
    %p257 = scmp.ne.s32.totalorder %s245, %s246
    %p258 = scmp.eq.s32.totalorder %s131, 1
    %p259 = por %p257, %p258
    %p261 = scmp.ne.s32.totalorder %s246, %s260
    %p262 = scmp.eq.s32.totalorder %s131, 0
    %p263 = por %p261, %p262
    %s265 = sadd.s32 %s264, 1
    %p268 = scmp.eq.s32.totalorder %s125, 1
    %p269 = scmp.ne.s32.totalorder %s264, %s266
    %p270 = scmp.eq.s32.totalorder %s125, 0
    %p271 = por %p269, %p270
    %p272 = scmp.ne.s32.totalorder %s264, %s266
    %p273 = scmp.eq.s32.totalorder %s130, 1
    %p274 = por %p272, %p273
    %p275 = scmp.ne.s32.totalorder %s266, %s267
    %p276 = scmp.eq.s32.totalorder %s130, 0
    %p277 = por %p275, %p276
    %p278 = scmp.ne.s32.totalorder %s266, %s267
    %p279 = scmp.eq.s32.totalorder %s131, 1
    %p280 = por %p278, %p279
    %p282 = scmp.ne.s32.totalorder %s267, %s281
    %p283 = scmp.eq.s32.totalorder %s131, 0
    %p284 = por %p282, %p283
    %s286 = sadd.s32 %s285, 1
    %p289 = scmp.eq.s32.totalorder %s125, 1
    %p290 = scmp.ne.s32.totalorder %s285, %s287
    %p291 = scmp.eq.s32.totalorder %s125, 0
    %p292 = por %p290, %p291
    %p293 = scmp.ne.s32.totalorder %s285, %s287
    %p294 = scmp.eq.s32.totalorder %s130, 1
    %p295 = por %p293, %p294
    %p296 = scmp.ne.s32.totalorder %s287, %s288
    %p297 = scmp.eq.s32.totalorder %s130, 0
    %p298 = por %p296, %p297
    %p299 = scmp.ne.s32.totalorder %s287, %s288
    %p300 = scmp.eq.s32.totalorder %s131, 1
    %p301 = por %p299, %p300
    %p303 = scmp.ne.s32.totalorder %s288, %s302
    %p304 = scmp.eq.s32.totalorder %s131, 0
    %p305 = por %p303, %p304
    %s307 = sadd.s32 %s306, 1
    %p310 = scmp.eq.s32.totalorder %s125, 1
    %p311 = scmp.ne.s32.totalorder %s306, %s308
    %p312 = scmp.eq.s32.totalorder %s125, 0
    %p313 = por %p311, %p312
    %p314 = scmp.ne.s32.totalorder %s306, %s308
    %p315 = scmp.eq.s32.totalorder %s130, 1
    %p316 = por %p314, %p315
    %p317 = scmp.ne.s32.totalorder %s308, %s309
    %p318 = scmp.eq.s32.totalorder %s130, 0
    %p319 = por %p317, %p318
    %p320 = scmp.ne.s32.totalorder %s308, %s309
    %p321 = scmp.eq.s32.totalorder %s131, 1
    %p322 = por %p320, %p321
    %p324 = scmp.ne.s32.totalorder %s309, %s323
    %p325 = scmp.eq.s32.totalorder %s131, 0
    %p326 = por %p324, %p325
    %s328 = sadd.s32 %s327, 1
    %p331 = scmp.eq.s32.totalorder %s125, 1
    %p332 = scmp.ne.s32.totalorder %s327, %s329
    %p333 = scmp.eq.s32.totalorder %s125, 0
    %p334 = por %p332, %p333
    %p335 = scmp.ne.s32.totalorder %s327, %s329
    %p336 = scmp.eq.s32.totalorder %s130, 1
    %p337 = por %p335, %p336
    %p338 = scmp.ne.s32.totalorder %s329, %s330
    %p339 = scmp.eq.s32.totalorder %s130, 0
    %p340 = por %p338, %p339
    %p341 = scmp.ne.s32.totalorder %s329, %s330
    %p342 = scmp.eq.s32.totalorder %s131, 1
    %p343 = por %p341, %p342
    %p345 = scmp.ne.s32.totalorder %s330, %s344
    %p346 = scmp.eq.s32.totalorder %s131, 0
    %p347 = por %p345, %p346
    %s349 = sadd.s32 %s348, 1
    %p352 = scmp.eq.s32.totalorder %s125, 1
    %p353 = scmp.ne.s32.totalorder %s348, %s350
    %p354 = scmp.eq.s32.totalorder %s125, 0
    %p355 = por %p353, %p354
    %p356 = scmp.ne.s32.totalorder %s348, %s350
    %p357 = scmp.eq.s32.totalorder %s130, 1
    %p358 = por %p356, %p357
    %p359 = scmp.ne.s32.totalorder %s350, %s351
    %p360 = scmp.eq.s32.totalorder %s130, 0
    %p361 = por %p359, %p360
    %p362 = scmp.ne.s32.totalorder %s350, %s351
    %p363 = scmp.eq.s32.totalorder %s131, 1
    %p364 = por %p362, %p363
    %p366 = scmp.ne.s32.totalorder %s351, %s365
    %p367 = scmp.eq.s32.totalorder %s131, 0
    %p368 = por %p366, %p367
    %s370 = sadd.s32 %s369, 1
    %p373 = scmp.eq.s32.totalorder %s125, 1
    %p374 = scmp.ne.s32.totalorder %s369, %s371
    %p375 = scmp.eq.s32.totalorder %s125, 0
    %p376 = por %p374, %p375
    %p377 = scmp.ne.s32.totalorder %s369, %s371
    %p378 = scmp.eq.s32.totalorder %s130, 1
    %p379 = por %p377, %p378
    %p380 = scmp.ne.s32.totalorder %s371, %s372
    %p381 = scmp.eq.s32.totalorder %s130, 0
    %p382 = por %p380, %p381
    %p383 = scmp.ne.s32.totalorder %s371, %s372
    %p384 = scmp.eq.s32.totalorder %s131, 1
    %p385 = por %p383, %p384
    %p387 = scmp.ne.s32.totalorder %s372, %s386
    %p388 = scmp.eq.s32.totalorder %s131, 0
    %p389 = por %p387, %p388
    %s391 = sadd.s32 %s390, 1
    %p394 = scmp.eq.s32.totalorder %s125, 1
    %p395 = scmp.ne.s32.totalorder %s390, %s392
    %p396 = scmp.eq.s32.totalorder %s125, 0
    %p397 = por %p395, %p396
    %p398 = scmp.ne.s32.totalorder %s390, %s392
    %p399 = scmp.eq.s32.totalorder %s130, 1
    %p400 = por %p398, %p399
    %p401 = scmp.ne.s32.totalorder %s392, %s393
    %p402 = scmp.eq.s32.totalorder %s130, 0
    %p403 = por %p401, %p402
    %p404 = scmp.ne.s32.totalorder %s392, %s393
    %p405 = scmp.eq.s32.totalorder %s131, 1
    %p406 = por %p404, %p405
    %p408 = scmp.ne.s32.totalorder %s393, %s407
    %p409 = scmp.eq.s32.totalorder %s131, 0
    %p410 = por %p408, %p409
    %s412 = sadd.s32 %s411, 1
    %p415 = scmp.eq.s32.totalorder %s125, 1
    %p416 = scmp.ne.s32.totalorder %s411, %s413
    %p417 = scmp.eq.s32.totalorder %s125, 0
    %p418 = por %p416, %p417
    %p419 = scmp.ne.s32.totalorder %s411, %s413
    %p420 = scmp.eq.s32.totalorder %s130, 1
    %p421 = por %p419, %p420
    %p422 = scmp.ne.s32.totalorder %s413, %s414
    %p423 = scmp.eq.s32.totalorder %s130, 0
    %p424 = por %p422, %p423
    %p425 = scmp.ne.s32.totalorder %s413, %s414
    %p426 = scmp.eq.s32.totalorder %s131, 1
    %p427 = por %p425, %p426
    %p429 = scmp.ne.s32.totalorder %s414, %s428
    %p430 = scmp.eq.s32.totalorder %s131, 0
    %p431 = por %p429, %p430
    %s433 = sadd.s32 %s432, 1
    %p436 = scmp.eq.s32.totalorder %s125, 1
    %p437 = scmp.ne.s32.totalorder %s432, %s434
    %p438 = scmp.eq.s32.totalorder %s125, 0
    %p439 = por %p437, %p438
    %p440 = scmp.ne.s32.totalorder %s432, %s434
    %p441 = scmp.eq.s32.totalorder %s130, 1
    %p442 = por %p440, %p441
    %p443 = scmp.ne.s32.totalorder %s434, %s435
    %p444 = scmp.eq.s32.totalorder %s130, 0
    %p445 = por %p443, %p444
    %p446 = scmp.ne.s32.totalorder %s434, %s435
    %p447 = scmp.eq.s32.totalorder %s131, 1
    %p448 = por %p446, %p447
    %p450 = scmp.ne.s32.totalorder %s435, %s449
    %p451 = scmp.eq.s32.totalorder %s131, 0
    %p452 = por %p450, %p451
    %s454 = sadd.s32 %s453, 1
    %p457 = scmp.eq.s32.totalorder %s125, 1
    %p458 = scmp.ne.s32.totalorder %s453, %s455
    %p459 = scmp.eq.s32.totalorder %s125, 0
    %p460 = por %p458, %p459
    %p461 = scmp.ne.s32.totalorder %s453, %s455
    %p462 = scmp.eq.s32.totalorder %s130, 1
    %p463 = por %p461, %p462
    %p464 = scmp.ne.s32.totalorder %s455, %s456
    %p465 = scmp.eq.s32.totalorder %s130, 0
    %p466 = por %p464, %p465
    %p467 = scmp.ne.s32.totalorder %s455, %s456
    %p468 = scmp.eq.s32.totalorder %s131, 1
    %p469 = por %p467, %p468
    %p471 = scmp.ne.s32.totalorder %s456, %s470
    %p472 = scmp.eq.s32.totalorder %s131, 0
    %p473 = por %p471, %p472
    %s475 = sadd.s32 %s474, 1
    %p478 = scmp.eq.s32.totalorder %s125, 1
    %p479 = scmp.ne.s32.totalorder %s474, %s476
    %p480 = scmp.eq.s32.totalorder %s125, 0
    %p481 = por %p479, %p480
    %p482 = scmp.ne.s32.totalorder %s474, %s476
    %p483 = scmp.eq.s32.totalorder %s130, 1
    %p484 = por %p482, %p483
    %p485 = scmp.ne.s32.totalorder %s476, %s477
    %p486 = scmp.eq.s32.totalorder %s130, 0
    %p487 = por %p485, %p486
    %p488 = scmp.ne.s32.totalorder %s476, %s477
    %p489 = scmp.eq.s32.totalorder %s131, 1
    %p490 = por %p488, %p489
    %p492 = scmp.ne.s32.totalorder %s477, %s491
    %p493 = scmp.eq.s32.totalorder %s131, 0
    %p494 = por %p492, %p493
    %s496 = sadd.s32 %s495, 1
    %p499 = scmp.eq.s32.totalorder %s125, 1
    %p500 = scmp.ne.s32.totalorder %s495, %s497
    %p501 = scmp.eq.s32.totalorder %s125, 0
    %p502 = por %p500, %p501
    %p503 = scmp.ne.s32.totalorder %s495, %s497
    %p504 = scmp.eq.s32.totalorder %s130, 1
    %p505 = por %p503, %p504
    %p506 = scmp.ne.s32.totalorder %s497, %s498
    %p507 = scmp.eq.s32.totalorder %s130, 0
    %p508 = por %p506, %p507
    %p509 = scmp.ne.s32.totalorder %s497, %s498
    %p510 = scmp.eq.s32.totalorder %s131, 1
    %p511 = por %p509, %p510
    %p513 = scmp.ne.s32.totalorder %s498, %s512
    %p514 = scmp.eq.s32.totalorder %s131, 0
    %p515 = por %p513, %p514
    %s517 = sadd.s32 %s516, 1
    %p520 = scmp.eq.s32.totalorder %s125, 1
    %p521 = scmp.ne.s32.totalorder %s516, %s518
    %p522 = scmp.eq.s32.totalorder %s125, 0
    %p523 = por %p521, %p522
    %p524 = scmp.ne.s32.totalorder %s516, %s518
    %p525 = scmp.eq.s32.totalorder %s130, 1
    %p526 = por %p524, %p525
    %p527 = scmp.ne.s32.totalorder %s518, %s519
    %p528 = scmp.eq.s32.totalorder %s130, 0
    %p529 = por %p527, %p528
    %p530 = scmp.ne.s32.totalorder %s518, %s519
    %p531 = scmp.eq.s32.totalorder %s131, 1
    %p532 = por %p530, %p531
    %p534 = scmp.ne.s32.totalorder %s519, %s533
    %p535 = scmp.eq.s32.totalorder %s131, 0
    %p536 = por %p534, %p535
    %s538 = sadd.s32 %s537, 1
    %p541 = scmp.eq.s32.totalorder %s125, 1
    %p542 = scmp.ne.s32.totalorder %s537, %s539
    %p543 = scmp.eq.s32.totalorder %s125, 0
    %p544 = por %p542, %p543
    %p545 = scmp.ne.s32.totalorder %s537, %s539
    %p546 = scmp.eq.s32.totalorder %s130, 1
    %p547 = por %p545, %p546
    %p548 = scmp.ne.s32.totalorder %s539, %s540
    %p549 = scmp.eq.s32.totalorder %s130, 0
    %p550 = por %p548, %p549
    %p551 = scmp.ne.s32.totalorder %s539, %s540
    %p552 = scmp.eq.s32.totalorder %s131, 1
    %p553 = por %p551, %p552
    %p555 = scmp.ne.s32.totalorder %s540, %s554
    %p556 = scmp.eq.s32.totalorder %s131, 0
    %p557 = por %p555, %p556
    %s559 = sadd.s32 %s558, 1
    %p562 = scmp.eq.s32.totalorder %s125, 1
    %p563 = scmp.ne.s32.totalorder %s558, %s560
    %p564 = scmp.eq.s32.totalorder %s125, 0
    %p565 = por %p563, %p564
    %p566 = scmp.ne.s32.totalorder %s558, %s560
    %p567 = scmp.eq.s32.totalorder %s130, 1
    %p568 = por %p566, %p567
    %p569 = scmp.ne.s32.totalorder %s560, %s561
    %p570 = scmp.eq.s32.totalorder %s130, 0
    %p571 = por %p569, %p570
    %p572 = scmp.ne.s32.totalorder %s560, %s561
    %p573 = scmp.eq.s32.totalorder %s131, 1
    %p574 = por %p572, %p573
    %p576 = scmp.ne.s32.totalorder %s561, %s575
    %p577 = scmp.eq.s32.totalorder %s131, 0
    %p578 = por %p576, %p577
    %s580 = sadd.s32 %s579, 1
    %p583 = scmp.eq.s32.totalorder %s125, 1
    %p584 = scmp.ne.s32.totalorder %s579, %s581
    %p585 = scmp.eq.s32.totalorder %s125, 0
    %p586 = por %p584, %p585
    %p587 = scmp.ne.s32.totalorder %s579, %s581
    %p588 = scmp.eq.s32.totalorder %s130, 1
    %p589 = por %p587, %p588
    %p590 = scmp.ne.s32.totalorder %s581, %s582
    %p591 = scmp.eq.s32.totalorder %s130, 0
    %p592 = por %p590, %p591
    %p593 = scmp.ne.s32.totalorder %s581, %s582
    %p594 = scmp.eq.s32.totalorder %s131, 1
    %p595 = por %p593, %p594
    %p597 = scmp.ne.s32.totalorder %s582, %s596
    %p598 = scmp.eq.s32.totalorder %s131, 0
    %p599 = por %p597, %p598
    %s601 = sadd.s32 %s600, 1
    %p604 = scmp.eq.s32.totalorder %s125, 1
    %p605 = scmp.ne.s32.totalorder %s600, %s602
    %p606 = scmp.eq.s32.totalorder %s125, 0
    %p607 = por %p605, %p606
    %p608 = scmp.ne.s32.totalorder %s600, %s602
    %p609 = scmp.eq.s32.totalorder %s130, 1
    %p610 = por %p608, %p609
    %p611 = scmp.ne.s32.totalorder %s602, %s603
    %p612 = scmp.eq.s32.totalorder %s130, 0
    %p613 = por %p611, %p612
    %p614 = scmp.ne.s32.totalorder %s602, %s603
    %p615 = scmp.eq.s32.totalorder %s131, 1
    %p616 = por %p614, %p615
    %p618 = scmp.ne.s32.totalorder %s603, %s617
    %p619 = scmp.eq.s32.totalorder %s131, 0
    %p620 = por %p618, %p619
    %s622 = sadd.s32 %s621, 1
    %p625 = scmp.eq.s32.totalorder %s125, 1
    %p626 = scmp.ne.s32.totalorder %s621, %s623
    %p627 = scmp.eq.s32.totalorder %s125, 0
    %p628 = por %p626, %p627
    %p629 = scmp.ne.s32.totalorder %s621, %s623
    %p630 = scmp.eq.s32.totalorder %s130, 1
    %p631 = por %p629, %p630
    %p632 = scmp.ne.s32.totalorder %s623, %s624
    %p633 = scmp.eq.s32.totalorder %s130, 0
    %p634 = por %p632, %p633
    %p635 = scmp.ne.s32.totalorder %s623, %s624
    %p636 = scmp.eq.s32.totalorder %s131, 1
    %p637 = por %p635, %p636
    %p639 = scmp.ne.s32.totalorder %s624, %s638
    %p640 = scmp.eq.s32.totalorder %s131, 0
    %p641 = por %p639, %p640
    %s643 = sadd.s32 %s642, 1
    %p646 = scmp.eq.s32.totalorder %s125, 1
    %p647 = scmp.ne.s32.totalorder %s642, %s644
    %p648 = scmp.eq.s32.totalorder %s125, 0
    %p649 = por %p647, %p648
    %p650 = scmp.ne.s32.totalorder %s642, %s644
    %p651 = scmp.eq.s32.totalorder %s130, 1
    %p652 = por %p650, %p651
    %p653 = scmp.ne.s32.totalorder %s644, %s645
    %p654 = scmp.eq.s32.totalorder %s130, 0
    %p655 = por %p653, %p654
    %p656 = scmp.ne.s32.totalorder %s644, %s645
    %p657 = scmp.eq.s32.totalorder %s131, 1
    %p658 = por %p656, %p657
    %p660 = scmp.ne.s32.totalorder %s645, %s659
    %p661 = scmp.eq.s32.totalorder %s131, 0
    %p662 = por %p660, %p661
    %s664 = sadd.s32 %s663, 1
    %p667 = scmp.eq.s32.totalorder %s125, 1
    %p668 = scmp.ne.s32.totalorder %s663, %s665
    %p669 = scmp.eq.s32.totalorder %s125, 0
    %p670 = por %p668, %p669
    %p671 = scmp.ne.s32.totalorder %s663, %s665
    %p672 = scmp.eq.s32.totalorder %s130, 1
    %p673 = por %p671, %p672
    %p674 = scmp.ne.s32.totalorder %s665, %s666
    %p675 = scmp.eq.s32.totalorder %s130, 0
    %p676 = por %p674, %p675
    %p677 = scmp.ne.s32.totalorder %s665, %s666
    %p678 = scmp.eq.s32.totalorder %s131, 1
    %p679 = por %p677, %p678
    %p681 = scmp.ne.s32.totalorder %s666, %s680
    %p682 = scmp.eq.s32.totalorder %s131, 0
    %p683 = por %p681, %p682
    %s685 = sadd.s32 %s684, 1
    %p688 = scmp.eq.s32.totalorder %s125, 1
    %p689 = scmp.ne.s32.totalorder %s684, %s686
    %p690 = scmp.eq.s32.totalorder %s125, 0
    %p691 = por %p689, %p690
    %p692 = scmp.ne.s32.totalorder %s684, %s686
    %p693 = scmp.eq.s32.totalorder %s130, 1
    %p694 = por %p692, %p693
    %p695 = scmp.ne.s32.totalorder %s686, %s687
    %p696 = scmp.eq.s32.totalorder %s130, 0
    %p697 = por %p695, %p696
    %p698 = scmp.ne.s32.totalorder %s686, %s687
    %p699 = scmp.eq.s32.totalorder %s131, 1
    %p700 = por %p698, %p699
    %p702 = scmp.ne.s32.totalorder %s687, %s701
    %p703 = scmp.eq.s32.totalorder %s131, 0
    %p704 = por %p702, %p703
    %s706 = sadd.s32 %s705, 1
    %p709 = scmp.eq.s32.totalorder %s125, 1
    %p710 = scmp.ne.s32.totalorder %s705, %s707
    %p711 = scmp.eq.s32.totalorder %s125, 0
    %p712 = por %p710, %p711
    %p713 = scmp.ne.s32.totalorder %s705, %s707
    %p714 = scmp.eq.s32.totalorder %s130, 1
    %p715 = por %p713, %p714
    %p716 = scmp.ne.s32.totalorder %s707, %s708
    %p717 = scmp.eq.s32.totalorder %s130, 0
    %p718 = por %p716, %p717
    %p719 = scmp.ne.s32.totalorder %s707, %s708
    %p720 = scmp.eq.s32.totalorder %s131, 1
    %p721 = por %p719, %p720
    %p723 = scmp.ne.s32.totalorder %s708, %s722
    %p724 = scmp.eq.s32.totalorder %s131, 0
    %p725 = por %p723, %p724
    %s727 = sadd.s32 %s726, 1
    %p730 = scmp.eq.s32.totalorder %s125, 1
    %p731 = scmp.ne.s32.totalorder %s726, %s728
    %p732 = scmp.eq.s32.totalorder %s125, 0
    %p733 = por %p731, %p732
    %p734 = scmp.ne.s32.totalorder %s726, %s728
    %p735 = scmp.eq.s32.totalorder %s130, 1
    %p736 = por %p734, %p735
    %p737 = scmp.ne.s32.totalorder %s728, %s729
    %p738 = scmp.eq.s32.totalorder %s130, 0
    %p739 = por %p737, %p738
    %p740 = scmp.ne.s32.totalorder %s728, %s729
    %p741 = scmp.eq.s32.totalorder %s131, 1
    %p742 = por %p740, %p741
    %p744 = scmp.ne.s32.totalorder %s729, %s743
    %p745 = scmp.eq.s32.totalorder %s131, 0
    %p746 = por %p744, %p745
    %s748 = sadd.s32 %s747, 1
    %p751 = scmp.eq.s32.totalorder %s125, 1
    %p752 = scmp.ne.s32.totalorder %s747, %s749
    %p753 = scmp.eq.s32.totalorder %s125, 0
    %p754 = por %p752, %p753
    %p755 = scmp.ne.s32.totalorder %s747, %s749
    %p756 = scmp.eq.s32.totalorder %s130, 1
    %p757 = por %p755, %p756
    %p758 = scmp.ne.s32.totalorder %s749, %s750
    %p759 = scmp.eq.s32.totalorder %s130, 0
    %p760 = por %p758, %p759
    %p761 = scmp.ne.s32.totalorder %s749, %s750
    %p762 = scmp.eq.s32.totalorder %s131, 1
    %p763 = por %p761, %p762
    %p765 = scmp.ne.s32.totalorder %s750, %s764
    %p766 = scmp.eq.s32.totalorder %s131, 0
    %p767 = por %p765, %p766
    %s769 = sadd.s32 %s768, 1
    %p772 = scmp.eq.s32.totalorder %s125, 1
    %p773 = scmp.ne.s32.totalorder %s768, %s770
    %p774 = scmp.eq.s32.totalorder %s125, 0
    %p775 = por %p773, %p774
    %p776 = scmp.ne.s32.totalorder %s768, %s770
    %p777 = scmp.eq.s32.totalorder %s130, 1
    %p778 = por %p776, %p777
    %p779 = scmp.ne.s32.totalorder %s770, %s771
    %p780 = scmp.eq.s32.totalorder %s130, 0
    %p781 = por %p779, %p780
    %p782 = scmp.ne.s32.totalorder %s770, %s771
    %p783 = scmp.eq.s32.totalorder %s131, 1
    %p784 = por %p782, %p783
    %p786 = scmp.ne.s32.totalorder %s771, %s785
    %p787 = scmp.eq.s32.totalorder %s131, 0
    %p788 = por %p786, %p787
    %s790 = sadd.s32 %s789, 1
    %p793 = scmp.eq.s32.totalorder %s125, 1
    %p794 = scmp.ne.s32.totalorder %s789, %s791
    %p795 = scmp.eq.s32.totalorder %s125, 0
    %p796 = por %p794, %p795
    %p797 = scmp.ne.s32.totalorder %s789, %s791
    %p798 = scmp.eq.s32.totalorder %s130, 1
    %p799 = por %p797, %p798
    %p800 = scmp.ne.s32.totalorder %s791, %s792
    %p801 = scmp.eq.s32.totalorder %s130, 0
    %p802 = por %p800, %p801
    %p803 = scmp.ne.s32.totalorder %s791, %s792
    %p804 = scmp.eq.s32.totalorder %s131, 1
    %p805 = por %p803, %p804
    %p807 = scmp.ne.s32.totalorder %s792, %s806
    %p808 = scmp.eq.s32.totalorder %s131, 0
    %p809 = por %p807, %p808
    %s811 = sadd.s32 %s810, 1
    %p814 = scmp.eq.s32.totalorder %s125, 1
    %p815 = scmp.ne.s32.totalorder %s810, %s812
    %p816 = scmp.eq.s32.totalorder %s125, 0
    %p817 = por %p815, %p816
    %p818 = scmp.ne.s32.totalorder %s810, %s812
    %p819 = scmp.eq.s32.totalorder %s130, 1
    %p820 = por %p818, %p819
    %p821 = scmp.ne.s32.totalorder %s812, %s813
    %p822 = scmp.eq.s32.totalorder %s130, 0
    %p823 = por %p821, %p822
    %p824 = scmp.ne.s32.totalorder %s812, %s813
    %p825 = scmp.eq.s32.totalorder %s131, 1
    %p826 = por %p824, %p825
    %p828 = scmp.ne.s32.totalorder %s813, %s827
    %p829 = scmp.eq.s32.totalorder %s131, 0
    %p830 = por %p828, %p829
    %s832 = sadd.s32 %s831, 1
    %p835 = scmp.eq.s32.totalorder %s125, 1
    %p836 = scmp.ne.s32.totalorder %s831, %s833
    %p837 = scmp.eq.s32.totalorder %s125, 0
    %p838 = por %p836, %p837
    %p839 = scmp.ne.s32.totalorder %s831, %s833
    %p840 = scmp.eq.s32.totalorder %s130, 1
    %p841 = por %p839, %p840
    %p842 = scmp.ne.s32.totalorder %s833, %s834
    %p843 = scmp.eq.s32.totalorder %s130, 0
    %p844 = por %p842, %p843
    %p845 = scmp.ne.s32.totalorder %s833, %s834
    %p846 = scmp.eq.s32.totalorder %s131, 1
    %p847 = por %p845, %p846
    %p849 = scmp.ne.s32.totalorder %s834, %s848
    %p850 = scmp.eq.s32.totalorder %s131, 0
    %p851 = por %p849, %p850
    %s853 = sadd.s32 %s852, 1
    %p856 = scmp.eq.s32.totalorder %s125, 1
    %p857 = scmp.ne.s32.totalorder %s852, %s854
    %p858 = scmp.eq.s32.totalorder %s125, 0
    %p859 = por %p857, %p858
    %p860 = scmp.ne.s32.totalorder %s852, %s854
    %p861 = scmp.eq.s32.totalorder %s130, 1
    %p862 = por %p860, %p861
    %p863 = scmp.ne.s32.totalorder %s854, %s855
    %p864 = scmp.eq.s32.totalorder %s130, 0
    %p865 = por %p863, %p864
    %p866 = scmp.ne.s32.totalorder %s854, %s855
    %p867 = scmp.eq.s32.totalorder %s131, 1
    %p868 = por %p866, %p867
    %p870 = scmp.ne.s32.totalorder %s855, %s869
    %p871 = scmp.eq.s32.totalorder %s131, 0
    %p872 = por %p870, %p871
    %s874 = sadd.s32 %s873, 1
    %p877 = scmp.eq.s32.totalorder %s125, 1
    %p878 = scmp.ne.s32.totalorder %s873, %s875
    %p879 = scmp.eq.s32.totalorder %s125, 0
    %p880 = por %p878, %p879
    %p881 = scmp.ne.s32.totalorder %s873, %s875
    %p882 = scmp.eq.s32.totalorder %s130, 1
    %p883 = por %p881, %p882
    %p884 = scmp.ne.s32.totalorder %s875, %s876
    %p885 = scmp.eq.s32.totalorder %s130, 0
    %p886 = por %p884, %p885
    %p887 = scmp.ne.s32.totalorder %s875, %s876
    %p888 = scmp.eq.s32.totalorder %s131, 1
    %p889 = por %p887, %p888
    %p891 = scmp.ne.s32.totalorder %s876, %s890
    %p892 = scmp.eq.s32.totalorder %s131, 0
    %p893 = por %p891, %p892
    %s895 = sadd.s32 %s894, 1
    %p898 = scmp.eq.s32.totalorder %s125, 1
    %p899 = scmp.ne.s32.totalorder %s894, %s896
    %p900 = scmp.eq.s32.totalorder %s125, 0
    %p901 = por %p899, %p900
    %p902 = scmp.ne.s32.totalorder %s894, %s896
    %p903 = scmp.eq.s32.totalorder %s130, 1
    %p904 = por %p902, %p903
    %p905 = scmp.ne.s32.totalorder %s896, %s897
    %p906 = scmp.eq.s32.totalorder %s130, 0
    %p907 = por %p905, %p906
    %p908 = scmp.ne.s32.totalorder %s896, %s897
    %p909 = scmp.eq.s32.totalorder %s131, 1
    %p910 = por %p908, %p909
    %p912 = scmp.ne.s32.totalorder %s897, %s911
    %p913 = scmp.eq.s32.totalorder %s131, 0
    %p914 = por %p912, %p913
    %s916 = sadd.s32 %s915, 1
    %p919 = scmp.eq.s32.totalorder %s125, 1
    %p920 = scmp.ne.s32.totalorder %s915, %s917
    %p921 = scmp.eq.s32.totalorder %s125, 0
    %p922 = por %p920, %p921
    %p923 = scmp.ne.s32.totalorder %s915, %s917
    %p924 = scmp.eq.s32.totalorder %s130, 1
    %p925 = por %p923, %p924
    %p926 = scmp.ne.s32.totalorder %s917, %s918
    %p927 = scmp.eq.s32.totalorder %s130, 0
    %p928 = por %p926, %p927
    %p929 = scmp.ne.s32.totalorder %s917, %s918
    %p930 = scmp.eq.s32.totalorder %s131, 1
    %p931 = por %p929, %p930
    %p933 = scmp.ne.s32.totalorder %s918, %s932
    %p934 = scmp.eq.s32.totalorder %s131, 0
    %p935 = por %p933, %p934
    %s937 = sadd.s32 %s936, 1
    %p940 = scmp.eq.s32.totalorder %s125, 1
    %p941 = scmp.ne.s32.totalorder %s936, %s938
    %p942 = scmp.eq.s32.totalorder %s125, 0
    %p943 = por %p941, %p942
    %p944 = scmp.ne.s32.totalorder %s936, %s938
    %p945 = scmp.eq.s32.totalorder %s130, 1
    %p946 = por %p944, %p945
    %p947 = scmp.ne.s32.totalorder %s938, %s939
    %p948 = scmp.eq.s32.totalorder %s130, 0
    %p949 = por %p947, %p948
    %p950 = scmp.ne.s32.totalorder %s938, %s939
    %p951 = scmp.eq.s32.totalorder %s131, 1
    %p952 = por %p950, %p951
    %p954 = scmp.ne.s32.totalorder %s939, %s953
    %p955 = scmp.eq.s32.totalorder %s131, 0
    %p956 = por %p954, %p955
    %s958 = sadd.s32 %s957, 1
    %p961 = scmp.eq.s32.totalorder %s125, 1
    %p962 = scmp.ne.s32.totalorder %s957, %s959
    %p963 = scmp.eq.s32.totalorder %s125, 0
    %p964 = por %p962, %p963
    %p965 = scmp.ne.s32.totalorder %s957, %s959
    %p966 = scmp.eq.s32.totalorder %s130, 1
    %p967 = por %p965, %p966
    %p968 = scmp.ne.s32.totalorder %s959, %s960
    %p969 = scmp.eq.s32.totalorder %s130, 0
    %p970 = por %p968, %p969
    %p971 = scmp.ne.s32.totalorder %s959, %s960
    %p972 = scmp.eq.s32.totalorder %s131, 1
    %p973 = por %p971, %p972
    %p975 = scmp.ne.s32.totalorder %s960, %s974
    %p976 = scmp.eq.s32.totalorder %s131, 0
    %p977 = por %p975, %p976
    %s979 = sadd.s32 %s978, 1
    %p982 = scmp.eq.s32.totalorder %s125, 1
    %p983 = scmp.ne.s32.totalorder %s978, %s980
    %p984 = scmp.eq.s32.totalorder %s125, 0
    %p985 = por %p983, %p984
    %p986 = scmp.ne.s32.totalorder %s978, %s980
    %p987 = scmp.eq.s32.totalorder %s130, 1
    %p988 = por %p986, %p987
    %p989 = scmp.ne.s32.totalorder %s980, %s981
    %p990 = scmp.eq.s32.totalorder %s130, 0
    %p991 = por %p989, %p990
    %p992 = scmp.ne.s32.totalorder %s980, %s981
    %p993 = scmp.eq.s32.totalorder %s131, 1
    %p994 = por %p992, %p993
    %p996 = scmp.ne.s32.totalorder %s981, %s995
    %p997 = scmp.eq.s32.totalorder %s131, 0
    %p998 = por %p996, %p997
    %s1000 = sadd.s32 %s999, 1
    %p1003 = scmp.eq.s32.totalorder %s125, 1
    %p1004 = scmp.ne.s32.totalorder %s999, %s1001
    %p1005 = scmp.eq.s32.totalorder %s125, 0
    %p1006 = por %p1004, %p1005
    %p1007 = scmp.ne.s32.totalorder %s999, %s1001
    %p1008 = scmp.eq.s32.totalorder %s130, 1
    %p1009 = por %p1007, %p1008
    %p1010 = scmp.ne.s32.totalorder %s1001, %s1002
    %p1011 = scmp.eq.s32.totalorder %s130, 0
    %p1012 = por %p1010, %p1011
    %p1013 = scmp.ne.s32.totalorder %s1001, %s1002
    %p1014 = scmp.eq.s32.totalorder %s131, 1
    %p1015 = por %p1013, %p1014
    %p1017 = scmp.ne.s32.totalorder %s1002, %s1016
    %p1018 = scmp.eq.s32.totalorder %s131, 0
    %p1019 = por %p1017, %p1018
    %s1021 = sadd.s32 %s1020, 1
    %p1024 = scmp.eq.s32.totalorder %s125, 1
    %p1025 = scmp.ne.s32.totalorder %s1020, %s1022
    %p1026 = scmp.eq.s32.totalorder %s125, 0
    %p1027 = por %p1025, %p1026
    %p1028 = scmp.ne.s32.totalorder %s1020, %s1022
    %p1029 = scmp.eq.s32.totalorder %s130, 1
    %p1030 = por %p1028, %p1029
    %p1031 = scmp.ne.s32.totalorder %s1022, %s1023
    %p1032 = scmp.eq.s32.totalorder %s130, 0
    %p1033 = por %p1031, %p1032
    %p1034 = scmp.ne.s32.totalorder %s1022, %s1023
    %p1035 = scmp.eq.s32.totalorder %s131, 1
    %p1036 = por %p1034, %p1035
    %p1038 = scmp.ne.s32.totalorder %s1023, %s1037
    %p1039 = scmp.eq.s32.totalorder %s131, 0
    %p1040 = por %p1038, %p1039
    %s1042 = sadd.s32 %s1041, 1
    %p1045 = scmp.eq.s32.totalorder %s125, 1
    %p1046 = scmp.ne.s32.totalorder %s1041, %s1043
    %p1047 = scmp.eq.s32.totalorder %s125, 0
    %p1048 = por %p1046, %p1047
    %p1049 = scmp.ne.s32.totalorder %s1041, %s1043
    %p1050 = scmp.eq.s32.totalorder %s130, 1
    %p1051 = por %p1049, %p1050
    %p1052 = scmp.ne.s32.totalorder %s1043, %s1044
    %p1053 = scmp.eq.s32.totalorder %s130, 0
    %p1054 = por %p1052, %p1053
    %p1055 = scmp.ne.s32.totalorder %s1043, %s1044
    %p1056 = scmp.eq.s32.totalorder %s131, 1
    %p1057 = por %p1055, %p1056
    %p1059 = scmp.ne.s32.totalorder %s1044, %s1058
    %p1060 = scmp.eq.s32.totalorder %s131, 0
    %p1061 = por %p1059, %p1060
    %s1063 = sadd.s32 %s1062, 1
    %p1066 = scmp.eq.s32.totalorder %s125, 1
    %p1067 = scmp.ne.s32.totalorder %s1062, %s1064
    %p1068 = scmp.eq.s32.totalorder %s125, 0
    %p1069 = por %p1067, %p1068
    %p1070 = scmp.ne.s32.totalorder %s1062, %s1064
    %p1071 = scmp.eq.s32.totalorder %s130, 1
    %p1072 = por %p1070, %p1071
    %p1073 = scmp.ne.s32.totalorder %s1064, %s1065
    %p1074 = scmp.eq.s32.totalorder %s130, 0
    %p1075 = por %p1073, %p1074
    %p1076 = scmp.ne.s32.totalorder %s1064, %s1065
    %p1077 = scmp.eq.s32.totalorder %s131, 1
    %p1078 = por %p1076, %p1077
    %p1080 = scmp.ne.s32.totalorder %s1065, %s1079
    %p1081 = scmp.eq.s32.totalorder %s131, 0
    %p1082 = por %p1080, %p1081
    %s1084 = sadd.s32 %s1083, 1
    %p1087 = scmp.eq.s32.totalorder %s125, 1
    %p1088 = scmp.ne.s32.totalorder %s1083, %s1085
    %p1089 = scmp.eq.s32.totalorder %s125, 0
    %p1090 = por %p1088, %p1089
    %p1091 = scmp.ne.s32.totalorder %s1083, %s1085
    %p1092 = scmp.eq.s32.totalorder %s130, 1
    %p1093 = por %p1091, %p1092
    %p1094 = scmp.ne.s32.totalorder %s1085, %s1086
    %p1095 = scmp.eq.s32.totalorder %s130, 0
    %p1096 = por %p1094, %p1095
    %p1097 = scmp.ne.s32.totalorder %s1085, %s1086
    %p1098 = scmp.eq.s32.totalorder %s131, 1
    %p1099 = por %p1097, %p1098
    %p1101 = scmp.ne.s32.totalorder %s1086, %s1100
    %p1102 = scmp.eq.s32.totalorder %s131, 0
    %p1103 = por %p1101, %p1102
    %s1105 = sadd.s32 %s1104, 1
    %p1108 = scmp.eq.s32.totalorder %s125, 1
    %p1109 = scmp.ne.s32.totalorder %s1104, %s1106
    %p1110 = scmp.eq.s32.totalorder %s125, 0
    %p1111 = por %p1109, %p1110
    %p1112 = scmp.ne.s32.totalorder %s1104, %s1106
    %p1113 = scmp.eq.s32.totalorder %s130, 1
    %p1114 = por %p1112, %p1113
    %p1115 = scmp.ne.s32.totalorder %s1106, %s1107
    %p1116 = scmp.eq.s32.totalorder %s130, 0
    %p1117 = por %p1115, %p1116
    %p1118 = scmp.ne.s32.totalorder %s1106, %s1107
    %p1119 = scmp.eq.s32.totalorder %s131, 1
    %p1120 = por %p1118, %p1119
    %p1122 = scmp.ne.s32.totalorder %s1107, %s1121
    %p1123 = scmp.eq.s32.totalorder %s131, 0
    %p1124 = por %p1122, %p1123
    %s1126 = sadd.s32 %s1125, 1
    %p1129 = scmp.eq.s32.totalorder %s125, 1
    %p1130 = scmp.ne.s32.totalorder %s1125, %s1127
    %p1131 = scmp.eq.s32.totalorder %s125, 0
    %p1132 = por %p1130, %p1131
    %p1133 = scmp.ne.s32.totalorder %s1125, %s1127
    %p1134 = scmp.eq.s32.totalorder %s130, 1
    %p1135 = por %p1133, %p1134
    %p1136 = scmp.ne.s32.totalorder %s1127, %s1128
    %p1137 = scmp.eq.s32.totalorder %s130, 0
    %p1138 = por %p1136, %p1137
    %p1139 = scmp.ne.s32.totalorder %s1127, %s1128
    %p1140 = scmp.eq.s32.totalorder %s131, 1
    %p1141 = por %p1139, %p1140
    %p1143 = scmp.ne.s32.totalorder %s1128, %s1142
    %p1144 = scmp.eq.s32.totalorder %s131, 0
    %p1145 = por %p1143, %p1144
    %s1147 = sadd.s32 %s1146, 1
    %p1150 = scmp.eq.s32.totalorder %s125, 1
    %p1151 = scmp.ne.s32.totalorder %s1146, %s1148
    %p1152 = scmp.eq.s32.totalorder %s125, 0
    %p1153 = por %p1151, %p1152
    %p1154 = scmp.ne.s32.totalorder %s1146, %s1148
    %p1155 = scmp.eq.s32.totalorder %s130, 1
    %p1156 = por %p1154, %p1155
    %p1157 = scmp.ne.s32.totalorder %s1148, %s1149
    %p1158 = scmp.eq.s32.totalorder %s130, 0
    %p1159 = por %p1157, %p1158
    %p1160 = scmp.ne.s32.totalorder %s1148, %s1149
    %p1161 = scmp.eq.s32.totalorder %s131, 1
    %p1162 = por %p1160, %p1161
    %p1164 = scmp.ne.s32.totalorder %s1149, %s1163
    %p1165 = scmp.eq.s32.totalorder %s131, 0
    %p1166 = por %p1164, %p1165
    %s1168 = sadd.s32 %s1167, 1
    %p1171 = scmp.eq.s32.totalorder %s125, 1
    %p1172 = scmp.ne.s32.totalorder %s1167, %s1169
    %p1173 = scmp.eq.s32.totalorder %s125, 0
    %p1174 = por %p1172, %p1173
    %p1175 = scmp.ne.s32.totalorder %s1167, %s1169
    %p1176 = scmp.eq.s32.totalorder %s130, 1
    %p1177 = por %p1175, %p1176
    %p1178 = scmp.ne.s32.totalorder %s1169, %s1170
    %p1179 = scmp.eq.s32.totalorder %s130, 0
    %p1180 = por %p1178, %p1179
    %p1181 = scmp.ne.s32.totalorder %s1169, %s1170
    %p1182 = scmp.eq.s32.totalorder %s131, 1
    %p1183 = por %p1181, %p1182
    %p1185 = scmp.ne.s32.totalorder %s1170, %s1184
    %p1186 = scmp.eq.s32.totalorder %s131, 0
    %p1187 = por %p1185, %p1186
    %s1189 = sadd.s32 %s1188, 1
    %p1192 = scmp.eq.s32.totalorder %s125, 1
    %p1193 = scmp.ne.s32.totalorder %s1188, %s1190
    %p1194 = scmp.eq.s32.totalorder %s125, 0
    %p1195 = por %p1193, %p1194
    %p1196 = scmp.ne.s32.totalorder %s1188, %s1190
    %p1197 = scmp.eq.s32.totalorder %s130, 1
    %p1198 = por %p1196, %p1197
    %p1199 = scmp.ne.s32.totalorder %s1190, %s1191
    %p1200 = scmp.eq.s32.totalorder %s130, 0
    %p1201 = por %p1199, %p1200
    %p1202 = scmp.ne.s32.totalorder %s1190, %s1191
    %p1203 = scmp.eq.s32.totalorder %s131, 1
    %p1204 = por %p1202, %p1203
    %p1206 = scmp.ne.s32.totalorder %s1191, %s1205
    %p1207 = scmp.eq.s32.totalorder %s131, 0
    %p1208 = por %p1206, %p1207
    %s1210 = sadd.s32 %s1209, 1
    %p1213 = scmp.eq.s32.totalorder %s125, 1
    %p1214 = scmp.ne.s32.totalorder %s1209, %s1211
    %p1215 = scmp.eq.s32.totalorder %s125, 0
    %p1216 = por %p1214, %p1215
    %p1217 = scmp.ne.s32.totalorder %s1209, %s1211
    %p1218 = scmp.eq.s32.totalorder %s130, 1
    %p1219 = por %p1217, %p1218
    %p1220 = scmp.ne.s32.totalorder %s1211, %s1212
    %p1221 = scmp.eq.s32.totalorder %s130, 0
    %p1222 = por %p1220, %p1221
    %p1223 = scmp.ne.s32.totalorder %s1211, %s1212
    %p1224 = scmp.eq.s32.totalorder %s131, 1
    %p1225 = por %p1223, %p1224
    %p1227 = scmp.ne.s32.totalorder %s1212, %s1226
    %p1228 = scmp.eq.s32.totalorder %s131, 0
    %p1229 = por %p1227, %p1228
    %s1231 = sadd.s32 %s1230, 1
    %p1234 = scmp.eq.s32.totalorder %s125, 1
    %p1235 = scmp.ne.s32.totalorder %s1230, %s1232
    %p1236 = scmp.eq.s32.totalorder %s125, 0
    %p1237 = por %p1235, %p1236
    %p1238 = scmp.ne.s32.totalorder %s1230, %s1232
    %p1239 = scmp.eq.s32.totalorder %s130, 1
    %p1240 = por %p1238, %p1239
    %p1241 = scmp.ne.s32.totalorder %s1232, %s1233
    %p1242 = scmp.eq.s32.totalorder %s130, 0
    %p1243 = por %p1241, %p1242
    %p1244 = scmp.ne.s32.totalorder %s1232, %s1233
    %p1245 = scmp.eq.s32.totalorder %s131, 1
    %p1246 = por %p1244, %p1245
    %p1248 = scmp.ne.s32.totalorder %s1233, %s1247
    %p1249 = scmp.eq.s32.totalorder %s131, 0
    %p1250 = por %p1248, %p1249
    %s1252 = sadd.s32 %s1251, 1
    %p1255 = scmp.eq.s32.totalorder %s125, 1
    %p1256 = scmp.ne.s32.totalorder %s1251, %s1253
    %p1257 = scmp.eq.s32.totalorder %s125, 0
    %p1258 = por %p1256, %p1257
    %p1259 = scmp.ne.s32.totalorder %s1251, %s1253
    %p1260 = scmp.eq.s32.totalorder %s130, 1
    %p1261 = por %p1259, %p1260
    %p1262 = scmp.ne.s32.totalorder %s1253, %s1254
    %p1263 = scmp.eq.s32.totalorder %s130, 0
    %p1264 = por %p1262, %p1263
    %p1265 = scmp.ne.s32.totalorder %s1253, %s1254
    %p1266 = scmp.eq.s32.totalorder %s131, 1
    %p1267 = por %p1265, %p1266
    %p1269 = scmp.ne.s32.totalorder %s1254, %s1268
    %p1270 = scmp.eq.s32.totalorder %s131, 0
    %p1271 = por %p1269, %p1270
    %s1273 = sadd.s32 %s1272, 1
    %p1276 = scmp.eq.s32.totalorder %s125, 1
    %p1277 = scmp.ne.s32.totalorder %s1272, %s1274
    %p1278 = scmp.eq.s32.totalorder %s125, 0
    %p1279 = por %p1277, %p1278
    %p1280 = scmp.ne.s32.totalorder %s1272, %s1274
    %p1281 = scmp.eq.s32.totalorder %s130, 1
    %p1282 = por %p1280, %p1281
    %p1283 = scmp.ne.s32.totalorder %s1274, %s1275
    %p1284 = scmp.eq.s32.totalorder %s130, 0
    %p1285 = por %p1283, %p1284
    %p1286 = scmp.ne.s32.totalorder %s1274, %s1275
    %p1287 = scmp.eq.s32.totalorder %s131, 1
    %p1288 = por %p1286, %p1287
    %p1290 = scmp.ne.s32.totalorder %s1275, %s1289
    %p1291 = scmp.eq.s32.totalorder %s131, 0
    %p1292 = por %p1290, %p1291
    %s1294 = sadd.s32 %s1293, 1
    %p1297 = scmp.eq.s32.totalorder %s125, 1
    %p1298 = scmp.ne.s32.totalorder %s1293, %s1295
    %p1299 = scmp.eq.s32.totalorder %s125, 0
    %p1300 = por %p1298, %p1299
    %p1301 = scmp.ne.s32.totalorder %s1293, %s1295
    %p1302 = scmp.eq.s32.totalorder %s130, 1
    %p1303 = por %p1301, %p1302
    %p1304 = scmp.ne.s32.totalorder %s1295, %s1296
    %p1305 = scmp.eq.s32.totalorder %s130, 0
    %p1306 = por %p1304, %p1305
    %p1307 = scmp.ne.s32.totalorder %s1295, %s1296
    %p1308 = scmp.eq.s32.totalorder %s131, 1
    %p1309 = por %p1307, %p1308
    %p1311 = scmp.ne.s32.totalorder %s1296, %s1310
    %p1312 = scmp.eq.s32.totalorder %s131, 0
    %p1313 = por %p1311, %p1312
    %s1315 = sadd.s32 %s1314, 1
    %p1318 = scmp.eq.s32.totalorder %s125, 1
    %p1319 = scmp.ne.s32.totalorder %s1314, %s1316
    %p1320 = scmp.eq.s32.totalorder %s125, 0
    %p1321 = por %p1319, %p1320
    %p1322 = scmp.ne.s32.totalorder %s1314, %s1316
    %p1323 = scmp.eq.s32.totalorder %s130, 1
    %p1324 = por %p1322, %p1323
    %p1325 = scmp.ne.s32.totalorder %s1316, %s1317
    %p1326 = scmp.eq.s32.totalorder %s130, 0
    %p1327 = por %p1325, %p1326
    %p1328 = scmp.ne.s32.totalorder %s1316, %s1317
    %p1329 = scmp.eq.s32.totalorder %s131, 1
    %p1330 = por %p1328, %p1329
    %p1332 = scmp.ne.s32.totalorder %s1317, %s1331
    %p1333 = scmp.eq.s32.totalorder %s131, 0
    %p1334 = por %p1332, %p1333
    %s1336 = sadd.s32 %s1335, 1
    %p1339 = scmp.eq.s32.totalorder %s125, 1
    %p1340 = scmp.ne.s32.totalorder %s1335, %s1337
    %p1341 = scmp.eq.s32.totalorder %s125, 0
    %p1342 = por %p1340, %p1341
    %p1343 = scmp.ne.s32.totalorder %s1335, %s1337
    %p1344 = scmp.eq.s32.totalorder %s130, 1
    %p1345 = por %p1343, %p1344
    %p1346 = scmp.ne.s32.totalorder %s1337, %s1338
    %p1347 = scmp.eq.s32.totalorder %s130, 0
    %p1348 = por %p1346, %p1347
    %p1349 = scmp.ne.s32.totalorder %s1337, %s1338
    %p1350 = scmp.eq.s32.totalorder %s131, 1
    %p1351 = por %p1349, %p1350
    %p1353 = scmp.ne.s32.totalorder %s1338, %s1352
    %p1354 = scmp.eq.s32.totalorder %s131, 0
    %p1355 = por %p1353, %p1354
    %s1357 = sadd.s32 %s1356, 1
    %p1360 = scmp.eq.s32.totalorder %s125, 1
    %p1361 = scmp.ne.s32.totalorder %s1356, %s1358
    %p1362 = scmp.eq.s32.totalorder %s125, 0
    %p1363 = por %p1361, %p1362
    %p1364 = scmp.ne.s32.totalorder %s1356, %s1358
    %p1365 = scmp.eq.s32.totalorder %s130, 1
    %p1366 = por %p1364, %p1365
    %p1367 = scmp.ne.s32.totalorder %s1358, %s1359
    %p1368 = scmp.eq.s32.totalorder %s130, 0
    %p1369 = por %p1367, %p1368
    %p1370 = scmp.ne.s32.totalorder %s1358, %s1359
    %p1371 = scmp.eq.s32.totalorder %s131, 1
    %p1372 = por %p1370, %p1371
    %p1374 = scmp.ne.s32.totalorder %s1359, %s1373
    %p1375 = scmp.eq.s32.totalorder %s131, 0
    %p1376 = por %p1374, %p1375
    %s1377 = ssub.s32 %s125, %s132
    %p1378 = scmp.eq.s32.totalorder %s1377, 0
    %s1380 = sadd.s32 %s1379, 1
    %s1381 = scalar_select %p1378, %s1379, %s1380
    %p1384 = pneg %p1378
    %p1385 = scmp.eq.s32.totalorder %s125, 1
    %p1386 = por %p1384, %p1385
    %p1387 = scmp.ne.s32.totalorder %s1379, %s1382
    %p1388 = scmp.eq.s32.totalorder %s125, 0
    %p1389 = por %p1387, %p1388
    %p1390 = scmp.ne.s32.totalorder %s1379, %s1382
    %p1391 = scmp.eq.s32.totalorder %s130, 1
    %p1392 = por %p1390, %p1391
    %p1393 = scmp.ne.s32.totalorder %s1382, %s1383
    %p1394 = scmp.eq.s32.totalorder %s130, 0
    %p1395 = por %p1393, %p1394
    %p1396 = scmp.ne.s32.totalorder %s1382, %s1383
    %p1397 = scmp.eq.s32.totalorder %s131, 1
    %p1398 = por %p1396, %p1397
    %p1400 = scmp.ne.s32.totalorder %s1383, %s1399
    %p1401 = scmp.eq.s32.totalorder %s131, 0
    %p1402 = por %p1400, %p1401
    %p1403 = scmp.le.s32.totalorder 1, %s125
    %p1404 = scmp.lt.s32.totalorder %s125, 3
    %p1405 = pnand %p1403, %p1404
    %p1406 = pneg %p1405
    // Predicated region
    $region9: #{unet_forward.1} parent=5 // pred_check
      _
    $region10: #{unet_forward.1} parent=5 // pred_check_branch
      %1408 = sbr.rel (%p1405) target = $region12
    $region11: #{unet_forward.1} parent=5 // pred_region
      %s1409 = ssub.s32 %s125, 1
      // Predicated region
      $region13: #{unet_forward.1} parent=11 // pred_check
        %p1410 = pneg %p172
      $region14: #{unet_forward.1} parent=11 // pred_check_branch
        %1412 = sbr.rel (%p1410) target = $region16
      $region15: #{unet_forward.1} parent=11 // pred_region
        _
      $region16: #{unet_forward.1} parent=11 // pred_fallthru
        _
      // Predicated region
      $region17: #{unet_forward.1} parent=11 // pred_check
        %p1413 = pneg %p193
      $region18: #{unet_forward.1} parent=11 // pred_check_branch
        %1415 = sbr.rel (%p1413) target = $region20
      $region19: #{unet_forward.1} parent=11 // pred_region
        _
      $region20: #{unet_forward.1} parent=11 // pred_fallthru
        _
      // Predicated region
      $region21: #{unet_forward.1} parent=11 // pred_check
        %p1416 = pneg %p214
      $region22: #{unet_forward.1} parent=11 // pred_check_branch
        %1418 = sbr.rel (%p1416) target = $region24
      $region23: #{unet_forward.1} parent=11 // pred_region
        _
      $region24: #{unet_forward.1} parent=11 // pred_fallthru
        _
      // Predicated region
      $region25: #{unet_forward.1} parent=11 // pred_check
        %p1419 = pneg %p235
      $region26: #{unet_forward.1} parent=11 // pred_check_branch
        %1421 = sbr.rel (%p1419) target = $region28
      $region27: #{unet_forward.1} parent=11 // pred_region
        _
      $region28: #{unet_forward.1} parent=11 // pred_fallthru
        _
      // Predicated region
      $region29: #{unet_forward.1} parent=11 // pred_check
        %p1422 = pneg %p256
      $region30: #{unet_forward.1} parent=11 // pred_check_branch
        %1424 = sbr.rel (%p1422) target = $region32
      $region31: #{unet_forward.1} parent=11 // pred_region
        _
      $region32: #{unet_forward.1} parent=11 // pred_fallthru
        _
      // Predicated region
      $region33: #{unet_forward.1} parent=11 // pred_check
        %p1425 = pneg %p277
      $region34: #{unet_forward.1} parent=11 // pred_check_branch
        %1427 = sbr.rel (%p1425) target = $region36
      $region35: #{unet_forward.1} parent=11 // pred_region
        _
      $region36: #{unet_forward.1} parent=11 // pred_fallthru
        _
      // Predicated region
      $region37: #{unet_forward.1} parent=11 // pred_check
        %p1428 = pneg %p298
      $region38: #{unet_forward.1} parent=11 // pred_check_branch
        %1430 = sbr.rel (%p1428) target = $region40
      $region39: #{unet_forward.1} parent=11 // pred_region
        _
      $region40: #{unet_forward.1} parent=11 // pred_fallthru
        _
      // Predicated region
      $region41: #{unet_forward.1} parent=11 // pred_check
        %p1431 = pneg %p319
      $region42: #{unet_forward.1} parent=11 // pred_check_branch
        %1433 = sbr.rel (%p1431) target = $region44
      $region43: #{unet_forward.1} parent=11 // pred_region
        _
      $region44: #{unet_forward.1} parent=11 // pred_fallthru
        _
      // Predicated region
      $region45: #{unet_forward.1} parent=11 // pred_check
        %p1434 = pneg %p340
      $region46: #{unet_forward.1} parent=11 // pred_check_branch
        %1436 = sbr.rel (%p1434) target = $region48
      $region47: #{unet_forward.1} parent=11 // pred_region
        _
      $region48: #{unet_forward.1} parent=11 // pred_fallthru
        _
      // Predicated region
      $region49: #{unet_forward.1} parent=11 // pred_check
        %p1437 = pneg %p361
      $region50: #{unet_forward.1} parent=11 // pred_check_branch
        %1439 = sbr.rel (%p1437) target = $region52
      $region51: #{unet_forward.1} parent=11 // pred_region
        _
      $region52: #{unet_forward.1} parent=11 // pred_fallthru
        _
      // Predicated region
      $region53: #{unet_forward.1} parent=11 // pred_check
        %p1440 = pneg %p382
      $region54: #{unet_forward.1} parent=11 // pred_check_branch
        %1442 = sbr.rel (%p1440) target = $region56
      $region55: #{unet_forward.1} parent=11 // pred_region
        _
      $region56: #{unet_forward.1} parent=11 // pred_fallthru
        _
      // Predicated region
      $region57: #{unet_forward.1} parent=11 // pred_check
        %p1443 = pneg %p403
      $region58: #{unet_forward.1} parent=11 // pred_check_branch
        %1445 = sbr.rel (%p1443) target = $region60
      $region59: #{unet_forward.1} parent=11 // pred_region
        _
      $region60: #{unet_forward.1} parent=11 // pred_fallthru
        _
      // Predicated region
      $region61: #{unet_forward.1} parent=11 // pred_check
        %p1446 = pneg %p424
      $region62: #{unet_forward.1} parent=11 // pred_check_branch
        %1448 = sbr.rel (%p1446) target = $region64
      $region63: #{unet_forward.1} parent=11 // pred_region
        _
      $region64: #{unet_forward.1} parent=11 // pred_fallthru
        _
      // Predicated region
      $region65: #{unet_forward.1} parent=11 // pred_check
        %p1449 = pneg %p445
      $region66: #{unet_forward.1} parent=11 // pred_check_branch
        %1451 = sbr.rel (%p1449) target = $region68
      $region67: #{unet_forward.1} parent=11 // pred_region
        _
      $region68: #{unet_forward.1} parent=11 // pred_fallthru
        _
      // Predicated region
      $region69: #{unet_forward.1} parent=11 // pred_check
        %p1452 = pneg %p466
      $region70: #{unet_forward.1} parent=11 // pred_check_branch
        %1454 = sbr.rel (%p1452) target = $region72
      $region71: #{unet_forward.1} parent=11 // pred_region
        _
      $region72: #{unet_forward.1} parent=11 // pred_fallthru
        _
      // Predicated region
      $region73: #{unet_forward.1} parent=11 // pred_check
        %p1455 = pneg %p487
      $region74: #{unet_forward.1} parent=11 // pred_check_branch
        %1457 = sbr.rel (%p1455) target = $region76
      $region75: #{unet_forward.1} parent=11 // pred_region
        _
      $region76: #{unet_forward.1} parent=11 // pred_fallthru
        _
      // Predicated region
      $region77: #{unet_forward.1} parent=11 // pred_check
        %p1458 = pneg %p508
      $region78: #{unet_forward.1} parent=11 // pred_check_branch
        %1460 = sbr.rel (%p1458) target = $region80
      $region79: #{unet_forward.1} parent=11 // pred_region
        _
      $region80: #{unet_forward.1} parent=11 // pred_fallthru
        _
      // Predicated region
      $region81: #{unet_forward.1} parent=11 // pred_check
        %p1461 = pneg %p529
      $region82: #{unet_forward.1} parent=11 // pred_check_branch
        %1463 = sbr.rel (%p1461) target = $region84
      $region83: #{unet_forward.1} parent=11 // pred_region
        _
      $region84: #{unet_forward.1} parent=11 // pred_fallthru
        _
      // Predicated region
      $region85: #{unet_forward.1} parent=11 // pred_check
        %p1464 = pneg %p550
      $region86: #{unet_forward.1} parent=11 // pred_check_branch
        %1466 = sbr.rel (%p1464) target = $region88
      $region87: #{unet_forward.1} parent=11 // pred_region
        _
      $region88: #{unet_forward.1} parent=11 // pred_fallthru
        _
      // Predicated region
      $region89: #{unet_forward.1} parent=11 // pred_check
        %p1467 = pneg %p571
      $region90: #{unet_forward.1} parent=11 // pred_check_branch
        %1469 = sbr.rel (%p1467) target = $region92
      $region91: #{unet_forward.1} parent=11 // pred_region
        _
      $region92: #{unet_forward.1} parent=11 // pred_fallthru
        _
      // Predicated region
      $region93: #{unet_forward.1} parent=11 // pred_check
        %p1470 = pneg %p592
      $region94: #{unet_forward.1} parent=11 // pred_check_branch
        %1472 = sbr.rel (%p1470) target = $region96
      $region95: #{unet_forward.1} parent=11 // pred_region
        _
      $region96: #{unet_forward.1} parent=11 // pred_fallthru
        _
      // Predicated region
      $region97: #{unet_forward.1} parent=11 // pred_check
        %p1473 = pneg %p613
      $region98: #{unet_forward.1} parent=11 // pred_check_branch
        %1475 = sbr.rel (%p1473) target = $region100
      $region99: #{unet_forward.1} parent=11 // pred_region
        _
      $region100: #{unet_forward.1} parent=11 // pred_fallthru
        _
      // Predicated region
      $region101: #{unet_forward.1} parent=11 // pred_check
        %p1476 = pneg %p634
      $region102: #{unet_forward.1} parent=11 // pred_check_branch
        %1478 = sbr.rel (%p1476) target = $region104
      $region103: #{unet_forward.1} parent=11 // pred_region
        _
      $region104: #{unet_forward.1} parent=11 // pred_fallthru
        _
      // Predicated region
      $region105: #{unet_forward.1} parent=11 // pred_check
        %p1479 = pneg %p655
      $region106: #{unet_forward.1} parent=11 // pred_check_branch
        %1481 = sbr.rel (%p1479) target = $region108
      $region107: #{unet_forward.1} parent=11 // pred_region
        _
      $region108: #{unet_forward.1} parent=11 // pred_fallthru
        _
      // Predicated region
      $region109: #{unet_forward.1} parent=11 // pred_check
        %p1482 = pneg %p676
      $region110: #{unet_forward.1} parent=11 // pred_check_branch
        %1484 = sbr.rel (%p1482) target = $region112
      $region111: #{unet_forward.1} parent=11 // pred_region
        _
      $region112: #{unet_forward.1} parent=11 // pred_fallthru
        _
      // Predicated region
      $region113: #{unet_forward.1} parent=11 // pred_check
        %p1485 = pneg %p697
      $region114: #{unet_forward.1} parent=11 // pred_check_branch
        %1487 = sbr.rel (%p1485) target = $region116
      $region115: #{unet_forward.1} parent=11 // pred_region
        _
      $region116: #{unet_forward.1} parent=11 // pred_fallthru
        _
      // Predicated region
      $region117: #{unet_forward.1} parent=11 // pred_check
        %p1488 = pneg %p718
      $region118: #{unet_forward.1} parent=11 // pred_check_branch
        %1490 = sbr.rel (%p1488) target = $region120
      $region119: #{unet_forward.1} parent=11 // pred_region
        _
      $region120: #{unet_forward.1} parent=11 // pred_fallthru
        _
      // Predicated region
      $region121: #{unet_forward.1} parent=11 // pred_check
        %p1491 = pneg %p739
      $region122: #{unet_forward.1} parent=11 // pred_check_branch
        %1493 = sbr.rel (%p1491) target = $region124
      $region123: #{unet_forward.1} parent=11 // pred_region
        _
      $region124: #{unet_forward.1} parent=11 // pred_fallthru
        _
      // Predicated region
      $region125: #{unet_forward.1} parent=11 // pred_check
        %p1494 = pneg %p760
      $region126: #{unet_forward.1} parent=11 // pred_check_branch
        %1496 = sbr.rel (%p1494) target = $region128
      $region127: #{unet_forward.1} parent=11 // pred_region
        _
      $region128: #{unet_forward.1} parent=11 // pred_fallthru
        _
      // Predicated region
      $region129: #{unet_forward.1} parent=11 // pred_check
        %p1497 = pneg %p781
      $region130: #{unet_forward.1} parent=11 // pred_check_branch
        %1499 = sbr.rel (%p1497) target = $region132
      $region131: #{unet_forward.1} parent=11 // pred_region
        _
      $region132: #{unet_forward.1} parent=11 // pred_fallthru
        _
      // Predicated region
      $region133: #{unet_forward.1} parent=11 // pred_check
        %p1500 = pneg %p802
      $region134: #{unet_forward.1} parent=11 // pred_check_branch
        %1502 = sbr.rel (%p1500) target = $region136
      $region135: #{unet_forward.1} parent=11 // pred_region
        _
      $region136: #{unet_forward.1} parent=11 // pred_fallthru
        _
      // Predicated region
      $region137: #{unet_forward.1} parent=11 // pred_check
        %p1503 = pneg %p823
      $region138: #{unet_forward.1} parent=11 // pred_check_branch
        %1505 = sbr.rel (%p1503) target = $region140
      $region139: #{unet_forward.1} parent=11 // pred_region
        _
      $region140: #{unet_forward.1} parent=11 // pred_fallthru
        _
      // Predicated region
      $region141: #{unet_forward.1} parent=11 // pred_check
        %p1506 = pneg %p844
      $region142: #{unet_forward.1} parent=11 // pred_check_branch
        %1508 = sbr.rel (%p1506) target = $region144
      $region143: #{unet_forward.1} parent=11 // pred_region
        _
      $region144: #{unet_forward.1} parent=11 // pred_fallthru
        _
      // Predicated region
      $region145: #{unet_forward.1} parent=11 // pred_check
        %p1509 = pneg %p865
      $region146: #{unet_forward.1} parent=11 // pred_check_branch
        %1511 = sbr.rel (%p1509) target = $region148
      $region147: #{unet_forward.1} parent=11 // pred_region
        _
      $region148: #{unet_forward.1} parent=11 // pred_fallthru
        _
      // Predicated region
      $region149: #{unet_forward.1} parent=11 // pred_check
        %p1512 = pneg %p886
      $region150: #{unet_forward.1} parent=11 // pred_check_branch
        %1514 = sbr.rel (%p1512) target = $region152
      $region151: #{unet_forward.1} parent=11 // pred_region
        _
      $region152: #{unet_forward.1} parent=11 // pred_fallthru
        _
      // Predicated region
      $region153: #{unet_forward.1} parent=11 // pred_check
        %p1515 = pneg %p907
      $region154: #{unet_forward.1} parent=11 // pred_check_branch
        %1517 = sbr.rel (%p1515) target = $region156
      $region155: #{unet_forward.1} parent=11 // pred_region
        _
      $region156: #{unet_forward.1} parent=11 // pred_fallthru
        _
      // Predicated region
      $region157: #{unet_forward.1} parent=11 // pred_check
        %p1518 = pneg %p928
      $region158: #{unet_forward.1} parent=11 // pred_check_branch
        %1520 = sbr.rel (%p1518) target = $region160
      $region159: #{unet_forward.1} parent=11 // pred_region
        _
      $region160: #{unet_forward.1} parent=11 // pred_fallthru
        _
      // Predicated region
      $region161: #{unet_forward.1} parent=11 // pred_check
        %p1521 = pneg %p949
      $region162: #{unet_forward.1} parent=11 // pred_check_branch
        %1523 = sbr.rel (%p1521) target = $region164
      $region163: #{unet_forward.1} parent=11 // pred_region
        _
      $region164: #{unet_forward.1} parent=11 // pred_fallthru
        _
      // Predicated region
      $region165: #{unet_forward.1} parent=11 // pred_check
        %p1524 = pneg %p970
      $region166: #{unet_forward.1} parent=11 // pred_check_branch
        %1526 = sbr.rel (%p1524) target = $region168
      $region167: #{unet_forward.1} parent=11 // pred_region
        _
      $region168: #{unet_forward.1} parent=11 // pred_fallthru
        _
      // Predicated region
      $region169: #{unet_forward.1} parent=11 // pred_check
        %p1527 = pneg %p991
      $region170: #{unet_forward.1} parent=11 // pred_check_branch
        %1529 = sbr.rel (%p1527) target = $region172
      $region171: #{unet_forward.1} parent=11 // pred_region
        _
      $region172: #{unet_forward.1} parent=11 // pred_fallthru
        _
      // Predicated region
      $region173: #{unet_forward.1} parent=11 // pred_check
        %p1530 = pneg %p1012
      $region174: #{unet_forward.1} parent=11 // pred_check_branch
        %1532 = sbr.rel (%p1530) target = $region176
      $region175: #{unet_forward.1} parent=11 // pred_region
        _
      $region176: #{unet_forward.1} parent=11 // pred_fallthru
        _
      // Predicated region
      $region177: #{unet_forward.1} parent=11 // pred_check
        %p1533 = pneg %p1033
      $region178: #{unet_forward.1} parent=11 // pred_check_branch
        %1535 = sbr.rel (%p1533) target = $region180
      $region179: #{unet_forward.1} parent=11 // pred_region
        _
      $region180: #{unet_forward.1} parent=11 // pred_fallthru
        _
      // Predicated region
      $region181: #{unet_forward.1} parent=11 // pred_check
        %p1536 = pneg %p1054
      $region182: #{unet_forward.1} parent=11 // pred_check_branch
        %1538 = sbr.rel (%p1536) target = $region184
      $region183: #{unet_forward.1} parent=11 // pred_region
        _
      $region184: #{unet_forward.1} parent=11 // pred_fallthru
        _
      // Predicated region
      $region185: #{unet_forward.1} parent=11 // pred_check
        %p1539 = pneg %p1075
      $region186: #{unet_forward.1} parent=11 // pred_check_branch
        %1541 = sbr.rel (%p1539) target = $region188
      $region187: #{unet_forward.1} parent=11 // pred_region
        _
      $region188: #{unet_forward.1} parent=11 // pred_fallthru
        _
      // Predicated region
      $region189: #{unet_forward.1} parent=11 // pred_check
        %p1542 = pneg %p1096
      $region190: #{unet_forward.1} parent=11 // pred_check_branch
        %1544 = sbr.rel (%p1542) target = $region192
      $region191: #{unet_forward.1} parent=11 // pred_region
        _
      $region192: #{unet_forward.1} parent=11 // pred_fallthru
        _
      // Predicated region
      $region193: #{unet_forward.1} parent=11 // pred_check
        %p1545 = pneg %p1117
      $region194: #{unet_forward.1} parent=11 // pred_check_branch
        %1547 = sbr.rel (%p1545) target = $region196
      $region195: #{unet_forward.1} parent=11 // pred_region
        _
      $region196: #{unet_forward.1} parent=11 // pred_fallthru
        _
      // Predicated region
      $region197: #{unet_forward.1} parent=11 // pred_check
        %p1548 = pneg %p1138
      $region198: #{unet_forward.1} parent=11 // pred_check_branch
        %1550 = sbr.rel (%p1548) target = $region200
      $region199: #{unet_forward.1} parent=11 // pred_region
        _
      $region200: #{unet_forward.1} parent=11 // pred_fallthru
        _
      // Predicated region
      $region201: #{unet_forward.1} parent=11 // pred_check
        %p1551 = pneg %p1159
      $region202: #{unet_forward.1} parent=11 // pred_check_branch
        %1553 = sbr.rel (%p1551) target = $region204
      $region203: #{unet_forward.1} parent=11 // pred_region
        _
      $region204: #{unet_forward.1} parent=11 // pred_fallthru
        _
      // Predicated region
      $region205: #{unet_forward.1} parent=11 // pred_check
        %p1554 = pneg %p1180
      $region206: #{unet_forward.1} parent=11 // pred_check_branch
        %1556 = sbr.rel (%p1554) target = $region208
      $region207: #{unet_forward.1} parent=11 // pred_region
        _
      $region208: #{unet_forward.1} parent=11 // pred_fallthru
        _
      // Predicated region
      $region209: #{unet_forward.1} parent=11 // pred_check
        %p1557 = pneg %p1201
      $region210: #{unet_forward.1} parent=11 // pred_check_branch
        %1559 = sbr.rel (%p1557) target = $region212
      $region211: #{unet_forward.1} parent=11 // pred_region
        _
      $region212: #{unet_forward.1} parent=11 // pred_fallthru
        _
      // Predicated region
      $region213: #{unet_forward.1} parent=11 // pred_check
        %p1560 = pneg %p1222
      $region214: #{unet_forward.1} parent=11 // pred_check_branch
        %1562 = sbr.rel (%p1560) target = $region216
      $region215: #{unet_forward.1} parent=11 // pred_region
        _
      $region216: #{unet_forward.1} parent=11 // pred_fallthru
        _
      // Predicated region
      $region217: #{unet_forward.1} parent=11 // pred_check
        %p1563 = pneg %p1243
      $region218: #{unet_forward.1} parent=11 // pred_check_branch
        %1565 = sbr.rel (%p1563) target = $region220
      $region219: #{unet_forward.1} parent=11 // pred_region
        _
      $region220: #{unet_forward.1} parent=11 // pred_fallthru
        _
      // Predicated region
      $region221: #{unet_forward.1} parent=11 // pred_check
        %p1566 = pneg %p1264
      $region222: #{unet_forward.1} parent=11 // pred_check_branch
        %1568 = sbr.rel (%p1566) target = $region224
      $region223: #{unet_forward.1} parent=11 // pred_region
        _
      $region224: #{unet_forward.1} parent=11 // pred_fallthru
        _
      // Predicated region
      $region225: #{unet_forward.1} parent=11 // pred_check
        %p1569 = pneg %p1285
      $region226: #{unet_forward.1} parent=11 // pred_check_branch
        %1571 = sbr.rel (%p1569) target = $region228
      $region227: #{unet_forward.1} parent=11 // pred_region
        _
      $region228: #{unet_forward.1} parent=11 // pred_fallthru
        _
      // Predicated region
      $region229: #{unet_forward.1} parent=11 // pred_check
        %p1572 = pneg %p1306
      $region230: #{unet_forward.1} parent=11 // pred_check_branch
        %1574 = sbr.rel (%p1572) target = $region232
      $region231: #{unet_forward.1} parent=11 // pred_region
        _
      $region232: #{unet_forward.1} parent=11 // pred_fallthru
        _
      // Predicated region
      $region233: #{unet_forward.1} parent=11 // pred_check
        %p1575 = pneg %p1327
      $region234: #{unet_forward.1} parent=11 // pred_check_branch
        %1577 = sbr.rel (%p1575) target = $region236
      $region235: #{unet_forward.1} parent=11 // pred_region
        _
      $region236: #{unet_forward.1} parent=11 // pred_fallthru
        _
      // Predicated region
      $region237: #{unet_forward.1} parent=11 // pred_check
        %p1578 = pneg %p1348
      $region238: #{unet_forward.1} parent=11 // pred_check_branch
        %1580 = sbr.rel (%p1578) target = $region240
      $region239: #{unet_forward.1} parent=11 // pred_region
        _
      $region240: #{unet_forward.1} parent=11 // pred_fallthru
        _
      // Predicated region
      $region241: #{unet_forward.1} parent=11 // pred_check
        %p1581 = pneg %p1369
      $region242: #{unet_forward.1} parent=11 // pred_check_branch
        %1583 = sbr.rel (%p1581) target = $region244
      $region243: #{unet_forward.1} parent=11 // pred_region
        _
      $region244: #{unet_forward.1} parent=11 // pred_fallthru
        _
    $region12: #{unet_forward.1} parent=5 // pred_fallthru
      _
    %p1584 = scmp.lt.s32.totalorder %s125, 2
    // Predicated region
    $region245: #{unet_forward.1} parent=5 // pred_check
      %p1585 = pneg %p1584
    $region246: #{unet_forward.1} parent=5 // pred_check_branch
      %1587 = sbr.rel (%p1585) target = $region248
    $region247: #{unet_forward.1} parent=5 // pred_region
      // Predicated region
      $region249: #{unet_forward.1} parent=247 // pred_check
        %p1588 = pneg %p145
      $region250: #{unet_forward.1} parent=247 // pred_check_branch
        %1590 = sbr.rel (%p1588) target = $region252
      $region251: #{unet_forward.1} parent=247 // pred_region
        %p1591 = scmp.lt.s32.totalorder %s125, 1
        %s1592 = scalar_select %p1591, %s125, 1
        %s1593 = smul.addr %s1592, 3
        %s1594 = smul.addr %s1593, 4
        %s1595 = scalar_lea.vmem %s1, %s1594
      $region252: #{unet_forward.1} parent=247 // pred_fallthru
        _
    $region248: #{unet_forward.1} parent=5 // pred_fallthru
      _
    %p1596 = scmp.le.s32.totalorder 1, %s125
    %p1597 = scmp.lt.s32.totalorder %s125, 3
    %p1598 = pnand %p1596, %p1597
    %p1599 = pneg %p1598
    // Predicated region
    $region253: #{unet_forward.1} parent=5 // pred_check
      _
    $region254: #{unet_forward.1} parent=5 // pred_check_branch
      %1601 = sbr.rel (%p1598) target = $region256
    $region255: #{unet_forward.1} parent=5 // pred_region
      %s1602 = ssub.s32 %s125, 1
      %p1603 = scmp.lt.s32.totalorder %s130, 1
      %s1604 = scalar_select %p1603, %s130, 1
      %s1605 = smul.addr %s1604, 3
      %s1606 = smul.addr %s1605, 4
      %s1607 = scalar_lea.vmem %s1, %s1606
      %p1608 = pneg %p151
      %p1609 = pneg %p148
      %p1610 = pneg %p172
      %p1611 = pneg %p169
      %p1612 = pneg %p193
      %p1613 = pneg %p190
      %p1614 = pneg %p214
      %p1615 = pneg %p211
      %p1616 = pneg %p235
      %p1617 = pneg %p232
      %p1618 = pneg %p256
      %p1619 = pneg %p253
      %p1620 = pneg %p277
      %p1621 = pneg %p274
      %p1622 = pneg %p298
      %p1623 = pneg %p295
      %p1624 = pneg %p319
      %p1625 = pneg %p316
      %p1626 = pneg %p340
      %p1627 = pneg %p337
      %p1628 = pneg %p361
      %p1629 = pneg %p358
      %p1630 = pneg %p382
      %p1631 = pneg %p379
      %p1632 = pneg %p403
      %p1633 = pneg %p400
      %p1634 = pneg %p424
      %p1635 = pneg %p421
      %p1636 = pneg %p445
      %p1637 = pneg %p442
      %p1638 = pneg %p466
      %p1639 = pneg %p463
      %p1640 = pneg %p487
      %p1641 = pneg %p484
      %p1642 = pneg %p508
      %p1643 = pneg %p505
      %p1644 = pneg %p529
      %p1645 = pneg %p526
      %p1646 = pneg %p550
      %p1647 = pneg %p547
      %p1648 = pneg %p571
      %p1649 = pneg %p568
      %p1650 = pneg %p592
      %p1651 = pneg %p589
      %p1652 = pneg %p613
      %p1653 = pneg %p610
      %p1654 = pneg %p634
      %p1655 = pneg %p631
      %p1656 = pneg %p655
      %p1657 = pneg %p652
      %p1658 = pneg %p676
      %p1659 = pneg %p673
      %p1660 = pneg %p697
      %p1661 = pneg %p694
      %p1662 = pneg %p718
      %p1663 = pneg %p715
      %p1664 = pneg %p739
      %p1665 = pneg %p736
      %p1666 = pneg %p760
      %p1667 = pneg %p757
      %p1668 = pneg %p781
      %p1669 = pneg %p778
      %p1670 = pneg %p802
      %p1671 = pneg %p799
      %p1672 = pneg %p823
      %p1673 = pneg %p820
      %p1674 = pneg %p844
      %p1675 = pneg %p841
      %p1676 = pneg %p865
      %p1677 = pneg %p862
      %p1678 = pneg %p886
      %p1679 = pneg %p883
      %p1680 = pneg %p907
      %p1681 = pneg %p904
      %p1682 = pneg %p928
      %p1683 = pneg %p925
      %p1684 = pneg %p949
      %p1685 = pneg %p946
      %p1686 = pneg %p970
      %p1687 = pneg %p967
      %p1688 = pneg %p991
      %p1689 = pneg %p988
      %p1690 = pneg %p1012
      %p1691 = pneg %p1009
      %p1692 = pneg %p1033
      %p1693 = pneg %p1030
      %p1694 = pneg %p1054
      %p1695 = pneg %p1051
      %p1696 = pneg %p1075
      %p1697 = pneg %p1072
      %p1698 = pneg %p1096
      %p1699 = pneg %p1093
      %p1700 = pneg %p1117
      %p1701 = pneg %p1114
      %p1702 = pneg %p1138
      %p1703 = pneg %p1135
      %p1704 = pneg %p1159
      %p1705 = pneg %p1156
      %p1706 = pneg %p1180
      %p1707 = pneg %p1177
      %p1708 = pneg %p1201
      %p1709 = pneg %p1198
      %p1710 = pneg %p1222
      %p1711 = pneg %p1219
      %p1712 = pneg %p1243
      %p1713 = pneg %p1240
      %p1714 = pneg %p1264
      %p1715 = pneg %p1261
      %p1716 = pneg %p1285
      %p1717 = pneg %p1282
      %p1718 = pneg %p1306
      %p1719 = pneg %p1303
      %p1720 = pneg %p1327
      %p1721 = pneg %p1324
      %p1722 = pneg %p1348
      %p1723 = pneg %p1345
      %p1724 = pneg %p1369
      %p1725 = pneg %p1366
      %p1726 = pneg %p1395
      %p1727 = pneg %p1392
      %p1728 = scmp.lt.s32.totalorder %s130, 1
      %s1729 = scalar_select %p1728, %s130, 1
      %s1730 = smul.addr %s1729, 3
      %s1731 = smul.addr %s1730, 2
      %s1732 = scalar_lea.vmem %s119, %s1731
      %p1733 = scmp.lt.s32.totalorder %s130, 1
      %s1734 = scalar_select %p1733, %s130, 1
      %s1735 = smul.addr %s1734, 3
      %s1736 = smul.addr %s1735, 4
      %s1737 = scalar_lea.vmem %s1, %s1736
      %p1738 = scmp.lt.s32.totalorder %s130, 1
      %s1739 = scalar_select %p1738, %s130, 1
      %s1740 = smul.addr %s1739, 3
      %s1741 = smul.addr %s1740, 2
      %s1742 = scalar_lea.vmem %s119, %s1741
      %v1743 = vld [vmem:[%s99] sm:$0x7]
      %v1744 = vld [vmem:[%s101] sm:$0x1]
      %v1745 = vld [vmem:[%s103] sm:$0x1]
      %v1746 = vld [vmem:[%s105] sm:$0x1]
      %v1747 = vld [vmem:[%s1737] sm:$0xff]
      %v1748 = vld [vmem:[%s1737 + $0x8] sm:$0xf]
      %v1749 = vld [vmem:[%s3] sm:$0xf]
      %1751 = vset.pattern.permute.xlu0 0
      %1752 = vperm.xlu0 %1751, %v1749
      %v1753 = vpop.permute.xlu0 %1752
      %v1755 = vunpack.c.l.s4 839922192
      %v1756 = vunpack.c.0.s8 %v1755
      %v1757 = vperm.slane %v1753, %v1756
      %v1759 = vmul.f32 %v1747, %v1757
      %v1760 = vmul.f32 %v1748, %v1757
      %v1761 = vld [vmem:[%s5] sm:$0xf]
      %1763 = vset.pattern.permute.xlu0 0
      %1764 = vperm.xlu0 %1763, %v1761
      %v1765 = vpop.permute.xlu0 %1764
      %v1767 = vunpack.c.l.s4 839922192
      %v1768 = vunpack.c.0.s8 %v1767
      %v1769 = vperm.slane %v1765, %v1768
      %v1771 = vadd.f32 %v1759, %v1769
      %v1772 = vadd.f32 %v1760, %v1769
      %v1773 = vmax.f32 %v1771, 0.0
      %v1774 = vmax.f32 %v1772, 0.0
      %v1776 = vperm.slane %v1743, 0
      %v1777 = vperm.slane %v1743, 1
      %v1778 = vperm.slane %v1743, 2
      %v1780 = vrot.slane %v1777, 4
      %vm1781 = vcmask 1043456
      %v1782 = vsel %vm1781, %v1776, %v1780
      %v1784 = vmul.f32 %v1773, %v1782
      %v1785 = vmul.f32 %v1774, %v1778
      %1788 = vst [vmem:[#allocation1] ss:$2 sm:$0xff] %v1784
      %s1789 = scalar_lea.vmem [#allocation1], 16
      %1790 = vst [vmem:[%s1789] ss:$2 sm:$0xff] %v1785
      %v1791 = vld.sshfl [vmem:[#allocation1] sm:$0xff pattern:$0x75316420]
      %v1792 = vld.sshfl [vmem:[#allocation1 + $0x8] sm:$0xff pattern:$0x75316420]
      %v1793 = vld.sshfl [vmem:[#allocation1 + $0x10] sm:$0xff pattern:$0x75316420]
      %1794 = vrot.lane.b32.xlu0 %v1791, 19
      %v1795 = vpop.permute.xlu0 %1794
      %1796 = vrot.lane.b32.xlu0 %v1792, 19
      %v1797 = vpop.permute.xlu0 %1796
      %1798 = vrot.lane.b32.xlu0 %v1793, 19
      %v1799 = vpop.permute.xlu0 %1798
      %vm1800 = vcmask 154624
      %v1801 = vsel %vm1800, %v1795, %v1797
      %v1802 = vsel %vm1800, %v1797, %v1799
      %v1806 = vsel %vm1800, 0.0, %v1795
      %vm1807 = vcmask 711680
      %v1808 = vsel %vm1807, %v1802, 0.0
      %v1811 = vrot.slane %v1806, 4
      %v1812 = vrot.slane %v1801, 4
      %v1813 = vrot.slane %v1808, 4
      %1814 = vrot.lane.b32.xlu0 %v1811, 127
      %v1815 = vpop.permute.xlu0 %1814
      %1816 = vrot.lane.b32.xlu0 %v1812, 127
      %v1817 = vpop.permute.xlu0 %1816
      %1818 = vrot.lane.b32.xlu0 %v1813, 127
      %v1819 = vpop.permute.xlu0 %1818
      %vm1820 = vcmask 1039360
      %v1821 = vsel %vm1820, %v1815, %v1817
      %v1822 = vsel %vm1820, %v1817, %v1819
      %1826 = vrot.lane.b32.xlu0 %v1806, 126
      %v1827 = vpop.permute.xlu0 %1826
      %1828 = vrot.lane.b32.xlu0 %v1801, 126
      %v1829 = vpop.permute.xlu0 %1828
      %1830 = vrot.lane.b32.xlu0 %v1808, 126
      %v1831 = vpop.permute.xlu0 %1830
      %vm1832 = vcmask 1031168
      %v1833 = vsel %vm1832, %v1827, %v1829
      %v1834 = vsel %vm1832, %v1829, %v1831
      %1838 = vrot.lane.b32.xlu0 %v1811, 110
      %v1839 = vpop.permute.xlu0 %1838
      %1840 = vrot.lane.b32.xlu0 %v1812, 110
      %v1841 = vpop.permute.xlu0 %1840
      %1842 = vrot.lane.b32.xlu0 %v1813, 110
      %v1843 = vpop.permute.xlu0 %1842
      %vm1844 = vcmask 900096
      %v1845 = vsel %vm1844, %v1839, %v1841
      %v1846 = vsel %vm1844, %v1841, %v1843
      %1850 = vrot.lane.b32.xlu0 %v1806, 109
      %v1851 = vpop.permute.xlu0 %1850
      %1852 = vrot.lane.b32.xlu0 %v1801, 109
      %v1853 = vpop.permute.xlu0 %1852
      %1854 = vrot.lane.b32.xlu0 %v1808, 109
      %v1855 = vpop.permute.xlu0 %1854
      %vm1856 = vcmask 891904
      %v1857 = vsel %vm1856, %v1851, %v1853
      %v1858 = vsel %vm1856, %v1853, %v1855
      %1862 = vrot.lane.b32.xlu0 %v1811, 108
      %v1863 = vpop.permute.xlu0 %1862
      %1864 = vrot.lane.b32.xlu0 %v1812, 108
      %v1865 = vpop.permute.xlu0 %1864
      %1866 = vrot.lane.b32.xlu0 %v1813, 108
      %v1867 = vpop.permute.xlu0 %1866
      %vm1868 = vcmask 883712
      %v1869 = vsel %vm1868, %v1863, %v1865
      %v1870 = vsel %vm1868, %v1865, %v1867
      %1874 = vrot.lane.b32.xlu0 %v1806, 92
      %v1875 = vpop.permute.xlu0 %1874
      %1876 = vrot.lane.b32.xlu0 %v1801, 92
      %v1877 = vpop.permute.xlu0 %1876
      %1878 = vrot.lane.b32.xlu0 %v1808, 92
      %v1879 = vpop.permute.xlu0 %1878
      %vm1880 = vcmask 752640
      %v1881 = vsel %vm1880, %v1875, %v1877
      %v1882 = vsel %vm1880, %v1877, %v1879
      %1886 = vrot.lane.b32.xlu0 %v1811, 91
      %v1887 = vpop.permute.xlu0 %1886
      %1888 = vrot.lane.b32.xlu0 %v1812, 91
      %v1889 = vpop.permute.xlu0 %1888
      %1890 = vrot.lane.b32.xlu0 %v1813, 91
      %v1891 = vpop.permute.xlu0 %1890
      %vm1892 = vcmask 744448
      %v1893 = vsel %vm1892, %v1887, %v1889
      %v1894 = vsel %vm1892, %v1889, %v1891
      %1898 = vrot.lane.b32.xlu0 %v1806, 90
      %v1899 = vpop.permute.xlu0 %1898
      %1900 = vrot.lane.b32.xlu0 %v1801, 90
      %v1901 = vpop.permute.xlu0 %1900
      %1902 = vrot.lane.b32.xlu0 %v1808, 90
      %v1903 = vpop.permute.xlu0 %1902
      %vm1904 = vcmask 736256
      %v1905 = vsel %vm1904, %v1899, %v1901
      %v1906 = vsel %vm1904, %v1901, %v1903
      %v1907 = vsel %vm1781, %v1806, %v1821
      %v1908 = vsel %vm1781, %v1801, %v1822
      %v1909 = vsel %vm1781, %v1808, %v1819
      %v1910 = vsel %vm1781, %v1833, %v1845
      %v1911 = vsel %vm1781, %v1834, %v1846
      %v1912 = vsel %vm1781, %v1831, %v1843
      %v1913 = vsel %vm1781, %v1857, %v1869
      %v1914 = vsel %vm1781, %v1858, %v1870
      %v1915 = vsel %vm1781, %v1855, %v1867
      %v1916 = vsel %vm1781, %v1881, %v1893
      %v1917 = vsel %vm1781, %v1882, %v1894
      %v1918 = vsel %vm1781, %v1879, %v1891
      %v1919 = vld [vmem:[%s7] sm:$0xff]
      %v1920 = vld [vmem:[%s9] sm:$0xff]
      %1922 = vset.pattern.permute.xlu0 0
      %1923 = vperm.xlu0 %1922, %v1920
      %v1924 = vpop.permute.xlu0 %1923
      %vm1926 = vcmask 293888
      %v1928 = vsel %vm1926, %v1919, 0
      %v1930 = vsel %vm1781, %v1905, 0
      %v1932 = vsel %vm1781, %v1906, 0
      %v1934 = vsel %vm1781, %v1903, 0
      %1936 = vmatpush.msra.mxu0 0.0
      %1937 = vmatpush.msra.mxu0 0.0
      %1938 = vmatpush.msra.mxu0 0.0
      %1939 = vmatpush.msra.mxu0 0.0
      %1940 = vmatpush.msra.mxu0 0.0
      %1941 = vmatpush.msra.mxu0 0.0
      %1942 = vmatpush.msra.mxu0 0.0
      %1943 = vmatpush.msra.mxu0 0.0
      %1944 = vmatpush.msra.mxu0 0.0
      %1945 = vmatpush.msra.mxu0 0.0
      %1946 = vmatpush.msra.mxu0 0.0
      %1947 = vmatpush.msra.mxu0 %v1930
      %1948 = vmatpush.msra.mxu0 %v1916
      %1949 = vmatpush.msra.mxu0 %v1913
      %1950 = vmatpush.msra.mxu0 %v1910
      %1951 = vmatpush.msra.mxu0 %v1907
      %1952 = vmatmul.f32.gmra.mxu0 %v1928
      %v1953 = vpop.f32.mrf.mxu0
      %v1954 = vadd.f32 %v1924, %v1953
      %1955 = vdwg.mxu0
      %1956 = vmatpush.msra.mxu0 0.0
      %1957 = vmatpush.msra.mxu0 0.0
      %1958 = vmatpush.msra.mxu0 0.0
      %1959 = vmatpush.msra.mxu0 0.0
      %1960 = vmatpush.msra.mxu0 0.0
      %1961 = vmatpush.msra.mxu0 0.0
      %1962 = vmatpush.msra.mxu0 0.0
      %1963 = vmatpush.msra.mxu0 0.0
      %1964 = vmatpush.msra.mxu0 0.0
      %1965 = vmatpush.msra.mxu0 0.0
      %1966 = vmatpush.msra.mxu0 0.0
      %1967 = vmatpush.msra.mxu0 %v1932
      %1968 = vmatpush.msra.mxu0 %v1917
      %1969 = vmatpush.msra.mxu0 %v1914
      %1970 = vmatpush.msra.mxu0 %v1911
      %1971 = vmatpush.msra.mxu0 %v1908
      %1972 = vmatmul.f32.gmra.mxu0 %v1928
      %v1973 = vpop.f32.mrf.mxu0
      %v1974 = vadd.f32 %v1924, %v1973
      %1975 = vdwg.mxu0
      %1976 = vmatpush.msra.mxu0 0.0
      %1977 = vmatpush.msra.mxu0 0.0
      %1978 = vmatpush.msra.mxu0 0.0
      %1979 = vmatpush.msra.mxu0 0.0
      %1980 = vmatpush.msra.mxu0 0.0
      %1981 = vmatpush.msra.mxu0 0.0
      %1982 = vmatpush.msra.mxu0 0.0
      %1983 = vmatpush.msra.mxu0 0.0
      %1984 = vmatpush.msra.mxu0 0.0
      %1985 = vmatpush.msra.mxu0 0.0
      %1986 = vmatpush.msra.mxu0 0.0
      %1987 = vmatpush.msra.mxu0 %v1934
      %1988 = vmatpush.msra.mxu0 %v1918
      %1989 = vmatpush.msra.mxu0 %v1915
      %1990 = vmatpush.msra.mxu0 %v1912
      %1991 = vmatpush.msra.mxu0 %v1909
      %1992 = vmatmul.f32.gmra.mxu0 %v1928
      %v1993 = vpop.f32.mrf.mxu0
      %v1994 = vadd.f32 %v1924, %v1993
      %1995 = vdwg.mxu0
      %v1998 = vmul.f32 %v1954, %v1776
      %v1999 = vmul.f32 %v1974, %v1777
      %v2000 = vmul.f32 %v1994, %v1778
      %v2001 = vld [vmem:[%s11] sm:$0xff]
      %2003 = vset.pattern.permute.xlu0 0
      %2004 = vperm.xlu0 %2003, %v2001
      %v2005 = vpop.permute.xlu0 %2004
      %v2007 = vmul.f32 %v1998, %v2005
      %v2008 = vmul.f32 %v1999, %v2005
      %v2009 = vmul.f32 %v2000, %v2005
      %v2010 = vld [vmem:[%s13] sm:$0xff]
      %2012 = vset.pattern.permute.xlu0 0
      %2013 = vperm.xlu0 %2012, %v2010
      %v2014 = vpop.permute.xlu0 %2013
      %v2016 = vadd.f32 %v2007, %v2014
      %v2017 = vadd.f32 %v2008, %v2014
      %v2018 = vadd.f32 %v2009, %v2014
      %v2019 = vmax.f32 %v2016, 0.0
      %v2020 = vmax.f32 %v2017, 0.0
      %v2021 = vmax.f32 %v2018, 0.0
      %v2022 = vmul.f32 %v2019, %v1776
      %v2023 = vmul.f32 %v2020, %v1777
      %v2024 = vmul.f32 %v2021, %v1778
      %2028 = vrot.lane.b32.xlu0 %v2022, 19
      %v2029 = vpop.permute.xlu0 %2028
      %2030 = vrot.lane.b32.xlu0 %v2023, 19
      %v2031 = vpop.permute.xlu0 %2030
      %2032 = vrot.lane.b32.xlu0 %v2024, 19
      %v2033 = vpop.permute.xlu0 %2032
      %v2034 = vsel %vm1800, %v2029, %v2031
      %v2035 = vsel %vm1800, %v2031, %v2033
      %v2039 = vsel %vm1800, 0.0, %v2029
      %v2040 = vsel %vm1807, %v2035, 0.0
      %2043 = vrot.lane.b32.xlu0 %v2039, 127
      %v2044 = vpop.permute.xlu0 %2043
      %2045 = vrot.lane.b32.xlu0 %v2034, 127
      %v2046 = vpop.permute.xlu0 %2045
      %2047 = vrot.lane.b32.xlu0 %v2040, 127
      %v2048 = vpop.permute.xlu0 %2047
      %v2049 = vsel %vm1820, %v2044, %v2046
      %v2050 = vsel %vm1820, %v2046, %v2048
      %2054 = vrot.lane.b32.xlu0 %v2039, 126
      %v2055 = vpop.permute.xlu0 %2054
      %2056 = vrot.lane.b32.xlu0 %v2034, 126
      %v2057 = vpop.permute.xlu0 %2056
      %2058 = vrot.lane.b32.xlu0 %v2040, 126
      %v2059 = vpop.permute.xlu0 %2058
      %v2060 = vsel %vm1832, %v2055, %v2057
      %v2061 = vsel %vm1832, %v2057, %v2059
      %2065 = vrot.lane.b32.xlu0 %v2039, 110
      %v2066 = vpop.permute.xlu0 %2065
      %2067 = vrot.lane.b32.xlu0 %v2034, 110
      %v2068 = vpop.permute.xlu0 %2067
      %2069 = vrot.lane.b32.xlu0 %v2040, 110
      %v2070 = vpop.permute.xlu0 %2069
      %v2071 = vsel %vm1844, %v2066, %v2068
      %v2072 = vsel %vm1844, %v2068, %v2070
      %2076 = vrot.lane.b32.xlu0 %v2039, 109
      %v2077 = vpop.permute.xlu0 %2076
      %2078 = vrot.lane.b32.xlu0 %v2034, 109
      %v2079 = vpop.permute.xlu0 %2078
      %2080 = vrot.lane.b32.xlu0 %v2040, 109
      %v2081 = vpop.permute.xlu0 %2080
      %v2082 = vsel %vm1856, %v2077, %v2079
      %v2083 = vsel %vm1856, %v2079, %v2081
      %2087 = vrot.lane.b32.xlu0 %v2039, 108
      %v2088 = vpop.permute.xlu0 %2087
      %2089 = vrot.lane.b32.xlu0 %v2034, 108
      %v2090 = vpop.permute.xlu0 %2089
      %2091 = vrot.lane.b32.xlu0 %v2040, 108
      %v2092 = vpop.permute.xlu0 %2091
      %v2093 = vsel %vm1868, %v2088, %v2090
      %v2094 = vsel %vm1868, %v2090, %v2092
      %2098 = vrot.lane.b32.xlu0 %v2039, 92
      %v2099 = vpop.permute.xlu0 %2098
      %2100 = vrot.lane.b32.xlu0 %v2034, 92
      %v2101 = vpop.permute.xlu0 %2100
      %2102 = vrot.lane.b32.xlu0 %v2040, 92
      %v2103 = vpop.permute.xlu0 %2102
      %v2104 = vsel %vm1880, %v2099, %v2101
      %v2105 = vsel %vm1880, %v2101, %v2103
      %2109 = vrot.lane.b32.xlu0 %v2039, 91
      %v2110 = vpop.permute.xlu0 %2109
      %2111 = vrot.lane.b32.xlu0 %v2034, 91
      %v2112 = vpop.permute.xlu0 %2111
      %2113 = vrot.lane.b32.xlu0 %v2040, 91
      %v2114 = vpop.permute.xlu0 %2113
      %v2115 = vsel %vm1892, %v2110, %v2112
      %v2116 = vsel %vm1892, %v2112, %v2114
      %2120 = vrot.lane.b32.xlu0 %v2039, 90
      %v2121 = vpop.permute.xlu0 %2120
      %2122 = vrot.lane.b32.xlu0 %v2034, 90
      %v2123 = vpop.permute.xlu0 %2122
      %2124 = vrot.lane.b32.xlu0 %v2040, 90
      %v2125 = vpop.permute.xlu0 %2124
      %v2126 = vsel %vm1904, %v2121, %v2123
      %v2127 = vsel %vm1904, %v2123, %v2125
      %v2131 = vld [vmem:[%s15] sm:$0xff]
      %v2132 = vld [vmem:[%s17] sm:$0xff]
      %2134 = vset.pattern.permute.xlu0 0
      %2135 = vperm.xlu0 %2134, %v2132
      %v2136 = vpop.permute.xlu0 %2135
      %vm2138 = vcmask 588800
      %v2140 = vsel %vm2138, %v2131, 0
      %2142 = vmatpush.msra.mxu0 0.0
      %2143 = vmatpush.msra.mxu0 0.0
      %2144 = vmatpush.msra.mxu0 0.0
      %2145 = vmatpush.msra.mxu0 0.0
      %2146 = vmatpush.msra.mxu0 0.0
      %2147 = vmatpush.msra.mxu0 0.0
      %2148 = vmatpush.msra.mxu0 0.0
      %2149 = vmatpush.msra.mxu0 %v2126
      %2150 = vmatpush.msra.mxu0 %v2115
      %2151 = vmatpush.msra.mxu0 %v2104
      %2152 = vmatpush.msra.mxu0 %v2093
      %2153 = vmatpush.msra.mxu0 %v2082
      %2154 = vmatpush.msra.mxu0 %v2071
      %2155 = vmatpush.msra.mxu0 %v2060
      %2156 = vmatpush.msra.mxu0 %v2049
      %2157 = vmatpush.msra.mxu0 %v2039
      %2158 = vmatmul.f32.gmra.mxu0 %v2140
      %v2159 = vpop.f32.mrf.mxu0
      %v2160 = vadd.f32 %v2136, %v2159
      %2161 = vdwg.mxu0
      %2162 = vmatpush.msra.mxu0 0.0
      %2163 = vmatpush.msra.mxu0 0.0
      %2164 = vmatpush.msra.mxu0 0.0
      %2165 = vmatpush.msra.mxu0 0.0
      %2166 = vmatpush.msra.mxu0 0.0
      %2167 = vmatpush.msra.mxu0 0.0
      %2168 = vmatpush.msra.mxu0 0.0
      %2169 = vmatpush.msra.mxu0 %v2127
      %2170 = vmatpush.msra.mxu0 %v2116
      %2171 = vmatpush.msra.mxu0 %v2105
      %2172 = vmatpush.msra.mxu0 %v2094
      %2173 = vmatpush.msra.mxu0 %v2083
      %2174 = vmatpush.msra.mxu0 %v2072
      %2175 = vmatpush.msra.mxu0 %v2061
      %2176 = vmatpush.msra.mxu0 %v2050
      %2177 = vmatpush.msra.mxu0 %v2034
      %2178 = vmatmul.f32.gmra.mxu0 %v2140
      %v2179 = vpop.f32.mrf.mxu0
      %v2180 = vadd.f32 %v2136, %v2179
      %2181 = vdwg.mxu0
      %2182 = vmatpush.msra.mxu0 0.0
      %2183 = vmatpush.msra.mxu0 0.0
      %2184 = vmatpush.msra.mxu0 0.0
      %2185 = vmatpush.msra.mxu0 0.0
      %2186 = vmatpush.msra.mxu0 0.0
      %2187 = vmatpush.msra.mxu0 0.0
      %2188 = vmatpush.msra.mxu0 0.0
      %2189 = vmatpush.msra.mxu0 %v2125
      %2190 = vmatpush.msra.mxu0 %v2114
      %2191 = vmatpush.msra.mxu0 %v2103
      %2192 = vmatpush.msra.mxu0 %v2092
      %2193 = vmatpush.msra.mxu0 %v2081
      %2194 = vmatpush.msra.mxu0 %v2070
      %2195 = vmatpush.msra.mxu0 %v2059
      %2196 = vmatpush.msra.mxu0 %v2048
      %2197 = vmatpush.msra.mxu0 %v2040
      %2198 = vmatmul.f32.gmra.mxu0 %v2140
      %v2199 = vpop.f32.mrf.mxu0
      %v2200 = vadd.f32 %v2136, %v2199
      %2201 = vdwg.mxu0
      %v2202 = vmul.f32 %v2160, %v1776
      %v2203 = vmul.f32 %v2180, %v1777
      %v2204 = vmul.f32 %v2200, %v1778
      %2208 = vrot.lane.b32.xlu0 %v2202, 19
      %v2209 = vpop.permute.xlu0 %2208
      %2210 = vrot.lane.b32.xlu0 %v2203, 19
      %v2211 = vpop.permute.xlu0 %2210
      %2212 = vrot.lane.b32.xlu0 %v2204, 19
      %v2213 = vpop.permute.xlu0 %2212
      %v2214 = vsel %vm1800, %v2209, %v2211
      %v2215 = vsel %vm1800, %v2211, %v2213
      %v2219 = vsel %vm1800, 0.0, %v2209
      %v2220 = vsel %vm1807, %v2215, 0.0
      %2223 = vrot.lane.b32.xlu0 %v2219, 127
      %v2224 = vpop.permute.xlu0 %2223
      %2225 = vrot.lane.b32.xlu0 %v2214, 127
      %v2226 = vpop.permute.xlu0 %2225
      %2227 = vrot.lane.b32.xlu0 %v2220, 127
      %v2228 = vpop.permute.xlu0 %2227
      %v2229 = vsel %vm1820, %v2224, %v2226
      %v2230 = vsel %vm1820, %v2226, %v2228
      %v2234 = vmax.f32 %v2219, %v2229
      %v2235 = vmax.f32 %v2214, %v2230
      %v2236 = vmax.f32 %v2220, %v2228
      %2240 = vrot.lane.b32.xlu0 %v2234, 110
      %v2241 = vpop.permute.xlu0 %2240
      %2242 = vrot.lane.b32.xlu0 %v2235, 110
      %v2243 = vpop.permute.xlu0 %2242
      %2244 = vrot.lane.b32.xlu0 %v2236, 110
      %v2245 = vpop.permute.xlu0 %2244
      %v2246 = vsel %vm1844, %v2241, %v2243
      %v2247 = vsel %vm1844, %v2243, %v2245
      %v2251 = vmax.f32 %v2234, %v2246
      %v2252 = vmax.f32 %v2235, %v2247
      %v2253 = vmax.f32 %v2236, %v2245
      %v2254 = vld [vmem:[%s107] sm:$0xff]
      %v2255 = vld [vmem:[%s107 + $0x8] sm:$0xff]
      %v2256 = vld [vmem:[%s107 + $0x10] sm:$0xff]
      %v2257 = vld [vmem:[%s107 + $0x18] sm:$0xff]
      %v2258 = vld [vmem:[%s107 + $0x20] sm:$0xff]
      %v2259 = vld [vmem:[%s107 + $0x28] sm:$0xff]
      %v2260 = vld [vmem:[%s107 + $0x30] sm:$0xff]
      %v2261 = vld [vmem:[%s107 + $0x38] sm:$0xff]
      %v2262 = vld [vmem:[%s107 + $0x40] sm:$0xff]
      %v2263 = vld [vmem:[%s107 + $0x48] sm:$0xff]
      %v2264 = vld [vmem:[%s107 + $0x50] sm:$0xff]
      %v2265 = vld [vmem:[%s107 + $0x58] sm:$0xff]
      %v2266 = vld [vmem:[%s107 + $0x60] sm:$0xff]
      %v2267 = vld [vmem:[%s107 + $0x68] sm:$0xff]
      %v2268 = vld [vmem:[%s107 + $0x70] sm:$0xff]
      %v2269 = vld [vmem:[%s107 + $0x78] sm:$0xff]
      %v2270 = vld [vmem:[%s107 + $0x80] sm:$0xff]
      %v2271 = vld [vmem:[%s107 + $0x88] sm:$0xff]
      %v2272 = vld [vmem:[%s107 + $0x90] sm:$0xff]
      %v2273 = vld [vmem:[%s107 + $0x98] sm:$0xff]
      %v2274 = vld [vmem:[%s107 + $0xa0] sm:$0xff]
      %v2275 = vld [vmem:[%s107 + $0xa8] sm:$0xff]
      %v2276 = vld [vmem:[%s107 + $0xb0] sm:$0xff]
      %v2277 = vld [vmem:[%s107 + $0xb8] sm:$0xff]
      %v2278 = vld [vmem:[%s107 + $0xc0] sm:$0xff]
      %v2279 = vld [vmem:[%s107 + $0xc8] sm:$0xff]
      %v2280 = vld [vmem:[%s107 + $0xd0] sm:$0xff]
      %v2281 = vld [vmem:[%s107 + $0xd8] sm:$0xff]
      %v2282 = vld [vmem:[%s107 + $0xe0] sm:$0xff]
      %v2283 = vld [vmem:[%s107 + $0xe8] sm:$0xff]
      %v2284 = vld [vmem:[%s107 + $0xf0] sm:$0xff]
      %v2285 = vld [vmem:[%s107 + $0xf8] sm:$0xff]
      %v2286 = vld [vmem:[%s107 + $0x100] sm:$0xff]
      %v2287 = vld [vmem:[%s107 + $0x108] sm:$0xff]
      %v2288 = vld [vmem:[%s107 + $0x110] sm:$0xff]
      %v2289 = vld [vmem:[%s107 + $0x118] sm:$0xff]
      %v2290 = vld [vmem:[%s107 + $0x120] sm:$0xff]
      %v2291 = vld [vmem:[%s107 + $0x128] sm:$0xff]
      %v2292 = vld [vmem:[%s107 + $0x130] sm:$0xff]
      %v2293 = vld [vmem:[%s107 + $0x138] sm:$0xff]
      %v2294 = vld [vmem:[%s107 + $0x140] sm:$0xf]
      %2298 = vrot.lane.b32.xlu0 %v2251, 109
      %v2299 = vpop.permute.xlu0 %2298
      %2300 = vrot.lane.b32.xlu0 %v2252, 109
      %v2301 = vpop.permute.xlu0 %2300
      %2302 = vrot.lane.b32.xlu0 %v2253, 109
      %v2303 = vpop.permute.xlu0 %2302
      %v2304 = vsel %vm1856, %v2299, %v2301
      %v2305 = vsel %vm1856, %v2301, %v2303
      %vm2308 = vcmask 556032
      %v2309 = vsel %vm2308, %v2303, 0
      %v2312 = vsel %vm1781, %v2294, 0
      %2314 = vmatpush.msra.mxu0 %v2269
      %2315 = vmatpush.msra.mxu0 %v2268
      %2316 = vmatpush.msra.mxu0 %v2267
      %2317 = vmatpush.msra.mxu0 %v2266
      %2318 = vmatpush.msra.mxu0 %v2265
      %2319 = vmatpush.msra.mxu0 %v2264
      %2320 = vmatpush.msra.mxu0 %v2263
      %2321 = vmatpush.msra.mxu0 %v2262
      %2322 = vmatpush.msra.mxu0 %v2261
      %2323 = vmatpush.msra.mxu0 %v2260
      %2324 = vmatpush.msra.mxu0 %v2259
      %2325 = vmatpush.msra.mxu0 %v2258
      %2326 = vmatpush.msra.mxu0 %v2257
      %2327 = vmatpush.msra.mxu0 %v2256
      %2328 = vmatpush.msra.mxu0 %v2255
      %2329 = vmatpush.msra.mxu0 %v2254
      %2330 = vmatmul.f32.gmra.mxu0 %v2304
      %v2331 = vpop.f32.mrf.mxu0
      %v2332 = vadd.f32 0.0, %v2331
      %2333 = vdwg.mxu0
      %2334 = vmatpush.msra.mxu0 %v2285
      %2335 = vmatpush.msra.mxu0 %v2284
      %2336 = vmatpush.msra.mxu0 %v2283
      %2337 = vmatpush.msra.mxu0 %v2282
      %2338 = vmatpush.msra.mxu0 %v2281
      %2339 = vmatpush.msra.mxu0 %v2280
      %2340 = vmatpush.msra.mxu0 %v2279
      %2341 = vmatpush.msra.mxu0 %v2278
      %2342 = vmatpush.msra.mxu0 %v2277
      %2343 = vmatpush.msra.mxu0 %v2276
      %2344 = vmatpush.msra.mxu0 %v2275
      %2345 = vmatpush.msra.mxu0 %v2274
      %2346 = vmatpush.msra.mxu0 %v2273
      %2347 = vmatpush.msra.mxu0 %v2272
      %2348 = vmatpush.msra.mxu0 %v2271
      %2349 = vmatpush.msra.mxu0 %v2270
      %2350 = vmatmul.f32.gmra.mxu0 %v2305
      %v2351 = vpop.f32.mrf.mxu0
      %v2352 = vadd.f32 %v2332, %v2351
      %2353 = vdwg.mxu0
      %2354 = vmatpush.msra.mxu0 0.0
      %2355 = vmatpush.msra.mxu0 0.0
      %2356 = vmatpush.msra.mxu0 0.0
      %2357 = vmatpush.msra.mxu0 0.0
      %2358 = vmatpush.msra.mxu0 0.0
      %2359 = vmatpush.msra.mxu0 0.0
      %2360 = vmatpush.msra.mxu0 0.0
      %2361 = vmatpush.msra.mxu0 %v2312
      %2362 = vmatpush.msra.mxu0 %v2293
      %2363 = vmatpush.msra.mxu0 %v2292
      %2364 = vmatpush.msra.mxu0 %v2291
      %2365 = vmatpush.msra.mxu0 %v2290
      %2366 = vmatpush.msra.mxu0 %v2289
      %2367 = vmatpush.msra.mxu0 %v2288
      %2368 = vmatpush.msra.mxu0 %v2287
      %2369 = vmatpush.msra.mxu0 %v2286
      %2370 = vmatmul.f32.gmra.mxu0 %v2309
      %v2371 = vpop.f32.mrf.mxu0
      %v2372 = vadd.f32 %v2352, %v2371
      %2373 = vdwg.mxu0
      %v2374 = vld [vmem:[%s19] sm:$0xff]
      %2376 = vset.pattern.permute.xlu0 0
      %2377 = vperm.xlu0 %2376, %v2374
      %v2378 = vpop.permute.xlu0 %2377
      %v2380 = vmul.f32 %v2372, %v2378
      %v2381 = vld [vmem:[%s21] sm:$0xff]
      %2383 = vset.pattern.permute.xlu0 0
      %2384 = vperm.xlu0 %2383, %v2381
      %v2385 = vpop.permute.xlu0 %2384
      %v2387 = vadd.f32 %v2380, %v2385
      %v2388 = vmax.f32 %v2387, 0.0
      %v2390 = vperm.slane %v1744, 0
      %v2392 = vmul.f32 %v2388, %v2390
      %2394 = vrot.lane.b32.xlu0 %v2392, 11
      %v2395 = vpop.permute.xlu0 %2394
      %vm2397 = vcmask 89088
      %v2398 = vsel %vm2397, 0.0, %v2395
      %vm2399 = vcmask 908288
      %v2400 = vsel %vm2399, %v2398, 0.0
      %2402 = vrot.lane.b32.xlu0 %v2400, 127
      %v2403 = vpop.permute.xlu0 %2402
      %2405 = vrot.lane.b32.xlu0 %v2400, 126
      %v2406 = vpop.permute.xlu0 %2405
      %2408 = vrot.lane.b32.xlu0 %v2400, 118
      %v2409 = vpop.permute.xlu0 %2408
      %2411 = vrot.lane.b32.xlu0 %v2400, 117
      %v2412 = vpop.permute.xlu0 %2411
      %2414 = vrot.lane.b32.xlu0 %v2400, 116
      %v2415 = vpop.permute.xlu0 %2414
      %2417 = vrot.lane.b32.xlu0 %v2400, 108
      %v2418 = vpop.permute.xlu0 %2417
      %2420 = vrot.lane.b32.xlu0 %v2400, 107
      %v2421 = vpop.permute.xlu0 %2420
      %2423 = vrot.lane.b32.xlu0 %v2400, 106
      %v2424 = vpop.permute.xlu0 %2423
      %v2426 = vld [vmem:[%s23] sm:$0xff]
      %v2427 = vld [vmem:[%s23 + $0x8] sm:$0xff]
      %v2428 = vld [vmem:[%s25] sm:$0xff]
      %v2429 = vld [vmem:[%s25 + $0x8] sm:$0xff]
      %2431 = vset.pattern.permute.xlu0 0
      %2432 = vperm.xlu0 %2431, %v2428
      %v2433 = vpop.permute.xlu0 %2432
      %2436 = vset.pattern.permute.xlu0 0
      %2437 = vperm.xlu0 %2436, %v2429
      %v2438 = vpop.permute.xlu0 %2437
      %v2441 = vsel %vm2138, %v2426, 0
      %v2444 = vsel %vm2138, %v2427, 0
      %2446 = vmatpush.msra.mxu0 0.0
      %2447 = vmatpush.msra.mxu0 0.0
      %2448 = vmatpush.msra.mxu0 0.0
      %2449 = vmatpush.msra.mxu0 0.0
      %2450 = vmatpush.msra.mxu0 0.0
      %2451 = vmatpush.msra.mxu0 0.0
      %2452 = vmatpush.msra.mxu0 0.0
      %2453 = vmatpush.msra.mxu0 %v2424
      %2454 = vmatpush.msra.mxu0 %v2421
      %2455 = vmatpush.msra.mxu0 %v2418
      %2456 = vmatpush.msra.mxu0 %v2415
      %2457 = vmatpush.msra.mxu0 %v2412
      %2458 = vmatpush.msra.mxu0 %v2409
      %2459 = vmatpush.msra.mxu0 %v2406
      %2460 = vmatpush.msra.mxu0 %v2403
      %2461 = vmatpush.msra.mxu0 %v2400
      %2462 = vmatmul.f32.gmra.mxu0 %v2441
      %v2463 = vpop.f32.mrf.mxu0
      %v2464 = vadd.f32 %v2433, %v2463
      %2465 = vmatmul.f32.gmra.mxu0 %v2444
      %v2466 = vpop.f32.mrf.mxu0
      %v2467 = vadd.f32 %v2438, %v2466
      %2468 = vdwg.mxu0
      %v2469 = vmul.f32 %v2464, %v2390
      %v2470 = vmul.f32 %v2467, %v2390
      %v2471 = vld [vmem:[%s27] sm:$0xff]
      %v2472 = vld [vmem:[%s27 + $0x8] sm:$0xff]
      %2474 = vset.pattern.permute.xlu0 0
      %2475 = vperm.xlu0 %2474, %v2471
      %v2476 = vpop.permute.xlu0 %2475
      %2479 = vset.pattern.permute.xlu0 0
      %2480 = vperm.xlu0 %2479, %v2472
      %v2481 = vpop.permute.xlu0 %2480
      %v2483 = vmul.f32 %v2469, %v2476
      %v2484 = vmul.f32 %v2470, %v2481
      %v2485 = vld [vmem:[%s29] sm:$0xff]
      %v2486 = vld [vmem:[%s29 + $0x8] sm:$0xff]
      %2488 = vset.pattern.permute.xlu0 0
      %2489 = vperm.xlu0 %2488, %v2485
      %v2490 = vpop.permute.xlu0 %2489
      %2493 = vset.pattern.permute.xlu0 0
      %2494 = vperm.xlu0 %2493, %v2486
      %v2495 = vpop.permute.xlu0 %2494
      %v2497 = vadd.f32 %v2483, %v2490
      %v2498 = vadd.f32 %v2484, %v2495
      %v2499 = vmax.f32 %v2497, 0.0
      %v2500 = vmax.f32 %v2498, 0.0
      %v2501 = vmul.f32 %v2499, %v2390
      %v2502 = vmul.f32 %v2500, %v2390
      %2505 = vrot.lane.b32.xlu0 %v2501, 11
      %v2506 = vpop.permute.xlu0 %2505
      %2507 = vrot.lane.b32.xlu0 %v2502, 11
      %v2508 = vpop.permute.xlu0 %2507
      %v2511 = vsel %vm2397, 0.0, %v2506
      %v2512 = vsel %vm2397, 0.0, %v2508
      %v2513 = vsel %vm2399, %v2511, 0.0
      %v2514 = vsel %vm2399, %v2512, 0.0
      %2517 = vrot.lane.b32.xlu0 %v2513, 127
      %v2518 = vpop.permute.xlu0 %2517
      %2519 = vrot.lane.b32.xlu0 %v2514, 127
      %v2520 = vpop.permute.xlu0 %2519
      %2523 = vrot.lane.b32.xlu0 %v2513, 126
      %v2524 = vpop.permute.xlu0 %2523
      %2525 = vrot.lane.b32.xlu0 %v2514, 126
      %v2526 = vpop.permute.xlu0 %2525
      %2529 = vrot.lane.b32.xlu0 %v2513, 118
      %v2530 = vpop.permute.xlu0 %2529
      %2531 = vrot.lane.b32.xlu0 %v2514, 118
      %v2532 = vpop.permute.xlu0 %2531
      %2535 = vrot.lane.b32.xlu0 %v2513, 117
      %v2536 = vpop.permute.xlu0 %2535
      %2537 = vrot.lane.b32.xlu0 %v2514, 117
      %v2538 = vpop.permute.xlu0 %2537
      %2541 = vrot.lane.b32.xlu0 %v2513, 116
      %v2542 = vpop.permute.xlu0 %2541
      %2543 = vrot.lane.b32.xlu0 %v2514, 116
      %v2544 = vpop.permute.xlu0 %2543
      %2547 = vrot.lane.b32.xlu0 %v2513, 108
      %v2548 = vpop.permute.xlu0 %2547
      %2549 = vrot.lane.b32.xlu0 %v2514, 108
      %v2550 = vpop.permute.xlu0 %2549
      %2553 = vrot.lane.b32.xlu0 %v2513, 107
      %v2554 = vpop.permute.xlu0 %2553
      %2555 = vrot.lane.b32.xlu0 %v2514, 107
      %v2556 = vpop.permute.xlu0 %2555
      %2559 = vrot.lane.b32.xlu0 %v2513, 106
      %v2560 = vpop.permute.xlu0 %2559
      %2561 = vrot.lane.b32.xlu0 %v2514, 106
      %v2562 = vpop.permute.xlu0 %2561
      %v2565 = vld [vmem:[%s31] sm:$0xff]
      %v2566 = vld [vmem:[%s31 + $0x8] sm:$0xff]
      %v2567 = vld [vmem:[%s31 + $0x10] sm:$0xff]
      %v2568 = vld [vmem:[%s31 + $0x18] sm:$0xff]
      %v2569 = vld [vmem:[%s33] sm:$0xff]
      %v2570 = vld [vmem:[%s33 + $0x8] sm:$0xff]
      %2572 = vset.pattern.permute.xlu0 0
      %2573 = vperm.xlu0 %2572, %v2569
      %v2574 = vpop.permute.xlu0 %2573
      %2577 = vset.pattern.permute.xlu0 0
      %2578 = vperm.xlu0 %2577, %v2570
      %v2579 = vpop.permute.xlu0 %2578
      %vm2581 = vcmask 130048
      %v2583 = vsel %vm2581, %v2566, 0
      %v2586 = vsel %vm2581, %v2568, 0
      %2588 = vmatpush.msra.mxu0 %v2556
      %2589 = vmatpush.msra.mxu0 %v2554
      %2590 = vmatpush.msra.mxu0 %v2550
      %2591 = vmatpush.msra.mxu0 %v2548
      %2592 = vmatpush.msra.mxu0 %v2544
      %2593 = vmatpush.msra.mxu0 %v2542
      %2594 = vmatpush.msra.mxu0 %v2538
      %2595 = vmatpush.msra.mxu0 %v2536
      %2596 = vmatpush.msra.mxu0 %v2532
      %2597 = vmatpush.msra.mxu0 %v2530
      %2598 = vmatpush.msra.mxu0 %v2526
      %2599 = vmatpush.msra.mxu0 %v2524
      %2600 = vmatpush.msra.mxu0 %v2520
      %2601 = vmatpush.msra.mxu0 %v2518
      %2602 = vmatpush.msra.mxu0 %v2514
      %2603 = vmatpush.msra.mxu0 %v2513
      %2604 = vmatmul.f32.gmra.mxu0 %v2565
      %v2605 = vpop.f32.mrf.mxu0
      %v2606 = vadd.f32 %v2574, %v2605
      %2607 = vmatmul.f32.gmra.mxu0 %v2567
      %v2608 = vpop.f32.mrf.mxu0
      %v2609 = vadd.f32 %v2579, %v2608
      %2610 = vdwg.mxu0
      %2611 = vmatpush.msra.mxu0 0.0
      %2612 = vmatpush.msra.mxu0 0.0
      %2613 = vmatpush.msra.mxu0 0.0
      %2614 = vmatpush.msra.mxu0 0.0
      %2615 = vmatpush.msra.mxu0 0.0
      %2616 = vmatpush.msra.mxu0 0.0
      %2617 = vmatpush.msra.mxu0 0.0
      %2618 = vmatpush.msra.mxu0 0.0
      %2619 = vmatpush.msra.mxu0 0.0
      %2620 = vmatpush.msra.mxu0 0.0
      %2621 = vmatpush.msra.mxu0 0.0
      %2622 = vmatpush.msra.mxu0 0.0
      %2623 = vmatpush.msra.mxu0 0.0
      %2624 = vmatpush.msra.mxu0 0.0
      %2625 = vmatpush.msra.mxu0 %v2562
      %2626 = vmatpush.msra.mxu0 %v2560
      %2627 = vmatmul.f32.gmra.mxu0 %v2583
      %v2628 = vpop.f32.mrf.mxu0
      %v2629 = vadd.f32 %v2606, %v2628
      %2630 = vmatmul.f32.gmra.mxu0 %v2586
      %v2631 = vpop.f32.mrf.mxu0
      %v2632 = vadd.f32 %v2609, %v2631
      %2633 = vdwg.mxu0
      %v2634 = vmul.f32 %v2629, %v2390
      %v2635 = vmul.f32 %v2632, %v2390
      %2638 = vrot.lane.b32.xlu0 %v2634, 11
      %v2639 = vpop.permute.xlu0 %2638
      %2640 = vrot.lane.b32.xlu0 %v2635, 11
      %v2641 = vpop.permute.xlu0 %2640
      %v2644 = vsel %vm2397, 0.0, %v2639
      %v2645 = vsel %vm2397, 0.0, %v2641
      %v2646 = vsel %vm2399, %v2644, 0.0
      %v2647 = vsel %vm2399, %v2645, 0.0
      %2650 = vrot.lane.b32.xlu0 %v2646, 127
      %v2651 = vpop.permute.xlu0 %2650
      %2652 = vrot.lane.b32.xlu0 %v2647, 127
      %v2653 = vpop.permute.xlu0 %2652
      %v2656 = vmax.f32 %v2646, %v2651
      %v2657 = vmax.f32 %v2647, %v2653
      %2660 = vrot.lane.b32.xlu0 %v2656, 118
      %v2661 = vpop.permute.xlu0 %2660
      %2662 = vrot.lane.b32.xlu0 %v2657, 118
      %v2663 = vpop.permute.xlu0 %2662
      %v2666 = vmax.f32 %v2656, %v2661
      %v2667 = vmax.f32 %v2657, %v2663
      %v2668 = vld [vmem:[%s109] sm:$0xff]
      %v2669 = vld [vmem:[%s109 + $0x8] sm:$0xff]
      %v2670 = vld [vmem:[%s109 + $0x10] sm:$0xff]
      %v2671 = vld [vmem:[%s109 + $0x18] sm:$0xff]
      %v2672 = vld [vmem:[%s109 + $0x20] sm:$0xff]
      %v2673 = vld [vmem:[%s109 + $0x28] sm:$0xff]
      %v2674 = vld [vmem:[%s109 + $0x30] sm:$0xff]
      %v2675 = vld [vmem:[%s109 + $0x38] sm:$0xff]
      %v2676 = vld [vmem:[%s109 + $0x40] sm:$0xff]
      %v2677 = vld [vmem:[%s109 + $0x48] sm:$0xff]
      %v2678 = vld [vmem:[%s109 + $0x50] sm:$0xff]
      %v2679 = vld [vmem:[%s109 + $0x58] sm:$0xff]
      %v2680 = vld [vmem:[%s109 + $0x60] sm:$0xf]
      %2683 = vrot.lane.b32.xlu0 %v2666, 117
      %v2684 = vpop.permute.xlu0 %2683
      %2685 = vrot.lane.b32.xlu0 %v2667, 117
      %v2686 = vpop.permute.xlu0 %2685
      %vm2687 = vcmask 818176
      %v2688 = vsel %vm2687, %v2684, 0
      %v2690 = vsel %vm2687, %v2686, 0
      %v2693 = vsel %vm1781, %v2680, 0
      %2695 = vmatpush.msra.mxu0 0.0
      %2696 = vmatpush.msra.mxu0 0.0
      %2697 = vmatpush.msra.mxu0 0.0
      %2698 = vmatpush.msra.mxu0 %v2693
      %2699 = vmatpush.msra.mxu0 %v2679
      %2700 = vmatpush.msra.mxu0 %v2678
      %2701 = vmatpush.msra.mxu0 %v2677
      %2702 = vmatpush.msra.mxu0 %v2676
      %2703 = vmatpush.msra.mxu0 %v2675
      %2704 = vmatpush.msra.mxu0 %v2674
      %2705 = vmatpush.msra.mxu0 %v2673
      %2706 = vmatpush.msra.mxu0 %v2672
      %2707 = vmatpush.msra.mxu0 %v2671
      %2708 = vmatpush.msra.mxu0 %v2670
      %2709 = vmatpush.msra.mxu0 %v2669
      %2710 = vmatpush.msra.mxu0 %v2668
      %2711 = vmatmul.f32.gmra.mxu0 %v2688
      %v2712 = vpop.f32.mrf.mxu0
      %v2713 = vadd.f32 0.0, %v2712
      %2714 = vmatmul.f32.gmra.mxu0 %v2690
      %v2715 = vpop.f32.mrf.mxu0
      %v2716 = vadd.f32 0.0, %v2715
      %2717 = vdwg.mxu0
      %v2718 = vld [vmem:[%s35] sm:$0xff]
      %v2719 = vld [vmem:[%s35 + $0x8] sm:$0xff]
      %2721 = vset.pattern.permute.xlu0 0
      %2722 = vperm.xlu0 %2721, %v2718
      %v2723 = vpop.permute.xlu0 %2722
      %2726 = vset.pattern.permute.xlu0 0
      %2727 = vperm.xlu0 %2726, %v2719
      %v2728 = vpop.permute.xlu0 %2727
      %v2730 = vmul.f32 %v2713, %v2723
      %v2731 = vmul.f32 %v2716, %v2728
      %v2732 = vld [vmem:[%s37] sm:$0xff]
      %v2733 = vld [vmem:[%s37 + $0x8] sm:$0xff]
      %2735 = vset.pattern.permute.xlu0 0
      %2736 = vperm.xlu0 %2735, %v2732
      %v2737 = vpop.permute.xlu0 %2736
      %2740 = vset.pattern.permute.xlu0 0
      %2741 = vperm.xlu0 %2740, %v2733
      %v2742 = vpop.permute.xlu0 %2741
      %v2744 = vadd.f32 %v2730, %v2737
      %v2745 = vadd.f32 %v2731, %v2742
      %v2746 = vmax.f32 %v2744, 0.0
      %v2747 = vmax.f32 %v2745, 0.0
      %v2749 = vperm.slane %v1745, 0
      %v2751 = vmul.f32 %v2746, %v2749
      %v2752 = vmul.f32 %v2747, %v2749
      %2755 = vrot.lane.b32.xlu0 %v2751, 7
      %v2756 = vpop.permute.xlu0 %2755
      %2757 = vrot.lane.b32.xlu0 %v2752, 7
      %v2758 = vpop.permute.xlu0 %2757
      %vm2761 = vcmask 56320
      %v2762 = vsel %vm2761, 0.0, %v2756
      %v2763 = vsel %vm2761, 0.0, %v2758
      %vm2764 = vcmask 351232
      %v2765 = vsel %vm2764, %v2762, 0.0
      %v2766 = vsel %vm2764, %v2763, 0.0
      %2769 = vrot.lane.b32.xlu0 %v2765, 127
      %v2770 = vpop.permute.xlu0 %2769
      %2771 = vrot.lane.b32.xlu0 %v2766, 127
      %v2772 = vpop.permute.xlu0 %2771
      %2775 = vrot.lane.b32.xlu0 %v2765, 126
      %v2776 = vpop.permute.xlu0 %2775
      %2777 = vrot.lane.b32.xlu0 %v2766, 126
      %v2778 = vpop.permute.xlu0 %2777
      %2781 = vrot.lane.b32.xlu0 %v2765, 122
      %v2782 = vpop.permute.xlu0 %2781
      %2783 = vrot.lane.b32.xlu0 %v2766, 122
      %v2784 = vpop.permute.xlu0 %2783
      %2787 = vrot.lane.b32.xlu0 %v2765, 121
      %v2788 = vpop.permute.xlu0 %2787
      %2789 = vrot.lane.b32.xlu0 %v2766, 121
      %v2790 = vpop.permute.xlu0 %2789
      %2793 = vrot.lane.b32.xlu0 %v2765, 120
      %v2794 = vpop.permute.xlu0 %2793
      %2795 = vrot.lane.b32.xlu0 %v2766, 120
      %v2796 = vpop.permute.xlu0 %2795
      %2799 = vrot.lane.b32.xlu0 %v2765, 116
      %v2800 = vpop.permute.xlu0 %2799
      %2801 = vrot.lane.b32.xlu0 %v2766, 116
      %v2802 = vpop.permute.xlu0 %2801
      %2805 = vrot.lane.b32.xlu0 %v2765, 115
      %v2806 = vpop.permute.xlu0 %2805
      %2807 = vrot.lane.b32.xlu0 %v2766, 115
      %v2808 = vpop.permute.xlu0 %2807
      %2811 = vrot.lane.b32.xlu0 %v2765, 114
      %v2812 = vpop.permute.xlu0 %2811
      %2813 = vrot.lane.b32.xlu0 %v2766, 114
      %v2814 = vpop.permute.xlu0 %2813
      %v2817 = vld [vmem:[%s39] sm:$0xff]
      %v2818 = vld [vmem:[%s39 + $0x8] sm:$0xff]
      %v2819 = vld [vmem:[%s39 + $0x10] sm:$0xff]
      %v2820 = vld [vmem:[%s39 + $0x18] sm:$0xff]
      %v2821 = vld [vmem:[%s39 + $0x20] sm:$0xff]
      %v2822 = vld [vmem:[%s39 + $0x28] sm:$0xff]
      %v2823 = vld [vmem:[%s39 + $0x30] sm:$0xff]
      %v2824 = vld [vmem:[%s39 + $0x38] sm:$0xff]
      %v2825 = vld [vmem:[%s41] sm:$0xff]
      %v2826 = vld [vmem:[%s41 + $0x8] sm:$0xff]
      %v2827 = vld [vmem:[%s41 + $0x10] sm:$0xff]
      %v2828 = vld [vmem:[%s41 + $0x18] sm:$0xff]
      %2830 = vset.pattern.permute.xlu0 0
      %2831 = vperm.xlu0 %2830, %v2825
      %v2832 = vpop.permute.xlu0 %2831
      %2835 = vset.pattern.permute.xlu0 0
      %2836 = vperm.xlu0 %2835, %v2826
      %v2837 = vpop.permute.xlu0 %2836
      %2840 = vset.pattern.permute.xlu0 0
      %2841 = vperm.xlu0 %2840, %v2827
      %v2842 = vpop.permute.xlu0 %2841
      %2845 = vset.pattern.permute.xlu0 0
      %2846 = vperm.xlu0 %2845, %v2828
      %v2847 = vpop.permute.xlu0 %2846
      %v2850 = vsel %vm2581, %v2818, 0
      %v2853 = vsel %vm2581, %v2820, 0
      %v2856 = vsel %vm2581, %v2822, 0
      %v2859 = vsel %vm2581, %v2824, 0
      %2861 = vmatpush.msra.mxu0 %v2808
      %2862 = vmatpush.msra.mxu0 %v2806
      %2863 = vmatpush.msra.mxu0 %v2802
      %2864 = vmatpush.msra.mxu0 %v2800
      %2865 = vmatpush.msra.mxu0 %v2796
      %2866 = vmatpush.msra.mxu0 %v2794
      %2867 = vmatpush.msra.mxu0 %v2790
      %2868 = vmatpush.msra.mxu0 %v2788
      %2869 = vmatpush.msra.mxu0 %v2784
      %2870 = vmatpush.msra.mxu0 %v2782
      %2871 = vmatpush.msra.mxu0 %v2778
      %2872 = vmatpush.msra.mxu0 %v2776
      %2873 = vmatpush.msra.mxu0 %v2772
      %2874 = vmatpush.msra.mxu0 %v2770
      %2875 = vmatpush.msra.mxu0 %v2766
      %2876 = vmatpush.msra.mxu0 %v2765
      %2877 = vmatmul.f32.gmra.mxu0 %v2817
      %v2878 = vpop.f32.mrf.mxu0
      %v2879 = vadd.f32 %v2832, %v2878
      %2880 = vmatmul.f32.gmra.mxu0 %v2819
      %v2881 = vpop.f32.mrf.mxu0
      %v2882 = vadd.f32 %v2837, %v2881
      %2883 = vmatmul.f32.gmra.mxu0 %v2821
      %v2884 = vpop.f32.mrf.mxu0
      %v2885 = vadd.f32 %v2842, %v2884
      %2886 = vmatmul.f32.gmra.mxu0 %v2823
      %v2887 = vpop.f32.mrf.mxu0
      %v2888 = vadd.f32 %v2847, %v2887
      %2889 = vdwg.mxu0
      %2890 = vmatpush.msra.mxu0 0.0
      %2891 = vmatpush.msra.mxu0 0.0
      %2892 = vmatpush.msra.mxu0 0.0
      %2893 = vmatpush.msra.mxu0 0.0
      %2894 = vmatpush.msra.mxu0 0.0
      %2895 = vmatpush.msra.mxu0 0.0
      %2896 = vmatpush.msra.mxu0 0.0
      %2897 = vmatpush.msra.mxu0 0.0
      %2898 = vmatpush.msra.mxu0 0.0
      %2899 = vmatpush.msra.mxu0 0.0
      %2900 = vmatpush.msra.mxu0 0.0
      %2901 = vmatpush.msra.mxu0 0.0
      %2902 = vmatpush.msra.mxu0 0.0
      %2903 = vmatpush.msra.mxu0 0.0
      %2904 = vmatpush.msra.mxu0 %v2814
      %2905 = vmatpush.msra.mxu0 %v2812
      %2906 = vmatmul.f32.gmra.mxu0 %v2850
      %v2907 = vpop.f32.mrf.mxu0
      %v2908 = vadd.f32 %v2879, %v2907
      %2909 = vmatmul.f32.gmra.mxu0 %v2853
      %v2910 = vpop.f32.mrf.mxu0
      %v2911 = vadd.f32 %v2882, %v2910
      %2912 = vmatmul.f32.gmra.mxu0 %v2856
      %v2913 = vpop.f32.mrf.mxu0
      %v2914 = vadd.f32 %v2885, %v2913
      %2915 = vmatmul.f32.gmra.mxu0 %v2859
      %v2916 = vpop.f32.mrf.mxu0
      %v2917 = vadd.f32 %v2888, %v2916
      %2918 = vdwg.mxu0
      %v2919 = vmul.f32 %v2908, %v2749
      %v2920 = vmul.f32 %v2911, %v2749
      %v2921 = vmul.f32 %v2914, %v2749
      %v2922 = vmul.f32 %v2917, %v2749
      %v2923 = vld [vmem:[%s43] sm:$0xff]
      %v2924 = vld [vmem:[%s43 + $0x8] sm:$0xff]
      %v2925 = vld [vmem:[%s43 + $0x10] sm:$0xff]
      %v2926 = vld [vmem:[%s43 + $0x18] sm:$0xff]
      %2928 = vset.pattern.permute.xlu0 0
      %2929 = vperm.xlu0 %2928, %v2923
      %v2930 = vpop.permute.xlu0 %2929
      %2933 = vset.pattern.permute.xlu0 0
      %2934 = vperm.xlu0 %2933, %v2924
      %v2935 = vpop.permute.xlu0 %2934
      %2938 = vset.pattern.permute.xlu0 0
      %2939 = vperm.xlu0 %2938, %v2925
      %v2940 = vpop.permute.xlu0 %2939
      %2943 = vset.pattern.permute.xlu0 0
      %2944 = vperm.xlu0 %2943, %v2926
      %v2945 = vpop.permute.xlu0 %2944
      %v2947 = vmul.f32 %v2919, %v2930
      %v2948 = vmul.f32 %v2920, %v2935
      %v2949 = vmul.f32 %v2921, %v2940
      %v2950 = vmul.f32 %v2922, %v2945
      %v2951 = vld [vmem:[%s45] sm:$0xff]
      %v2952 = vld [vmem:[%s45 + $0x8] sm:$0xff]
      %v2953 = vld [vmem:[%s45 + $0x10] sm:$0xff]
      %v2954 = vld [vmem:[%s45 + $0x18] sm:$0xff]
      %2956 = vset.pattern.permute.xlu0 0
      %2957 = vperm.xlu0 %2956, %v2951
      %v2958 = vpop.permute.xlu0 %2957
      %2961 = vset.pattern.permute.xlu0 0
      %2962 = vperm.xlu0 %2961, %v2952
      %v2963 = vpop.permute.xlu0 %2962
      %2966 = vset.pattern.permute.xlu0 0
      %2967 = vperm.xlu0 %2966, %v2953
      %v2968 = vpop.permute.xlu0 %2967
      %2971 = vset.pattern.permute.xlu0 0
      %2972 = vperm.xlu0 %2971, %v2954
      %v2973 = vpop.permute.xlu0 %2972
      %v2975 = vadd.f32 %v2947, %v2958
      %v2976 = vadd.f32 %v2948, %v2963
      %v2977 = vadd.f32 %v2949, %v2968
      %v2978 = vadd.f32 %v2950, %v2973
      %v2979 = vmax.f32 %v2975, 0.0
      %v2980 = vmax.f32 %v2976, 0.0
      %v2981 = vmax.f32 %v2977, 0.0
      %v2982 = vmax.f32 %v2978, 0.0
      %v2983 = vmul.f32 %v2979, %v2749
      %v2984 = vmul.f32 %v2980, %v2749
      %v2985 = vmul.f32 %v2981, %v2749
      %v2986 = vmul.f32 %v2982, %v2749
      %2991 = vrot.lane.b32.xlu0 %v2983, 7
      %v2992 = vpop.permute.xlu0 %2991
      %2993 = vrot.lane.b32.xlu0 %v2984, 7
      %v2994 = vpop.permute.xlu0 %2993
      %2995 = vrot.lane.b32.xlu0 %v2985, 7
      %v2996 = vpop.permute.xlu0 %2995
      %2997 = vrot.lane.b32.xlu0 %v2986, 7
      %v2998 = vpop.permute.xlu0 %2997
      %v3003 = vsel %vm2761, 0.0, %v2992
      %v3004 = vsel %vm2761, 0.0, %v2994
      %v3005 = vsel %vm2761, 0.0, %v2996
      %v3006 = vsel %vm2761, 0.0, %v2998
      %v3007 = vsel %vm2764, %v3003, 0.0
      %v3008 = vsel %vm2764, %v3004, 0.0
      %v3009 = vsel %vm2764, %v3005, 0.0
      %v3010 = vsel %vm2764, %v3006, 0.0
      %3015 = vrot.lane.b32.xlu0 %v3007, 127
      %v3016 = vpop.permute.xlu0 %3015
      %3017 = vrot.lane.b32.xlu0 %v3008, 127
      %v3018 = vpop.permute.xlu0 %3017
      %3019 = vrot.lane.b32.xlu0 %v3009, 127
      %v3020 = vpop.permute.xlu0 %3019
      %3021 = vrot.lane.b32.xlu0 %v3010, 127
      %v3022 = vpop.permute.xlu0 %3021
      %3027 = vrot.lane.b32.xlu0 %v3007, 126
      %v3028 = vpop.permute.xlu0 %3027
      %3029 = vrot.lane.b32.xlu0 %v3008, 126
      %v3030 = vpop.permute.xlu0 %3029
      %3031 = vrot.lane.b32.xlu0 %v3009, 126
      %v3032 = vpop.permute.xlu0 %3031
      %3033 = vrot.lane.b32.xlu0 %v3010, 126
      %v3034 = vpop.permute.xlu0 %3033
      %3039 = vrot.lane.b32.xlu0 %v3007, 122
      %v3040 = vpop.permute.xlu0 %3039
      %3041 = vrot.lane.b32.xlu0 %v3008, 122
      %v3042 = vpop.permute.xlu0 %3041
      %3043 = vrot.lane.b32.xlu0 %v3009, 122
      %v3044 = vpop.permute.xlu0 %3043
      %3045 = vrot.lane.b32.xlu0 %v3010, 122
      %v3046 = vpop.permute.xlu0 %3045
      %3051 = vrot.lane.b32.xlu0 %v3007, 121
      %v3052 = vpop.permute.xlu0 %3051
      %3053 = vrot.lane.b32.xlu0 %v3008, 121
      %v3054 = vpop.permute.xlu0 %3053
      %3055 = vrot.lane.b32.xlu0 %v3009, 121
      %v3056 = vpop.permute.xlu0 %3055
      %3057 = vrot.lane.b32.xlu0 %v3010, 121
      %v3058 = vpop.permute.xlu0 %3057
      %3063 = vrot.lane.b32.xlu0 %v3007, 120
      %v3064 = vpop.permute.xlu0 %3063
      %3065 = vrot.lane.b32.xlu0 %v3008, 120
      %v3066 = vpop.permute.xlu0 %3065
      %3067 = vrot.lane.b32.xlu0 %v3009, 120
      %v3068 = vpop.permute.xlu0 %3067
      %3069 = vrot.lane.b32.xlu0 %v3010, 120
      %v3070 = vpop.permute.xlu0 %3069
      %3075 = vrot.lane.b32.xlu0 %v3007, 116
      %v3076 = vpop.permute.xlu0 %3075
      %3077 = vrot.lane.b32.xlu0 %v3008, 116
      %v3078 = vpop.permute.xlu0 %3077
      %3079 = vrot.lane.b32.xlu0 %v3009, 116
      %v3080 = vpop.permute.xlu0 %3079
      %3081 = vrot.lane.b32.xlu0 %v3010, 116
      %v3082 = vpop.permute.xlu0 %3081
      %3087 = vrot.lane.b32.xlu0 %v3007, 115
      %v3088 = vpop.permute.xlu0 %3087
      %3089 = vrot.lane.b32.xlu0 %v3008, 115
      %v3090 = vpop.permute.xlu0 %3089
      %3091 = vrot.lane.b32.xlu0 %v3009, 115
      %v3092 = vpop.permute.xlu0 %3091
      %3093 = vrot.lane.b32.xlu0 %v3010, 115
      %v3094 = vpop.permute.xlu0 %3093
      %3099 = vrot.lane.b32.xlu0 %v3007, 114
      %v3100 = vpop.permute.xlu0 %3099
      %3101 = vrot.lane.b32.xlu0 %v3008, 114
      %v3102 = vpop.permute.xlu0 %3101
      %3103 = vrot.lane.b32.xlu0 %v3009, 114
      %v3104 = vpop.permute.xlu0 %3103
      %3105 = vrot.lane.b32.xlu0 %v3010, 114
      %v3106 = vpop.permute.xlu0 %3105
      %v3111 = vld [vmem:[%s47] sm:$0xff]
      %v3112 = vld [vmem:[%s47 + $0x8] sm:$0xff]
      %v3113 = vld [vmem:[%s47 + $0x10] sm:$0xff]
      %v3114 = vld [vmem:[%s47 + $0x18] sm:$0xff]
      %v3115 = vld [vmem:[%s47 + $0x20] sm:$0xff]
      %v3116 = vld [vmem:[%s47 + $0x28] sm:$0xff]
      %v3117 = vld [vmem:[%s47 + $0x30] sm:$0xff]
      %v3118 = vld [vmem:[%s47 + $0x38] sm:$0xff]
      %v3119 = vld [vmem:[%s47 + $0x40] sm:$0xff]
      %v3120 = vld [vmem:[%s47 + $0x48] sm:$0xff]
      %v3121 = vld [vmem:[%s47 + $0x50] sm:$0xff]
      %v3122 = vld [vmem:[%s47 + $0x58] sm:$0xff]
      %v3123 = vld [vmem:[%s49] sm:$0xff]
      %v3124 = vld [vmem:[%s49 + $0x8] sm:$0xff]
      %v3125 = vld [vmem:[%s49 + $0x10] sm:$0xff]
      %v3126 = vld [vmem:[%s49 + $0x18] sm:$0xff]
      %3128 = vset.pattern.permute.xlu0 0
      %3129 = vperm.xlu0 %3128, %v3123
      %v3130 = vpop.permute.xlu0 %3129
      %3133 = vset.pattern.permute.xlu0 0
      %3134 = vperm.xlu0 %3133, %v3124
      %v3135 = vpop.permute.xlu0 %3134
      %3138 = vset.pattern.permute.xlu0 0
      %3139 = vperm.xlu0 %3138, %v3125
      %v3140 = vpop.permute.xlu0 %3139
      %3143 = vset.pattern.permute.xlu0 0
      %3144 = vperm.xlu0 %3143, %v3126
      %v3145 = vpop.permute.xlu0 %3144
      %vm3147 = vcmask 261120
      %v3149 = vsel %vm3147, %v3113, 0
      %v3152 = vsel %vm3147, %v3116, 0
      %v3155 = vsel %vm3147, %v3119, 0
      %v3158 = vsel %vm3147, %v3122, 0
      %3160 = vmatpush.msra.mxu0 %v3046
      %3161 = vmatpush.msra.mxu0 %v3044
      %3162 = vmatpush.msra.mxu0 %v3042
      %3163 = vmatpush.msra.mxu0 %v3040
      %3164 = vmatpush.msra.mxu0 %v3034
      %3165 = vmatpush.msra.mxu0 %v3032
      %3166 = vmatpush.msra.mxu0 %v3030
      %3167 = vmatpush.msra.mxu0 %v3028
      %3168 = vmatpush.msra.mxu0 %v3022
      %3169 = vmatpush.msra.mxu0 %v3020
      %3170 = vmatpush.msra.mxu0 %v3018
      %3171 = vmatpush.msra.mxu0 %v3016
      %3172 = vmatpush.msra.mxu0 %v3010
      %3173 = vmatpush.msra.mxu0 %v3009
      %3174 = vmatpush.msra.mxu0 %v3008
      %3175 = vmatpush.msra.mxu0 %v3007
      %3176 = vmatmul.f32.gmra.mxu0 %v3111
      %v3177 = vpop.f32.mrf.mxu0
      %v3178 = vadd.f32 %v3130, %v3177
      %3179 = vmatmul.f32.gmra.mxu0 %v3114
      %v3180 = vpop.f32.mrf.mxu0
      %v3181 = vadd.f32 %v3135, %v3180
      %3182 = vmatmul.f32.gmra.mxu0 %v3117
      %v3183 = vpop.f32.mrf.mxu0
      %v3184 = vadd.f32 %v3140, %v3183
      %3185 = vmatmul.f32.gmra.mxu0 %v3120
      %v3186 = vpop.f32.mrf.mxu0
      %v3187 = vadd.f32 %v3145, %v3186
      %3188 = vdwg.mxu0
      %3189 = vmatpush.msra.mxu0 %v3094
      %3190 = vmatpush.msra.mxu0 %v3092
      %3191 = vmatpush.msra.mxu0 %v3090
      %3192 = vmatpush.msra.mxu0 %v3088
      %3193 = vmatpush.msra.mxu0 %v3082
      %3194 = vmatpush.msra.mxu0 %v3080
      %3195 = vmatpush.msra.mxu0 %v3078
      %3196 = vmatpush.msra.mxu0 %v3076
      %3197 = vmatpush.msra.mxu0 %v3070
      %3198 = vmatpush.msra.mxu0 %v3068
      %3199 = vmatpush.msra.mxu0 %v3066
      %3200 = vmatpush.msra.mxu0 %v3064
      %3201 = vmatpush.msra.mxu0 %v3058
      %3202 = vmatpush.msra.mxu0 %v3056
      %3203 = vmatpush.msra.mxu0 %v3054
      %3204 = vmatpush.msra.mxu0 %v3052
      %3205 = vmatmul.f32.gmra.mxu0 %v3112
      %v3206 = vpop.f32.mrf.mxu0
      %v3207 = vadd.f32 %v3178, %v3206
      %3208 = vmatmul.f32.gmra.mxu0 %v3115
      %v3209 = vpop.f32.mrf.mxu0
      %v3210 = vadd.f32 %v3181, %v3209
      %3211 = vmatmul.f32.gmra.mxu0 %v3118
      %v3212 = vpop.f32.mrf.mxu0
      %v3213 = vadd.f32 %v3184, %v3212
      %3214 = vmatmul.f32.gmra.mxu0 %v3121
      %v3215 = vpop.f32.mrf.mxu0
      %v3216 = vadd.f32 %v3187, %v3215
      %3217 = vdwg.mxu0
      %3218 = vmatpush.msra.mxu0 0.0
      %3219 = vmatpush.msra.mxu0 0.0
      %3220 = vmatpush.msra.mxu0 0.0
      %3221 = vmatpush.msra.mxu0 0.0
      %3222 = vmatpush.msra.mxu0 0.0
      %3223 = vmatpush.msra.mxu0 0.0
      %3224 = vmatpush.msra.mxu0 0.0
      %3225 = vmatpush.msra.mxu0 0.0
      %3226 = vmatpush.msra.mxu0 0.0
      %3227 = vmatpush.msra.mxu0 0.0
      %3228 = vmatpush.msra.mxu0 0.0
      %3229 = vmatpush.msra.mxu0 0.0
      %3230 = vmatpush.msra.mxu0 %v3106
      %3231 = vmatpush.msra.mxu0 %v3104
      %3232 = vmatpush.msra.mxu0 %v3102
      %3233 = vmatpush.msra.mxu0 %v3100
      %3234 = vmatmul.f32.gmra.mxu0 %v3149
      %v3235 = vpop.f32.mrf.mxu0
      %v3236 = vadd.f32 %v3207, %v3235
      %3237 = vmatmul.f32.gmra.mxu0 %v3152
      %v3238 = vpop.f32.mrf.mxu0
      %v3239 = vadd.f32 %v3210, %v3238
      %3240 = vmatmul.f32.gmra.mxu0 %v3155
      %v3241 = vpop.f32.mrf.mxu0
      %v3242 = vadd.f32 %v3213, %v3241
      %3243 = vmatmul.f32.gmra.mxu0 %v3158
      %v3244 = vpop.f32.mrf.mxu0
      %v3245 = vadd.f32 %v3216, %v3244
      %3246 = vdwg.mxu0
      %v3247 = vmul.f32 %v3236, %v2749
      %v3248 = vmul.f32 %v3239, %v2749
      %v3249 = vmul.f32 %v3242, %v2749
      %v3250 = vmul.f32 %v3245, %v2749
      %3255 = vrot.lane.b32.xlu0 %v3247, 7
      %v3256 = vpop.permute.xlu0 %3255
      %3257 = vrot.lane.b32.xlu0 %v3248, 7
      %v3258 = vpop.permute.xlu0 %3257
      %3259 = vrot.lane.b32.xlu0 %v3249, 7
      %v3260 = vpop.permute.xlu0 %3259
      %3261 = vrot.lane.b32.xlu0 %v3250, 7
      %v3262 = vpop.permute.xlu0 %3261
      %v3267 = vsel %vm2761, 0.0, %v3256
      %v3268 = vsel %vm2761, 0.0, %v3258
      %v3269 = vsel %vm2761, 0.0, %v3260
      %v3270 = vsel %vm2761, 0.0, %v3262
      %v3271 = vsel %vm2764, %v3267, 0.0
      %v3272 = vsel %vm2764, %v3268, 0.0
      %v3273 = vsel %vm2764, %v3269, 0.0
      %v3274 = vsel %vm2764, %v3270, 0.0
      %3279 = vrot.lane.b32.xlu0 %v3271, 127
      %v3280 = vpop.permute.xlu0 %3279
      %3281 = vrot.lane.b32.xlu0 %v3272, 127
      %v3282 = vpop.permute.xlu0 %3281
      %3283 = vrot.lane.b32.xlu0 %v3273, 127
      %v3284 = vpop.permute.xlu0 %3283
      %3285 = vrot.lane.b32.xlu0 %v3274, 127
      %v3286 = vpop.permute.xlu0 %3285
      %v3291 = vmax.f32 %v3271, %v3280
      %v3292 = vmax.f32 %v3272, %v3282
      %v3293 = vmax.f32 %v3273, %v3284
      %v3294 = vmax.f32 %v3274, %v3286
      %3299 = vrot.lane.b32.xlu0 %v3291, 122
      %v3300 = vpop.permute.xlu0 %3299
      %3301 = vrot.lane.b32.xlu0 %v3292, 122
      %v3302 = vpop.permute.xlu0 %3301
      %3303 = vrot.lane.b32.xlu0 %v3293, 122
      %v3304 = vpop.permute.xlu0 %3303
      %3305 = vrot.lane.b32.xlu0 %v3294, 122
      %v3306 = vpop.permute.xlu0 %3305
      %v3311 = vmax.f32 %v3291, %v3300
      %v3312 = vmax.f32 %v3292, %v3302
      %v3313 = vmax.f32 %v3293, %v3304
      %v3314 = vmax.f32 %v3294, %v3306
      %v3315 = vld [vmem:[%s111] sm:$0xff]
      %v3316 = vld [vmem:[%s111 + $0x8] sm:$0xff]
      %v3317 = vld [vmem:[%s111 + $0x10] sm:$0xff]
      %v3318 = vld [vmem:[%s111 + $0x18] sm:$0xff]
      %v3319 = vld [vmem:[%s111 + $0x20] sm:$0xf]
      %3324 = vrot.lane.b32.xlu0 %v3311, 121
      %v3325 = vpop.permute.xlu0 %3324
      %3326 = vrot.lane.b32.xlu0 %v3312, 121
      %v3327 = vpop.permute.xlu0 %3326
      %3328 = vrot.lane.b32.xlu0 %v3313, 121
      %v3329 = vpop.permute.xlu0 %3328
      %3330 = vrot.lane.b32.xlu0 %v3314, 121
      %v3331 = vpop.permute.xlu0 %3330
      %v3332 = vsel %vm1926, %v3325, 0
      %v3334 = vsel %vm1926, %v3327, 0
      %v3336 = vsel %vm1926, %v3329, 0
      %v3338 = vsel %vm1926, %v3331, 0
      %v3341 = vsel %vm1781, %v3319, 0
      %3343 = vmatpush.msra.mxu0 0.0
      %3344 = vmatpush.msra.mxu0 0.0
      %3345 = vmatpush.msra.mxu0 0.0
      %3346 = vmatpush.msra.mxu0 0.0
      %3347 = vmatpush.msra.mxu0 0.0
      %3348 = vmatpush.msra.mxu0 0.0
      %3349 = vmatpush.msra.mxu0 0.0
      %3350 = vmatpush.msra.mxu0 0.0
      %3351 = vmatpush.msra.mxu0 0.0
      %3352 = vmatpush.msra.mxu0 0.0
      %3353 = vmatpush.msra.mxu0 0.0
      %3354 = vmatpush.msra.mxu0 %v3341
      %3355 = vmatpush.msra.mxu0 %v3318
      %3356 = vmatpush.msra.mxu0 %v3317
      %3357 = vmatpush.msra.mxu0 %v3316
      %3358 = vmatpush.msra.mxu0 %v3315
      %3359 = vmatmul.f32.gmra.mxu0 %v3332
      %v3360 = vpop.f32.mrf.mxu0
      %v3361 = vadd.f32 0.0, %v3360
      %3362 = vmatmul.f32.gmra.mxu0 %v3334
      %v3363 = vpop.f32.mrf.mxu0
      %v3364 = vadd.f32 0.0, %v3363
      %3365 = vmatmul.f32.gmra.mxu0 %v3336
      %v3366 = vpop.f32.mrf.mxu0
      %v3367 = vadd.f32 0.0, %v3366
      %3368 = vmatmul.f32.gmra.mxu0 %v3338
      %v3369 = vpop.f32.mrf.mxu0
      %v3370 = vadd.f32 0.0, %v3369
      %3371 = vdwg.mxu0
      %v3372 = vld [vmem:[%s51] sm:$0xff]
      %v3373 = vld [vmem:[%s51 + $0x8] sm:$0xff]
      %v3374 = vld [vmem:[%s51 + $0x10] sm:$0xff]
      %v3375 = vld [vmem:[%s51 + $0x18] sm:$0xff]
      %3377 = vset.pattern.permute.xlu0 0
      %3378 = vperm.xlu0 %3377, %v3372
      %v3379 = vpop.permute.xlu0 %3378
      %3382 = vset.pattern.permute.xlu0 0
      %3383 = vperm.xlu0 %3382, %v3373
      %v3384 = vpop.permute.xlu0 %3383
      %3387 = vset.pattern.permute.xlu0 0
      %3388 = vperm.xlu0 %3387, %v3374
      %v3389 = vpop.permute.xlu0 %3388
      %3392 = vset.pattern.permute.xlu0 0
      %3393 = vperm.xlu0 %3392, %v3375
      %v3394 = vpop.permute.xlu0 %3393
      %v3396 = vmul.f32 %v3361, %v3379
      %v3397 = vmul.f32 %v3364, %v3384
      %v3398 = vmul.f32 %v3367, %v3389
      %v3399 = vmul.f32 %v3370, %v3394
      %v3400 = vld [vmem:[%s53] sm:$0xff]
      %v3401 = vld [vmem:[%s53 + $0x8] sm:$0xff]
      %v3402 = vld [vmem:[%s53 + $0x10] sm:$0xff]
      %v3403 = vld [vmem:[%s53 + $0x18] sm:$0xff]
      %3405 = vset.pattern.permute.xlu0 0
      %3406 = vperm.xlu0 %3405, %v3400
      %v3407 = vpop.permute.xlu0 %3406
      %3410 = vset.pattern.permute.xlu0 0
      %3411 = vperm.xlu0 %3410, %v3401
      %v3412 = vpop.permute.xlu0 %3411
      %3415 = vset.pattern.permute.xlu0 0
      %3416 = vperm.xlu0 %3415, %v3402
      %v3417 = vpop.permute.xlu0 %3416
      %3420 = vset.pattern.permute.xlu0 0
      %3421 = vperm.xlu0 %3420, %v3403
      %v3422 = vpop.permute.xlu0 %3421
      %v3424 = vadd.f32 %v3396, %v3407
      %v3425 = vadd.f32 %v3397, %v3412
      %v3426 = vadd.f32 %v3398, %v3417
      %v3427 = vadd.f32 %v3399, %v3422
      %v3428 = vmax.f32 %v3424, 0.0
      %v3429 = vmax.f32 %v3425, 0.0
      %v3430 = vmax.f32 %v3426, 0.0
      %v3431 = vmax.f32 %v3427, 0.0
      %v3433 = vperm.slane %v1746, 0
      %v3435 = vmul.f32 %v3428, %v3433
      %v3436 = vmul.f32 %v3429, %v3433
      %v3437 = vmul.f32 %v3430, %v3433
      %v3438 = vmul.f32 %v3431, %v3433
      %3443 = vrot.lane.b32.xlu0 %v3435, 5
      %v3444 = vpop.permute.xlu0 %3443
      %3445 = vrot.lane.b32.xlu0 %v3436, 5
      %v3446 = vpop.permute.xlu0 %3445
      %3447 = vrot.lane.b32.xlu0 %v3437, 5
      %v3448 = vpop.permute.xlu0 %3447
      %3449 = vrot.lane.b32.xlu0 %v3438, 5
      %v3450 = vpop.permute.xlu0 %3449
      %vm3455 = vcmask 39936
      %v3456 = vsel %vm3455, 0.0, %v3444
      %v3457 = vsel %vm3455, 0.0, %v3446
      %v3458 = vsel %vm3455, 0.0, %v3448
      %v3459 = vsel %vm3455, 0.0, %v3450
      %vm3460 = vcmask 171008
      %v3461 = vsel %vm3460, %v3456, 0.0
      %v3462 = vsel %vm3460, %v3457, 0.0
      %v3463 = vsel %vm3460, %v3458, 0.0
      %v3464 = vsel %vm3460, %v3459, 0.0
      %3469 = vrot.lane.b32.xlu0 %v3461, 127
      %v3470 = vpop.permute.xlu0 %3469
      %3471 = vrot.lane.b32.xlu0 %v3462, 127
      %v3472 = vpop.permute.xlu0 %3471
      %3473 = vrot.lane.b32.xlu0 %v3463, 127
      %v3474 = vpop.permute.xlu0 %3473
      %3475 = vrot.lane.b32.xlu0 %v3464, 127
      %v3476 = vpop.permute.xlu0 %3475
      %3481 = vrot.lane.b32.xlu0 %v3461, 126
      %v3482 = vpop.permute.xlu0 %3481
      %3483 = vrot.lane.b32.xlu0 %v3462, 126
      %v3484 = vpop.permute.xlu0 %3483
      %3485 = vrot.lane.b32.xlu0 %v3463, 126
      %v3486 = vpop.permute.xlu0 %3485
      %3487 = vrot.lane.b32.xlu0 %v3464, 126
      %v3488 = vpop.permute.xlu0 %3487
      %3493 = vrot.lane.b32.xlu0 %v3461, 124
      %v3494 = vpop.permute.xlu0 %3493
      %3495 = vrot.lane.b32.xlu0 %v3462, 124
      %v3496 = vpop.permute.xlu0 %3495
      %3497 = vrot.lane.b32.xlu0 %v3463, 124
      %v3498 = vpop.permute.xlu0 %3497
      %3499 = vrot.lane.b32.xlu0 %v3464, 124
      %v3500 = vpop.permute.xlu0 %3499
      %3505 = vrot.lane.b32.xlu0 %v3461, 123
      %v3506 = vpop.permute.xlu0 %3505
      %3507 = vrot.lane.b32.xlu0 %v3462, 123
      %v3508 = vpop.permute.xlu0 %3507
      %3509 = vrot.lane.b32.xlu0 %v3463, 123
      %v3510 = vpop.permute.xlu0 %3509
      %3511 = vrot.lane.b32.xlu0 %v3464, 123
      %v3512 = vpop.permute.xlu0 %3511
      %3517 = vrot.lane.b32.xlu0 %v3461, 122
      %v3518 = vpop.permute.xlu0 %3517
      %3519 = vrot.lane.b32.xlu0 %v3462, 122
      %v3520 = vpop.permute.xlu0 %3519
      %3521 = vrot.lane.b32.xlu0 %v3463, 122
      %v3522 = vpop.permute.xlu0 %3521
      %3523 = vrot.lane.b32.xlu0 %v3464, 122
      %v3524 = vpop.permute.xlu0 %3523
      %3529 = vrot.lane.b32.xlu0 %v3461, 120
      %v3530 = vpop.permute.xlu0 %3529
      %3531 = vrot.lane.b32.xlu0 %v3462, 120
      %v3532 = vpop.permute.xlu0 %3531
      %3533 = vrot.lane.b32.xlu0 %v3463, 120
      %v3534 = vpop.permute.xlu0 %3533
      %3535 = vrot.lane.b32.xlu0 %v3464, 120
      %v3536 = vpop.permute.xlu0 %3535
      %3541 = vrot.lane.b32.xlu0 %v3461, 119
      %v3542 = vpop.permute.xlu0 %3541
      %3543 = vrot.lane.b32.xlu0 %v3462, 119
      %v3544 = vpop.permute.xlu0 %3543
      %3545 = vrot.lane.b32.xlu0 %v3463, 119
      %v3546 = vpop.permute.xlu0 %3545
      %3547 = vrot.lane.b32.xlu0 %v3464, 119
      %v3548 = vpop.permute.xlu0 %3547
      %3553 = vrot.lane.b32.xlu0 %v3461, 118
      %v3554 = vpop.permute.xlu0 %3553
      %3555 = vrot.lane.b32.xlu0 %v3462, 118
      %v3556 = vpop.permute.xlu0 %3555
      %3557 = vrot.lane.b32.xlu0 %v3463, 118
      %v3558 = vpop.permute.xlu0 %3557
      %3559 = vrot.lane.b32.xlu0 %v3464, 118
      %v3560 = vpop.permute.xlu0 %3559
      %v3565 = vld [vmem:[%s55] sm:$0xff]
      %v3566 = vld [vmem:[%s55 + $0x8] sm:$0xff]
      %v3567 = vld [vmem:[%s55 + $0x10] sm:$0xff]
      %v3568 = vld [vmem:[%s55 + $0x18] sm:$0xff]
      %v3569 = vld [vmem:[%s55 + $0x20] sm:$0xff]
      %v3570 = vld [vmem:[%s55 + $0x28] sm:$0xff]
      %v3571 = vld [vmem:[%s55 + $0x30] sm:$0xff]
      %v3572 = vld [vmem:[%s55 + $0x38] sm:$0xff]
      %v3573 = vld [vmem:[%s55 + $0x40] sm:$0xff]
      %v3574 = vld [vmem:[%s55 + $0x48] sm:$0xff]
      %v3575 = vld [vmem:[%s55 + $0x50] sm:$0xff]
      %v3576 = vld [vmem:[%s55 + $0x58] sm:$0xff]
      %v3577 = vld [vmem:[%s55 + $0x60] sm:$0xff]
      %v3578 = vld [vmem:[%s55 + $0x68] sm:$0xff]
      %v3579 = vld [vmem:[%s55 + $0x70] sm:$0xff]
      %v3580 = vld [vmem:[%s55 + $0x78] sm:$0xff]
      %v3581 = vld [vmem:[%s55 + $0x80] sm:$0xff]
      %v3582 = vld [vmem:[%s55 + $0x88] sm:$0xff]
      %v3583 = vld [vmem:[%s55 + $0x90] sm:$0xff]
      %v3584 = vld [vmem:[%s55 + $0x98] sm:$0xff]
      %v3585 = vld [vmem:[%s55 + $0xa0] sm:$0xff]
      %v3586 = vld [vmem:[%s55 + $0xa8] sm:$0xff]
      %v3587 = vld [vmem:[%s55 + $0xb0] sm:$0xff]
      %v3588 = vld [vmem:[%s55 + $0xb8] sm:$0xff]
      %v3589 = vld [vmem:[%s57] sm:$0xff]
      %v3590 = vld [vmem:[%s57 + $0x8] sm:$0xff]
      %v3591 = vld [vmem:[%s57 + $0x10] sm:$0xff]
      %v3592 = vld [vmem:[%s57 + $0x18] sm:$0xff]
      %v3593 = vld [vmem:[%s57 + $0x20] sm:$0xff]
      %v3594 = vld [vmem:[%s57 + $0x28] sm:$0xff]
      %v3595 = vld [vmem:[%s57 + $0x30] sm:$0xff]
      %v3596 = vld [vmem:[%s57 + $0x38] sm:$0xff]
      %3598 = vset.pattern.permute.xlu0 0
      %3599 = vperm.xlu0 %3598, %v3589
      %v3600 = vpop.permute.xlu0 %3599
      %3603 = vset.pattern.permute.xlu0 0
      %3604 = vperm.xlu0 %3603, %v3590
      %v3605 = vpop.permute.xlu0 %3604
      %3608 = vset.pattern.permute.xlu0 0
      %3609 = vperm.xlu0 %3608, %v3591
      %v3610 = vpop.permute.xlu0 %3609
      %3613 = vset.pattern.permute.xlu0 0
      %3614 = vperm.xlu0 %3613, %v3592
      %v3615 = vpop.permute.xlu0 %3614
      %3618 = vset.pattern.permute.xlu0 0
      %3619 = vperm.xlu0 %3618, %v3593
      %v3620 = vpop.permute.xlu0 %3619
      %3623 = vset.pattern.permute.xlu0 0
      %3624 = vperm.xlu0 %3623, %v3594
      %v3625 = vpop.permute.xlu0 %3624
      %3628 = vset.pattern.permute.xlu0 0
      %3629 = vperm.xlu0 %3628, %v3595
      %v3630 = vpop.permute.xlu0 %3629
      %3633 = vset.pattern.permute.xlu0 0
      %3634 = vperm.xlu0 %3633, %v3596
      %v3635 = vpop.permute.xlu0 %3634
      %v3638 = vsel %vm3147, %v3567, 0
      %v3641 = vsel %vm3147, %v3570, 0
      %v3644 = vsel %vm3147, %v3573, 0
      %v3647 = vsel %vm3147, %v3576, 0
      %v3650 = vsel %vm3147, %v3579, 0
      %v3653 = vsel %vm3147, %v3582, 0
      %v3656 = vsel %vm3147, %v3585, 0
      %v3659 = vsel %vm3147, %v3588, 0
      %3661 = vmatpush.msra.mxu0 %v3500
      %3662 = vmatpush.msra.mxu0 %v3498
      %3663 = vmatpush.msra.mxu0 %v3496
      %3664 = vmatpush.msra.mxu0 %v3494
      %3665 = vmatpush.msra.mxu0 %v3488
      %3666 = vmatpush.msra.mxu0 %v3486
      %3667 = vmatpush.msra.mxu0 %v3484
      %3668 = vmatpush.msra.mxu0 %v3482
      %3669 = vmatpush.msra.mxu0 %v3476
      %3670 = vmatpush.msra.mxu0 %v3474
      %3671 = vmatpush.msra.mxu0 %v3472
      %3672 = vmatpush.msra.mxu0 %v3470
      %3673 = vmatpush.msra.mxu0 %v3464
      %3674 = vmatpush.msra.mxu0 %v3463
      %3675 = vmatpush.msra.mxu0 %v3462
      %3676 = vmatpush.msra.mxu0 %v3461
      %3677 = vmatmul.f32.gmra.mxu0 %v3565
      %v3678 = vpop.f32.mrf.mxu0
      %v3679 = vadd.f32 %v3600, %v3678
      %3680 = vmatmul.f32.gmra.mxu0 %v3568
      %v3681 = vpop.f32.mrf.mxu0
      %v3682 = vadd.f32 %v3605, %v3681
      %3683 = vmatmul.f32.gmra.mxu0 %v3571
      %v3684 = vpop.f32.mrf.mxu0
      %v3685 = vadd.f32 %v3610, %v3684
      %3686 = vmatmul.f32.gmra.mxu0 %v3574
      %v3687 = vpop.f32.mrf.mxu0
      %v3688 = vadd.f32 %v3615, %v3687
      %3689 = vmatmul.f32.gmra.mxu0 %v3577
      %v3690 = vpop.f32.mrf.mxu0
      %v3691 = vadd.f32 %v3620, %v3690
      %3692 = vmatmul.f32.gmra.mxu0 %v3580
      %v3693 = vpop.f32.mrf.mxu0
      %v3694 = vadd.f32 %v3625, %v3693
      %3695 = vmatmul.f32.gmra.mxu0 %v3583
      %v3696 = vpop.f32.mrf.mxu0
      %v3697 = vadd.f32 %v3630, %v3696
      %3698 = vmatmul.f32.gmra.mxu0 %v3586
      %v3699 = vpop.f32.mrf.mxu0
      %v3700 = vadd.f32 %v3635, %v3699
      %3701 = vdwg.mxu0
      %3702 = vmatpush.msra.mxu0 %v3548
      %3703 = vmatpush.msra.mxu0 %v3546
      %3704 = vmatpush.msra.mxu0 %v3544
      %3705 = vmatpush.msra.mxu0 %v3542
      %3706 = vmatpush.msra.mxu0 %v3536
      %3707 = vmatpush.msra.mxu0 %v3534
      %3708 = vmatpush.msra.mxu0 %v3532
      %3709 = vmatpush.msra.mxu0 %v3530
      %3710 = vmatpush.msra.mxu0 %v3524
      %3711 = vmatpush.msra.mxu0 %v3522
      %3712 = vmatpush.msra.mxu0 %v3520
      %3713 = vmatpush.msra.mxu0 %v3518
      %3714 = vmatpush.msra.mxu0 %v3512
      %3715 = vmatpush.msra.mxu0 %v3510
      %3716 = vmatpush.msra.mxu0 %v3508
      %3717 = vmatpush.msra.mxu0 %v3506
      %3718 = vmatmul.f32.gmra.mxu0 %v3566
      %v3719 = vpop.f32.mrf.mxu0
      %v3720 = vadd.f32 %v3679, %v3719
      %3721 = vmatmul.f32.gmra.mxu0 %v3569
      %v3722 = vpop.f32.mrf.mxu0
      %v3723 = vadd.f32 %v3682, %v3722
      %3724 = vmatmul.f32.gmra.mxu0 %v3572
      %v3725 = vpop.f32.mrf.mxu0
      %v3726 = vadd.f32 %v3685, %v3725
      %3727 = vmatmul.f32.gmra.mxu0 %v3575
      %v3728 = vpop.f32.mrf.mxu0
      %v3729 = vadd.f32 %v3688, %v3728
      %3730 = vmatmul.f32.gmra.mxu0 %v3578
      %v3731 = vpop.f32.mrf.mxu0
      %v3732 = vadd.f32 %v3691, %v3731
      %3733 = vmatmul.f32.gmra.mxu0 %v3581
      %v3734 = vpop.f32.mrf.mxu0
      %v3735 = vadd.f32 %v3694, %v3734
      %3736 = vmatmul.f32.gmra.mxu0 %v3584
      %v3737 = vpop.f32.mrf.mxu0
      %v3738 = vadd.f32 %v3697, %v3737
      %3739 = vmatmul.f32.gmra.mxu0 %v3587
      %v3740 = vpop.f32.mrf.mxu0
      %v3741 = vadd.f32 %v3700, %v3740
      %3742 = vdwg.mxu0
      %3743 = vmatpush.msra.mxu0 0.0
      %3744 = vmatpush.msra.mxu0 0.0
      %3745 = vmatpush.msra.mxu0 0.0
      %3746 = vmatpush.msra.mxu0 0.0
      %3747 = vmatpush.msra.mxu0 0.0
      %3748 = vmatpush.msra.mxu0 0.0
      %3749 = vmatpush.msra.mxu0 0.0
      %3750 = vmatpush.msra.mxu0 0.0
      %3751 = vmatpush.msra.mxu0 0.0
      %3752 = vmatpush.msra.mxu0 0.0
      %3753 = vmatpush.msra.mxu0 0.0
      %3754 = vmatpush.msra.mxu0 0.0
      %3755 = vmatpush.msra.mxu0 %v3560
      %3756 = vmatpush.msra.mxu0 %v3558
      %3757 = vmatpush.msra.mxu0 %v3556
      %3758 = vmatpush.msra.mxu0 %v3554
      %3759 = vmatmul.f32.gmra.mxu0 %v3638
      %v3760 = vpop.f32.mrf.mxu0
      %v3761 = vadd.f32 %v3720, %v3760
      %3762 = vmatmul.f32.gmra.mxu0 %v3641
      %v3763 = vpop.f32.mrf.mxu0
      %v3764 = vadd.f32 %v3723, %v3763
      %3765 = vmatmul.f32.gmra.mxu0 %v3644
      %v3766 = vpop.f32.mrf.mxu0
      %v3767 = vadd.f32 %v3726, %v3766
      %3768 = vmatmul.f32.gmra.mxu0 %v3647
      %v3769 = vpop.f32.mrf.mxu0
      %v3770 = vadd.f32 %v3729, %v3769
      %3771 = vmatmul.f32.gmra.mxu0 %v3650
      %v3772 = vpop.f32.mrf.mxu0
      %v3773 = vadd.f32 %v3732, %v3772
      %3774 = vmatmul.f32.gmra.mxu0 %v3653
      %v3775 = vpop.f32.mrf.mxu0
      %v3776 = vadd.f32 %v3735, %v3775
      %3777 = vmatmul.f32.gmra.mxu0 %v3656
      %v3778 = vpop.f32.mrf.mxu0
      %v3779 = vadd.f32 %v3738, %v3778
      %3780 = vmatmul.f32.gmra.mxu0 %v3659
      %v3781 = vpop.f32.mrf.mxu0
      %v3782 = vadd.f32 %v3741, %v3781
      %3783 = vdwg.mxu0
      %v3784 = vmul.f32 %v3761, %v3433
      %v3785 = vmul.f32 %v3764, %v3433
      %v3786 = vmul.f32 %v3767, %v3433
      %v3787 = vmul.f32 %v3770, %v3433
      %v3788 = vmul.f32 %v3773, %v3433
      %v3789 = vmul.f32 %v3776, %v3433
      %v3790 = vmul.f32 %v3779, %v3433
      %v3791 = vmul.f32 %v3782, %v3433
      %v3792 = vld [vmem:[%s59] sm:$0xff]
      %v3793 = vld [vmem:[%s59 + $0x8] sm:$0xff]
      %v3794 = vld [vmem:[%s59 + $0x10] sm:$0xff]
      %v3795 = vld [vmem:[%s59 + $0x18] sm:$0xff]
      %v3796 = vld [vmem:[%s59 + $0x20] sm:$0xff]
      %v3797 = vld [vmem:[%s59 + $0x28] sm:$0xff]
      %v3798 = vld [vmem:[%s59 + $0x30] sm:$0xff]
      %v3799 = vld [vmem:[%s59 + $0x38] sm:$0xff]
      %3801 = vset.pattern.permute.xlu0 0
      %3802 = vperm.xlu0 %3801, %v3792
      %v3803 = vpop.permute.xlu0 %3802
      %3806 = vset.pattern.permute.xlu0 0
      %3807 = vperm.xlu0 %3806, %v3793
      %v3808 = vpop.permute.xlu0 %3807
      %3811 = vset.pattern.permute.xlu0 0
      %3812 = vperm.xlu0 %3811, %v3794
      %v3813 = vpop.permute.xlu0 %3812
      %3816 = vset.pattern.permute.xlu0 0
      %3817 = vperm.xlu0 %3816, %v3795
      %v3818 = vpop.permute.xlu0 %3817
      %3821 = vset.pattern.permute.xlu0 0
      %3822 = vperm.xlu0 %3821, %v3796
      %v3823 = vpop.permute.xlu0 %3822
      %3826 = vset.pattern.permute.xlu0 0
      %3827 = vperm.xlu0 %3826, %v3797
      %v3828 = vpop.permute.xlu0 %3827
      %3831 = vset.pattern.permute.xlu0 0
      %3832 = vperm.xlu0 %3831, %v3798
      %v3833 = vpop.permute.xlu0 %3832
      %3836 = vset.pattern.permute.xlu0 0
      %3837 = vperm.xlu0 %3836, %v3799
      %v3838 = vpop.permute.xlu0 %3837
      %v3840 = vmul.f32 %v3784, %v3803
      %v3841 = vmul.f32 %v3785, %v3808
      %v3842 = vmul.f32 %v3786, %v3813
      %v3843 = vmul.f32 %v3787, %v3818
      %v3844 = vmul.f32 %v3788, %v3823
      %v3845 = vmul.f32 %v3789, %v3828
      %v3846 = vmul.f32 %v3790, %v3833
      %v3847 = vmul.f32 %v3791, %v3838
      %v3848 = vld [vmem:[%s61] sm:$0xff]
      %v3849 = vld [vmem:[%s61 + $0x8] sm:$0xff]
      %v3850 = vld [vmem:[%s61 + $0x10] sm:$0xff]
      %v3851 = vld [vmem:[%s61 + $0x18] sm:$0xff]
      %v3852 = vld [vmem:[%s61 + $0x20] sm:$0xff]
      %v3853 = vld [vmem:[%s61 + $0x28] sm:$0xff]
      %v3854 = vld [vmem:[%s61 + $0x30] sm:$0xff]
      %v3855 = vld [vmem:[%s61 + $0x38] sm:$0xff]
      %3857 = vset.pattern.permute.xlu0 0
      %3858 = vperm.xlu0 %3857, %v3848
      %v3859 = vpop.permute.xlu0 %3858
      %3862 = vset.pattern.permute.xlu0 0
      %3863 = vperm.xlu0 %3862, %v3849
      %v3864 = vpop.permute.xlu0 %3863
      %3867 = vset.pattern.permute.xlu0 0
      %3868 = vperm.xlu0 %3867, %v3850
      %v3869 = vpop.permute.xlu0 %3868
      %3872 = vset.pattern.permute.xlu0 0
      %3873 = vperm.xlu0 %3872, %v3851
      %v3874 = vpop.permute.xlu0 %3873
      %3877 = vset.pattern.permute.xlu0 0
      %3878 = vperm.xlu0 %3877, %v3852
      %v3879 = vpop.permute.xlu0 %3878
      %3882 = vset.pattern.permute.xlu0 0
      %3883 = vperm.xlu0 %3882, %v3853
      %v3884 = vpop.permute.xlu0 %3883
      %3887 = vset.pattern.permute.xlu0 0
      %3888 = vperm.xlu0 %3887, %v3854
      %v3889 = vpop.permute.xlu0 %3888
      %3892 = vset.pattern.permute.xlu0 0
      %3893 = vperm.xlu0 %3892, %v3855
      %v3894 = vpop.permute.xlu0 %3893
      %v3896 = vadd.f32 %v3840, %v3859
      %v3897 = vadd.f32 %v3841, %v3864
      %v3898 = vadd.f32 %v3842, %v3869
      %v3899 = vadd.f32 %v3843, %v3874
      %v3900 = vadd.f32 %v3844, %v3879
      %v3901 = vadd.f32 %v3845, %v3884
      %v3902 = vadd.f32 %v3846, %v3889
      %v3903 = vadd.f32 %v3847, %v3894
      %v3904 = vmax.f32 %v3896, 0.0
      %v3905 = vmax.f32 %v3897, 0.0
      %v3906 = vmax.f32 %v3898, 0.0
      %v3907 = vmax.f32 %v3899, 0.0
      %v3908 = vmax.f32 %v3900, 0.0
      %v3909 = vmax.f32 %v3901, 0.0
      %v3910 = vmax.f32 %v3902, 0.0
      %v3911 = vmax.f32 %v3903, 0.0
      %v3912 = vmul.f32 %v3904, %v3433
      %v3913 = vmul.f32 %v3905, %v3433
      %v3914 = vmul.f32 %v3906, %v3433
      %v3915 = vmul.f32 %v3907, %v3433
      %v3916 = vmul.f32 %v3908, %v3433
      %v3917 = vmul.f32 %v3909, %v3433
      %v3918 = vmul.f32 %v3910, %v3433
      %v3919 = vmul.f32 %v3911, %v3433
      %3928 = vrot.lane.b32.xlu0 %v3912, 5
      %v3929 = vpop.permute.xlu0 %3928
      %3930 = vrot.lane.b32.xlu0 %v3913, 5
      %v3931 = vpop.permute.xlu0 %3930
      %3932 = vrot.lane.b32.xlu0 %v3914, 5
      %v3933 = vpop.permute.xlu0 %3932
      %3934 = vrot.lane.b32.xlu0 %v3915, 5
      %v3935 = vpop.permute.xlu0 %3934
      %3936 = vrot.lane.b32.xlu0 %v3916, 5
      %v3937 = vpop.permute.xlu0 %3936
      %3938 = vrot.lane.b32.xlu0 %v3917, 5
      %v3939 = vpop.permute.xlu0 %3938
      %3940 = vrot.lane.b32.xlu0 %v3918, 5
      %v3941 = vpop.permute.xlu0 %3940
      %3942 = vrot.lane.b32.xlu0 %v3919, 5
      %v3943 = vpop.permute.xlu0 %3942
      %v3952 = vsel %vm3455, 0.0, %v3929
      %v3953 = vsel %vm3455, 0.0, %v3931
      %v3954 = vsel %vm3455, 0.0, %v3933
      %v3955 = vsel %vm3455, 0.0, %v3935
      %v3956 = vsel %vm3455, 0.0, %v3937
      %v3957 = vsel %vm3455, 0.0, %v3939
      %v3958 = vsel %vm3455, 0.0, %v3941
      %v3959 = vsel %vm3455, 0.0, %v3943
      %v3960 = vsel %vm3460, %v3952, 0.0
      %v3961 = vsel %vm3460, %v3953, 0.0
      %v3962 = vsel %vm3460, %v3954, 0.0
      %v3963 = vsel %vm3460, %v3955, 0.0
      %v3964 = vsel %vm3460, %v3956, 0.0
      %v3965 = vsel %vm3460, %v3957, 0.0
      %v3966 = vsel %vm3460, %v3958, 0.0
      %v3967 = vsel %vm3460, %v3959, 0.0
      %3976 = vrot.lane.b32.xlu0 %v3960, 127
      %v3977 = vpop.permute.xlu0 %3976
      %3978 = vrot.lane.b32.xlu0 %v3961, 127
      %v3979 = vpop.permute.xlu0 %3978
      %3980 = vrot.lane.b32.xlu0 %v3962, 127
      %v3981 = vpop.permute.xlu0 %3980
      %3982 = vrot.lane.b32.xlu0 %v3963, 127
      %v3983 = vpop.permute.xlu0 %3982
      %3984 = vrot.lane.b32.xlu0 %v3964, 127
      %v3985 = vpop.permute.xlu0 %3984
      %3986 = vrot.lane.b32.xlu0 %v3965, 127
      %v3987 = vpop.permute.xlu0 %3986
      %3988 = vrot.lane.b32.xlu0 %v3966, 127
      %v3989 = vpop.permute.xlu0 %3988
      %3990 = vrot.lane.b32.xlu0 %v3967, 127
      %v3991 = vpop.permute.xlu0 %3990
      %4000 = vrot.lane.b32.xlu0 %v3960, 126
      %v4001 = vpop.permute.xlu0 %4000
      %4002 = vrot.lane.b32.xlu0 %v3961, 126
      %v4003 = vpop.permute.xlu0 %4002
      %4004 = vrot.lane.b32.xlu0 %v3962, 126
      %v4005 = vpop.permute.xlu0 %4004
      %4006 = vrot.lane.b32.xlu0 %v3963, 126
      %v4007 = vpop.permute.xlu0 %4006
      %4008 = vrot.lane.b32.xlu0 %v3964, 126
      %v4009 = vpop.permute.xlu0 %4008
      %4010 = vrot.lane.b32.xlu0 %v3965, 126
      %v4011 = vpop.permute.xlu0 %4010
      %4012 = vrot.lane.b32.xlu0 %v3966, 126
      %v4013 = vpop.permute.xlu0 %4012
      %4014 = vrot.lane.b32.xlu0 %v3967, 126
      %v4015 = vpop.permute.xlu0 %4014
      %4024 = vrot.lane.b32.xlu0 %v3960, 124
      %v4025 = vpop.permute.xlu0 %4024
      %4026 = vrot.lane.b32.xlu0 %v3961, 124
      %v4027 = vpop.permute.xlu0 %4026
      %4028 = vrot.lane.b32.xlu0 %v3962, 124
      %v4029 = vpop.permute.xlu0 %4028
      %4030 = vrot.lane.b32.xlu0 %v3963, 124
      %v4031 = vpop.permute.xlu0 %4030
      %4032 = vrot.lane.b32.xlu0 %v3964, 124
      %v4033 = vpop.permute.xlu0 %4032
      %4034 = vrot.lane.b32.xlu0 %v3965, 124
      %v4035 = vpop.permute.xlu0 %4034
      %4036 = vrot.lane.b32.xlu0 %v3966, 124
      %v4037 = vpop.permute.xlu0 %4036
      %4038 = vrot.lane.b32.xlu0 %v3967, 124
      %v4039 = vpop.permute.xlu0 %4038
      %4048 = vrot.lane.b32.xlu0 %v3960, 123
      %v4049 = vpop.permute.xlu0 %4048
      %4050 = vrot.lane.b32.xlu0 %v3961, 123
      %v4051 = vpop.permute.xlu0 %4050
      %4052 = vrot.lane.b32.xlu0 %v3962, 123
      %v4053 = vpop.permute.xlu0 %4052
      %4054 = vrot.lane.b32.xlu0 %v3963, 123
      %v4055 = vpop.permute.xlu0 %4054
      %4056 = vrot.lane.b32.xlu0 %v3964, 123
      %v4057 = vpop.permute.xlu0 %4056
      %4058 = vrot.lane.b32.xlu0 %v3965, 123
      %v4059 = vpop.permute.xlu0 %4058
      %4060 = vrot.lane.b32.xlu0 %v3966, 123
      %v4061 = vpop.permute.xlu0 %4060
      %4062 = vrot.lane.b32.xlu0 %v3967, 123
      %v4063 = vpop.permute.xlu0 %4062
      %4072 = vrot.lane.b32.xlu0 %v3960, 122
      %v4073 = vpop.permute.xlu0 %4072
      %4074 = vrot.lane.b32.xlu0 %v3961, 122
      %v4075 = vpop.permute.xlu0 %4074
      %4076 = vrot.lane.b32.xlu0 %v3962, 122
      %v4077 = vpop.permute.xlu0 %4076
      %4078 = vrot.lane.b32.xlu0 %v3963, 122
      %v4079 = vpop.permute.xlu0 %4078
      %4080 = vrot.lane.b32.xlu0 %v3964, 122
      %v4081 = vpop.permute.xlu0 %4080
      %4082 = vrot.lane.b32.xlu0 %v3965, 122
      %v4083 = vpop.permute.xlu0 %4082
      %4084 = vrot.lane.b32.xlu0 %v3966, 122
      %v4085 = vpop.permute.xlu0 %4084
      %4086 = vrot.lane.b32.xlu0 %v3967, 122
      %v4087 = vpop.permute.xlu0 %4086
      %4096 = vrot.lane.b32.xlu0 %v3960, 120
      %v4097 = vpop.permute.xlu0 %4096
      %4098 = vrot.lane.b32.xlu0 %v3961, 120
      %v4099 = vpop.permute.xlu0 %4098
      %4100 = vrot.lane.b32.xlu0 %v3962, 120
      %v4101 = vpop.permute.xlu0 %4100
      %4102 = vrot.lane.b32.xlu0 %v3963, 120
      %v4103 = vpop.permute.xlu0 %4102
      %4104 = vrot.lane.b32.xlu0 %v3964, 120
      %v4105 = vpop.permute.xlu0 %4104
      %4106 = vrot.lane.b32.xlu0 %v3965, 120
      %v4107 = vpop.permute.xlu0 %4106
      %4108 = vrot.lane.b32.xlu0 %v3966, 120
      %v4109 = vpop.permute.xlu0 %4108
      %4110 = vrot.lane.b32.xlu0 %v3967, 120
      %v4111 = vpop.permute.xlu0 %4110
      %4120 = vrot.lane.b32.xlu0 %v3960, 119
      %v4121 = vpop.permute.xlu0 %4120
      %4122 = vrot.lane.b32.xlu0 %v3961, 119
      %v4123 = vpop.permute.xlu0 %4122
      %4124 = vrot.lane.b32.xlu0 %v3962, 119
      %v4125 = vpop.permute.xlu0 %4124
      %4126 = vrot.lane.b32.xlu0 %v3963, 119
      %v4127 = vpop.permute.xlu0 %4126
      %4128 = vrot.lane.b32.xlu0 %v3964, 119
      %v4129 = vpop.permute.xlu0 %4128
      %4130 = vrot.lane.b32.xlu0 %v3965, 119
      %v4131 = vpop.permute.xlu0 %4130
      %4132 = vrot.lane.b32.xlu0 %v3966, 119
      %v4133 = vpop.permute.xlu0 %4132
      %4134 = vrot.lane.b32.xlu0 %v3967, 119
      %v4135 = vpop.permute.xlu0 %4134
      %4144 = vrot.lane.b32.xlu0 %v3960, 118
      %v4145 = vpop.permute.xlu0 %4144
      %4146 = vrot.lane.b32.xlu0 %v3961, 118
      %v4147 = vpop.permute.xlu0 %4146
      %4148 = vrot.lane.b32.xlu0 %v3962, 118
      %v4149 = vpop.permute.xlu0 %4148
      %4150 = vrot.lane.b32.xlu0 %v3963, 118
      %v4151 = vpop.permute.xlu0 %4150
      %4152 = vrot.lane.b32.xlu0 %v3964, 118
      %v4153 = vpop.permute.xlu0 %4152
      %4154 = vrot.lane.b32.xlu0 %v3965, 118
      %v4155 = vpop.permute.xlu0 %4154
      %4156 = vrot.lane.b32.xlu0 %v3966, 118
      %v4157 = vpop.permute.xlu0 %4156
      %4158 = vrot.lane.b32.xlu0 %v3967, 118
      %v4159 = vpop.permute.xlu0 %4158
      %v4168 = vld [vmem:[%s63] sm:$0xff]
      %v4169 = vld [vmem:[%s63 + $0x8] sm:$0xff]
      %v4170 = vld [vmem:[%s63 + $0x10] sm:$0xff]
      %v4171 = vld [vmem:[%s63 + $0x18] sm:$0xff]
      %v4172 = vld [vmem:[%s63 + $0x20] sm:$0xff]
      %v4173 = vld [vmem:[%s63 + $0x28] sm:$0xff]
      %v4174 = vld [vmem:[%s63 + $0x30] sm:$0xff]
      %v4175 = vld [vmem:[%s63 + $0x38] sm:$0xff]
      %v4176 = vld [vmem:[%s63 + $0x40] sm:$0xff]
      %v4177 = vld [vmem:[%s63 + $0x48] sm:$0xff]
      %v4178 = vld [vmem:[%s63 + $0x50] sm:$0xff]
      %v4179 = vld [vmem:[%s63 + $0x58] sm:$0xff]
      %v4180 = vld [vmem:[%s63 + $0x60] sm:$0xff]
      %v4181 = vld [vmem:[%s63 + $0x68] sm:$0xff]
      %v4182 = vld [vmem:[%s63 + $0x70] sm:$0xff]
      %v4183 = vld [vmem:[%s63 + $0x78] sm:$0xff]
      %v4184 = vld [vmem:[%s63 + $0x80] sm:$0xff]
      %v4185 = vld [vmem:[%s63 + $0x88] sm:$0xff]
      %v4186 = vld [vmem:[%s63 + $0x90] sm:$0xff]
      %v4187 = vld [vmem:[%s63 + $0x98] sm:$0xff]
      %v4188 = vld [vmem:[%s63 + $0xa0] sm:$0xff]
      %v4189 = vld [vmem:[%s63 + $0xa8] sm:$0xff]
      %v4190 = vld [vmem:[%s63 + $0xb0] sm:$0xff]
      %v4191 = vld [vmem:[%s63 + $0xb8] sm:$0xff]
      %v4192 = vld [vmem:[%s63 + $0xc0] sm:$0xff]
      %v4193 = vld [vmem:[%s63 + $0xc8] sm:$0xff]
      %v4194 = vld [vmem:[%s63 + $0xd0] sm:$0xff]
      %v4195 = vld [vmem:[%s63 + $0xd8] sm:$0xff]
      %v4196 = vld [vmem:[%s63 + $0xe0] sm:$0xff]
      %v4197 = vld [vmem:[%s63 + $0xe8] sm:$0xff]
      %v4198 = vld [vmem:[%s63 + $0xf0] sm:$0xff]
      %v4199 = vld [vmem:[%s63 + $0xf8] sm:$0xff]
      %v4200 = vld [vmem:[%s63 + $0x100] sm:$0xff]
      %v4201 = vld [vmem:[%s63 + $0x108] sm:$0xff]
      %v4202 = vld [vmem:[%s63 + $0x110] sm:$0xff]
      %v4203 = vld [vmem:[%s63 + $0x118] sm:$0xff]
      %v4204 = vld [vmem:[%s63 + $0x120] sm:$0xff]
      %v4205 = vld [vmem:[%s63 + $0x128] sm:$0xff]
      %v4206 = vld [vmem:[%s63 + $0x130] sm:$0xff]
      %v4207 = vld [vmem:[%s63 + $0x138] sm:$0xff]
      %v4208 = vld [vmem:[%s65] sm:$0xff]
      %v4209 = vld [vmem:[%s65 + $0x8] sm:$0xff]
      %v4210 = vld [vmem:[%s65 + $0x10] sm:$0xff]
      %v4211 = vld [vmem:[%s65 + $0x18] sm:$0xff]
      %v4212 = vld [vmem:[%s65 + $0x20] sm:$0xff]
      %v4213 = vld [vmem:[%s65 + $0x28] sm:$0xff]
      %v4214 = vld [vmem:[%s65 + $0x30] sm:$0xff]
      %v4215 = vld [vmem:[%s65 + $0x38] sm:$0xff]
      %4217 = vset.pattern.permute.xlu0 0
      %4218 = vperm.xlu0 %4217, %v4208
      %v4219 = vpop.permute.xlu0 %4218
      %4222 = vset.pattern.permute.xlu0 0
      %4223 = vperm.xlu0 %4222, %v4209
      %v4224 = vpop.permute.xlu0 %4223
      %4227 = vset.pattern.permute.xlu0 0
      %4228 = vperm.xlu0 %4227, %v4210
      %v4229 = vpop.permute.xlu0 %4228
      %4232 = vset.pattern.permute.xlu0 0
      %4233 = vperm.xlu0 %4232, %v4211
      %v4234 = vpop.permute.xlu0 %4233
      %4237 = vset.pattern.permute.xlu0 0
      %4238 = vperm.xlu0 %4237, %v4212
      %v4239 = vpop.permute.xlu0 %4238
      %4242 = vset.pattern.permute.xlu0 0
      %4243 = vperm.xlu0 %4242, %v4213
      %v4244 = vpop.permute.xlu0 %4243
      %4247 = vset.pattern.permute.xlu0 0
      %4248 = vperm.xlu0 %4247, %v4214
      %v4249 = vpop.permute.xlu0 %4248
      %4252 = vset.pattern.permute.xlu0 0
      %4253 = vperm.xlu0 %4252, %v4215
      %v4254 = vpop.permute.xlu0 %4253
      %vm4256 = vcmask 523264
      %v4258 = vsel %vm4256, %v4172, 0
      %v4261 = vsel %vm4256, %v4177, 0
      %v4264 = vsel %vm4256, %v4182, 0
      %v4267 = vsel %vm4256, %v4187, 0
      %v4270 = vsel %vm4256, %v4192, 0
      %v4273 = vsel %vm4256, %v4197, 0
      %v4276 = vsel %vm4256, %v4202, 0
      %v4279 = vsel %vm4256, %v4207, 0
      %4281 = vmatpush.msra.mxu0 %v3991
      %4282 = vmatpush.msra.mxu0 %v3989
      %4283 = vmatpush.msra.mxu0 %v3987
      %4284 = vmatpush.msra.mxu0 %v3985
      %4285 = vmatpush.msra.mxu0 %v3983
      %4286 = vmatpush.msra.mxu0 %v3981
      %4287 = vmatpush.msra.mxu0 %v3979
      %4288 = vmatpush.msra.mxu0 %v3977
      %4289 = vmatpush.msra.mxu0 %v3967
      %4290 = vmatpush.msra.mxu0 %v3966
      %4291 = vmatpush.msra.mxu0 %v3965
      %4292 = vmatpush.msra.mxu0 %v3964
      %4293 = vmatpush.msra.mxu0 %v3963
      %4294 = vmatpush.msra.mxu0 %v3962
      %4295 = vmatpush.msra.mxu0 %v3961
      %4296 = vmatpush.msra.mxu0 %v3960
      %4297 = vmatmul.f32.gmra.mxu0 %v4168
      %v4298 = vpop.f32.mrf.mxu0
      %v4299 = vadd.f32 %v4219, %v4298
      %4300 = vmatmul.f32.gmra.mxu0 %v4173
      %v4301 = vpop.f32.mrf.mxu0
      %v4302 = vadd.f32 %v4224, %v4301
      %4303 = vmatmul.f32.gmra.mxu0 %v4178
      %v4304 = vpop.f32.mrf.mxu0
      %v4305 = vadd.f32 %v4229, %v4304
      %4306 = vmatmul.f32.gmra.mxu0 %v4183
      %v4307 = vpop.f32.mrf.mxu0
      %v4308 = vadd.f32 %v4234, %v4307
      %4309 = vmatmul.f32.gmra.mxu0 %v4188
      %v4310 = vpop.f32.mrf.mxu0
      %v4311 = vadd.f32 %v4239, %v4310
      %4312 = vmatmul.f32.gmra.mxu0 %v4193
      %v4313 = vpop.f32.mrf.mxu0
      %v4314 = vadd.f32 %v4244, %v4313
      %4315 = vmatmul.f32.gmra.mxu0 %v4198
      %v4316 = vpop.f32.mrf.mxu0
      %v4317 = vadd.f32 %v4249, %v4316
      %4318 = vmatmul.f32.gmra.mxu0 %v4203
      %v4319 = vpop.f32.mrf.mxu0
      %v4320 = vadd.f32 %v4254, %v4319
      %4321 = vdwg.mxu0
      %4322 = vmatpush.msra.mxu0 %v4039
      %4323 = vmatpush.msra.mxu0 %v4037
      %4324 = vmatpush.msra.mxu0 %v4035
      %4325 = vmatpush.msra.mxu0 %v4033
      %4326 = vmatpush.msra.mxu0 %v4031
      %4327 = vmatpush.msra.mxu0 %v4029
      %4328 = vmatpush.msra.mxu0 %v4027
      %4329 = vmatpush.msra.mxu0 %v4025
      %4330 = vmatpush.msra.mxu0 %v4015
      %4331 = vmatpush.msra.mxu0 %v4013
      %4332 = vmatpush.msra.mxu0 %v4011
      %4333 = vmatpush.msra.mxu0 %v4009
      %4334 = vmatpush.msra.mxu0 %v4007
      %4335 = vmatpush.msra.mxu0 %v4005
      %4336 = vmatpush.msra.mxu0 %v4003
      %4337 = vmatpush.msra.mxu0 %v4001
      %4338 = vmatmul.f32.gmra.mxu0 %v4169
      %v4339 = vpop.f32.mrf.mxu0
      %v4340 = vadd.f32 %v4299, %v4339
      %4341 = vmatmul.f32.gmra.mxu0 %v4174
      %v4342 = vpop.f32.mrf.mxu0
      %v4343 = vadd.f32 %v4302, %v4342
      %4344 = vmatmul.f32.gmra.mxu0 %v4179
      %v4345 = vpop.f32.mrf.mxu0
      %v4346 = vadd.f32 %v4305, %v4345
      %4347 = vmatmul.f32.gmra.mxu0 %v4184
      %v4348 = vpop.f32.mrf.mxu0
      %v4349 = vadd.f32 %v4308, %v4348
      %4350 = vmatmul.f32.gmra.mxu0 %v4189
      %v4351 = vpop.f32.mrf.mxu0
      %v4352 = vadd.f32 %v4311, %v4351
      %4353 = vmatmul.f32.gmra.mxu0 %v4194
      %v4354 = vpop.f32.mrf.mxu0
      %v4355 = vadd.f32 %v4314, %v4354
      %4356 = vmatmul.f32.gmra.mxu0 %v4199
      %v4357 = vpop.f32.mrf.mxu0
      %v4358 = vadd.f32 %v4317, %v4357
      %4359 = vmatmul.f32.gmra.mxu0 %v4204
      %v4360 = vpop.f32.mrf.mxu0
      %v4361 = vadd.f32 %v4320, %v4360
      %4362 = vdwg.mxu0
      %4363 = vmatpush.msra.mxu0 %v4087
      %4364 = vmatpush.msra.mxu0 %v4085
      %4365 = vmatpush.msra.mxu0 %v4083
      %4366 = vmatpush.msra.mxu0 %v4081
      %4367 = vmatpush.msra.mxu0 %v4079
      %4368 = vmatpush.msra.mxu0 %v4077
      %4369 = vmatpush.msra.mxu0 %v4075
      %4370 = vmatpush.msra.mxu0 %v4073
      %4371 = vmatpush.msra.mxu0 %v4063
      %4372 = vmatpush.msra.mxu0 %v4061
      %4373 = vmatpush.msra.mxu0 %v4059
      %4374 = vmatpush.msra.mxu0 %v4057
      %4375 = vmatpush.msra.mxu0 %v4055
      %4376 = vmatpush.msra.mxu0 %v4053
      %4377 = vmatpush.msra.mxu0 %v4051
      %4378 = vmatpush.msra.mxu0 %v4049
      %4379 = vmatmul.f32.gmra.mxu0 %v4170
      %v4380 = vpop.f32.mrf.mxu0
      %v4381 = vadd.f32 %v4340, %v4380
      %4382 = vmatmul.f32.gmra.mxu0 %v4175
      %v4383 = vpop.f32.mrf.mxu0
      %v4384 = vadd.f32 %v4343, %v4383
      %4385 = vmatmul.f32.gmra.mxu0 %v4180
      %v4386 = vpop.f32.mrf.mxu0
      %v4387 = vadd.f32 %v4346, %v4386
      %4388 = vmatmul.f32.gmra.mxu0 %v4185
      %v4389 = vpop.f32.mrf.mxu0
      %v4390 = vadd.f32 %v4349, %v4389
      %4391 = vmatmul.f32.gmra.mxu0 %v4190
      %v4392 = vpop.f32.mrf.mxu0
      %v4393 = vadd.f32 %v4352, %v4392
      %4394 = vmatmul.f32.gmra.mxu0 %v4195
      %v4395 = vpop.f32.mrf.mxu0
      %v4396 = vadd.f32 %v4355, %v4395
      %4397 = vmatmul.f32.gmra.mxu0 %v4200
      %v4398 = vpop.f32.mrf.mxu0
      %v4399 = vadd.f32 %v4358, %v4398
      %4400 = vmatmul.f32.gmra.mxu0 %v4205
      %v4401 = vpop.f32.mrf.mxu0
      %v4402 = vadd.f32 %v4361, %v4401
      %4403 = vdwg.mxu0
      %4404 = vmatpush.msra.mxu0 %v4135
      %4405 = vmatpush.msra.mxu0 %v4133
      %4406 = vmatpush.msra.mxu0 %v4131
      %4407 = vmatpush.msra.mxu0 %v4129
      %4408 = vmatpush.msra.mxu0 %v4127
      %4409 = vmatpush.msra.mxu0 %v4125
      %4410 = vmatpush.msra.mxu0 %v4123
      %4411 = vmatpush.msra.mxu0 %v4121
      %4412 = vmatpush.msra.mxu0 %v4111
      %4413 = vmatpush.msra.mxu0 %v4109
      %4414 = vmatpush.msra.mxu0 %v4107
      %4415 = vmatpush.msra.mxu0 %v4105
      %4416 = vmatpush.msra.mxu0 %v4103
      %4417 = vmatpush.msra.mxu0 %v4101
      %4418 = vmatpush.msra.mxu0 %v4099
      %4419 = vmatpush.msra.mxu0 %v4097
      %4420 = vmatmul.f32.gmra.mxu0 %v4171
      %v4421 = vpop.f32.mrf.mxu0
      %v4422 = vadd.f32 %v4381, %v4421
      %4423 = vmatmul.f32.gmra.mxu0 %v4176
      %v4424 = vpop.f32.mrf.mxu0
      %v4425 = vadd.f32 %v4384, %v4424
      %4426 = vmatmul.f32.gmra.mxu0 %v4181
      %v4427 = vpop.f32.mrf.mxu0
      %v4428 = vadd.f32 %v4387, %v4427
      %4429 = vmatmul.f32.gmra.mxu0 %v4186
      %v4430 = vpop.f32.mrf.mxu0
      %v4431 = vadd.f32 %v4390, %v4430
      %4432 = vmatmul.f32.gmra.mxu0 %v4191
      %v4433 = vpop.f32.mrf.mxu0
      %v4434 = vadd.f32 %v4393, %v4433
      %4435 = vmatmul.f32.gmra.mxu0 %v4196
      %v4436 = vpop.f32.mrf.mxu0
      %v4437 = vadd.f32 %v4396, %v4436
      %4438 = vmatmul.f32.gmra.mxu0 %v4201
      %v4439 = vpop.f32.mrf.mxu0
      %v4440 = vadd.f32 %v4399, %v4439
      %4441 = vmatmul.f32.gmra.mxu0 %v4206
      %v4442 = vpop.f32.mrf.mxu0
      %v4443 = vadd.f32 %v4402, %v4442
      %4444 = vdwg.mxu0
      %4445 = vmatpush.msra.mxu0 0.0
      %4446 = vmatpush.msra.mxu0 0.0
      %4447 = vmatpush.msra.mxu0 0.0
      %4448 = vmatpush.msra.mxu0 0.0
      %4449 = vmatpush.msra.mxu0 0.0
      %4450 = vmatpush.msra.mxu0 0.0
      %4451 = vmatpush.msra.mxu0 0.0
      %4452 = vmatpush.msra.mxu0 0.0
      %4453 = vmatpush.msra.mxu0 %v4159
      %4454 = vmatpush.msra.mxu0 %v4157
      %4455 = vmatpush.msra.mxu0 %v4155
      %4456 = vmatpush.msra.mxu0 %v4153
      %4457 = vmatpush.msra.mxu0 %v4151
      %4458 = vmatpush.msra.mxu0 %v4149
      %4459 = vmatpush.msra.mxu0 %v4147
      %4460 = vmatpush.msra.mxu0 %v4145
      %4461 = vmatmul.f32.gmra.mxu0 %v4258
      %v4462 = vpop.f32.mrf.mxu0
      %v4463 = vadd.f32 %v4422, %v4462
      %4464 = vmatmul.f32.gmra.mxu0 %v4261
      %v4465 = vpop.f32.mrf.mxu0
      %v4466 = vadd.f32 %v4425, %v4465
      %4467 = vmatmul.f32.gmra.mxu0 %v4264
      %v4468 = vpop.f32.mrf.mxu0
      %v4469 = vadd.f32 %v4428, %v4468
      %4470 = vmatmul.f32.gmra.mxu0 %v4267
      %v4471 = vpop.f32.mrf.mxu0
      %v4472 = vadd.f32 %v4431, %v4471
      %4473 = vmatmul.f32.gmra.mxu0 %v4270
      %v4474 = vpop.f32.mrf.mxu0
      %v4475 = vadd.f32 %v4434, %v4474
      %4476 = vmatmul.f32.gmra.mxu0 %v4273
      %v4477 = vpop.f32.mrf.mxu0
      %v4478 = vadd.f32 %v4437, %v4477
      %4479 = vmatmul.f32.gmra.mxu0 %v4276
      %v4480 = vpop.f32.mrf.mxu0
      %v4481 = vadd.f32 %v4440, %v4480
      %4482 = vmatmul.f32.gmra.mxu0 %v4279
      %v4483 = vpop.f32.mrf.mxu0
      %v4484 = vadd.f32 %v4443, %v4483
      %4485 = vdwg.mxu0
      %v4486 = vmul.f32 %v4463, %v3433
      %v4487 = vmul.f32 %v4466, %v3433
      %v4488 = vmul.f32 %v4469, %v3433
      %v4489 = vmul.f32 %v4472, %v3433
      %v4490 = vmul.f32 %v4475, %v3433
      %v4491 = vmul.f32 %v4478, %v3433
      %v4492 = vmul.f32 %v4481, %v3433
      %v4493 = vmul.f32 %v4484, %v3433
      %4502 = vrot.lane.b32.xlu0 %v4486, 5
      %v4503 = vpop.permute.xlu0 %4502
      %4504 = vrot.lane.b32.xlu0 %v4487, 5
      %v4505 = vpop.permute.xlu0 %4504
      %4506 = vrot.lane.b32.xlu0 %v4488, 5
      %v4507 = vpop.permute.xlu0 %4506
      %4508 = vrot.lane.b32.xlu0 %v4489, 5
      %v4509 = vpop.permute.xlu0 %4508
      %4510 = vrot.lane.b32.xlu0 %v4490, 5
      %v4511 = vpop.permute.xlu0 %4510
      %4512 = vrot.lane.b32.xlu0 %v4491, 5
      %v4513 = vpop.permute.xlu0 %4512
      %4514 = vrot.lane.b32.xlu0 %v4492, 5
      %v4515 = vpop.permute.xlu0 %4514
      %4516 = vrot.lane.b32.xlu0 %v4493, 5
      %v4517 = vpop.permute.xlu0 %4516
      %v4526 = vsel %vm3455, 0.0, %v4503
      %v4527 = vsel %vm3455, 0.0, %v4505
      %v4528 = vsel %vm3455, 0.0, %v4507
      %v4529 = vsel %vm3455, 0.0, %v4509
      %v4530 = vsel %vm3455, 0.0, %v4511
      %v4531 = vsel %vm3455, 0.0, %v4513
      %v4532 = vsel %vm3455, 0.0, %v4515
      %v4533 = vsel %vm3455, 0.0, %v4517
      %v4534 = vsel %vm3460, %v4526, 0.0
      %v4535 = vsel %vm3460, %v4527, 0.0
      %v4536 = vsel %vm3460, %v4528, 0.0
      %v4537 = vsel %vm3460, %v4529, 0.0
      %v4538 = vsel %vm3460, %v4530, 0.0
      %v4539 = vsel %vm3460, %v4531, 0.0
      %v4540 = vsel %vm3460, %v4532, 0.0
      %v4541 = vsel %vm3460, %v4533, 0.0
      %s4542 = scalar_lea.vmem %s67, 128
      %v4543 = vld [vmem:[%s4542] sm:$0xff]
      %v4544 = vld [vmem:[%s4542 + $0x8] sm:$0xff]
      %v4545 = vld [vmem:[%s4542 + $0x10] sm:$0xff]
      %v4546 = vld [vmem:[%s4542 + $0x18] sm:$0xff]
      %4555 = vrot.lane.b32.xlu0 %v4534, 123
      %v4556 = vpop.permute.xlu0 %4555
      %4557 = vrot.lane.b32.xlu0 %v4535, 123
      %v4558 = vpop.permute.xlu0 %4557
      %4559 = vrot.lane.b32.xlu0 %v4536, 123
      %v4560 = vpop.permute.xlu0 %4559
      %4561 = vrot.lane.b32.xlu0 %v4537, 123
      %v4562 = vpop.permute.xlu0 %4561
      %4563 = vrot.lane.b32.xlu0 %v4538, 123
      %v4564 = vpop.permute.xlu0 %4563
      %4565 = vrot.lane.b32.xlu0 %v4539, 123
      %v4566 = vpop.permute.xlu0 %4565
      %4567 = vrot.lane.b32.xlu0 %v4540, 123
      %v4568 = vpop.permute.xlu0 %4567
      %4569 = vrot.lane.b32.xlu0 %v4541, 123
      %v4570 = vpop.permute.xlu0 %4569
      %v4580 = vsel %vm4256, %v4543, 0
      %v4583 = vsel %vm4256, %v4544, 0
      %v4586 = vsel %vm4256, %v4545, 0
      %v4589 = vsel %vm4256, %v4546, 0
      %4591 = vmatpush.msra.mxu0 0.0
      %4592 = vmatpush.msra.mxu0 0.0
      %4593 = vmatpush.msra.mxu0 0.0
      %4594 = vmatpush.msra.mxu0 0.0
      %4595 = vmatpush.msra.mxu0 0.0
      %4596 = vmatpush.msra.mxu0 0.0
      %4597 = vmatpush.msra.mxu0 0.0
      %4598 = vmatpush.msra.mxu0 0.0
      %4599 = vmatpush.msra.mxu0 %v4570
      %4600 = vmatpush.msra.mxu0 %v4568
      %4601 = vmatpush.msra.mxu0 %v4566
      %4602 = vmatpush.msra.mxu0 %v4564
      %4603 = vmatpush.msra.mxu0 %v4562
      %4604 = vmatpush.msra.mxu0 %v4560
      %4605 = vmatpush.msra.mxu0 %v4558
      %4606 = vmatpush.msra.mxu0 %v4556
      %4607 = vmatmul.f32.gmra.mxu0 %v4580
      %v4608 = vpop.f32.mrf.mxu0
      %v4609 = vadd.f32 0.0, %v4608
      %4610 = vmatmul.f32.gmra.mxu0 %v4583
      %v4611 = vpop.f32.mrf.mxu0
      %v4612 = vadd.f32 0.0, %v4611
      %4613 = vmatmul.f32.gmra.mxu0 %v4586
      %v4614 = vpop.f32.mrf.mxu0
      %v4615 = vadd.f32 0.0, %v4614
      %4616 = vmatmul.f32.gmra.mxu0 %v4589
      %v4617 = vpop.f32.mrf.mxu0
      %v4618 = vadd.f32 0.0, %v4617
      %4619 = vdwg.mxu0
      %s4620 = scalar_lea.vmem %s67, 96
      %v4621 = vld [vmem:[%s4620] sm:$0xff]
      %v4622 = vld [vmem:[%s4620 + $0x8] sm:$0xff]
      %v4623 = vld [vmem:[%s4620 + $0x10] sm:$0xff]
      %v4624 = vld [vmem:[%s4620 + $0x18] sm:$0xff]
      %s4625 = scalar_lea.vmem %s67, 160
      %v4626 = vld [vmem:[%s4625] sm:$0xff]
      %v4627 = vld [vmem:[%s4625 + $0x8] sm:$0xff]
      %v4628 = vld [vmem:[%s4625 + $0x10] sm:$0xff]
      %v4629 = vld [vmem:[%s4625 + $0x18] sm:$0xff]
      %4630 = vrot.lane.b32.xlu0 %v4534, 122
      %v4631 = vpop.permute.xlu0 %4630
      %4632 = vrot.lane.b32.xlu0 %v4535, 122
      %v4633 = vpop.permute.xlu0 %4632
      %4634 = vrot.lane.b32.xlu0 %v4536, 122
      %v4635 = vpop.permute.xlu0 %4634
      %4636 = vrot.lane.b32.xlu0 %v4537, 122
      %v4637 = vpop.permute.xlu0 %4636
      %4638 = vrot.lane.b32.xlu0 %v4538, 122
      %v4639 = vpop.permute.xlu0 %4638
      %4640 = vrot.lane.b32.xlu0 %v4539, 122
      %v4641 = vpop.permute.xlu0 %4640
      %4642 = vrot.lane.b32.xlu0 %v4540, 122
      %v4643 = vpop.permute.xlu0 %4642
      %4644 = vrot.lane.b32.xlu0 %v4541, 122
      %v4645 = vpop.permute.xlu0 %4644
      %v4655 = vsel %vm4256, %v4626, 0
      %v4658 = vsel %vm4256, %v4627, 0
      %v4661 = vsel %vm4256, %v4628, 0
      %v4664 = vsel %vm4256, %v4629, 0
      %4666 = vmatpush.msra.mxu0 0.0
      %4667 = vmatpush.msra.mxu0 0.0
      %4668 = vmatpush.msra.mxu0 0.0
      %4669 = vmatpush.msra.mxu0 0.0
      %4670 = vmatpush.msra.mxu0 0.0
      %4671 = vmatpush.msra.mxu0 0.0
      %4672 = vmatpush.msra.mxu0 0.0
      %4673 = vmatpush.msra.mxu0 0.0
      %4674 = vmatpush.msra.mxu0 %v4645
      %4675 = vmatpush.msra.mxu0 %v4643
      %4676 = vmatpush.msra.mxu0 %v4641
      %4677 = vmatpush.msra.mxu0 %v4639
      %4678 = vmatpush.msra.mxu0 %v4637
      %4679 = vmatpush.msra.mxu0 %v4635
      %4680 = vmatpush.msra.mxu0 %v4633
      %4681 = vmatpush.msra.mxu0 %v4631
      %4682 = vmatmul.f32.gmra.mxu0 %v4655
      %v4683 = vpop.f32.mrf.mxu0
      %v4684 = vadd.f32 0.0, %v4683
      %4685 = vmatmul.f32.gmra.mxu0 %v4658
      %v4686 = vpop.f32.mrf.mxu0
      %v4687 = vadd.f32 0.0, %v4686
      %4688 = vmatmul.f32.gmra.mxu0 %v4661
      %v4689 = vpop.f32.mrf.mxu0
      %v4690 = vadd.f32 0.0, %v4689
      %4691 = vmatmul.f32.gmra.mxu0 %v4664
      %v4692 = vpop.f32.mrf.mxu0
      %v4693 = vadd.f32 0.0, %v4692
      %4694 = vdwg.mxu0
      %v4696 = vsel %vm4256, %v4621, 0
      %v4699 = vsel %vm4256, %v4622, 0
      %v4702 = vsel %vm4256, %v4623, 0
      %v4705 = vsel %vm4256, %v4624, 0
      %4707 = vmatpush.msra.mxu0 0.0
      %4708 = vmatpush.msra.mxu0 0.0
      %4709 = vmatpush.msra.mxu0 0.0
      %4710 = vmatpush.msra.mxu0 0.0
      %4711 = vmatpush.msra.mxu0 0.0
      %4712 = vmatpush.msra.mxu0 0.0
      %4713 = vmatpush.msra.mxu0 0.0
      %4714 = vmatpush.msra.mxu0 0.0
      %4715 = vmatpush.msra.mxu0 %v4570
      %4716 = vmatpush.msra.mxu0 %v4568
      %4717 = vmatpush.msra.mxu0 %v4566
      %4718 = vmatpush.msra.mxu0 %v4564
      %4719 = vmatpush.msra.mxu0 %v4562
      %4720 = vmatpush.msra.mxu0 %v4560
      %4721 = vmatpush.msra.mxu0 %v4558
      %4722 = vmatpush.msra.mxu0 %v4556
      %4723 = vmatmul.f32.gmra.mxu0 %v4696
      %v4724 = vpop.f32.mrf.mxu0
      %v4725 = vadd.f32 %v4684, %v4724
      %4726 = vmatmul.f32.gmra.mxu0 %v4699
      %v4727 = vpop.f32.mrf.mxu0
      %v4728 = vadd.f32 %v4687, %v4727
      %4729 = vmatmul.f32.gmra.mxu0 %v4702
      %v4730 = vpop.f32.mrf.mxu0
      %v4731 = vadd.f32 %v4690, %v4730
      %4732 = vmatmul.f32.gmra.mxu0 %v4705
      %v4733 = vpop.f32.mrf.mxu0
      %v4734 = vadd.f32 %v4693, %v4733
      %4735 = vdwg.mxu0
      %s4736 = scalar_lea.vmem %s67, 32
      %v4737 = vld [vmem:[%s4736] sm:$0xff]
      %v4738 = vld [vmem:[%s4736 + $0x8] sm:$0xff]
      %v4739 = vld [vmem:[%s4736 + $0x10] sm:$0xff]
      %v4740 = vld [vmem:[%s4736 + $0x18] sm:$0xff]
      %s4741 = scalar_lea.vmem %s67, 224
      %v4742 = vld [vmem:[%s4741] sm:$0xff]
      %v4743 = vld [vmem:[%s4741 + $0x8] sm:$0xff]
      %v4744 = vld [vmem:[%s4741 + $0x10] sm:$0xff]
      %v4745 = vld [vmem:[%s4741 + $0x18] sm:$0xff]
      %4746 = vrot.lane.b32.xlu0 %v4534, 119
      %v4747 = vpop.permute.xlu0 %4746
      %4748 = vrot.lane.b32.xlu0 %v4535, 119
      %v4749 = vpop.permute.xlu0 %4748
      %4750 = vrot.lane.b32.xlu0 %v4536, 119
      %v4751 = vpop.permute.xlu0 %4750
      %4752 = vrot.lane.b32.xlu0 %v4537, 119
      %v4753 = vpop.permute.xlu0 %4752
      %4754 = vrot.lane.b32.xlu0 %v4538, 119
      %v4755 = vpop.permute.xlu0 %4754
      %4756 = vrot.lane.b32.xlu0 %v4539, 119
      %v4757 = vpop.permute.xlu0 %4756
      %4758 = vrot.lane.b32.xlu0 %v4540, 119
      %v4759 = vpop.permute.xlu0 %4758
      %4760 = vrot.lane.b32.xlu0 %v4541, 119
      %v4761 = vpop.permute.xlu0 %4760
      %v4771 = vsel %vm4256, %v4742, 0
      %v4774 = vsel %vm4256, %v4743, 0
      %v4777 = vsel %vm4256, %v4744, 0
      %v4780 = vsel %vm4256, %v4745, 0
      %4782 = vmatpush.msra.mxu0 0.0
      %4783 = vmatpush.msra.mxu0 0.0
      %4784 = vmatpush.msra.mxu0 0.0
      %4785 = vmatpush.msra.mxu0 0.0
      %4786 = vmatpush.msra.mxu0 0.0
      %4787 = vmatpush.msra.mxu0 0.0
      %4788 = vmatpush.msra.mxu0 0.0
      %4789 = vmatpush.msra.mxu0 0.0
      %4790 = vmatpush.msra.mxu0 %v4761
      %4791 = vmatpush.msra.mxu0 %v4759
      %4792 = vmatpush.msra.mxu0 %v4757
      %4793 = vmatpush.msra.mxu0 %v4755
      %4794 = vmatpush.msra.mxu0 %v4753
      %4795 = vmatpush.msra.mxu0 %v4751
      %4796 = vmatpush.msra.mxu0 %v4749
      %4797 = vmatpush.msra.mxu0 %v4747
      %4798 = vmatmul.f32.gmra.mxu0 %v4771
      %v4799 = vpop.f32.mrf.mxu0
      %v4800 = vadd.f32 0.0, %v4799
      %4801 = vmatmul.f32.gmra.mxu0 %v4774
      %v4802 = vpop.f32.mrf.mxu0
      %v4803 = vadd.f32 0.0, %v4802
      %4804 = vmatmul.f32.gmra.mxu0 %v4777
      %v4805 = vpop.f32.mrf.mxu0
      %v4806 = vadd.f32 0.0, %v4805
      %4807 = vmatmul.f32.gmra.mxu0 %v4780
      %v4808 = vpop.f32.mrf.mxu0
      %v4809 = vadd.f32 0.0, %v4808
      %4810 = vdwg.mxu0
      %v4812 = vsel %vm4256, %v4737, 0
      %v4815 = vsel %vm4256, %v4738, 0
      %v4818 = vsel %vm4256, %v4739, 0
      %v4821 = vsel %vm4256, %v4740, 0
      %4823 = vmatpush.msra.mxu0 0.0
      %4824 = vmatpush.msra.mxu0 0.0
      %4825 = vmatpush.msra.mxu0 0.0
      %4826 = vmatpush.msra.mxu0 0.0
      %4827 = vmatpush.msra.mxu0 0.0
      %4828 = vmatpush.msra.mxu0 0.0
      %4829 = vmatpush.msra.mxu0 0.0
      %4830 = vmatpush.msra.mxu0 0.0
      %4831 = vmatpush.msra.mxu0 %v4570
      %4832 = vmatpush.msra.mxu0 %v4568
      %4833 = vmatpush.msra.mxu0 %v4566
      %4834 = vmatpush.msra.mxu0 %v4564
      %4835 = vmatpush.msra.mxu0 %v4562
      %4836 = vmatpush.msra.mxu0 %v4560
      %4837 = vmatpush.msra.mxu0 %v4558
      %4838 = vmatpush.msra.mxu0 %v4556
      %4839 = vmatmul.f32.gmra.mxu0 %v4812
      %v4840 = vpop.f32.mrf.mxu0
      %v4841 = vadd.f32 %v4800, %v4840
      %4842 = vmatmul.f32.gmra.mxu0 %v4815
      %v4843 = vpop.f32.mrf.mxu0
      %v4844 = vadd.f32 %v4803, %v4843
      %4845 = vmatmul.f32.gmra.mxu0 %v4818
      %v4846 = vpop.f32.mrf.mxu0
      %v4847 = vadd.f32 %v4806, %v4846
      %4848 = vmatmul.f32.gmra.mxu0 %v4821
      %v4849 = vpop.f32.mrf.mxu0
      %v4850 = vadd.f32 %v4809, %v4849
      %4851 = vdwg.mxu0
      %v4852 = vld [vmem:[%s67] sm:$0xff]
      %v4853 = vld [vmem:[%s67 + $0x8] sm:$0xff]
      %v4854 = vld [vmem:[%s67 + $0x10] sm:$0xff]
      %v4855 = vld [vmem:[%s67 + $0x18] sm:$0xff]
      %s4856 = scalar_lea.vmem %s67, 64
      %v4857 = vld [vmem:[%s4856] sm:$0xff]
      %v4858 = vld [vmem:[%s4856 + $0x8] sm:$0xff]
      %v4859 = vld [vmem:[%s4856 + $0x10] sm:$0xff]
      %v4860 = vld [vmem:[%s4856 + $0x18] sm:$0xff]
      %v4862 = vsel %vm4256, %v4857, 0
      %v4865 = vsel %vm4256, %v4858, 0
      %v4868 = vsel %vm4256, %v4859, 0
      %v4871 = vsel %vm4256, %v4860, 0
      %4873 = vmatpush.msra.mxu0 0.0
      %4874 = vmatpush.msra.mxu0 0.0
      %4875 = vmatpush.msra.mxu0 0.0
      %4876 = vmatpush.msra.mxu0 0.0
      %4877 = vmatpush.msra.mxu0 0.0
      %4878 = vmatpush.msra.mxu0 0.0
      %4879 = vmatpush.msra.mxu0 0.0
      %4880 = vmatpush.msra.mxu0 0.0
      %4881 = vmatpush.msra.mxu0 %v4645
      %4882 = vmatpush.msra.mxu0 %v4643
      %4883 = vmatpush.msra.mxu0 %v4641
      %4884 = vmatpush.msra.mxu0 %v4639
      %4885 = vmatpush.msra.mxu0 %v4637
      %4886 = vmatpush.msra.mxu0 %v4635
      %4887 = vmatpush.msra.mxu0 %v4633
      %4888 = vmatpush.msra.mxu0 %v4631
      %4889 = vmatmul.f32.gmra.mxu0 %v4862
      %v4890 = vpop.f32.mrf.mxu0
      %v4891 = vadd.f32 0.0, %v4890
      %4892 = vmatmul.f32.gmra.mxu0 %v4865
      %v4893 = vpop.f32.mrf.mxu0
      %v4894 = vadd.f32 0.0, %v4893
      %4895 = vmatmul.f32.gmra.mxu0 %v4868
      %v4896 = vpop.f32.mrf.mxu0
      %v4897 = vadd.f32 0.0, %v4896
      %4898 = vmatmul.f32.gmra.mxu0 %v4871
      %v4899 = vpop.f32.mrf.mxu0
      %v4900 = vadd.f32 0.0, %v4899
      %4901 = vdwg.mxu0
      %v4903 = vsel %vm4256, %v4852, 0
      %v4906 = vsel %vm4256, %v4853, 0
      %v4909 = vsel %vm4256, %v4854, 0
      %v4912 = vsel %vm4256, %v4855, 0
      %4914 = vmatpush.msra.mxu0 0.0
      %4915 = vmatpush.msra.mxu0 0.0
      %4916 = vmatpush.msra.mxu0 0.0
      %4917 = vmatpush.msra.mxu0 0.0
      %4918 = vmatpush.msra.mxu0 0.0
      %4919 = vmatpush.msra.mxu0 0.0
      %4920 = vmatpush.msra.mxu0 0.0
      %4921 = vmatpush.msra.mxu0 0.0
      %4922 = vmatpush.msra.mxu0 %v4570
      %4923 = vmatpush.msra.mxu0 %v4568
      %4924 = vmatpush.msra.mxu0 %v4566
      %4925 = vmatpush.msra.mxu0 %v4564
      %4926 = vmatpush.msra.mxu0 %v4562
      %4927 = vmatpush.msra.mxu0 %v4560
      %4928 = vmatpush.msra.mxu0 %v4558
      %4929 = vmatpush.msra.mxu0 %v4556
      %4930 = vmatmul.f32.gmra.mxu0 %v4903
      %v4931 = vpop.f32.mrf.mxu0
      %v4932 = vadd.f32 %v4891, %v4931
      %4933 = vmatmul.f32.gmra.mxu0 %v4906
      %v4934 = vpop.f32.mrf.mxu0
      %v4935 = vadd.f32 %v4894, %v4934
      %4936 = vmatmul.f32.gmra.mxu0 %v4909
      %v4937 = vpop.f32.mrf.mxu0
      %v4938 = vadd.f32 %v4897, %v4937
      %4939 = vmatmul.f32.gmra.mxu0 %v4912
      %v4940 = vpop.f32.mrf.mxu0
      %v4941 = vadd.f32 %v4900, %v4940
      %4942 = vdwg.mxu0
      %s4943 = scalar_lea.vmem %s67, 192
      %v4944 = vld [vmem:[%s4943] sm:$0xff]
      %v4945 = vld [vmem:[%s4943 + $0x8] sm:$0xff]
      %v4946 = vld [vmem:[%s4943 + $0x10] sm:$0xff]
      %v4947 = vld [vmem:[%s4943 + $0x18] sm:$0xff]
      %v4949 = vsel %vm4256, %v4944, 0
      %v4952 = vsel %vm4256, %v4945, 0
      %v4955 = vsel %vm4256, %v4946, 0
      %v4958 = vsel %vm4256, %v4947, 0
      %4960 = vmatpush.msra.mxu0 0.0
      %4961 = vmatpush.msra.mxu0 0.0
      %4962 = vmatpush.msra.mxu0 0.0
      %4963 = vmatpush.msra.mxu0 0.0
      %4964 = vmatpush.msra.mxu0 0.0
      %4965 = vmatpush.msra.mxu0 0.0
      %4966 = vmatpush.msra.mxu0 0.0
      %4967 = vmatpush.msra.mxu0 0.0
      %4968 = vmatpush.msra.mxu0 %v4761
      %4969 = vmatpush.msra.mxu0 %v4759
      %4970 = vmatpush.msra.mxu0 %v4757
      %4971 = vmatpush.msra.mxu0 %v4755
      %4972 = vmatpush.msra.mxu0 %v4753
      %4973 = vmatpush.msra.mxu0 %v4751
      %4974 = vmatpush.msra.mxu0 %v4749
      %4975 = vmatpush.msra.mxu0 %v4747
      %4976 = vmatmul.f32.gmra.mxu0 %v4949
      %v4977 = vpop.f32.mrf.mxu0
      %v4978 = vadd.f32 0.0, %v4977
      %4979 = vmatmul.f32.gmra.mxu0 %v4952
      %v4980 = vpop.f32.mrf.mxu0
      %v4981 = vadd.f32 0.0, %v4980
      %4982 = vmatmul.f32.gmra.mxu0 %v4955
      %v4983 = vpop.f32.mrf.mxu0
      %v4984 = vadd.f32 0.0, %v4983
      %4985 = vmatmul.f32.gmra.mxu0 %v4958
      %v4986 = vpop.f32.mrf.mxu0
      %v4987 = vadd.f32 0.0, %v4986
      %4988 = vdwg.mxu0
      %v4989 = vadd.f32 %v4932, %v4978
      %v4990 = vadd.f32 %v4935, %v4981
      %v4991 = vadd.f32 %v4938, %v4984
      %v4992 = vadd.f32 %v4941, %v4987
      %s4993 = scalar_lea.vmem %s67, 256
      %v4994 = vld [vmem:[%s4993] sm:$0xff]
      %v4995 = vld [vmem:[%s4993 + $0x8] sm:$0xff]
      %v4996 = vld [vmem:[%s4993 + $0x10] sm:$0xff]
      %v4997 = vld [vmem:[%s4993 + $0x18] sm:$0xff]
      %4998 = vrot.lane.b32.xlu0 %v4534, 118
      %v4999 = vpop.permute.xlu0 %4998
      %5000 = vrot.lane.b32.xlu0 %v4535, 118
      %v5001 = vpop.permute.xlu0 %5000
      %5002 = vrot.lane.b32.xlu0 %v4536, 118
      %v5003 = vpop.permute.xlu0 %5002
      %5004 = vrot.lane.b32.xlu0 %v4537, 118
      %v5005 = vpop.permute.xlu0 %5004
      %5006 = vrot.lane.b32.xlu0 %v4538, 118
      %v5007 = vpop.permute.xlu0 %5006
      %5008 = vrot.lane.b32.xlu0 %v4539, 118
      %v5009 = vpop.permute.xlu0 %5008
      %5010 = vrot.lane.b32.xlu0 %v4540, 118
      %v5011 = vpop.permute.xlu0 %5010
      %5012 = vrot.lane.b32.xlu0 %v4541, 118
      %v5013 = vpop.permute.xlu0 %5012
      %v5023 = vsel %vm4256, %v4994, 0
      %v5026 = vsel %vm4256, %v4995, 0
      %v5029 = vsel %vm4256, %v4996, 0
      %v5032 = vsel %vm4256, %v4997, 0
      %5034 = vmatpush.msra.mxu0 0.0
      %5035 = vmatpush.msra.mxu0 0.0
      %5036 = vmatpush.msra.mxu0 0.0
      %5037 = vmatpush.msra.mxu0 0.0
      %5038 = vmatpush.msra.mxu0 0.0
      %5039 = vmatpush.msra.mxu0 0.0
      %5040 = vmatpush.msra.mxu0 0.0
      %5041 = vmatpush.msra.mxu0 0.0
      %5042 = vmatpush.msra.mxu0 %v5013
      %5043 = vmatpush.msra.mxu0 %v5011
      %5044 = vmatpush.msra.mxu0 %v5009
      %5045 = vmatpush.msra.mxu0 %v5007
      %5046 = vmatpush.msra.mxu0 %v5005
      %5047 = vmatpush.msra.mxu0 %v5003
      %5048 = vmatpush.msra.mxu0 %v5001
      %5049 = vmatpush.msra.mxu0 %v4999
      %5050 = vmatmul.f32.gmra.mxu0 %v5023
      %v5051 = vpop.f32.mrf.mxu0
      %v5052 = vadd.f32 0.0, %v5051
      %5053 = vmatmul.f32.gmra.mxu0 %v5026
      %v5054 = vpop.f32.mrf.mxu0
      %v5055 = vadd.f32 0.0, %v5054
      %5056 = vmatmul.f32.gmra.mxu0 %v5029
      %v5057 = vpop.f32.mrf.mxu0
      %v5058 = vadd.f32 0.0, %v5057
      %5059 = vmatmul.f32.gmra.mxu0 %v5032
      %v5060 = vpop.f32.mrf.mxu0
      %v5061 = vadd.f32 0.0, %v5060
      %5062 = vdwg.mxu0
      %v5063 = vadd.f32 %v4989, %v5052
      %v5064 = vadd.f32 %v4990, %v5055
      %v5065 = vadd.f32 %v4991, %v5058
      %v5066 = vadd.f32 %v4992, %v5061
      %v5067 = vld [vmem:[%s113] sm:$0xff]
      %v5068 = vld [vmem:[%s113 + $0x8] sm:$0xff]
      %s5069 = scalar_lea.vmem %s113, 16
      %v5070 = vld [vmem:[%s5069] sm:$0xff]
      %v5071 = vld [vmem:[%s5069 + $0x8] sm:$0xff]
      %v5073 = vsel %vm2581, %v4725, 0
      %v5076 = vsel %vm2581, %v4728, 0
      %v5079 = vsel %vm2581, %v4731, 0
      %v5082 = vsel %vm2581, %v4734, 0
      %5084 = vmatpush.msra.mxu0 0.0
      %5085 = vmatpush.msra.mxu0 0.0
      %5086 = vmatpush.msra.mxu0 0.0
      %5087 = vmatpush.msra.mxu0 0.0
      %5088 = vmatpush.msra.mxu0 0.0
      %5089 = vmatpush.msra.mxu0 0.0
      %5090 = vmatpush.msra.mxu0 0.0
      %5091 = vmatpush.msra.mxu0 0.0
      %5092 = vmatpush.msra.mxu0 0.0
      %5093 = vmatpush.msra.mxu0 0.0
      %5094 = vmatpush.msra.mxu0 0.0
      %5095 = vmatpush.msra.mxu0 0.0
      %5096 = vmatpush.msra.mxu0 0.0
      %5097 = vmatpush.msra.mxu0 0.0
      %5098 = vmatpush.msra.mxu0 %v5071
      %5099 = vmatpush.msra.mxu0 %v5070
      %5100 = vmatmul.f32.gmra.mxu0 %v5073
      %v5101 = vpop.f32.mrf.mxu0
      %v5102 = vadd.f32 0.0, %v5101
      %5103 = vmatmul.f32.gmra.mxu0 %v5076
      %v5104 = vpop.f32.mrf.mxu0
      %v5105 = vadd.f32 0.0, %v5104
      %5106 = vmatmul.f32.gmra.mxu0 %v5079
      %v5107 = vpop.f32.mrf.mxu0
      %v5108 = vadd.f32 0.0, %v5107
      %5109 = vmatmul.f32.gmra.mxu0 %v5082
      %v5110 = vpop.f32.mrf.mxu0
      %v5111 = vadd.f32 0.0, %v5110
      %5112 = vdwg.mxu0
      %v5114 = vsel %vm2581, %v4609, 0
      %v5117 = vsel %vm2581, %v4612, 0
      %v5120 = vsel %vm2581, %v4615, 0
      %v5123 = vsel %vm2581, %v4618, 0
      %5125 = vmatpush.msra.mxu0 0.0
      %5126 = vmatpush.msra.mxu0 0.0
      %5127 = vmatpush.msra.mxu0 0.0
      %5128 = vmatpush.msra.mxu0 0.0
      %5129 = vmatpush.msra.mxu0 0.0
      %5130 = vmatpush.msra.mxu0 0.0
      %5131 = vmatpush.msra.mxu0 0.0
      %5132 = vmatpush.msra.mxu0 0.0
      %5133 = vmatpush.msra.mxu0 0.0
      %5134 = vmatpush.msra.mxu0 0.0
      %5135 = vmatpush.msra.mxu0 0.0
      %5136 = vmatpush.msra.mxu0 0.0
      %5137 = vmatpush.msra.mxu0 0.0
      %5138 = vmatpush.msra.mxu0 0.0
      %5139 = vmatpush.msra.mxu0 %v5068
      %5140 = vmatpush.msra.mxu0 %v5067
      %5141 = vmatmul.f32.gmra.mxu0 %v5114
      %v5142 = vpop.f32.mrf.mxu0
      %v5143 = vadd.f32 %v5102, %v5142
      %5144 = vmatmul.f32.gmra.mxu0 %v5117
      %v5145 = vpop.f32.mrf.mxu0
      %v5146 = vadd.f32 %v5105, %v5145
      %5147 = vmatmul.f32.gmra.mxu0 %v5120
      %v5148 = vpop.f32.mrf.mxu0
      %v5149 = vadd.f32 %v5108, %v5148
      %5150 = vmatmul.f32.gmra.mxu0 %v5123
      %v5151 = vpop.f32.mrf.mxu0
      %v5152 = vadd.f32 %v5111, %v5151
      %5153 = vdwg.mxu0
      %s5154 = scalar_lea.vmem %s113, 32
      %v5155 = vld [vmem:[%s5154] sm:$0xff]
      %v5156 = vld [vmem:[%s5154 + $0x8] sm:$0xff]
      %v5158 = vsel %vm2581, %v4841, 0
      %v5161 = vsel %vm2581, %v4844, 0
      %v5164 = vsel %vm2581, %v4847, 0
      %v5167 = vsel %vm2581, %v4850, 0
      %5169 = vmatpush.msra.mxu0 0.0
      %5170 = vmatpush.msra.mxu0 0.0
      %5171 = vmatpush.msra.mxu0 0.0
      %5172 = vmatpush.msra.mxu0 0.0
      %5173 = vmatpush.msra.mxu0 0.0
      %5174 = vmatpush.msra.mxu0 0.0
      %5175 = vmatpush.msra.mxu0 0.0
      %5176 = vmatpush.msra.mxu0 0.0
      %5177 = vmatpush.msra.mxu0 0.0
      %5178 = vmatpush.msra.mxu0 0.0
      %5179 = vmatpush.msra.mxu0 0.0
      %5180 = vmatpush.msra.mxu0 0.0
      %5181 = vmatpush.msra.mxu0 0.0
      %5182 = vmatpush.msra.mxu0 0.0
      %5183 = vmatpush.msra.mxu0 %v5156
      %5184 = vmatpush.msra.mxu0 %v5155
      %5185 = vmatmul.f32.gmra.mxu0 %v5158
      %v5186 = vpop.f32.mrf.mxu0
      %v5187 = vadd.f32 0.0, %v5186
      %5188 = vmatmul.f32.gmra.mxu0 %v5161
      %v5189 = vpop.f32.mrf.mxu0
      %v5190 = vadd.f32 0.0, %v5189
      %5191 = vmatmul.f32.gmra.mxu0 %v5164
      %v5192 = vpop.f32.mrf.mxu0
      %v5193 = vadd.f32 0.0, %v5192
      %5194 = vmatmul.f32.gmra.mxu0 %v5167
      %v5195 = vpop.f32.mrf.mxu0
      %v5196 = vadd.f32 0.0, %v5195
      %5197 = vdwg.mxu0
      %v5198 = vadd.f32 %v5143, %v5187
      %v5199 = vadd.f32 %v5146, %v5190
      %v5200 = vadd.f32 %v5149, %v5193
      %v5201 = vadd.f32 %v5152, %v5196
      %s5202 = scalar_lea.vmem %s113, 48
      %v5203 = vld [vmem:[%s5202] sm:$0xff]
      %v5204 = vld [vmem:[%s5202 + $0x8] sm:$0xff]
      %v5206 = vsel %vm2581, %v5063, 0
      %v5209 = vsel %vm2581, %v5064, 0
      %v5212 = vsel %vm2581, %v5065, 0
      %v5215 = vsel %vm2581, %v5066, 0
      %5217 = vmatpush.msra.mxu0 0.0
      %5218 = vmatpush.msra.mxu0 0.0
      %5219 = vmatpush.msra.mxu0 0.0
      %5220 = vmatpush.msra.mxu0 0.0
      %5221 = vmatpush.msra.mxu0 0.0
      %5222 = vmatpush.msra.mxu0 0.0
      %5223 = vmatpush.msra.mxu0 0.0
      %5224 = vmatpush.msra.mxu0 0.0
      %5225 = vmatpush.msra.mxu0 0.0
      %5226 = vmatpush.msra.mxu0 0.0
      %5227 = vmatpush.msra.mxu0 0.0
      %5228 = vmatpush.msra.mxu0 0.0
      %5229 = vmatpush.msra.mxu0 0.0
      %5230 = vmatpush.msra.mxu0 0.0
      %5231 = vmatpush.msra.mxu0 %v5204
      %5232 = vmatpush.msra.mxu0 %v5203
      %5233 = vmatmul.f32.gmra.mxu0 %v5206
      %v5234 = vpop.f32.mrf.mxu0
      %v5235 = vadd.f32 0.0, %v5234
      %5236 = vmatmul.f32.gmra.mxu0 %v5209
      %v5237 = vpop.f32.mrf.mxu0
      %v5238 = vadd.f32 0.0, %v5237
      %5239 = vmatmul.f32.gmra.mxu0 %v5212
      %v5240 = vpop.f32.mrf.mxu0
      %v5241 = vadd.f32 0.0, %v5240
      %5242 = vmatmul.f32.gmra.mxu0 %v5215
      %v5243 = vpop.f32.mrf.mxu0
      %v5244 = vadd.f32 0.0, %v5243
      %5245 = vdwg.mxu0
      %v5246 = vadd.f32 %v5198, %v5235
      %v5247 = vadd.f32 %v5199, %v5238
      %v5248 = vadd.f32 %v5200, %v5241
      %v5249 = vadd.f32 %v5201, %v5244
      %v5250 = vld [vmem:[%s69] sm:$0xff]
      %v5251 = vld [vmem:[%s69 + $0x8] sm:$0xff]
      %v5252 = vld [vmem:[%s69 + $0x10] sm:$0xff]
      %v5253 = vld [vmem:[%s69 + $0x18] sm:$0xff]
      %5255 = vset.pattern.permute.xlu0 0
      %5256 = vperm.xlu0 %5255, %v5250
      %v5257 = vpop.permute.xlu0 %5256
      %5260 = vset.pattern.permute.xlu0 0
      %5261 = vperm.xlu0 %5260, %v5251
      %v5262 = vpop.permute.xlu0 %5261
      %5265 = vset.pattern.permute.xlu0 0
      %5266 = vperm.xlu0 %5265, %v5252
      %v5267 = vpop.permute.xlu0 %5266
      %5270 = vset.pattern.permute.xlu0 0
      %5271 = vperm.xlu0 %5270, %v5253
      %v5272 = vpop.permute.xlu0 %5271
      %v5274 = vadd.f32 %v5246, %v5257
      %v5275 = vadd.f32 %v5247, %v5262
      %v5276 = vadd.f32 %v5248, %v5267
      %v5277 = vadd.f32 %v5249, %v5272
      %v5278 = vmul.f32 %v5274, %v2749
      %v5279 = vmul.f32 %v5275, %v2749
      %v5280 = vmul.f32 %v5276, %v2749
      %v5281 = vmul.f32 %v5277, %v2749
      %5286 = vrot.lane.b32.xlu0 %v5278, 7
      %v5287 = vpop.permute.xlu0 %5286
      %5288 = vrot.lane.b32.xlu0 %v5279, 7
      %v5289 = vpop.permute.xlu0 %5288
      %5290 = vrot.lane.b32.xlu0 %v5280, 7
      %v5291 = vpop.permute.xlu0 %5290
      %5292 = vrot.lane.b32.xlu0 %v5281, 7
      %v5293 = vpop.permute.xlu0 %5292
      %v5298 = vsel %vm2761, 0.0, %v5287
      %v5299 = vsel %vm2761, 0.0, %v5289
      %v5300 = vsel %vm2761, 0.0, %v5291
      %v5301 = vsel %vm2761, 0.0, %v5293
      %v5302 = vsel %vm2764, %v5298, 0.0
      %v5303 = vsel %vm2764, %v5299, 0.0
      %v5304 = vsel %vm2764, %v5300, 0.0
      %v5305 = vsel %vm2764, %v5301, 0.0
      %5310 = vrot.lane.b32.xlu0 %v5302, 127
      %v5311 = vpop.permute.xlu0 %5310
      %5312 = vrot.lane.b32.xlu0 %v5303, 127
      %v5313 = vpop.permute.xlu0 %5312
      %5314 = vrot.lane.b32.xlu0 %v5304, 127
      %v5315 = vpop.permute.xlu0 %5314
      %5316 = vrot.lane.b32.xlu0 %v5305, 127
      %v5317 = vpop.permute.xlu0 %5316
      %5322 = vrot.lane.b32.xlu0 %v3271, 126
      %v5323 = vpop.permute.xlu0 %5322
      %5324 = vrot.lane.b32.xlu0 %v3272, 126
      %v5325 = vpop.permute.xlu0 %5324
      %5326 = vrot.lane.b32.xlu0 %v3273, 126
      %v5327 = vpop.permute.xlu0 %5326
      %5328 = vrot.lane.b32.xlu0 %v3274, 126
      %v5329 = vpop.permute.xlu0 %5328
      %5330 = vrot.lane.b32.xlu0 %v5302, 126
      %v5331 = vpop.permute.xlu0 %5330
      %5332 = vrot.lane.b32.xlu0 %v5303, 126
      %v5333 = vpop.permute.xlu0 %5332
      %5334 = vrot.lane.b32.xlu0 %v5304, 126
      %v5335 = vpop.permute.xlu0 %5334
      %5336 = vrot.lane.b32.xlu0 %v5305, 126
      %v5337 = vpop.permute.xlu0 %5336
      %5346 = vrot.lane.b32.xlu0 %v3271, 122
      %v5347 = vpop.permute.xlu0 %5346
      %5348 = vrot.lane.b32.xlu0 %v3272, 122
      %v5349 = vpop.permute.xlu0 %5348
      %5350 = vrot.lane.b32.xlu0 %v3273, 122
      %v5351 = vpop.permute.xlu0 %5350
      %5352 = vrot.lane.b32.xlu0 %v3274, 122
      %v5353 = vpop.permute.xlu0 %5352
      %5354 = vrot.lane.b32.xlu0 %v5302, 122
      %v5355 = vpop.permute.xlu0 %5354
      %5356 = vrot.lane.b32.xlu0 %v5303, 122
      %v5357 = vpop.permute.xlu0 %5356
      %5358 = vrot.lane.b32.xlu0 %v5304, 122
      %v5359 = vpop.permute.xlu0 %5358
      %5360 = vrot.lane.b32.xlu0 %v5305, 122
      %v5361 = vpop.permute.xlu0 %5360
      %5370 = vrot.lane.b32.xlu0 %v3271, 121
      %v5371 = vpop.permute.xlu0 %5370
      %5372 = vrot.lane.b32.xlu0 %v3272, 121
      %v5373 = vpop.permute.xlu0 %5372
      %5374 = vrot.lane.b32.xlu0 %v3273, 121
      %v5375 = vpop.permute.xlu0 %5374
      %5376 = vrot.lane.b32.xlu0 %v3274, 121
      %v5377 = vpop.permute.xlu0 %5376
      %5378 = vrot.lane.b32.xlu0 %v5302, 121
      %v5379 = vpop.permute.xlu0 %5378
      %5380 = vrot.lane.b32.xlu0 %v5303, 121
      %v5381 = vpop.permute.xlu0 %5380
      %5382 = vrot.lane.b32.xlu0 %v5304, 121
      %v5383 = vpop.permute.xlu0 %5382
      %5384 = vrot.lane.b32.xlu0 %v5305, 121
      %v5385 = vpop.permute.xlu0 %5384
      %5394 = vrot.lane.b32.xlu0 %v3271, 120
      %v5395 = vpop.permute.xlu0 %5394
      %5396 = vrot.lane.b32.xlu0 %v3272, 120
      %v5397 = vpop.permute.xlu0 %5396
      %5398 = vrot.lane.b32.xlu0 %v3273, 120
      %v5399 = vpop.permute.xlu0 %5398
      %5400 = vrot.lane.b32.xlu0 %v3274, 120
      %v5401 = vpop.permute.xlu0 %5400
      %5402 = vrot.lane.b32.xlu0 %v5302, 120
      %v5403 = vpop.permute.xlu0 %5402
      %5404 = vrot.lane.b32.xlu0 %v5303, 120
      %v5405 = vpop.permute.xlu0 %5404
      %5406 = vrot.lane.b32.xlu0 %v5304, 120
      %v5407 = vpop.permute.xlu0 %5406
      %5408 = vrot.lane.b32.xlu0 %v5305, 120
      %v5409 = vpop.permute.xlu0 %5408
      %5418 = vrot.lane.b32.xlu0 %v3271, 116
      %v5419 = vpop.permute.xlu0 %5418
      %5420 = vrot.lane.b32.xlu0 %v3272, 116
      %v5421 = vpop.permute.xlu0 %5420
      %5422 = vrot.lane.b32.xlu0 %v3273, 116
      %v5423 = vpop.permute.xlu0 %5422
      %5424 = vrot.lane.b32.xlu0 %v3274, 116
      %v5425 = vpop.permute.xlu0 %5424
      %5426 = vrot.lane.b32.xlu0 %v5302, 116
      %v5427 = vpop.permute.xlu0 %5426
      %5428 = vrot.lane.b32.xlu0 %v5303, 116
      %v5429 = vpop.permute.xlu0 %5428
      %5430 = vrot.lane.b32.xlu0 %v5304, 116
      %v5431 = vpop.permute.xlu0 %5430
      %5432 = vrot.lane.b32.xlu0 %v5305, 116
      %v5433 = vpop.permute.xlu0 %5432
      %5442 = vrot.lane.b32.xlu0 %v3271, 115
      %v5443 = vpop.permute.xlu0 %5442
      %5444 = vrot.lane.b32.xlu0 %v3272, 115
      %v5445 = vpop.permute.xlu0 %5444
      %5446 = vrot.lane.b32.xlu0 %v3273, 115
      %v5447 = vpop.permute.xlu0 %5446
      %5448 = vrot.lane.b32.xlu0 %v3274, 115
      %v5449 = vpop.permute.xlu0 %5448
      %5450 = vrot.lane.b32.xlu0 %v5302, 115
      %v5451 = vpop.permute.xlu0 %5450
      %5452 = vrot.lane.b32.xlu0 %v5303, 115
      %v5453 = vpop.permute.xlu0 %5452
      %5454 = vrot.lane.b32.xlu0 %v5304, 115
      %v5455 = vpop.permute.xlu0 %5454
      %5456 = vrot.lane.b32.xlu0 %v5305, 115
      %v5457 = vpop.permute.xlu0 %5456
      %5466 = vrot.lane.b32.xlu0 %v3271, 114
      %v5467 = vpop.permute.xlu0 %5466
      %5468 = vrot.lane.b32.xlu0 %v3272, 114
      %v5469 = vpop.permute.xlu0 %5468
      %5470 = vrot.lane.b32.xlu0 %v3273, 114
      %v5471 = vpop.permute.xlu0 %5470
      %5472 = vrot.lane.b32.xlu0 %v3274, 114
      %v5473 = vpop.permute.xlu0 %5472
      %5474 = vrot.lane.b32.xlu0 %v5302, 114
      %v5475 = vpop.permute.xlu0 %5474
      %5476 = vrot.lane.b32.xlu0 %v5303, 114
      %v5477 = vpop.permute.xlu0 %5476
      %5478 = vrot.lane.b32.xlu0 %v5304, 114
      %v5479 = vpop.permute.xlu0 %5478
      %5480 = vrot.lane.b32.xlu0 %v5305, 114
      %v5481 = vpop.permute.xlu0 %5480
      %v5490 = vld [vmem:[%s71] sm:$0xff]
      %v5491 = vld [vmem:[%s71 + $0x8] sm:$0xff]
      %v5492 = vld [vmem:[%s71 + $0x10] sm:$0xff]
      %v5493 = vld [vmem:[%s71 + $0x18] sm:$0xff]
      %v5494 = vld [vmem:[%s71 + $0x20] sm:$0xff]
      %v5495 = vld [vmem:[%s71 + $0x28] sm:$0xff]
      %v5496 = vld [vmem:[%s71 + $0x30] sm:$0xff]
      %v5497 = vld [vmem:[%s71 + $0x38] sm:$0xff]
      %v5498 = vld [vmem:[%s71 + $0x40] sm:$0xff]
      %v5499 = vld [vmem:[%s71 + $0x48] sm:$0xff]
      %v5500 = vld [vmem:[%s71 + $0x50] sm:$0xff]
      %v5501 = vld [vmem:[%s71 + $0x58] sm:$0xff]
      %v5502 = vld [vmem:[%s71 + $0x60] sm:$0xff]
      %v5503 = vld [vmem:[%s71 + $0x68] sm:$0xff]
      %v5504 = vld [vmem:[%s71 + $0x70] sm:$0xff]
      %v5505 = vld [vmem:[%s71 + $0x78] sm:$0xff]
      %v5506 = vld [vmem:[%s71 + $0x80] sm:$0xff]
      %v5507 = vld [vmem:[%s71 + $0x88] sm:$0xff]
      %v5508 = vld [vmem:[%s71 + $0x90] sm:$0xff]
      %v5509 = vld [vmem:[%s71 + $0x98] sm:$0xff]
      %v5510 = vld [vmem:[%s73] sm:$0xff]
      %v5511 = vld [vmem:[%s73 + $0x8] sm:$0xff]
      %v5512 = vld [vmem:[%s73 + $0x10] sm:$0xff]
      %v5513 = vld [vmem:[%s73 + $0x18] sm:$0xff]
      %5515 = vset.pattern.permute.xlu0 0
      %5516 = vperm.xlu0 %5515, %v5510
      %v5517 = vpop.permute.xlu0 %5516
      %5520 = vset.pattern.permute.xlu0 0
      %5521 = vperm.xlu0 %5520, %v5511
      %v5522 = vpop.permute.xlu0 %5521
      %5525 = vset.pattern.permute.xlu0 0
      %5526 = vperm.xlu0 %5525, %v5512
      %v5527 = vpop.permute.xlu0 %5526
      %5530 = vset.pattern.permute.xlu0 0
      %5531 = vperm.xlu0 %5530, %v5513
      %v5532 = vpop.permute.xlu0 %5531
      %v5535 = vsel %vm4256, %v5494, 0
      %v5538 = vsel %vm4256, %v5499, 0
      %v5541 = vsel %vm4256, %v5504, 0
      %v5544 = vsel %vm4256, %v5509, 0
      %5546 = vmatpush.msra.mxu0 %v5317
      %5547 = vmatpush.msra.mxu0 %v5315
      %5548 = vmatpush.msra.mxu0 %v5313
      %5549 = vmatpush.msra.mxu0 %v5311
      %5550 = vmatpush.msra.mxu0 %v3286
      %5551 = vmatpush.msra.mxu0 %v3284
      %5552 = vmatpush.msra.mxu0 %v3282
      %5553 = vmatpush.msra.mxu0 %v3280
      %5554 = vmatpush.msra.mxu0 %v5305
      %5555 = vmatpush.msra.mxu0 %v5304
      %5556 = vmatpush.msra.mxu0 %v5303
      %5557 = vmatpush.msra.mxu0 %v5302
      %5558 = vmatpush.msra.mxu0 %v3274
      %5559 = vmatpush.msra.mxu0 %v3273
      %5560 = vmatpush.msra.mxu0 %v3272
      %5561 = vmatpush.msra.mxu0 %v3271
      %5562 = vmatmul.f32.gmra.mxu0 %v5490
      %v5563 = vpop.f32.mrf.mxu0
      %v5564 = vadd.f32 %v5517, %v5563
      %5565 = vmatmul.f32.gmra.mxu0 %v5495
      %v5566 = vpop.f32.mrf.mxu0
      %v5567 = vadd.f32 %v5522, %v5566
      %5568 = vmatmul.f32.gmra.mxu0 %v5500
      %v5569 = vpop.f32.mrf.mxu0
      %v5570 = vadd.f32 %v5527, %v5569
      %5571 = vmatmul.f32.gmra.mxu0 %v5505
      %v5572 = vpop.f32.mrf.mxu0
      %v5573 = vadd.f32 %v5532, %v5572
      %5574 = vdwg.mxu0
      %5575 = vmatpush.msra.mxu0 %v5361
      %5576 = vmatpush.msra.mxu0 %v5359
      %5577 = vmatpush.msra.mxu0 %v5357
      %5578 = vmatpush.msra.mxu0 %v5355
      %5579 = vmatpush.msra.mxu0 %v5353
      %5580 = vmatpush.msra.mxu0 %v5351
      %5581 = vmatpush.msra.mxu0 %v5349
      %5582 = vmatpush.msra.mxu0 %v5347
      %5583 = vmatpush.msra.mxu0 %v5337
      %5584 = vmatpush.msra.mxu0 %v5335
      %5585 = vmatpush.msra.mxu0 %v5333
      %5586 = vmatpush.msra.mxu0 %v5331
      %5587 = vmatpush.msra.mxu0 %v5329
      %5588 = vmatpush.msra.mxu0 %v5327
      %5589 = vmatpush.msra.mxu0 %v5325
      %5590 = vmatpush.msra.mxu0 %v5323
      %5591 = vmatmul.f32.gmra.mxu0 %v5491
      %v5592 = vpop.f32.mrf.mxu0
      %v5593 = vadd.f32 %v5564, %v5592
      %5594 = vmatmul.f32.gmra.mxu0 %v5496
      %v5595 = vpop.f32.mrf.mxu0
      %v5596 = vadd.f32 %v5567, %v5595
      %5597 = vmatmul.f32.gmra.mxu0 %v5501
      %v5598 = vpop.f32.mrf.mxu0
      %v5599 = vadd.f32 %v5570, %v5598
      %5600 = vmatmul.f32.gmra.mxu0 %v5506
      %v5601 = vpop.f32.mrf.mxu0
      %v5602 = vadd.f32 %v5573, %v5601
      %5603 = vdwg.mxu0
      %5604 = vmatpush.msra.mxu0 %v5409
      %5605 = vmatpush.msra.mxu0 %v5407
      %5606 = vmatpush.msra.mxu0 %v5405
      %5607 = vmatpush.msra.mxu0 %v5403
      %5608 = vmatpush.msra.mxu0 %v5401
      %5609 = vmatpush.msra.mxu0 %v5399
      %5610 = vmatpush.msra.mxu0 %v5397
      %5611 = vmatpush.msra.mxu0 %v5395
      %5612 = vmatpush.msra.mxu0 %v5385
      %5613 = vmatpush.msra.mxu0 %v5383
      %5614 = vmatpush.msra.mxu0 %v5381
      %5615 = vmatpush.msra.mxu0 %v5379
      %5616 = vmatpush.msra.mxu0 %v5377
      %5617 = vmatpush.msra.mxu0 %v5375
      %5618 = vmatpush.msra.mxu0 %v5373
      %5619 = vmatpush.msra.mxu0 %v5371
      %5620 = vmatmul.f32.gmra.mxu0 %v5492
      %v5621 = vpop.f32.mrf.mxu0
      %v5622 = vadd.f32 %v5593, %v5621
      %5623 = vmatmul.f32.gmra.mxu0 %v5497
      %v5624 = vpop.f32.mrf.mxu0
      %v5625 = vadd.f32 %v5596, %v5624
      %5626 = vmatmul.f32.gmra.mxu0 %v5502
      %v5627 = vpop.f32.mrf.mxu0
      %v5628 = vadd.f32 %v5599, %v5627
      %5629 = vmatmul.f32.gmra.mxu0 %v5507
      %v5630 = vpop.f32.mrf.mxu0
      %v5631 = vadd.f32 %v5602, %v5630
      %5632 = vdwg.mxu0
      %5633 = vmatpush.msra.mxu0 %v5457
      %5634 = vmatpush.msra.mxu0 %v5455
      %5635 = vmatpush.msra.mxu0 %v5453
      %5636 = vmatpush.msra.mxu0 %v5451
      %5637 = vmatpush.msra.mxu0 %v5449
      %5638 = vmatpush.msra.mxu0 %v5447
      %5639 = vmatpush.msra.mxu0 %v5445
      %5640 = vmatpush.msra.mxu0 %v5443
      %5641 = vmatpush.msra.mxu0 %v5433
      %5642 = vmatpush.msra.mxu0 %v5431
      %5643 = vmatpush.msra.mxu0 %v5429
      %5644 = vmatpush.msra.mxu0 %v5427
      %5645 = vmatpush.msra.mxu0 %v5425
      %5646 = vmatpush.msra.mxu0 %v5423
      %5647 = vmatpush.msra.mxu0 %v5421
      %5648 = vmatpush.msra.mxu0 %v5419
      %5649 = vmatmul.f32.gmra.mxu0 %v5493
      %v5650 = vpop.f32.mrf.mxu0
      %v5651 = vadd.f32 %v5622, %v5650
      %5652 = vmatmul.f32.gmra.mxu0 %v5498
      %v5653 = vpop.f32.mrf.mxu0
      %v5654 = vadd.f32 %v5625, %v5653
      %5655 = vmatmul.f32.gmra.mxu0 %v5503
      %v5656 = vpop.f32.mrf.mxu0
      %v5657 = vadd.f32 %v5628, %v5656
      %5658 = vmatmul.f32.gmra.mxu0 %v5508
      %v5659 = vpop.f32.mrf.mxu0
      %v5660 = vadd.f32 %v5631, %v5659
      %5661 = vdwg.mxu0
      %5662 = vmatpush.msra.mxu0 0.0
      %5663 = vmatpush.msra.mxu0 0.0
      %5664 = vmatpush.msra.mxu0 0.0
      %5665 = vmatpush.msra.mxu0 0.0
      %5666 = vmatpush.msra.mxu0 0.0
      %5667 = vmatpush.msra.mxu0 0.0
      %5668 = vmatpush.msra.mxu0 0.0
      %5669 = vmatpush.msra.mxu0 0.0
      %5670 = vmatpush.msra.mxu0 %v5481
      %5671 = vmatpush.msra.mxu0 %v5479
      %5672 = vmatpush.msra.mxu0 %v5477
      %5673 = vmatpush.msra.mxu0 %v5475
      %5674 = vmatpush.msra.mxu0 %v5473
      %5675 = vmatpush.msra.mxu0 %v5471
      %5676 = vmatpush.msra.mxu0 %v5469
      %5677 = vmatpush.msra.mxu0 %v5467
      %5678 = vmatmul.f32.gmra.mxu0 %v5535
      %v5679 = vpop.f32.mrf.mxu0
      %v5680 = vadd.f32 %v5651, %v5679
      %5681 = vmatmul.f32.gmra.mxu0 %v5538
      %v5682 = vpop.f32.mrf.mxu0
      %v5683 = vadd.f32 %v5654, %v5682
      %5684 = vmatmul.f32.gmra.mxu0 %v5541
      %v5685 = vpop.f32.mrf.mxu0
      %v5686 = vadd.f32 %v5657, %v5685
      %5687 = vmatmul.f32.gmra.mxu0 %v5544
      %v5688 = vpop.f32.mrf.mxu0
      %v5689 = vadd.f32 %v5660, %v5688
      %5690 = vdwg.mxu0
      %v5691 = vmul.f32 %v5680, %v2749
      %v5692 = vmul.f32 %v5683, %v2749
      %v5693 = vmul.f32 %v5686, %v2749
      %v5694 = vmul.f32 %v5689, %v2749
      %5699 = vrot.lane.b32.xlu0 %v5691, 7
      %v5700 = vpop.permute.xlu0 %5699
      %5701 = vrot.lane.b32.xlu0 %v5692, 7
      %v5702 = vpop.permute.xlu0 %5701
      %5703 = vrot.lane.b32.xlu0 %v5693, 7
      %v5704 = vpop.permute.xlu0 %5703
      %5705 = vrot.lane.b32.xlu0 %v5694, 7
      %v5706 = vpop.permute.xlu0 %5705
      %v5711 = vsel %vm2761, 0.0, %v5700
      %v5712 = vsel %vm2761, 0.0, %v5702
      %v5713 = vsel %vm2761, 0.0, %v5704
      %v5714 = vsel %vm2761, 0.0, %v5706
      %v5715 = vsel %vm2764, %v5711, 0.0
      %v5716 = vsel %vm2764, %v5712, 0.0
      %v5717 = vsel %vm2764, %v5713, 0.0
      %v5718 = vsel %vm2764, %v5714, 0.0
      %5723 = vrot.lane.b32.xlu0 %v5715, 127
      %v5724 = vpop.permute.xlu0 %5723
      %5725 = vrot.lane.b32.xlu0 %v5716, 127
      %v5726 = vpop.permute.xlu0 %5725
      %5727 = vrot.lane.b32.xlu0 %v5717, 127
      %v5728 = vpop.permute.xlu0 %5727
      %5729 = vrot.lane.b32.xlu0 %v5718, 127
      %v5730 = vpop.permute.xlu0 %5729
      %5735 = vrot.lane.b32.xlu0 %v5715, 126
      %v5736 = vpop.permute.xlu0 %5735
      %5737 = vrot.lane.b32.xlu0 %v5716, 126
      %v5738 = vpop.permute.xlu0 %5737
      %5739 = vrot.lane.b32.xlu0 %v5717, 126
      %v5740 = vpop.permute.xlu0 %5739
      %5741 = vrot.lane.b32.xlu0 %v5718, 126
      %v5742 = vpop.permute.xlu0 %5741
      %5747 = vrot.lane.b32.xlu0 %v5715, 122
      %v5748 = vpop.permute.xlu0 %5747
      %5749 = vrot.lane.b32.xlu0 %v5716, 122
      %v5750 = vpop.permute.xlu0 %5749
      %5751 = vrot.lane.b32.xlu0 %v5717, 122
      %v5752 = vpop.permute.xlu0 %5751
      %5753 = vrot.lane.b32.xlu0 %v5718, 122
      %v5754 = vpop.permute.xlu0 %5753
      %5759 = vrot.lane.b32.xlu0 %v5715, 121
      %v5760 = vpop.permute.xlu0 %5759
      %5761 = vrot.lane.b32.xlu0 %v5716, 121
      %v5762 = vpop.permute.xlu0 %5761
      %5763 = vrot.lane.b32.xlu0 %v5717, 121
      %v5764 = vpop.permute.xlu0 %5763
      %5765 = vrot.lane.b32.xlu0 %v5718, 121
      %v5766 = vpop.permute.xlu0 %5765
      %5771 = vrot.lane.b32.xlu0 %v5715, 120
      %v5772 = vpop.permute.xlu0 %5771
      %5773 = vrot.lane.b32.xlu0 %v5716, 120
      %v5774 = vpop.permute.xlu0 %5773
      %5775 = vrot.lane.b32.xlu0 %v5717, 120
      %v5776 = vpop.permute.xlu0 %5775
      %5777 = vrot.lane.b32.xlu0 %v5718, 120
      %v5778 = vpop.permute.xlu0 %5777
      %5783 = vrot.lane.b32.xlu0 %v5715, 116
      %v5784 = vpop.permute.xlu0 %5783
      %5785 = vrot.lane.b32.xlu0 %v5716, 116
      %v5786 = vpop.permute.xlu0 %5785
      %5787 = vrot.lane.b32.xlu0 %v5717, 116
      %v5788 = vpop.permute.xlu0 %5787
      %5789 = vrot.lane.b32.xlu0 %v5718, 116
      %v5790 = vpop.permute.xlu0 %5789
      %5795 = vrot.lane.b32.xlu0 %v5715, 115
      %v5796 = vpop.permute.xlu0 %5795
      %5797 = vrot.lane.b32.xlu0 %v5716, 115
      %v5798 = vpop.permute.xlu0 %5797
      %5799 = vrot.lane.b32.xlu0 %v5717, 115
      %v5800 = vpop.permute.xlu0 %5799
      %5801 = vrot.lane.b32.xlu0 %v5718, 115
      %v5802 = vpop.permute.xlu0 %5801
      %5807 = vrot.lane.b32.xlu0 %v5715, 114
      %v5808 = vpop.permute.xlu0 %5807
      %5809 = vrot.lane.b32.xlu0 %v5716, 114
      %v5810 = vpop.permute.xlu0 %5809
      %5811 = vrot.lane.b32.xlu0 %v5717, 114
      %v5812 = vpop.permute.xlu0 %5811
      %5813 = vrot.lane.b32.xlu0 %v5718, 114
      %v5814 = vpop.permute.xlu0 %5813
      %v5819 = vld [vmem:[%s75] sm:$0xff]
      %v5820 = vld [vmem:[%s75 + $0x8] sm:$0xff]
      %v5821 = vld [vmem:[%s75 + $0x10] sm:$0xff]
      %v5822 = vld [vmem:[%s75 + $0x18] sm:$0xff]
      %v5823 = vld [vmem:[%s75 + $0x20] sm:$0xff]
      %v5824 = vld [vmem:[%s75 + $0x28] sm:$0xff]
      %v5825 = vld [vmem:[%s75 + $0x30] sm:$0xff]
      %v5826 = vld [vmem:[%s75 + $0x38] sm:$0xff]
      %v5827 = vld [vmem:[%s75 + $0x40] sm:$0xff]
      %v5828 = vld [vmem:[%s75 + $0x48] sm:$0xff]
      %v5829 = vld [vmem:[%s75 + $0x50] sm:$0xff]
      %v5830 = vld [vmem:[%s75 + $0x58] sm:$0xff]
      %v5831 = vld [vmem:[%s77] sm:$0xff]
      %v5832 = vld [vmem:[%s77 + $0x8] sm:$0xff]
      %v5833 = vld [vmem:[%s77 + $0x10] sm:$0xff]
      %v5834 = vld [vmem:[%s77 + $0x18] sm:$0xff]
      %5836 = vset.pattern.permute.xlu0 0
      %5837 = vperm.xlu0 %5836, %v5831
      %v5838 = vpop.permute.xlu0 %5837
      %5841 = vset.pattern.permute.xlu0 0
      %5842 = vperm.xlu0 %5841, %v5832
      %v5843 = vpop.permute.xlu0 %5842
      %5846 = vset.pattern.permute.xlu0 0
      %5847 = vperm.xlu0 %5846, %v5833
      %v5848 = vpop.permute.xlu0 %5847
      %5851 = vset.pattern.permute.xlu0 0
      %5852 = vperm.xlu0 %5851, %v5834
      %v5853 = vpop.permute.xlu0 %5852
      %v5856 = vsel %vm3147, %v5821, 0
      %v5859 = vsel %vm3147, %v5824, 0
      %v5862 = vsel %vm3147, %v5827, 0
      %v5865 = vsel %vm3147, %v5830, 0
      %5867 = vmatpush.msra.mxu0 %v5754
      %5868 = vmatpush.msra.mxu0 %v5752
      %5869 = vmatpush.msra.mxu0 %v5750
      %5870 = vmatpush.msra.mxu0 %v5748
      %5871 = vmatpush.msra.mxu0 %v5742
      %5872 = vmatpush.msra.mxu0 %v5740
      %5873 = vmatpush.msra.mxu0 %v5738
      %5874 = vmatpush.msra.mxu0 %v5736
      %5875 = vmatpush.msra.mxu0 %v5730
      %5876 = vmatpush.msra.mxu0 %v5728
      %5877 = vmatpush.msra.mxu0 %v5726
      %5878 = vmatpush.msra.mxu0 %v5724
      %5879 = vmatpush.msra.mxu0 %v5718
      %5880 = vmatpush.msra.mxu0 %v5717
      %5881 = vmatpush.msra.mxu0 %v5716
      %5882 = vmatpush.msra.mxu0 %v5715
      %5883 = vmatmul.f32.gmra.mxu0 %v5819
      %v5884 = vpop.f32.mrf.mxu0
      %v5885 = vadd.f32 %v5838, %v5884
      %5886 = vmatmul.f32.gmra.mxu0 %v5822
      %v5887 = vpop.f32.mrf.mxu0
      %v5888 = vadd.f32 %v5843, %v5887
      %5889 = vmatmul.f32.gmra.mxu0 %v5825
      %v5890 = vpop.f32.mrf.mxu0
      %v5891 = vadd.f32 %v5848, %v5890
      %5892 = vmatmul.f32.gmra.mxu0 %v5828
      %v5893 = vpop.f32.mrf.mxu0
      %v5894 = vadd.f32 %v5853, %v5893
      %5895 = vdwg.mxu0
      %5896 = vmatpush.msra.mxu0 %v5802
      %5897 = vmatpush.msra.mxu0 %v5800
      %5898 = vmatpush.msra.mxu0 %v5798
      %5899 = vmatpush.msra.mxu0 %v5796
      %5900 = vmatpush.msra.mxu0 %v5790
      %5901 = vmatpush.msra.mxu0 %v5788
      %5902 = vmatpush.msra.mxu0 %v5786
      %5903 = vmatpush.msra.mxu0 %v5784
      %5904 = vmatpush.msra.mxu0 %v5778
      %5905 = vmatpush.msra.mxu0 %v5776
      %5906 = vmatpush.msra.mxu0 %v5774
      %5907 = vmatpush.msra.mxu0 %v5772
      %5908 = vmatpush.msra.mxu0 %v5766
      %5909 = vmatpush.msra.mxu0 %v5764
      %5910 = vmatpush.msra.mxu0 %v5762
      %5911 = vmatpush.msra.mxu0 %v5760
      %5912 = vmatmul.f32.gmra.mxu0 %v5820
      %v5913 = vpop.f32.mrf.mxu0
      %v5914 = vadd.f32 %v5885, %v5913
      %5915 = vmatmul.f32.gmra.mxu0 %v5823
      %v5916 = vpop.f32.mrf.mxu0
      %v5917 = vadd.f32 %v5888, %v5916
      %5918 = vmatmul.f32.gmra.mxu0 %v5826
      %v5919 = vpop.f32.mrf.mxu0
      %v5920 = vadd.f32 %v5891, %v5919
      %5921 = vmatmul.f32.gmra.mxu0 %v5829
      %v5922 = vpop.f32.mrf.mxu0
      %v5923 = vadd.f32 %v5894, %v5922
      %5924 = vdwg.mxu0
      %5925 = vmatpush.msra.mxu0 0.0
      %5926 = vmatpush.msra.mxu0 0.0
      %5927 = vmatpush.msra.mxu0 0.0
      %5928 = vmatpush.msra.mxu0 0.0
      %5929 = vmatpush.msra.mxu0 0.0
      %5930 = vmatpush.msra.mxu0 0.0
      %5931 = vmatpush.msra.mxu0 0.0
      %5932 = vmatpush.msra.mxu0 0.0
      %5933 = vmatpush.msra.mxu0 0.0
      %5934 = vmatpush.msra.mxu0 0.0
      %5935 = vmatpush.msra.mxu0 0.0
      %5936 = vmatpush.msra.mxu0 0.0
      %5937 = vmatpush.msra.mxu0 %v5814
      %5938 = vmatpush.msra.mxu0 %v5812
      %5939 = vmatpush.msra.mxu0 %v5810
      %5940 = vmatpush.msra.mxu0 %v5808
      %5941 = vmatmul.f32.gmra.mxu0 %v5856
      %v5942 = vpop.f32.mrf.mxu0
      %v5943 = vadd.f32 %v5914, %v5942
      %5944 = vmatmul.f32.gmra.mxu0 %v5859
      %v5945 = vpop.f32.mrf.mxu0
      %v5946 = vadd.f32 %v5917, %v5945
      %5947 = vmatmul.f32.gmra.mxu0 %v5862
      %v5948 = vpop.f32.mrf.mxu0
      %v5949 = vadd.f32 %v5920, %v5948
      %5950 = vmatmul.f32.gmra.mxu0 %v5865
      %v5951 = vpop.f32.mrf.mxu0
      %v5952 = vadd.f32 %v5923, %v5951
      %5953 = vdwg.mxu0
      %v5954 = vmul.f32 %v5943, %v2749
      %v5955 = vmul.f32 %v5946, %v2749
      %v5956 = vmul.f32 %v5949, %v2749
      %v5957 = vmul.f32 %v5952, %v2749
      %5962 = vrot.lane.b32.xlu0 %v5954, 7
      %v5963 = vpop.permute.xlu0 %5962
      %5964 = vrot.lane.b32.xlu0 %v5955, 7
      %v5965 = vpop.permute.xlu0 %5964
      %5966 = vrot.lane.b32.xlu0 %v5956, 7
      %v5967 = vpop.permute.xlu0 %5966
      %5968 = vrot.lane.b32.xlu0 %v5957, 7
      %v5969 = vpop.permute.xlu0 %5968
      %v5974 = vsel %vm2761, 0.0, %v5963
      %v5975 = vsel %vm2761, 0.0, %v5965
      %v5976 = vsel %vm2761, 0.0, %v5967
      %v5977 = vsel %vm2761, 0.0, %v5969
      %v5978 = vsel %vm2764, %v5974, 0.0
      %v5979 = vsel %vm2764, %v5975, 0.0
      %v5980 = vsel %vm2764, %v5976, 0.0
      %v5981 = vsel %vm2764, %v5977, 0.0
      %s5982 = scalar_lea.vmem %s79, 64
      %v5983 = vld [vmem:[%s5982] sm:$0xff]
      %v5984 = vld [vmem:[%s5982 + $0x8] sm:$0xff]
      %5989 = vrot.lane.b32.xlu0 %v5978, 121
      %v5990 = vpop.permute.xlu0 %5989
      %5991 = vrot.lane.b32.xlu0 %v5979, 121
      %v5992 = vpop.permute.xlu0 %5991
      %5993 = vrot.lane.b32.xlu0 %v5980, 121
      %v5994 = vpop.permute.xlu0 %5993
      %5995 = vrot.lane.b32.xlu0 %v5981, 121
      %v5996 = vpop.permute.xlu0 %5995
      %v6002 = vsel %vm3147, %v5983, 0
      %v6005 = vsel %vm3147, %v5984, 0
      %6007 = vmatpush.msra.mxu0 0.0
      %6008 = vmatpush.msra.mxu0 0.0
      %6009 = vmatpush.msra.mxu0 0.0
      %6010 = vmatpush.msra.mxu0 0.0
      %6011 = vmatpush.msra.mxu0 0.0
      %6012 = vmatpush.msra.mxu0 0.0
      %6013 = vmatpush.msra.mxu0 0.0
      %6014 = vmatpush.msra.mxu0 0.0
      %6015 = vmatpush.msra.mxu0 0.0
      %6016 = vmatpush.msra.mxu0 0.0
      %6017 = vmatpush.msra.mxu0 0.0
      %6018 = vmatpush.msra.mxu0 0.0
      %6019 = vmatpush.msra.mxu0 %v5996
      %6020 = vmatpush.msra.mxu0 %v5994
      %6021 = vmatpush.msra.mxu0 %v5992
      %6022 = vmatpush.msra.mxu0 %v5990
      %6023 = vmatmul.f32.gmra.mxu0 %v6002
      %v6024 = vpop.f32.mrf.mxu0
      %v6025 = vadd.f32 0.0, %v6024
      %6026 = vmatmul.f32.gmra.mxu0 %v6005
      %v6027 = vpop.f32.mrf.mxu0
      %v6028 = vadd.f32 0.0, %v6027
      %6029 = vdwg.mxu0
      %s6030 = scalar_lea.vmem %s79, 48
      %v6031 = vld [vmem:[%s6030] sm:$0xff]
      %v6032 = vld [vmem:[%s6030 + $0x8] sm:$0xff]
      %s6033 = scalar_lea.vmem %s79, 80
      %v6034 = vld [vmem:[%s6033] sm:$0xff]
      %v6035 = vld [vmem:[%s6033 + $0x8] sm:$0xff]
      %6036 = vrot.lane.b32.xlu0 %v5978, 120
      %v6037 = vpop.permute.xlu0 %6036
      %6038 = vrot.lane.b32.xlu0 %v5979, 120
      %v6039 = vpop.permute.xlu0 %6038
      %6040 = vrot.lane.b32.xlu0 %v5980, 120
      %v6041 = vpop.permute.xlu0 %6040
      %6042 = vrot.lane.b32.xlu0 %v5981, 120
      %v6043 = vpop.permute.xlu0 %6042
      %v6049 = vsel %vm3147, %v6034, 0
      %v6052 = vsel %vm3147, %v6035, 0
      %6054 = vmatpush.msra.mxu0 0.0
      %6055 = vmatpush.msra.mxu0 0.0
      %6056 = vmatpush.msra.mxu0 0.0
      %6057 = vmatpush.msra.mxu0 0.0
      %6058 = vmatpush.msra.mxu0 0.0
      %6059 = vmatpush.msra.mxu0 0.0
      %6060 = vmatpush.msra.mxu0 0.0
      %6061 = vmatpush.msra.mxu0 0.0
      %6062 = vmatpush.msra.mxu0 0.0
      %6063 = vmatpush.msra.mxu0 0.0
      %6064 = vmatpush.msra.mxu0 0.0
      %6065 = vmatpush.msra.mxu0 0.0
      %6066 = vmatpush.msra.mxu0 %v6043
      %6067 = vmatpush.msra.mxu0 %v6041
      %6068 = vmatpush.msra.mxu0 %v6039
      %6069 = vmatpush.msra.mxu0 %v6037
      %6070 = vmatmul.f32.gmra.mxu0 %v6049
      %v6071 = vpop.f32.mrf.mxu0
      %v6072 = vadd.f32 0.0, %v6071
      %6073 = vmatmul.f32.gmra.mxu0 %v6052
      %v6074 = vpop.f32.mrf.mxu0
      %v6075 = vadd.f32 0.0, %v6074
      %6076 = vdwg.mxu0
      %v6078 = vsel %vm3147, %v6031, 0
      %v6081 = vsel %vm3147, %v6032, 0
      %6083 = vmatpush.msra.mxu0 0.0
      %6084 = vmatpush.msra.mxu0 0.0
      %6085 = vmatpush.msra.mxu0 0.0
      %6086 = vmatpush.msra.mxu0 0.0
      %6087 = vmatpush.msra.mxu0 0.0
      %6088 = vmatpush.msra.mxu0 0.0
      %6089 = vmatpush.msra.mxu0 0.0
      %6090 = vmatpush.msra.mxu0 0.0
      %6091 = vmatpush.msra.mxu0 0.0
      %6092 = vmatpush.msra.mxu0 0.0
      %6093 = vmatpush.msra.mxu0 0.0
      %6094 = vmatpush.msra.mxu0 0.0
      %6095 = vmatpush.msra.mxu0 %v5996
      %6096 = vmatpush.msra.mxu0 %v5994
      %6097 = vmatpush.msra.mxu0 %v5992
      %6098 = vmatpush.msra.mxu0 %v5990
      %6099 = vmatmul.f32.gmra.mxu0 %v6078
      %v6100 = vpop.f32.mrf.mxu0
      %v6101 = vadd.f32 %v6072, %v6100
      %6102 = vmatmul.f32.gmra.mxu0 %v6081
      %v6103 = vpop.f32.mrf.mxu0
      %v6104 = vadd.f32 %v6075, %v6103
      %6105 = vdwg.mxu0
      %s6106 = scalar_lea.vmem %s79, 16
      %v6107 = vld [vmem:[%s6106] sm:$0xff]
      %v6108 = vld [vmem:[%s6106 + $0x8] sm:$0xff]
      %s6109 = scalar_lea.vmem %s79, 112
      %v6110 = vld [vmem:[%s6109] sm:$0xff]
      %v6111 = vld [vmem:[%s6109 + $0x8] sm:$0xff]
      %6112 = vrot.lane.b32.xlu0 %v5978, 115
      %v6113 = vpop.permute.xlu0 %6112
      %6114 = vrot.lane.b32.xlu0 %v5979, 115
      %v6115 = vpop.permute.xlu0 %6114
      %6116 = vrot.lane.b32.xlu0 %v5980, 115
      %v6117 = vpop.permute.xlu0 %6116
      %6118 = vrot.lane.b32.xlu0 %v5981, 115
      %v6119 = vpop.permute.xlu0 %6118
      %v6125 = vsel %vm3147, %v6110, 0
      %v6128 = vsel %vm3147, %v6111, 0
      %6130 = vmatpush.msra.mxu0 0.0
      %6131 = vmatpush.msra.mxu0 0.0
      %6132 = vmatpush.msra.mxu0 0.0
      %6133 = vmatpush.msra.mxu0 0.0
      %6134 = vmatpush.msra.mxu0 0.0
      %6135 = vmatpush.msra.mxu0 0.0
      %6136 = vmatpush.msra.mxu0 0.0
      %6137 = vmatpush.msra.mxu0 0.0
      %6138 = vmatpush.msra.mxu0 0.0
      %6139 = vmatpush.msra.mxu0 0.0
      %6140 = vmatpush.msra.mxu0 0.0
      %6141 = vmatpush.msra.mxu0 0.0
      %6142 = vmatpush.msra.mxu0 %v6119
      %6143 = vmatpush.msra.mxu0 %v6117
      %6144 = vmatpush.msra.mxu0 %v6115
      %6145 = vmatpush.msra.mxu0 %v6113
      %6146 = vmatmul.f32.gmra.mxu0 %v6125
      %v6147 = vpop.f32.mrf.mxu0
      %v6148 = vadd.f32 0.0, %v6147
      %6149 = vmatmul.f32.gmra.mxu0 %v6128
      %v6150 = vpop.f32.mrf.mxu0
      %v6151 = vadd.f32 0.0, %v6150
      %6152 = vdwg.mxu0
      %v6154 = vsel %vm3147, %v6107, 0
      %v6157 = vsel %vm3147, %v6108, 0
      %6159 = vmatpush.msra.mxu0 0.0
      %6160 = vmatpush.msra.mxu0 0.0
      %6161 = vmatpush.msra.mxu0 0.0
      %6162 = vmatpush.msra.mxu0 0.0
      %6163 = vmatpush.msra.mxu0 0.0
      %6164 = vmatpush.msra.mxu0 0.0
      %6165 = vmatpush.msra.mxu0 0.0
      %6166 = vmatpush.msra.mxu0 0.0
      %6167 = vmatpush.msra.mxu0 0.0
      %6168 = vmatpush.msra.mxu0 0.0
      %6169 = vmatpush.msra.mxu0 0.0
      %6170 = vmatpush.msra.mxu0 0.0
      %6171 = vmatpush.msra.mxu0 %v5996
      %6172 = vmatpush.msra.mxu0 %v5994
      %6173 = vmatpush.msra.mxu0 %v5992
      %6174 = vmatpush.msra.mxu0 %v5990
      %6175 = vmatmul.f32.gmra.mxu0 %v6154
      %v6176 = vpop.f32.mrf.mxu0
      %v6177 = vadd.f32 %v6148, %v6176
      %6178 = vmatmul.f32.gmra.mxu0 %v6157
      %v6179 = vpop.f32.mrf.mxu0
      %v6180 = vadd.f32 %v6151, %v6179
      %6181 = vdwg.mxu0
      %v6182 = vld [vmem:[%s79] sm:$0xff]
      %v6183 = vld [vmem:[%s79 + $0x8] sm:$0xff]
      %s6184 = scalar_lea.vmem %s79, 32
      %v6185 = vld [vmem:[%s6184] sm:$0xff]
      %v6186 = vld [vmem:[%s6184 + $0x8] sm:$0xff]
      %v6188 = vsel %vm3147, %v6185, 0
      %v6191 = vsel %vm3147, %v6186, 0
      %6193 = vmatpush.msra.mxu0 0.0
      %6194 = vmatpush.msra.mxu0 0.0
      %6195 = vmatpush.msra.mxu0 0.0
      %6196 = vmatpush.msra.mxu0 0.0
      %6197 = vmatpush.msra.mxu0 0.0
      %6198 = vmatpush.msra.mxu0 0.0
      %6199 = vmatpush.msra.mxu0 0.0
      %6200 = vmatpush.msra.mxu0 0.0
      %6201 = vmatpush.msra.mxu0 0.0
      %6202 = vmatpush.msra.mxu0 0.0
      %6203 = vmatpush.msra.mxu0 0.0
      %6204 = vmatpush.msra.mxu0 0.0
      %6205 = vmatpush.msra.mxu0 %v6043
      %6206 = vmatpush.msra.mxu0 %v6041
      %6207 = vmatpush.msra.mxu0 %v6039
      %6208 = vmatpush.msra.mxu0 %v6037
      %6209 = vmatmul.f32.gmra.mxu0 %v6188
      %v6210 = vpop.f32.mrf.mxu0
      %v6211 = vadd.f32 0.0, %v6210
      %6212 = vmatmul.f32.gmra.mxu0 %v6191
      %v6213 = vpop.f32.mrf.mxu0
      %v6214 = vadd.f32 0.0, %v6213
      %6215 = vdwg.mxu0
      %v6217 = vsel %vm3147, %v6182, 0
      %v6220 = vsel %vm3147, %v6183, 0
      %6222 = vmatpush.msra.mxu0 0.0
      %6223 = vmatpush.msra.mxu0 0.0
      %6224 = vmatpush.msra.mxu0 0.0
      %6225 = vmatpush.msra.mxu0 0.0
      %6226 = vmatpush.msra.mxu0 0.0
      %6227 = vmatpush.msra.mxu0 0.0
      %6228 = vmatpush.msra.mxu0 0.0
      %6229 = vmatpush.msra.mxu0 0.0
      %6230 = vmatpush.msra.mxu0 0.0
      %6231 = vmatpush.msra.mxu0 0.0
      %6232 = vmatpush.msra.mxu0 0.0
      %6233 = vmatpush.msra.mxu0 0.0
      %6234 = vmatpush.msra.mxu0 %v5996
      %6235 = vmatpush.msra.mxu0 %v5994
      %6236 = vmatpush.msra.mxu0 %v5992
      %6237 = vmatpush.msra.mxu0 %v5990
      %6238 = vmatmul.f32.gmra.mxu0 %v6217
      %v6239 = vpop.f32.mrf.mxu0
      %v6240 = vadd.f32 %v6211, %v6239
      %6241 = vmatmul.f32.gmra.mxu0 %v6220
      %v6242 = vpop.f32.mrf.mxu0
      %v6243 = vadd.f32 %v6214, %v6242
      %6244 = vdwg.mxu0
      %s6245 = scalar_lea.vmem %s79, 96
      %v6246 = vld [vmem:[%s6245] sm:$0xff]
      %v6247 = vld [vmem:[%s6245 + $0x8] sm:$0xff]
      %v6249 = vsel %vm3147, %v6246, 0
      %v6252 = vsel %vm3147, %v6247, 0
      %6254 = vmatpush.msra.mxu0 0.0
      %6255 = vmatpush.msra.mxu0 0.0
      %6256 = vmatpush.msra.mxu0 0.0
      %6257 = vmatpush.msra.mxu0 0.0
      %6258 = vmatpush.msra.mxu0 0.0
      %6259 = vmatpush.msra.mxu0 0.0
      %6260 = vmatpush.msra.mxu0 0.0
      %6261 = vmatpush.msra.mxu0 0.0
      %6262 = vmatpush.msra.mxu0 0.0
      %6263 = vmatpush.msra.mxu0 0.0
      %6264 = vmatpush.msra.mxu0 0.0
      %6265 = vmatpush.msra.mxu0 0.0
      %6266 = vmatpush.msra.mxu0 %v6119
      %6267 = vmatpush.msra.mxu0 %v6117
      %6268 = vmatpush.msra.mxu0 %v6115
      %6269 = vmatpush.msra.mxu0 %v6113
      %6270 = vmatmul.f32.gmra.mxu0 %v6249
      %v6271 = vpop.f32.mrf.mxu0
      %v6272 = vadd.f32 0.0, %v6271
      %6273 = vmatmul.f32.gmra.mxu0 %v6252
      %v6274 = vpop.f32.mrf.mxu0
      %v6275 = vadd.f32 0.0, %v6274
      %6276 = vdwg.mxu0
      %v6277 = vadd.f32 %v6240, %v6272
      %v6278 = vadd.f32 %v6243, %v6275
      %s6279 = scalar_lea.vmem %s79, 128
      %v6280 = vld [vmem:[%s6279] sm:$0xff]
      %v6281 = vld [vmem:[%s6279 + $0x8] sm:$0xff]
      %6282 = vrot.lane.b32.xlu0 %v5978, 114
      %v6283 = vpop.permute.xlu0 %6282
      %6284 = vrot.lane.b32.xlu0 %v5979, 114
      %v6285 = vpop.permute.xlu0 %6284
      %6286 = vrot.lane.b32.xlu0 %v5980, 114
      %v6287 = vpop.permute.xlu0 %6286
      %6288 = vrot.lane.b32.xlu0 %v5981, 114
      %v6289 = vpop.permute.xlu0 %6288
      %v6295 = vsel %vm3147, %v6280, 0
      %v6298 = vsel %vm3147, %v6281, 0
      %6300 = vmatpush.msra.mxu0 0.0
      %6301 = vmatpush.msra.mxu0 0.0
      %6302 = vmatpush.msra.mxu0 0.0
      %6303 = vmatpush.msra.mxu0 0.0
      %6304 = vmatpush.msra.mxu0 0.0
      %6305 = vmatpush.msra.mxu0 0.0
      %6306 = vmatpush.msra.mxu0 0.0
      %6307 = vmatpush.msra.mxu0 0.0
      %6308 = vmatpush.msra.mxu0 0.0
      %6309 = vmatpush.msra.mxu0 0.0
      %6310 = vmatpush.msra.mxu0 0.0
      %6311 = vmatpush.msra.mxu0 0.0
      %6312 = vmatpush.msra.mxu0 %v6289
      %6313 = vmatpush.msra.mxu0 %v6287
      %6314 = vmatpush.msra.mxu0 %v6285
      %6315 = vmatpush.msra.mxu0 %v6283
      %6316 = vmatmul.f32.gmra.mxu0 %v6295
      %v6317 = vpop.f32.mrf.mxu0
      %v6318 = vadd.f32 0.0, %v6317
      %6319 = vmatmul.f32.gmra.mxu0 %v6298
      %v6320 = vpop.f32.mrf.mxu0
      %v6321 = vadd.f32 0.0, %v6320
      %6322 = vdwg.mxu0
      %v6323 = vadd.f32 %v6277, %v6318
      %v6324 = vadd.f32 %v6278, %v6321
      %v6325 = vld [vmem:[%s115] sm:$0xff]
      %v6326 = vld [vmem:[%s115 + $0x8] sm:$0xff]
      %v6327 = vld [vmem:[%s115 + $0x10] sm:$0xff]
      %v6328 = vld [vmem:[%s115 + $0x18] sm:$0xff]
      %v6329 = vld [vmem:[%s115 + $0x20] sm:$0xf]
      %s6330 = scalar_lea.vmem %s115, 40
      %v6331 = vld [vmem:[%s6330] sm:$0xff]
      %v6332 = vld [vmem:[%s6330 + $0x8] sm:$0xff]
      %v6333 = vld [vmem:[%s6330 + $0x10] sm:$0xff]
      %v6334 = vld [vmem:[%s6330 + $0x18] sm:$0xff]
      %v6335 = vld [vmem:[%s6330 + $0x20] sm:$0xf]
      %v6337 = vsel %vm1926, %v6101, 0
      %v6340 = vsel %vm1926, %v6104, 0
      %v6343 = vsel %vm1781, %v6335, 0
      %6345 = vmatpush.msra.mxu0 0.0
      %6346 = vmatpush.msra.mxu0 0.0
      %6347 = vmatpush.msra.mxu0 0.0
      %6348 = vmatpush.msra.mxu0 0.0
      %6349 = vmatpush.msra.mxu0 0.0
      %6350 = vmatpush.msra.mxu0 0.0
      %6351 = vmatpush.msra.mxu0 0.0
      %6352 = vmatpush.msra.mxu0 0.0
      %6353 = vmatpush.msra.mxu0 0.0
      %6354 = vmatpush.msra.mxu0 0.0
      %6355 = vmatpush.msra.mxu0 0.0
      %6356 = vmatpush.msra.mxu0 %v6343
      %6357 = vmatpush.msra.mxu0 %v6334
      %6358 = vmatpush.msra.mxu0 %v6333
      %6359 = vmatpush.msra.mxu0 %v6332
      %6360 = vmatpush.msra.mxu0 %v6331
      %6361 = vmatmul.f32.gmra.mxu0 %v6337
      %v6362 = vpop.f32.mrf.mxu0
      %v6363 = vadd.f32 0.0, %v6362
      %6364 = vmatmul.f32.gmra.mxu0 %v6340
      %v6365 = vpop.f32.mrf.mxu0
      %v6366 = vadd.f32 0.0, %v6365
      %6367 = vdwg.mxu0
      %v6369 = vsel %vm1926, %v6025, 0
      %v6372 = vsel %vm1926, %v6028, 0
      %v6375 = vsel %vm1781, %v6329, 0
      %6377 = vmatpush.msra.mxu0 0.0
      %6378 = vmatpush.msra.mxu0 0.0
      %6379 = vmatpush.msra.mxu0 0.0
      %6380 = vmatpush.msra.mxu0 0.0
      %6381 = vmatpush.msra.mxu0 0.0
      %6382 = vmatpush.msra.mxu0 0.0
      %6383 = vmatpush.msra.mxu0 0.0
      %6384 = vmatpush.msra.mxu0 0.0
      %6385 = vmatpush.msra.mxu0 0.0
      %6386 = vmatpush.msra.mxu0 0.0
      %6387 = vmatpush.msra.mxu0 0.0
      %6388 = vmatpush.msra.mxu0 %v6375
      %6389 = vmatpush.msra.mxu0 %v6328
      %6390 = vmatpush.msra.mxu0 %v6327
      %6391 = vmatpush.msra.mxu0 %v6326
      %6392 = vmatpush.msra.mxu0 %v6325
      %6393 = vmatmul.f32.gmra.mxu0 %v6369
      %v6394 = vpop.f32.mrf.mxu0
      %v6395 = vadd.f32 %v6363, %v6394
      %6396 = vmatmul.f32.gmra.mxu0 %v6372
      %v6397 = vpop.f32.mrf.mxu0
      %v6398 = vadd.f32 %v6366, %v6397
      %6399 = vdwg.mxu0
      %s6400 = scalar_lea.vmem %s115, 80
      %v6401 = vld [vmem:[%s6400] sm:$0xff]
      %v6402 = vld [vmem:[%s6400 + $0x8] sm:$0xff]
      %v6403 = vld [vmem:[%s6400 + $0x10] sm:$0xff]
      %v6404 = vld [vmem:[%s6400 + $0x18] sm:$0xff]
      %v6405 = vld [vmem:[%s6400 + $0x20] sm:$0xf]
      %v6407 = vsel %vm1926, %v6177, 0
      %v6410 = vsel %vm1926, %v6180, 0
      %v6413 = vsel %vm1781, %v6405, 0
      %6415 = vmatpush.msra.mxu0 0.0
      %6416 = vmatpush.msra.mxu0 0.0
      %6417 = vmatpush.msra.mxu0 0.0
      %6418 = vmatpush.msra.mxu0 0.0
      %6419 = vmatpush.msra.mxu0 0.0
      %6420 = vmatpush.msra.mxu0 0.0
      %6421 = vmatpush.msra.mxu0 0.0
      %6422 = vmatpush.msra.mxu0 0.0
      %6423 = vmatpush.msra.mxu0 0.0
      %6424 = vmatpush.msra.mxu0 0.0
      %6425 = vmatpush.msra.mxu0 0.0
      %6426 = vmatpush.msra.mxu0 %v6413
      %6427 = vmatpush.msra.mxu0 %v6404
      %6428 = vmatpush.msra.mxu0 %v6403
      %6429 = vmatpush.msra.mxu0 %v6402
      %6430 = vmatpush.msra.mxu0 %v6401
      %6431 = vmatmul.f32.gmra.mxu0 %v6407
      %v6432 = vpop.f32.mrf.mxu0
      %v6433 = vadd.f32 0.0, %v6432
      %6434 = vmatmul.f32.gmra.mxu0 %v6410
      %v6435 = vpop.f32.mrf.mxu0
      %v6436 = vadd.f32 0.0, %v6435
      %6437 = vdwg.mxu0
      %v6438 = vadd.f32 %v6395, %v6433
      %v6439 = vadd.f32 %v6398, %v6436
      %s6440 = scalar_lea.vmem %s115, 120
      %v6441 = vld [vmem:[%s6440] sm:$0xff]
      %v6442 = vld [vmem:[%s6440 + $0x8] sm:$0xff]
      %v6443 = vld [vmem:[%s6440 + $0x10] sm:$0xff]
      %v6444 = vld [vmem:[%s6440 + $0x18] sm:$0xff]
      %v6445 = vld [vmem:[%s6440 + $0x20] sm:$0xf]
      %v6447 = vsel %vm1926, %v6323, 0
      %v6450 = vsel %vm1926, %v6324, 0
      %v6453 = vsel %vm1781, %v6445, 0
      %6455 = vmatpush.msra.mxu0 0.0
      %6456 = vmatpush.msra.mxu0 0.0
      %6457 = vmatpush.msra.mxu0 0.0
      %6458 = vmatpush.msra.mxu0 0.0
      %6459 = vmatpush.msra.mxu0 0.0
      %6460 = vmatpush.msra.mxu0 0.0
      %6461 = vmatpush.msra.mxu0 0.0
      %6462 = vmatpush.msra.mxu0 0.0
      %6463 = vmatpush.msra.mxu0 0.0
      %6464 = vmatpush.msra.mxu0 0.0
      %6465 = vmatpush.msra.mxu0 0.0
      %6466 = vmatpush.msra.mxu0 %v6453
      %6467 = vmatpush.msra.mxu0 %v6444
      %6468 = vmatpush.msra.mxu0 %v6443
      %6469 = vmatpush.msra.mxu0 %v6442
      %6470 = vmatpush.msra.mxu0 %v6441
      %6471 = vmatmul.f32.gmra.mxu0 %v6447
      %v6472 = vpop.f32.mrf.mxu0
      %v6473 = vadd.f32 0.0, %v6472
      %6474 = vmatmul.f32.gmra.mxu0 %v6450
      %v6475 = vpop.f32.mrf.mxu0
      %v6476 = vadd.f32 0.0, %v6475
      %6477 = vdwg.mxu0
      %v6478 = vadd.f32 %v6438, %v6473
      %v6479 = vadd.f32 %v6439, %v6476
      %v6480 = vld [vmem:[%s81] sm:$0xff]
      %v6481 = vld [vmem:[%s81 + $0x8] sm:$0xff]
      %6483 = vset.pattern.permute.xlu0 0
      %6484 = vperm.xlu0 %6483, %v6480
      %v6485 = vpop.permute.xlu0 %6484
      %6488 = vset.pattern.permute.xlu0 0
      %6489 = vperm.xlu0 %6488, %v6481
      %v6490 = vpop.permute.xlu0 %6489
      %v6492 = vadd.f32 %v6478, %v6485
      %v6493 = vadd.f32 %v6479, %v6490
      %v6494 = vmul.f32 %v6492, %v2390
      %v6495 = vmul.f32 %v6493, %v2390
      %6498 = vrot.lane.b32.xlu0 %v6494, 11
      %v6499 = vpop.permute.xlu0 %6498
      %6500 = vrot.lane.b32.xlu0 %v6495, 11
      %v6501 = vpop.permute.xlu0 %6500
      %v6504 = vsel %vm2397, 0.0, %v6499
      %v6505 = vsel %vm2397, 0.0, %v6501
      %v6506 = vsel %vm2399, %v6504, 0.0
      %v6507 = vsel %vm2399, %v6505, 0.0
      %6510 = vrot.lane.b32.xlu0 %v6506, 127
      %v6511 = vpop.permute.xlu0 %6510
      %6512 = vrot.lane.b32.xlu0 %v6507, 127
      %v6513 = vpop.permute.xlu0 %6512
      %6516 = vrot.lane.b32.xlu0 %v2646, 126
      %v6517 = vpop.permute.xlu0 %6516
      %6518 = vrot.lane.b32.xlu0 %v2647, 126
      %v6519 = vpop.permute.xlu0 %6518
      %6520 = vrot.lane.b32.xlu0 %v6506, 126
      %v6521 = vpop.permute.xlu0 %6520
      %6522 = vrot.lane.b32.xlu0 %v6507, 126
      %v6523 = vpop.permute.xlu0 %6522
      %6528 = vrot.lane.b32.xlu0 %v2646, 118
      %v6529 = vpop.permute.xlu0 %6528
      %6530 = vrot.lane.b32.xlu0 %v2647, 118
      %v6531 = vpop.permute.xlu0 %6530
      %6532 = vrot.lane.b32.xlu0 %v6506, 118
      %v6533 = vpop.permute.xlu0 %6532
      %6534 = vrot.lane.b32.xlu0 %v6507, 118
      %v6535 = vpop.permute.xlu0 %6534
      %6540 = vrot.lane.b32.xlu0 %v2646, 117
      %v6541 = vpop.permute.xlu0 %6540
      %6542 = vrot.lane.b32.xlu0 %v2647, 117
      %v6543 = vpop.permute.xlu0 %6542
      %6544 = vrot.lane.b32.xlu0 %v6506, 117
      %v6545 = vpop.permute.xlu0 %6544
      %6546 = vrot.lane.b32.xlu0 %v6507, 117
      %v6547 = vpop.permute.xlu0 %6546
      %6552 = vrot.lane.b32.xlu0 %v2646, 116
      %v6553 = vpop.permute.xlu0 %6552
      %6554 = vrot.lane.b32.xlu0 %v2647, 116
      %v6555 = vpop.permute.xlu0 %6554
      %6556 = vrot.lane.b32.xlu0 %v6506, 116
      %v6557 = vpop.permute.xlu0 %6556
      %6558 = vrot.lane.b32.xlu0 %v6507, 116
      %v6559 = vpop.permute.xlu0 %6558
      %6564 = vrot.lane.b32.xlu0 %v2646, 108
      %v6565 = vpop.permute.xlu0 %6564
      %6566 = vrot.lane.b32.xlu0 %v2647, 108
      %v6567 = vpop.permute.xlu0 %6566
      %6568 = vrot.lane.b32.xlu0 %v6506, 108
      %v6569 = vpop.permute.xlu0 %6568
      %6570 = vrot.lane.b32.xlu0 %v6507, 108
      %v6571 = vpop.permute.xlu0 %6570
      %6576 = vrot.lane.b32.xlu0 %v2646, 107
      %v6577 = vpop.permute.xlu0 %6576
      %6578 = vrot.lane.b32.xlu0 %v2647, 107
      %v6579 = vpop.permute.xlu0 %6578
      %6580 = vrot.lane.b32.xlu0 %v6506, 107
      %v6581 = vpop.permute.xlu0 %6580
      %6582 = vrot.lane.b32.xlu0 %v6507, 107
      %v6583 = vpop.permute.xlu0 %6582
      %6588 = vrot.lane.b32.xlu0 %v2646, 106
      %v6589 = vpop.permute.xlu0 %6588
      %6590 = vrot.lane.b32.xlu0 %v2647, 106
      %v6591 = vpop.permute.xlu0 %6590
      %6592 = vrot.lane.b32.xlu0 %v6506, 106
      %v6593 = vpop.permute.xlu0 %6592
      %6594 = vrot.lane.b32.xlu0 %v6507, 106
      %v6595 = vpop.permute.xlu0 %6594
      %v6600 = vld [vmem:[%s83] sm:$0xff]
      %v6601 = vld [vmem:[%s83 + $0x8] sm:$0xff]
      %v6602 = vld [vmem:[%s83 + $0x10] sm:$0xff]
      %v6603 = vld [vmem:[%s83 + $0x18] sm:$0xff]
      %v6604 = vld [vmem:[%s83 + $0x20] sm:$0xff]
      %v6605 = vld [vmem:[%s83 + $0x28] sm:$0xff]
      %v6606 = vld [vmem:[%s85] sm:$0xff]
      %v6607 = vld [vmem:[%s85 + $0x8] sm:$0xff]
      %6609 = vset.pattern.permute.xlu0 0
      %6610 = vperm.xlu0 %6609, %v6606
      %v6611 = vpop.permute.xlu0 %6610
      %6614 = vset.pattern.permute.xlu0 0
      %6615 = vperm.xlu0 %6614, %v6607
      %v6616 = vpop.permute.xlu0 %6615
      %v6619 = vsel %vm3147, %v6602, 0
      %v6622 = vsel %vm3147, %v6605, 0
      %6624 = vmatpush.msra.mxu0 %v6535
      %6625 = vmatpush.msra.mxu0 %v6533
      %6626 = vmatpush.msra.mxu0 %v6531
      %6627 = vmatpush.msra.mxu0 %v6529
      %6628 = vmatpush.msra.mxu0 %v6523
      %6629 = vmatpush.msra.mxu0 %v6521
      %6630 = vmatpush.msra.mxu0 %v6519
      %6631 = vmatpush.msra.mxu0 %v6517
      %6632 = vmatpush.msra.mxu0 %v6513
      %6633 = vmatpush.msra.mxu0 %v6511
      %6634 = vmatpush.msra.mxu0 %v2653
      %6635 = vmatpush.msra.mxu0 %v2651
      %6636 = vmatpush.msra.mxu0 %v6507
      %6637 = vmatpush.msra.mxu0 %v6506
      %6638 = vmatpush.msra.mxu0 %v2647
      %6639 = vmatpush.msra.mxu0 %v2646
      %6640 = vmatmul.f32.gmra.mxu0 %v6600
      %v6641 = vpop.f32.mrf.mxu0
      %v6642 = vadd.f32 %v6611, %v6641
      %6643 = vmatmul.f32.gmra.mxu0 %v6603
      %v6644 = vpop.f32.mrf.mxu0
      %v6645 = vadd.f32 %v6616, %v6644
      %6646 = vdwg.mxu0
      %6647 = vmatpush.msra.mxu0 %v6583
      %6648 = vmatpush.msra.mxu0 %v6581
      %6649 = vmatpush.msra.mxu0 %v6579
      %6650 = vmatpush.msra.mxu0 %v6577
      %6651 = vmatpush.msra.mxu0 %v6571
      %6652 = vmatpush.msra.mxu0 %v6569
      %6653 = vmatpush.msra.mxu0 %v6567
      %6654 = vmatpush.msra.mxu0 %v6565
      %6655 = vmatpush.msra.mxu0 %v6559
      %6656 = vmatpush.msra.mxu0 %v6557
      %6657 = vmatpush.msra.mxu0 %v6555
      %6658 = vmatpush.msra.mxu0 %v6553
      %6659 = vmatpush.msra.mxu0 %v6547
      %6660 = vmatpush.msra.mxu0 %v6545
      %6661 = vmatpush.msra.mxu0 %v6543
      %6662 = vmatpush.msra.mxu0 %v6541
      %6663 = vmatmul.f32.gmra.mxu0 %v6601
      %v6664 = vpop.f32.mrf.mxu0
      %v6665 = vadd.f32 %v6642, %v6664
      %6666 = vmatmul.f32.gmra.mxu0 %v6604
      %v6667 = vpop.f32.mrf.mxu0
      %v6668 = vadd.f32 %v6645, %v6667
      %6669 = vdwg.mxu0
      %6670 = vmatpush.msra.mxu0 0.0
      %6671 = vmatpush.msra.mxu0 0.0
      %6672 = vmatpush.msra.mxu0 0.0
      %6673 = vmatpush.msra.mxu0 0.0
      %6674 = vmatpush.msra.mxu0 0.0
      %6675 = vmatpush.msra.mxu0 0.0
      %6676 = vmatpush.msra.mxu0 0.0
      %6677 = vmatpush.msra.mxu0 0.0
      %6678 = vmatpush.msra.mxu0 0.0
      %6679 = vmatpush.msra.mxu0 0.0
      %6680 = vmatpush.msra.mxu0 0.0
      %6681 = vmatpush.msra.mxu0 0.0
      %6682 = vmatpush.msra.mxu0 %v6595
      %6683 = vmatpush.msra.mxu0 %v6593
      %6684 = vmatpush.msra.mxu0 %v6591
      %6685 = vmatpush.msra.mxu0 %v6589
      %6686 = vmatmul.f32.gmra.mxu0 %v6619
      %v6687 = vpop.f32.mrf.mxu0
      %v6688 = vadd.f32 %v6665, %v6687
      %6689 = vmatmul.f32.gmra.mxu0 %v6622
      %v6690 = vpop.f32.mrf.mxu0
      %v6691 = vadd.f32 %v6668, %v6690
      %6692 = vdwg.mxu0
      %v6693 = vmul.f32 %v6688, %v2390
      %v6694 = vmul.f32 %v6691, %v2390
      %6697 = vrot.lane.b32.xlu0 %v6693, 11
      %v6698 = vpop.permute.xlu0 %6697
      %6699 = vrot.lane.b32.xlu0 %v6694, 11
      %v6700 = vpop.permute.xlu0 %6699
      %v6703 = vsel %vm2397, 0.0, %v6698
      %v6704 = vsel %vm2397, 0.0, %v6700
      %v6705 = vsel %vm2399, %v6703, 0.0
      %v6706 = vsel %vm2399, %v6704, 0.0
      %6709 = vrot.lane.b32.xlu0 %v6705, 127
      %v6710 = vpop.permute.xlu0 %6709
      %6711 = vrot.lane.b32.xlu0 %v6706, 127
      %v6712 = vpop.permute.xlu0 %6711
      %6715 = vrot.lane.b32.xlu0 %v6705, 126
      %v6716 = vpop.permute.xlu0 %6715
      %6717 = vrot.lane.b32.xlu0 %v6706, 126
      %v6718 = vpop.permute.xlu0 %6717
      %6721 = vrot.lane.b32.xlu0 %v6705, 118
      %v6722 = vpop.permute.xlu0 %6721
      %6723 = vrot.lane.b32.xlu0 %v6706, 118
      %v6724 = vpop.permute.xlu0 %6723
      %6727 = vrot.lane.b32.xlu0 %v6705, 117
      %v6728 = vpop.permute.xlu0 %6727
      %6729 = vrot.lane.b32.xlu0 %v6706, 117
      %v6730 = vpop.permute.xlu0 %6729
      %6733 = vrot.lane.b32.xlu0 %v6705, 116
      %v6734 = vpop.permute.xlu0 %6733
      %6735 = vrot.lane.b32.xlu0 %v6706, 116
      %v6736 = vpop.permute.xlu0 %6735
      %6739 = vrot.lane.b32.xlu0 %v6705, 108
      %v6740 = vpop.permute.xlu0 %6739
      %6741 = vrot.lane.b32.xlu0 %v6706, 108
      %v6742 = vpop.permute.xlu0 %6741
      %6745 = vrot.lane.b32.xlu0 %v6705, 107
      %v6746 = vpop.permute.xlu0 %6745
      %6747 = vrot.lane.b32.xlu0 %v6706, 107
      %v6748 = vpop.permute.xlu0 %6747
      %6751 = vrot.lane.b32.xlu0 %v6705, 106
      %v6752 = vpop.permute.xlu0 %6751
      %6753 = vrot.lane.b32.xlu0 %v6706, 106
      %v6754 = vpop.permute.xlu0 %6753
      %v6757 = vld [vmem:[%s87] sm:$0xff]
      %v6758 = vld [vmem:[%s87 + $0x8] sm:$0xff]
      %v6759 = vld [vmem:[%s87 + $0x10] sm:$0xff]
      %v6760 = vld [vmem:[%s87 + $0x18] sm:$0xff]
      %v6761 = vld [vmem:[%s89] sm:$0xff]
      %v6762 = vld [vmem:[%s89 + $0x8] sm:$0xff]
      %6764 = vset.pattern.permute.xlu0 0
      %6765 = vperm.xlu0 %6764, %v6761
      %v6766 = vpop.permute.xlu0 %6765
      %6769 = vset.pattern.permute.xlu0 0
      %6770 = vperm.xlu0 %6769, %v6762
      %v6771 = vpop.permute.xlu0 %6770
      %v6774 = vsel %vm2581, %v6758, 0
      %v6777 = vsel %vm2581, %v6760, 0
      %6779 = vmatpush.msra.mxu0 %v6748
      %6780 = vmatpush.msra.mxu0 %v6746
      %6781 = vmatpush.msra.mxu0 %v6742
      %6782 = vmatpush.msra.mxu0 %v6740
      %6783 = vmatpush.msra.mxu0 %v6736
      %6784 = vmatpush.msra.mxu0 %v6734
      %6785 = vmatpush.msra.mxu0 %v6730
      %6786 = vmatpush.msra.mxu0 %v6728
      %6787 = vmatpush.msra.mxu0 %v6724
      %6788 = vmatpush.msra.mxu0 %v6722
      %6789 = vmatpush.msra.mxu0 %v6718
      %6790 = vmatpush.msra.mxu0 %v6716
      %6791 = vmatpush.msra.mxu0 %v6712
      %6792 = vmatpush.msra.mxu0 %v6710
      %6793 = vmatpush.msra.mxu0 %v6706
      %6794 = vmatpush.msra.mxu0 %v6705
      %6795 = vmatmul.f32.gmra.mxu0 %v6757
      %v6796 = vpop.f32.mrf.mxu0
      %v6797 = vadd.f32 %v6766, %v6796
      %6798 = vmatmul.f32.gmra.mxu0 %v6759
      %v6799 = vpop.f32.mrf.mxu0
      %v6800 = vadd.f32 %v6771, %v6799
      %6801 = vdwg.mxu0
      %6802 = vmatpush.msra.mxu0 0.0
      %6803 = vmatpush.msra.mxu0 0.0
      %6804 = vmatpush.msra.mxu0 0.0
      %6805 = vmatpush.msra.mxu0 0.0
      %6806 = vmatpush.msra.mxu0 0.0
      %6807 = vmatpush.msra.mxu0 0.0
      %6808 = vmatpush.msra.mxu0 0.0
      %6809 = vmatpush.msra.mxu0 0.0
      %6810 = vmatpush.msra.mxu0 0.0
      %6811 = vmatpush.msra.mxu0 0.0
      %6812 = vmatpush.msra.mxu0 0.0
      %6813 = vmatpush.msra.mxu0 0.0
      %6814 = vmatpush.msra.mxu0 0.0
      %6815 = vmatpush.msra.mxu0 0.0
      %6816 = vmatpush.msra.mxu0 %v6754
      %6817 = vmatpush.msra.mxu0 %v6752
      %6818 = vmatmul.f32.gmra.mxu0 %v6774
      %v6819 = vpop.f32.mrf.mxu0
      %v6820 = vadd.f32 %v6797, %v6819
      %6821 = vmatmul.f32.gmra.mxu0 %v6777
      %v6822 = vpop.f32.mrf.mxu0
      %v6823 = vadd.f32 %v6800, %v6822
      %6824 = vdwg.mxu0
      %v6825 = vmul.f32 %v6820, %v2390
      %v6826 = vmul.f32 %v6823, %v2390
      %6829 = vrot.lane.b32.xlu0 %v6825, 11
      %v6830 = vpop.permute.xlu0 %6829
      %6831 = vrot.lane.b32.xlu0 %v6826, 11
      %v6832 = vpop.permute.xlu0 %6831
      %v6835 = vsel %vm2397, 0.0, %v6830
      %v6836 = vsel %vm2397, 0.0, %v6832
      %v6837 = vsel %vm2399, %v6835, 0.0
      %v6838 = vsel %vm2399, %v6836, 0.0
      %s6839 = scalar_lea.vmem %s91, 32
      %v6840 = vld [vmem:[%s6839] sm:$0xff]
      %6843 = vrot.lane.b32.xlu0 %v6837, 117
      %v6844 = vpop.permute.xlu0 %6843
      %6845 = vrot.lane.b32.xlu0 %v6838, 117
      %v6846 = vpop.permute.xlu0 %6845
      %v6850 = vsel %vm2581, %v6840, 0
      %6852 = vmatpush.msra.mxu0 0.0
      %6853 = vmatpush.msra.mxu0 0.0
      %6854 = vmatpush.msra.mxu0 0.0
      %6855 = vmatpush.msra.mxu0 0.0
      %6856 = vmatpush.msra.mxu0 0.0
      %6857 = vmatpush.msra.mxu0 0.0
      %6858 = vmatpush.msra.mxu0 0.0
      %6859 = vmatpush.msra.mxu0 0.0
      %6860 = vmatpush.msra.mxu0 0.0
      %6861 = vmatpush.msra.mxu0 0.0
      %6862 = vmatpush.msra.mxu0 0.0
      %6863 = vmatpush.msra.mxu0 0.0
      %6864 = vmatpush.msra.mxu0 0.0
      %6865 = vmatpush.msra.mxu0 0.0
      %6866 = vmatpush.msra.mxu0 %v6846
      %6867 = vmatpush.msra.mxu0 %v6844
      %6868 = vmatmul.f32.gmra.mxu0 %v6850
      %v6869 = vpop.f32.mrf.mxu0
      %v6870 = vadd.f32 0.0, %v6869
      %6871 = vdwg.mxu0
      %s6872 = scalar_lea.vmem %s91, 24
      %v6873 = vld [vmem:[%s6872] sm:$0xff]
      %s6874 = scalar_lea.vmem %s91, 40
      %v6875 = vld [vmem:[%s6874] sm:$0xff]
      %6876 = vrot.lane.b32.xlu0 %v6837, 116
      %v6877 = vpop.permute.xlu0 %6876
      %6878 = vrot.lane.b32.xlu0 %v6838, 116
      %v6879 = vpop.permute.xlu0 %6878
      %v6883 = vsel %vm2581, %v6875, 0
      %6885 = vmatpush.msra.mxu0 0.0
      %6886 = vmatpush.msra.mxu0 0.0
      %6887 = vmatpush.msra.mxu0 0.0
      %6888 = vmatpush.msra.mxu0 0.0
      %6889 = vmatpush.msra.mxu0 0.0
      %6890 = vmatpush.msra.mxu0 0.0
      %6891 = vmatpush.msra.mxu0 0.0
      %6892 = vmatpush.msra.mxu0 0.0
      %6893 = vmatpush.msra.mxu0 0.0
      %6894 = vmatpush.msra.mxu0 0.0
      %6895 = vmatpush.msra.mxu0 0.0
      %6896 = vmatpush.msra.mxu0 0.0
      %6897 = vmatpush.msra.mxu0 0.0
      %6898 = vmatpush.msra.mxu0 0.0
      %6899 = vmatpush.msra.mxu0 %v6879
      %6900 = vmatpush.msra.mxu0 %v6877
      %6901 = vmatmul.f32.gmra.mxu0 %v6883
      %v6902 = vpop.f32.mrf.mxu0
      %v6903 = vadd.f32 0.0, %v6902
      %6904 = vdwg.mxu0
      %v6906 = vsel %vm2581, %v6873, 0
      %6908 = vmatpush.msra.mxu0 0.0
      %6909 = vmatpush.msra.mxu0 0.0
      %6910 = vmatpush.msra.mxu0 0.0
      %6911 = vmatpush.msra.mxu0 0.0
      %6912 = vmatpush.msra.mxu0 0.0
      %6913 = vmatpush.msra.mxu0 0.0
      %6914 = vmatpush.msra.mxu0 0.0
      %6915 = vmatpush.msra.mxu0 0.0
      %6916 = vmatpush.msra.mxu0 0.0
      %6917 = vmatpush.msra.mxu0 0.0
      %6918 = vmatpush.msra.mxu0 0.0
      %6919 = vmatpush.msra.mxu0 0.0
      %6920 = vmatpush.msra.mxu0 0.0
      %6921 = vmatpush.msra.mxu0 0.0
      %6922 = vmatpush.msra.mxu0 %v6846
      %6923 = vmatpush.msra.mxu0 %v6844
      %6924 = vmatmul.f32.gmra.mxu0 %v6906
      %v6925 = vpop.f32.mrf.mxu0
      %v6926 = vadd.f32 %v6903, %v6925
      %6927 = vdwg.mxu0
      %s6928 = scalar_lea.vmem %s91, 8
      %v6929 = vld [vmem:[%s6928] sm:$0xff]
      %s6930 = scalar_lea.vmem %s91, 56
      %v6931 = vld [vmem:[%s6930] sm:$0xff]
      %6932 = vrot.lane.b32.xlu0 %v6837, 107
      %v6933 = vpop.permute.xlu0 %6932
      %6934 = vrot.lane.b32.xlu0 %v6838, 107
      %v6935 = vpop.permute.xlu0 %6934
      %v6939 = vsel %vm2581, %v6931, 0
      %6941 = vmatpush.msra.mxu0 0.0
      %6942 = vmatpush.msra.mxu0 0.0
      %6943 = vmatpush.msra.mxu0 0.0
      %6944 = vmatpush.msra.mxu0 0.0
      %6945 = vmatpush.msra.mxu0 0.0
      %6946 = vmatpush.msra.mxu0 0.0
      %6947 = vmatpush.msra.mxu0 0.0
      %6948 = vmatpush.msra.mxu0 0.0
      %6949 = vmatpush.msra.mxu0 0.0
      %6950 = vmatpush.msra.mxu0 0.0
      %6951 = vmatpush.msra.mxu0 0.0
      %6952 = vmatpush.msra.mxu0 0.0
      %6953 = vmatpush.msra.mxu0 0.0
      %6954 = vmatpush.msra.mxu0 0.0
      %6955 = vmatpush.msra.mxu0 %v6935
      %6956 = vmatpush.msra.mxu0 %v6933
      %6957 = vmatmul.f32.gmra.mxu0 %v6939
      %v6958 = vpop.f32.mrf.mxu0
      %v6959 = vadd.f32 0.0, %v6958
      %6960 = vdwg.mxu0
      %v6962 = vsel %vm2581, %v6929, 0
      %6964 = vmatpush.msra.mxu0 0.0
      %6965 = vmatpush.msra.mxu0 0.0
      %6966 = vmatpush.msra.mxu0 0.0
      %6967 = vmatpush.msra.mxu0 0.0
      %6968 = vmatpush.msra.mxu0 0.0
      %6969 = vmatpush.msra.mxu0 0.0
      %6970 = vmatpush.msra.mxu0 0.0
      %6971 = vmatpush.msra.mxu0 0.0
      %6972 = vmatpush.msra.mxu0 0.0
      %6973 = vmatpush.msra.mxu0 0.0
      %6974 = vmatpush.msra.mxu0 0.0
      %6975 = vmatpush.msra.mxu0 0.0
      %6976 = vmatpush.msra.mxu0 0.0
      %6977 = vmatpush.msra.mxu0 0.0
      %6978 = vmatpush.msra.mxu0 %v6846
      %6979 = vmatpush.msra.mxu0 %v6844
      %6980 = vmatmul.f32.gmra.mxu0 %v6962
      %v6981 = vpop.f32.mrf.mxu0
      %v6982 = vadd.f32 %v6959, %v6981
      %6983 = vdwg.mxu0
      %v6984 = vld [vmem:[%s91] sm:$0xff]
      %s6985 = scalar_lea.vmem %s91, 16
      %v6986 = vld [vmem:[%s6985] sm:$0xff]
      %v6988 = vsel %vm2581, %v6986, 0
      %6990 = vmatpush.msra.mxu0 0.0
      %6991 = vmatpush.msra.mxu0 0.0
      %6992 = vmatpush.msra.mxu0 0.0
      %6993 = vmatpush.msra.mxu0 0.0
      %6994 = vmatpush.msra.mxu0 0.0
      %6995 = vmatpush.msra.mxu0 0.0
      %6996 = vmatpush.msra.mxu0 0.0
      %6997 = vmatpush.msra.mxu0 0.0
      %6998 = vmatpush.msra.mxu0 0.0
      %6999 = vmatpush.msra.mxu0 0.0
      %7000 = vmatpush.msra.mxu0 0.0
      %7001 = vmatpush.msra.mxu0 0.0
      %7002 = vmatpush.msra.mxu0 0.0
      %7003 = vmatpush.msra.mxu0 0.0
      %7004 = vmatpush.msra.mxu0 %v6879
      %7005 = vmatpush.msra.mxu0 %v6877
      %7006 = vmatmul.f32.gmra.mxu0 %v6988
      %v7007 = vpop.f32.mrf.mxu0
      %v7008 = vadd.f32 0.0, %v7007
      %7009 = vdwg.mxu0
      %v7011 = vsel %vm2581, %v6984, 0
      %7013 = vmatpush.msra.mxu0 0.0
      %7014 = vmatpush.msra.mxu0 0.0
      %7015 = vmatpush.msra.mxu0 0.0
      %7016 = vmatpush.msra.mxu0 0.0
      %7017 = vmatpush.msra.mxu0 0.0
      %7018 = vmatpush.msra.mxu0 0.0
      %7019 = vmatpush.msra.mxu0 0.0
      %7020 = vmatpush.msra.mxu0 0.0
      %7021 = vmatpush.msra.mxu0 0.0
      %7022 = vmatpush.msra.mxu0 0.0
      %7023 = vmatpush.msra.mxu0 0.0
      %7024 = vmatpush.msra.mxu0 0.0
      %7025 = vmatpush.msra.mxu0 0.0
      %7026 = vmatpush.msra.mxu0 0.0
      %7027 = vmatpush.msra.mxu0 %v6846
      %7028 = vmatpush.msra.mxu0 %v6844
      %7029 = vmatmul.f32.gmra.mxu0 %v7011
      %v7030 = vpop.f32.mrf.mxu0
      %v7031 = vadd.f32 %v7008, %v7030
      %7032 = vdwg.mxu0
      %s7033 = scalar_lea.vmem %s91, 48
      %v7034 = vld [vmem:[%s7033] sm:$0xff]
      %v7036 = vsel %vm2581, %v7034, 0
      %7038 = vmatpush.msra.mxu0 0.0
      %7039 = vmatpush.msra.mxu0 0.0
      %7040 = vmatpush.msra.mxu0 0.0
      %7041 = vmatpush.msra.mxu0 0.0
      %7042 = vmatpush.msra.mxu0 0.0
      %7043 = vmatpush.msra.mxu0 0.0
      %7044 = vmatpush.msra.mxu0 0.0
      %7045 = vmatpush.msra.mxu0 0.0
      %7046 = vmatpush.msra.mxu0 0.0
      %7047 = vmatpush.msra.mxu0 0.0
      %7048 = vmatpush.msra.mxu0 0.0
      %7049 = vmatpush.msra.mxu0 0.0
      %7050 = vmatpush.msra.mxu0 0.0
      %7051 = vmatpush.msra.mxu0 0.0
      %7052 = vmatpush.msra.mxu0 %v6935
      %7053 = vmatpush.msra.mxu0 %v6933
      %7054 = vmatmul.f32.gmra.mxu0 %v7036
      %v7055 = vpop.f32.mrf.mxu0
      %v7056 = vadd.f32 0.0, %v7055
      %7057 = vdwg.mxu0
      %v7058 = vadd.f32 %v7031, %v7056
      %s7059 = scalar_lea.vmem %s91, 64
      %v7060 = vld [vmem:[%s7059] sm:$0xff]
      %7061 = vrot.lane.b32.xlu0 %v6837, 106
      %v7062 = vpop.permute.xlu0 %7061
      %7063 = vrot.lane.b32.xlu0 %v6838, 106
      %v7064 = vpop.permute.xlu0 %7063
      %v7068 = vsel %vm2581, %v7060, 0
      %7070 = vmatpush.msra.mxu0 0.0
      %7071 = vmatpush.msra.mxu0 0.0
      %7072 = vmatpush.msra.mxu0 0.0
      %7073 = vmatpush.msra.mxu0 0.0
      %7074 = vmatpush.msra.mxu0 0.0
      %7075 = vmatpush.msra.mxu0 0.0
      %7076 = vmatpush.msra.mxu0 0.0
      %7077 = vmatpush.msra.mxu0 0.0
      %7078 = vmatpush.msra.mxu0 0.0
      %7079 = vmatpush.msra.mxu0 0.0
      %7080 = vmatpush.msra.mxu0 0.0
      %7081 = vmatpush.msra.mxu0 0.0
      %7082 = vmatpush.msra.mxu0 0.0
      %7083 = vmatpush.msra.mxu0 0.0
      %7084 = vmatpush.msra.mxu0 %v7064
      %7085 = vmatpush.msra.mxu0 %v7062
      %7086 = vmatmul.f32.gmra.mxu0 %v7068
      %v7087 = vpop.f32.mrf.mxu0
      %v7088 = vadd.f32 0.0, %v7087
      %7089 = vdwg.mxu0
      %v7090 = vadd.f32 %v7058, %v7088
      %v7091 = vld [vmem:[%s117] sm:$0xff]
      %v7092 = vld [vmem:[%s117 + $0x8] sm:$0xff]
      %v7093 = vld [vmem:[%s117 + $0x10] sm:$0xff]
      %v7094 = vld [vmem:[%s117 + $0x18] sm:$0xff]
      %v7095 = vld [vmem:[%s117 + $0x20] sm:$0xff]
      %v7096 = vld [vmem:[%s117 + $0x28] sm:$0xff]
      %v7097 = vld [vmem:[%s117 + $0x30] sm:$0xff]
      %v7098 = vld [vmem:[%s117 + $0x38] sm:$0xff]
      %v7099 = vld [vmem:[%s117 + $0x40] sm:$0xff]
      %v7100 = vld [vmem:[%s117 + $0x48] sm:$0xff]
      %v7101 = vld [vmem:[%s117 + $0x50] sm:$0xff]
      %v7102 = vld [vmem:[%s117 + $0x58] sm:$0xff]
      %v7103 = vld [vmem:[%s117 + $0x60] sm:$0xff]
      %v7104 = vld [vmem:[%s117 + $0x68] sm:$0xff]
      %v7105 = vld [vmem:[%s117 + $0x70] sm:$0xff]
      %v7106 = vld [vmem:[%s117 + $0x78] sm:$0xff]
      %v7107 = vld [vmem:[%s117 + $0x80] sm:$0xff]
      %v7108 = vld [vmem:[%s117 + $0x88] sm:$0xff]
      %v7109 = vld [vmem:[%s117 + $0x90] sm:$0xff]
      %v7110 = vld [vmem:[%s117 + $0x98] sm:$0xff]
      %v7111 = vld [vmem:[%s117 + $0xa0] sm:$0xff]
      %v7112 = vld [vmem:[%s117 + $0xa8] sm:$0xff]
      %v7113 = vld [vmem:[%s117 + $0xb0] sm:$0xff]
      %v7114 = vld [vmem:[%s117 + $0xb8] sm:$0xff]
      %v7115 = vld [vmem:[%s117 + $0xc0] sm:$0xff]
      %v7116 = vld [vmem:[%s117 + $0xc8] sm:$0xff]
      %v7117 = vld [vmem:[%s117 + $0xd0] sm:$0xff]
      %v7118 = vld [vmem:[%s117 + $0xd8] sm:$0xff]
      %v7119 = vld [vmem:[%s117 + $0xe0] sm:$0xff]
      %v7120 = vld [vmem:[%s117 + $0xe8] sm:$0xff]
      %v7121 = vld [vmem:[%s117 + $0xf0] sm:$0xff]
      %v7122 = vld [vmem:[%s117 + $0xf8] sm:$0xff]
      %v7123 = vld [vmem:[%s117 + $0x100] sm:$0xff]
      %v7124 = vld [vmem:[%s117 + $0x108] sm:$0xff]
      %v7125 = vld [vmem:[%s117 + $0x110] sm:$0xff]
      %v7126 = vld [vmem:[%s117 + $0x118] sm:$0xff]
      %v7127 = vld [vmem:[%s117 + $0x120] sm:$0xf]
      %v7128 = vld [vmem:[%s117 + $0x128] sm:$0xf]
      %v7129 = vld [vmem:[%s117 + $0x130] sm:$0xf]
      %s7130 = scalar_lea.vmem %s117, 312
      %v7131 = vld [vmem:[%s7130] sm:$0xff]
      %v7132 = vld [vmem:[%s7130 + $0x8] sm:$0xff]
      %v7133 = vld [vmem:[%s7130 + $0x10] sm:$0xff]
      %v7134 = vld [vmem:[%s7130 + $0x18] sm:$0xff]
      %v7135 = vld [vmem:[%s7130 + $0x20] sm:$0xff]
      %v7136 = vld [vmem:[%s7130 + $0x28] sm:$0xff]
      %v7137 = vld [vmem:[%s7130 + $0x30] sm:$0xff]
      %v7138 = vld [vmem:[%s7130 + $0x38] sm:$0xff]
      %v7139 = vld [vmem:[%s7130 + $0x40] sm:$0xff]
      %v7140 = vld [vmem:[%s7130 + $0x48] sm:$0xff]
      %v7141 = vld [vmem:[%s7130 + $0x50] sm:$0xff]
      %v7142 = vld [vmem:[%s7130 + $0x58] sm:$0xff]
      %v7143 = vld [vmem:[%s7130 + $0x60] sm:$0xff]
      %v7144 = vld [vmem:[%s7130 + $0x68] sm:$0xff]
      %v7145 = vld [vmem:[%s7130 + $0x70] sm:$0xff]
      %v7146 = vld [vmem:[%s7130 + $0x78] sm:$0xff]
      %v7147 = vld [vmem:[%s7130 + $0x80] sm:$0xff]
      %v7148 = vld [vmem:[%s7130 + $0x88] sm:$0xff]
      %v7149 = vld [vmem:[%s7130 + $0x90] sm:$0xff]
      %v7150 = vld [vmem:[%s7130 + $0x98] sm:$0xff]
      %v7151 = vld [vmem:[%s7130 + $0xa0] sm:$0xff]
      %v7152 = vld [vmem:[%s7130 + $0xa8] sm:$0xff]
      %v7153 = vld [vmem:[%s7130 + $0xb0] sm:$0xff]
      %v7154 = vld [vmem:[%s7130 + $0xb8] sm:$0xff]
      %v7155 = vld [vmem:[%s7130 + $0xc0] sm:$0xff]
      %v7156 = vld [vmem:[%s7130 + $0xc8] sm:$0xff]
      %v7157 = vld [vmem:[%s7130 + $0xd0] sm:$0xff]
      %v7158 = vld [vmem:[%s7130 + $0xd8] sm:$0xff]
      %v7159 = vld [vmem:[%s7130 + $0xe0] sm:$0xff]
      %v7160 = vld [vmem:[%s7130 + $0xe8] sm:$0xff]
      %v7161 = vld [vmem:[%s7130 + $0xf0] sm:$0xff]
      %v7162 = vld [vmem:[%s7130 + $0xf8] sm:$0xff]
      %v7163 = vld [vmem:[%s7130 + $0x100] sm:$0xff]
      %v7164 = vld [vmem:[%s7130 + $0x108] sm:$0xff]
      %v7165 = vld [vmem:[%s7130 + $0x110] sm:$0xff]
      %v7166 = vld [vmem:[%s7130 + $0x118] sm:$0xff]
      %v7167 = vld [vmem:[%s7130 + $0x120] sm:$0xf]
      %v7168 = vld [vmem:[%s7130 + $0x128] sm:$0xf]
      %v7169 = vld [vmem:[%s7130 + $0x130] sm:$0xf]
      %v7171 = vsel %vm2687, %v6926, 0
      %v7174 = vsel %vm1781, %v7167, 0
      %v7177 = vsel %vm1781, %v7168, 0
      %v7180 = vsel %vm1781, %v7169, 0
      %7182 = vmatpush.msra.mxu0 0.0
      %7183 = vmatpush.msra.mxu0 0.0
      %7184 = vmatpush.msra.mxu0 0.0
      %7185 = vmatpush.msra.mxu0 %v7174
      %7186 = vmatpush.msra.mxu0 %v7164
      %7187 = vmatpush.msra.mxu0 %v7161
      %7188 = vmatpush.msra.mxu0 %v7158
      %7189 = vmatpush.msra.mxu0 %v7155
      %7190 = vmatpush.msra.mxu0 %v7152
      %7191 = vmatpush.msra.mxu0 %v7149
      %7192 = vmatpush.msra.mxu0 %v7146
      %7193 = vmatpush.msra.mxu0 %v7143
      %7194 = vmatpush.msra.mxu0 %v7140
      %7195 = vmatpush.msra.mxu0 %v7137
      %7196 = vmatpush.msra.mxu0 %v7134
      %7197 = vmatpush.msra.mxu0 %v7131
      %7198 = vmatmul.f32.gmra.mxu0 %v7171
      %v7199 = vpop.f32.mrf.mxu0
      %v7200 = vadd.f32 0.0, %v7199
      %7201 = vdwg.mxu0
      %7202 = vmatpush.msra.mxu0 0.0
      %7203 = vmatpush.msra.mxu0 0.0
      %7204 = vmatpush.msra.mxu0 0.0
      %7205 = vmatpush.msra.mxu0 %v7177
      %7206 = vmatpush.msra.mxu0 %v7165
      %7207 = vmatpush.msra.mxu0 %v7162
      %7208 = vmatpush.msra.mxu0 %v7159
      %7209 = vmatpush.msra.mxu0 %v7156
      %7210 = vmatpush.msra.mxu0 %v7153
      %7211 = vmatpush.msra.mxu0 %v7150
      %7212 = vmatpush.msra.mxu0 %v7147
      %7213 = vmatpush.msra.mxu0 %v7144
      %7214 = vmatpush.msra.mxu0 %v7141
      %7215 = vmatpush.msra.mxu0 %v7138
      %7216 = vmatpush.msra.mxu0 %v7135
      %7217 = vmatpush.msra.mxu0 %v7132
      %7218 = vmatmul.f32.gmra.mxu0 %v7171
      %v7219 = vpop.f32.mrf.mxu0
      %v7220 = vadd.f32 0.0, %v7219
      %7221 = vdwg.mxu0
      %7222 = vmatpush.msra.mxu0 0.0
      %7223 = vmatpush.msra.mxu0 0.0
      %7224 = vmatpush.msra.mxu0 0.0
      %7225 = vmatpush.msra.mxu0 %v7180
      %7226 = vmatpush.msra.mxu0 %v7166
      %7227 = vmatpush.msra.mxu0 %v7163
      %7228 = vmatpush.msra.mxu0 %v7160
      %7229 = vmatpush.msra.mxu0 %v7157
      %7230 = vmatpush.msra.mxu0 %v7154
      %7231 = vmatpush.msra.mxu0 %v7151
      %7232 = vmatpush.msra.mxu0 %v7148
      %7233 = vmatpush.msra.mxu0 %v7145
      %7234 = vmatpush.msra.mxu0 %v7142
      %7235 = vmatpush.msra.mxu0 %v7139
      %7236 = vmatpush.msra.mxu0 %v7136
      %7237 = vmatpush.msra.mxu0 %v7133
      %7238 = vmatmul.f32.gmra.mxu0 %v7171
      %v7239 = vpop.f32.mrf.mxu0
      %v7240 = vadd.f32 0.0, %v7239
      %7241 = vdwg.mxu0
      %v7243 = vsel %vm2687, %v6870, 0
      %v7246 = vsel %vm1781, %v7127, 0
      %v7249 = vsel %vm1781, %v7128, 0
      %v7252 = vsel %vm1781, %v7129, 0
      %7254 = vmatpush.msra.mxu0 0.0
      %7255 = vmatpush.msra.mxu0 0.0
      %7256 = vmatpush.msra.mxu0 0.0
      %7257 = vmatpush.msra.mxu0 %v7246
      %7258 = vmatpush.msra.mxu0 %v7124
      %7259 = vmatpush.msra.mxu0 %v7121
      %7260 = vmatpush.msra.mxu0 %v7118
      %7261 = vmatpush.msra.mxu0 %v7115
      %7262 = vmatpush.msra.mxu0 %v7112
      %7263 = vmatpush.msra.mxu0 %v7109
      %7264 = vmatpush.msra.mxu0 %v7106
      %7265 = vmatpush.msra.mxu0 %v7103
      %7266 = vmatpush.msra.mxu0 %v7100
      %7267 = vmatpush.msra.mxu0 %v7097
      %7268 = vmatpush.msra.mxu0 %v7094
      %7269 = vmatpush.msra.mxu0 %v7091
      %7270 = vmatmul.f32.gmra.mxu0 %v7243
      %v7271 = vpop.f32.mrf.mxu0
      %v7272 = vadd.f32 %v7200, %v7271
      %7273 = vdwg.mxu0
      %7274 = vmatpush.msra.mxu0 0.0
      %7275 = vmatpush.msra.mxu0 0.0
      %7276 = vmatpush.msra.mxu0 0.0
      %7277 = vmatpush.msra.mxu0 %v7249
      %7278 = vmatpush.msra.mxu0 %v7125
      %7279 = vmatpush.msra.mxu0 %v7122
      %7280 = vmatpush.msra.mxu0 %v7119
      %7281 = vmatpush.msra.mxu0 %v7116
      %7282 = vmatpush.msra.mxu0 %v7113
      %7283 = vmatpush.msra.mxu0 %v7110
      %7284 = vmatpush.msra.mxu0 %v7107
      %7285 = vmatpush.msra.mxu0 %v7104
      %7286 = vmatpush.msra.mxu0 %v7101
      %7287 = vmatpush.msra.mxu0 %v7098
      %7288 = vmatpush.msra.mxu0 %v7095
      %7289 = vmatpush.msra.mxu0 %v7092
      %7290 = vmatmul.f32.gmra.mxu0 %v7243
      %v7291 = vpop.f32.mrf.mxu0
      %v7292 = vadd.f32 %v7220, %v7291
      %7293 = vdwg.mxu0
      %7294 = vmatpush.msra.mxu0 0.0
      %7295 = vmatpush.msra.mxu0 0.0
      %7296 = vmatpush.msra.mxu0 0.0
      %7297 = vmatpush.msra.mxu0 %v7252
      %7298 = vmatpush.msra.mxu0 %v7126
      %7299 = vmatpush.msra.mxu0 %v7123
      %7300 = vmatpush.msra.mxu0 %v7120
      %7301 = vmatpush.msra.mxu0 %v7117
      %7302 = vmatpush.msra.mxu0 %v7114
      %7303 = vmatpush.msra.mxu0 %v7111
      %7304 = vmatpush.msra.mxu0 %v7108
      %7305 = vmatpush.msra.mxu0 %v7105
      %7306 = vmatpush.msra.mxu0 %v7102
      %7307 = vmatpush.msra.mxu0 %v7099
      %7308 = vmatpush.msra.mxu0 %v7096
      %7309 = vmatpush.msra.mxu0 %v7093
      %7310 = vmatmul.f32.gmra.mxu0 %v7243
      %v7311 = vpop.f32.mrf.mxu0
      %v7312 = vadd.f32 %v7240, %v7311
      %7313 = vdwg.mxu0
      %s7314 = scalar_lea.vmem %s117, 624
      %v7315 = vld [vmem:[%s7314] sm:$0xff]
      %v7316 = vld [vmem:[%s7314 + $0x8] sm:$0xff]
      %v7317 = vld [vmem:[%s7314 + $0x10] sm:$0xff]
      %v7318 = vld [vmem:[%s7314 + $0x18] sm:$0xff]
      %v7319 = vld [vmem:[%s7314 + $0x20] sm:$0xff]
      %v7320 = vld [vmem:[%s7314 + $0x28] sm:$0xff]
      %v7321 = vld [vmem:[%s7314 + $0x30] sm:$0xff]
      %v7322 = vld [vmem:[%s7314 + $0x38] sm:$0xff]
      %v7323 = vld [vmem:[%s7314 + $0x40] sm:$0xff]
      %v7324 = vld [vmem:[%s7314 + $0x48] sm:$0xff]
      %v7325 = vld [vmem:[%s7314 + $0x50] sm:$0xff]
      %v7326 = vld [vmem:[%s7314 + $0x58] sm:$0xff]
      %v7327 = vld [vmem:[%s7314 + $0x60] sm:$0xff]
      %v7328 = vld [vmem:[%s7314 + $0x68] sm:$0xff]
      %v7329 = vld [vmem:[%s7314 + $0x70] sm:$0xff]
      %v7330 = vld [vmem:[%s7314 + $0x78] sm:$0xff]
      %v7331 = vld [vmem:[%s7314 + $0x80] sm:$0xff]
      %v7332 = vld [vmem:[%s7314 + $0x88] sm:$0xff]
      %v7333 = vld [vmem:[%s7314 + $0x90] sm:$0xff]
      %v7334 = vld [vmem:[%s7314 + $0x98] sm:$0xff]
      %v7335 = vld [vmem:[%s7314 + $0xa0] sm:$0xff]
      %v7336 = vld [vmem:[%s7314 + $0xa8] sm:$0xff]
      %v7337 = vld [vmem:[%s7314 + $0xb0] sm:$0xff]
      %v7338 = vld [vmem:[%s7314 + $0xb8] sm:$0xff]
      %v7339 = vld [vmem:[%s7314 + $0xc0] sm:$0xff]
      %v7340 = vld [vmem:[%s7314 + $0xc8] sm:$0xff]
      %v7341 = vld [vmem:[%s7314 + $0xd0] sm:$0xff]
      %v7342 = vld [vmem:[%s7314 + $0xd8] sm:$0xff]
      %v7343 = vld [vmem:[%s7314 + $0xe0] sm:$0xff]
      %v7344 = vld [vmem:[%s7314 + $0xe8] sm:$0xff]
      %v7345 = vld [vmem:[%s7314 + $0xf0] sm:$0xff]
      %v7346 = vld [vmem:[%s7314 + $0xf8] sm:$0xff]
      %v7347 = vld [vmem:[%s7314 + $0x100] sm:$0xff]
      %v7348 = vld [vmem:[%s7314 + $0x108] sm:$0xff]
      %v7349 = vld [vmem:[%s7314 + $0x110] sm:$0xff]
      %v7350 = vld [vmem:[%s7314 + $0x118] sm:$0xff]
      %v7351 = vld [vmem:[%s7314 + $0x120] sm:$0xf]
      %v7352 = vld [vmem:[%s7314 + $0x128] sm:$0xf]
      %v7353 = vld [vmem:[%s7314 + $0x130] sm:$0xf]
      %v7355 = vsel %vm2687, %v6982, 0
      %v7358 = vsel %vm1781, %v7351, 0
      %v7361 = vsel %vm1781, %v7352, 0
      %v7364 = vsel %vm1781, %v7353, 0
      %7366 = vmatpush.msra.mxu0 0.0
      %7367 = vmatpush.msra.mxu0 0.0
      %7368 = vmatpush.msra.mxu0 0.0
      %7369 = vmatpush.msra.mxu0 %v7358
      %7370 = vmatpush.msra.mxu0 %v7348
      %7371 = vmatpush.msra.mxu0 %v7345
      %7372 = vmatpush.msra.mxu0 %v7342
      %7373 = vmatpush.msra.mxu0 %v7339
      %7374 = vmatpush.msra.mxu0 %v7336
      %7375 = vmatpush.msra.mxu0 %v7333
      %7376 = vmatpush.msra.mxu0 %v7330
      %7377 = vmatpush.msra.mxu0 %v7327
      %7378 = vmatpush.msra.mxu0 %v7324
      %7379 = vmatpush.msra.mxu0 %v7321
      %7380 = vmatpush.msra.mxu0 %v7318
      %7381 = vmatpush.msra.mxu0 %v7315
      %7382 = vmatmul.f32.gmra.mxu0 %v7355
      %v7383 = vpop.f32.mrf.mxu0
      %v7384 = vadd.f32 0.0, %v7383
      %7385 = vdwg.mxu0
      %7386 = vmatpush.msra.mxu0 0.0
      %7387 = vmatpush.msra.mxu0 0.0
      %7388 = vmatpush.msra.mxu0 0.0
      %7389 = vmatpush.msra.mxu0 %v7361
      %7390 = vmatpush.msra.mxu0 %v7349
      %7391 = vmatpush.msra.mxu0 %v7346
      %7392 = vmatpush.msra.mxu0 %v7343
      %7393 = vmatpush.msra.mxu0 %v7340
      %7394 = vmatpush.msra.mxu0 %v7337
      %7395 = vmatpush.msra.mxu0 %v7334
      %7396 = vmatpush.msra.mxu0 %v7331
      %7397 = vmatpush.msra.mxu0 %v7328
      %7398 = vmatpush.msra.mxu0 %v7325
      %7399 = vmatpush.msra.mxu0 %v7322
      %7400 = vmatpush.msra.mxu0 %v7319
      %7401 = vmatpush.msra.mxu0 %v7316
      %7402 = vmatmul.f32.gmra.mxu0 %v7355
      %v7403 = vpop.f32.mrf.mxu0
      %v7404 = vadd.f32 0.0, %v7403
      %7405 = vdwg.mxu0
      %7406 = vmatpush.msra.mxu0 0.0
      %7407 = vmatpush.msra.mxu0 0.0
      %7408 = vmatpush.msra.mxu0 0.0
      %7409 = vmatpush.msra.mxu0 %v7364
      %7410 = vmatpush.msra.mxu0 %v7350
      %7411 = vmatpush.msra.mxu0 %v7347
      %7412 = vmatpush.msra.mxu0 %v7344
      %7413 = vmatpush.msra.mxu0 %v7341
      %7414 = vmatpush.msra.mxu0 %v7338
      %7415 = vmatpush.msra.mxu0 %v7335
      %7416 = vmatpush.msra.mxu0 %v7332
      %7417 = vmatpush.msra.mxu0 %v7329
      %7418 = vmatpush.msra.mxu0 %v7326
      %7419 = vmatpush.msra.mxu0 %v7323
      %7420 = vmatpush.msra.mxu0 %v7320
      %7421 = vmatpush.msra.mxu0 %v7317
      %7422 = vmatmul.f32.gmra.mxu0 %v7355
      %v7423 = vpop.f32.mrf.mxu0
      %v7424 = vadd.f32 0.0, %v7423
      %7425 = vdwg.mxu0
      %v7426 = vadd.f32 %v7272, %v7384
      %v7427 = vadd.f32 %v7292, %v7404
      %v7428 = vadd.f32 %v7312, %v7424
      %s7429 = scalar_lea.vmem %s117, 936
      %v7430 = vld [vmem:[%s7429] sm:$0xff]
      %v7431 = vld [vmem:[%s7429 + $0x8] sm:$0xff]
      %v7432 = vld [vmem:[%s7429 + $0x10] sm:$0xff]
      %v7433 = vld [vmem:[%s7429 + $0x18] sm:$0xff]
      %v7434 = vld [vmem:[%s7429 + $0x20] sm:$0xff]
      %v7435 = vld [vmem:[%s7429 + $0x28] sm:$0xff]
      %v7436 = vld [vmem:[%s7429 + $0x30] sm:$0xff]
      %v7437 = vld [vmem:[%s7429 + $0x38] sm:$0xff]
      %v7438 = vld [vmem:[%s7429 + $0x40] sm:$0xff]
      %v7439 = vld [vmem:[%s7429 + $0x48] sm:$0xff]
      %v7440 = vld [vmem:[%s7429 + $0x50] sm:$0xff]
      %v7441 = vld [vmem:[%s7429 + $0x58] sm:$0xff]
      %v7442 = vld [vmem:[%s7429 + $0x60] sm:$0xff]
      %v7443 = vld [vmem:[%s7429 + $0x68] sm:$0xff]
      %v7444 = vld [vmem:[%s7429 + $0x70] sm:$0xff]
      %v7445 = vld [vmem:[%s7429 + $0x78] sm:$0xff]
      %v7446 = vld [vmem:[%s7429 + $0x80] sm:$0xff]
      %v7447 = vld [vmem:[%s7429 + $0x88] sm:$0xff]
      %v7448 = vld [vmem:[%s7429 + $0x90] sm:$0xff]
      %v7449 = vld [vmem:[%s7429 + $0x98] sm:$0xff]
      %v7450 = vld [vmem:[%s7429 + $0xa0] sm:$0xff]
      %v7451 = vld [vmem:[%s7429 + $0xa8] sm:$0xff]
      %v7452 = vld [vmem:[%s7429 + $0xb0] sm:$0xff]
      %v7453 = vld [vmem:[%s7429 + $0xb8] sm:$0xff]
      %v7454 = vld [vmem:[%s7429 + $0xc0] sm:$0xff]
      %v7455 = vld [vmem:[%s7429 + $0xc8] sm:$0xff]
      %v7456 = vld [vmem:[%s7429 + $0xd0] sm:$0xff]
      %v7457 = vld [vmem:[%s7429 + $0xd8] sm:$0xff]
      %v7458 = vld [vmem:[%s7429 + $0xe0] sm:$0xff]
      %v7459 = vld [vmem:[%s7429 + $0xe8] sm:$0xff]
      %v7460 = vld [vmem:[%s7429 + $0xf0] sm:$0xff]
      %v7461 = vld [vmem:[%s7429 + $0xf8] sm:$0xff]
      %v7462 = vld [vmem:[%s7429 + $0x100] sm:$0xff]
      %v7463 = vld [vmem:[%s7429 + $0x108] sm:$0xff]
      %v7464 = vld [vmem:[%s7429 + $0x110] sm:$0xff]
      %v7465 = vld [vmem:[%s7429 + $0x118] sm:$0xff]
      %v7466 = vld [vmem:[%s7429 + $0x120] sm:$0xf]
      %v7467 = vld [vmem:[%s7429 + $0x128] sm:$0xf]
      %v7468 = vld [vmem:[%s7429 + $0x130] sm:$0xf]
      %v7470 = vsel %vm2687, %v7090, 0
      %v7473 = vsel %vm1781, %v7466, 0
      %v7476 = vsel %vm1781, %v7467, 0
      %v7479 = vsel %vm1781, %v7468, 0
      %7481 = vmatpush.msra.mxu0 0.0
      %7482 = vmatpush.msra.mxu0 0.0
      %7483 = vmatpush.msra.mxu0 0.0
      %7484 = vmatpush.msra.mxu0 %v7473
      %7485 = vmatpush.msra.mxu0 %v7463
      %7486 = vmatpush.msra.mxu0 %v7460
      %7487 = vmatpush.msra.mxu0 %v7457
      %7488 = vmatpush.msra.mxu0 %v7454
      %7489 = vmatpush.msra.mxu0 %v7451
      %7490 = vmatpush.msra.mxu0 %v7448
      %7491 = vmatpush.msra.mxu0 %v7445
      %7492 = vmatpush.msra.mxu0 %v7442
      %7493 = vmatpush.msra.mxu0 %v7439
      %7494 = vmatpush.msra.mxu0 %v7436
      %7495 = vmatpush.msra.mxu0 %v7433
      %7496 = vmatpush.msra.mxu0 %v7430
      %7497 = vmatmul.f32.gmra.mxu0 %v7470
      %v7498 = vpop.f32.mrf.mxu0
      %v7499 = vadd.f32 0.0, %v7498
      %7500 = vdwg.mxu0
      %7501 = vmatpush.msra.mxu0 0.0
      %7502 = vmatpush.msra.mxu0 0.0
      %7503 = vmatpush.msra.mxu0 0.0
      %7504 = vmatpush.msra.mxu0 %v7476
      %7505 = vmatpush.msra.mxu0 %v7464
      %7506 = vmatpush.msra.mxu0 %v7461
      %7507 = vmatpush.msra.mxu0 %v7458
      %7508 = vmatpush.msra.mxu0 %v7455
      %7509 = vmatpush.msra.mxu0 %v7452
      %7510 = vmatpush.msra.mxu0 %v7449
      %7511 = vmatpush.msra.mxu0 %v7446
      %7512 = vmatpush.msra.mxu0 %v7443
      %7513 = vmatpush.msra.mxu0 %v7440
      %7514 = vmatpush.msra.mxu0 %v7437
      %7515 = vmatpush.msra.mxu0 %v7434
      %7516 = vmatpush.msra.mxu0 %v7431
      %7517 = vmatmul.f32.gmra.mxu0 %v7470
      %v7518 = vpop.f32.mrf.mxu0
      %v7519 = vadd.f32 0.0, %v7518
      %7520 = vdwg.mxu0
      %7521 = vmatpush.msra.mxu0 0.0
      %7522 = vmatpush.msra.mxu0 0.0
      %7523 = vmatpush.msra.mxu0 0.0
      %7524 = vmatpush.msra.mxu0 %v7479
      %7525 = vmatpush.msra.mxu0 %v7465
      %7526 = vmatpush.msra.mxu0 %v7462
      %7527 = vmatpush.msra.mxu0 %v7459
      %7528 = vmatpush.msra.mxu0 %v7456
      %7529 = vmatpush.msra.mxu0 %v7453
      %7530 = vmatpush.msra.mxu0 %v7450
      %7531 = vmatpush.msra.mxu0 %v7447
      %7532 = vmatpush.msra.mxu0 %v7444
      %7533 = vmatpush.msra.mxu0 %v7441
      %7534 = vmatpush.msra.mxu0 %v7438
      %7535 = vmatpush.msra.mxu0 %v7435
      %7536 = vmatpush.msra.mxu0 %v7432
      %7537 = vmatmul.f32.gmra.mxu0 %v7470
      %v7538 = vpop.f32.mrf.mxu0
      %v7539 = vadd.f32 0.0, %v7538
      %7540 = vdwg.mxu0
      %v7541 = vadd.f32 %v7426, %v7499
      %v7542 = vadd.f32 %v7427, %v7519
      %v7543 = vadd.f32 %v7428, %v7539
      %v7544 = vld [vmem:[%s93] sm:$0xff]
      %7546 = vset.pattern.permute.xlu0 0
      %7547 = vperm.xlu0 %7546, %v7544
      %v7548 = vpop.permute.xlu0 %7547
      %v7550 = vadd.f32 %v7541, %v7548
      %v7551 = vadd.f32 %v7542, %v7548
      %v7552 = vadd.f32 %v7543, %v7548
      %v7553 = vmul.f32 %v7550, %v1776
      %v7554 = vmul.f32 %v7551, %v1777
      %v7555 = vmul.f32 %v7552, %v1778
      %v7556 = vld [vmem:[%s95] sm:$0x3]
      %v7557 = vld [vmem:[%s97] sm:$0x3]
      %7559 = vset.pattern.permute.xlu0 0
      %7560 = vperm.xlu0 %7559, %v7557
      %v7561 = vpop.permute.xlu0 %7560
      %v7564 = vsel %vm2581, %v7556, 0
      %7566 = vmatpush.msra.mxu0 0.0
      %7567 = vmatpush.msra.mxu0 0.0
      %7568 = vmatpush.msra.mxu0 0.0
      %7569 = vmatpush.msra.mxu0 0.0
      %7570 = vmatpush.msra.mxu0 0.0
      %7571 = vmatpush.msra.mxu0 0.0
      %7572 = vmatpush.msra.mxu0 0.0
      %7573 = vmatpush.msra.mxu0 0.0
      %7574 = vmatpush.msra.mxu0 0.0
      %7575 = vmatpush.msra.mxu0 0.0
      %7576 = vmatpush.msra.mxu0 0.0
      %7577 = vmatpush.msra.mxu0 0.0
      %7578 = vmatpush.msra.mxu0 0.0
      %7579 = vmatpush.msra.mxu0 0.0
      %7580 = vmatpush.msra.mxu0 %v7553
      %7581 = vmatpush.msra.mxu0 %v2202
      %7582 = vmatmul.f32.gmra.mxu0 %v7564
      %v7583 = vpop.f32.mrf.mxu0
      %v7584 = vadd.f32 %v7561, %v7583
      %7585 = vdwg.mxu0
      %7586 = vmatpush.msra.mxu0 0.0
      %7587 = vmatpush.msra.mxu0 0.0
      %7588 = vmatpush.msra.mxu0 0.0
      %7589 = vmatpush.msra.mxu0 0.0
      %7590 = vmatpush.msra.mxu0 0.0
      %7591 = vmatpush.msra.mxu0 0.0
      %7592 = vmatpush.msra.mxu0 0.0
      %7593 = vmatpush.msra.mxu0 0.0
      %7594 = vmatpush.msra.mxu0 0.0
      %7595 = vmatpush.msra.mxu0 0.0
      %7596 = vmatpush.msra.mxu0 0.0
      %7597 = vmatpush.msra.mxu0 0.0
      %7598 = vmatpush.msra.mxu0 0.0
      %7599 = vmatpush.msra.mxu0 0.0
      %7600 = vmatpush.msra.mxu0 %v7554
      %7601 = vmatpush.msra.mxu0 %v2203
      %7602 = vmatmul.f32.gmra.mxu0 %v7564
      %v7603 = vpop.f32.mrf.mxu0
      %v7604 = vadd.f32 %v7561, %v7603
      %7605 = vdwg.mxu0
      %7606 = vmatpush.msra.mxu0 0.0
      %7607 = vmatpush.msra.mxu0 0.0
      %7608 = vmatpush.msra.mxu0 0.0
      %7609 = vmatpush.msra.mxu0 0.0
      %7610 = vmatpush.msra.mxu0 0.0
      %7611 = vmatpush.msra.mxu0 0.0
      %7612 = vmatpush.msra.mxu0 0.0
      %7613 = vmatpush.msra.mxu0 0.0
      %7614 = vmatpush.msra.mxu0 0.0
      %7615 = vmatpush.msra.mxu0 0.0
      %7616 = vmatpush.msra.mxu0 0.0
      %7617 = vmatpush.msra.mxu0 0.0
      %7618 = vmatpush.msra.mxu0 0.0
      %7619 = vmatpush.msra.mxu0 0.0
      %7620 = vmatpush.msra.mxu0 %v7555
      %7621 = vmatpush.msra.mxu0 %v2204
      %7622 = vmatmul.f32.gmra.mxu0 %v7564
      %v7623 = vpop.f32.mrf.mxu0
      %v7624 = vadd.f32 %v7561, %v7623
      %7625 = vdwg.mxu0
      %v7626 = vsub.f32 0.0, %v7584
      %v7627 = vsub.f32 0.0, %v7604
      %v7628 = vsub.f32 0.0, %v7624
      %v7629 = vmul.f32 %v7626, 1.442695
      %v7630 = vpow.pop %v7629
      %v7631 = vmul.f32 %v7627, 1.442695
      %v7632 = vpow.pop %v7631
      %v7633 = vmul.f32 %v7628, 1.442695
      %v7634 = vpow.pop %v7633
      %v7635 = vadd.f32 %v7630, 1.0
      %v7636 = vadd.f32 %v7632, 1.0
      %v7637 = vadd.f32 %v7634, 1.0
      %v7638 = vrcp.pop %v7635
      %v7639 = vmul.f32 %v7635, %v7638
      %v7640 = vsub.f32 1.0, %v7639
      %v7641 = vmul.f32 %v7638, %v7640
      %v7642 = vadd.f32 %v7638, %v7641
      %vm7643 = vweird.f32 %v7635
      %vm7644 = vweird.f32 %v7638
      %vm7645 = vmor %vm7643, %vm7644
      %v7646 = vsel %vm7645, %v7638, %v7642
      %v7647 = vand.u32 2147483647, %v7635
      %vm7648 = vcmp.eq.f32.partialorder %v7647, 8.507059e+37
      %v7649 = vand.u32 %v7635, 2147483648
      %v7650 = vor.u32 1.1754944e-38, %v7649
      %v7651 = vsel %vm7648, %v7650, %v7646
      %v7652 = vmul.f32 1.0, %v7651
      %v7653 = vrcp.pop %v7636
      %v7654 = vmul.f32 %v7636, %v7653
      %v7655 = vsub.f32 1.0, %v7654
      %v7656 = vmul.f32 %v7653, %v7655
      %v7657 = vadd.f32 %v7653, %v7656
      %vm7658 = vweird.f32 %v7636
      %vm7659 = vweird.f32 %v7653
      %vm7660 = vmor %vm7658, %vm7659
      %v7661 = vsel %vm7660, %v7653, %v7657
      %v7662 = vand.u32 2147483647, %v7636
      %vm7663 = vcmp.eq.f32.partialorder %v7662, 8.507059e+37
      %v7664 = vand.u32 %v7636, 2147483648
      %v7665 = vor.u32 1.1754944e-38, %v7664
      %v7666 = vsel %vm7663, %v7665, %v7661
      %v7667 = vmul.f32 1.0, %v7666
      %v7668 = vrcp.pop %v7637
      %v7669 = vmul.f32 %v7637, %v7668
      %v7670 = vsub.f32 1.0, %v7669
      %v7671 = vmul.f32 %v7668, %v7670
      %v7672 = vadd.f32 %v7668, %v7671
      %vm7673 = vweird.f32 %v7637
      %vm7674 = vweird.f32 %v7668
      %vm7675 = vmor %vm7673, %vm7674
      %v7676 = vsel %vm7675, %v7668, %v7672
      %v7677 = vand.u32 2147483647, %v7637
      %vm7678 = vcmp.eq.f32.partialorder %v7677, 8.507059e+37
      %v7679 = vand.u32 %v7637, 2147483648
      %v7680 = vor.u32 1.1754944e-38, %v7679
      %v7681 = vsel %vm7678, %v7680, %v7676
      %v7682 = vmul.f32 1.0, %v7681
      %v7686 = vrot.slane %v7667, 6
      %v7687 = vrot.slane %v7682, 4
      %vm7688 = vcmask 1041408
      %v7689 = vsel %vm7688, %v7652, %v7686
      %v7690 = vsel %vm1781, %v7689, %v7687
      %vm7692 = vcmask 1043458
      %vm7693 = vmor %vm7692, %vm7688
      %vm7694 = vcmask 553988
      %vm7695 = vmor %vm7694, %vm7693
      %7696 = vst.msk [vmem:[%s1742] sm:$0x3f] %vm7695, %v7690
      %p7697 = scmp.lt.s32.totalorder %s130, 1
      %s7698 = scalar_select %p7697, %s130, 1
      %s7699 = smul.addr %s7698, 3
      %s7700 = smul.addr %s7699, 2
      %s7701 = scalar_lea.vmem %s119, %s7700
      // Predicated region
      $region257: #{unet_forward.1} parent=255 // pred_check
        %p7702 = pneg %p1392
      $region258: #{unet_forward.1} parent=255 // pred_check_branch
        %7704 = sbr.rel (%p7702) target = $region260
      $region259: #{unet_forward.1} parent=255 // pred_region
        _
      $region260: #{unet_forward.1} parent=255 // pred_fallthru
        _
    $region256: #{unet_forward.1} parent=5 // pred_fallthru
      _
    %p7705 = scmp.le.s32.totalorder 2, %s125
    // Predicated region
    $region261: #{unet_forward.1} parent=5 // pred_check
      %p7706 = pneg %p7705
    $region262: #{unet_forward.1} parent=5 // pred_check_branch
      %7708 = sbr.rel (%p7706) target = $region264
    $region263: #{unet_forward.1} parent=5 // pred_region
      %s7709 = ssub.s32 %s125, 2
      // Predicated region
      $region265: #{unet_forward.1} parent=263 // pred_check
        %p7710 = pneg %p1398
      $region266: #{unet_forward.1} parent=263 // pred_check_branch
        %7712 = sbr.rel (%p7710) target = $region268
      $region267: #{unet_forward.1} parent=263 // pred_region
        %p7713 = scmp.lt.s32.totalorder %s131, 1
        %s7714 = scalar_select %p7713, %s131, 1
        %s7715 = smul.addr %s7714, 3
        %s7716 = smul.addr %s7715, 2
        %s7717 = scalar_lea.vmem %s119, %s7716
      $region268: #{unet_forward.1} parent=263 // pred_fallthru
        _
    $region264: #{unet_forward.1} parent=5 // pred_fallthru
      _
  $region6: #{unet_forward.1} parent=0 // loop_footer
    %s129 = sadd.s32 1, %s125
  $region7: #{unet_forward.1} parent=0 // loop_footer_branch
    %124 = sbr.rel target = $region3
  $region8: #{unet_forward.1} parent=0 // loop_exit
    _

</llo_original>
